<compile_context>
chip_gen: v6e
topology: v6e:2x2x1
jax: 0.10.0
libtpu: 0.0.40
codegen_flags: <defaults>
</compile_context>

<pallas_src>
import functools
import math

import numpy as np

import jax
import jax.numpy as jnp
from jax import lax
from jax.experimental import pallas as pl
from jax.experimental.pallas import tpu as pltpu

# ----------------------------- model dimensions (small, consistent with module) ---------------
B = 2            # batch
D_MODEL = 32     # d_model
V1 = 16          # vocab_size1 (icd)
V2 = 24          # vocab_size2 (drug)
SEQ_LEN = 8      # ICU time-series length (module default 48; small here)
N_FEAT = 12      # ICU time-series features (module default 1318; small here)
TB_IN = 73       # table_encoder input features (hard-coded in module)
TB_HID = 64      # table_encoder hidden (hard-coded in module)
DOC_DIM = 768    # clinical-note embedding dim
FFN_HID = 4 * D_MODEL
LN_EPS = 1e-5

VMEM = pl.BlockSpec(memory_space=pltpu.MemorySpace.VMEM)


# ======================================= parameter packing ====================================

def _round8(n):
    return ((n + 7) // 8) * 8


class ParamPack:
    """Packs many small 2-D parameters into one (rows, width) f32 array so each fused kernel
    takes a single parameter ref (one DMA) instead of dozens of sub-512B ones.  Row starts are
    aligned to 8 sublanes; lanes are zero-padded to `width`.  The layout is static Python data,
    shared by init-time packing and in-kernel unpacking (static slices -> zero runtime cost)."""

    def __init__(self, width):
        self.width = width
        self.slots = {}          # name -> (row_start, rows, cols, init_kind)
        self.rows = 0

    def add(self, name, shape, init="randn"):
        r, c = shape
        assert c <= self.width and name not in self.slots, name
        start = _round8(self.rows)
        self.slots[name] = (start, r, c, init)
        self.rows = start + r
        return self

    def init_arrays(self, key, scale=0.05):
        arrs = {}
        for i, (name, (_, r, c, init)) in enumerate(self.slots.items()):
            if init == "zeros":
                arrs[name] = jnp.zeros((r, c), jnp.float32)
            elif init == "ones":
                arrs[name] = jnp.ones((r, c), jnp.float32)
            else:
                arrs[name] = scale * jax.random.normal(
                    jax.random.fold_in(key, i), (r, c), jnp.float32)
        return arrs

    def build(self, arrays):
        buf = np.zeros((_round8(self.rows), self.width), np.float32)
        for name, (s, r, c, _) in self.slots.items():
            a = np.asarray(arrays[name], np.float32)
            assert a.shape == (r, c), (name, a.shape, (r, c))
            buf[s:s + r, :c] = a
        return jnp.asarray(buf)

    def get(self, ref, name):
        s, r, c, _ = self.slots[name]
        return ref[s:s + r, 0:c]


def _make_packs():
    D, Dh = D_MODEL, FFN_HID

    # ---- embeddings kernel pack (width D) ----
    ep = ParamPack(D)
    for pre, v in (("icd_", V1), ("drug_", V2)):
        ep.add(pre + "w1", (v, D))
        ep.add(pre + "b1", (1, D), "zeros")
        ep.add(pre + "g1", (1, D), "ones")
        ep.add(pre + "be1", (1, D), "zeros")
        ep.add(pre + "w2", (D, D))
        ep.add(pre + "b2", (1, D), "zeros")
        ep.add(pre + "g2", (1, D), "ones")
        ep.add(pre + "be2", (1, D), "zeros")
    ep.add("doc_w", (DOC_DIM, D))
    ep.add("doc_b", (1, D), "zeros")
    ep.add("doc_g", (1, D), "ones")
    ep.add("doc_be", (1, D), "zeros")
    ep.add("mask_icd_w", (1, D))
    ep.add("mask_icd_b", (1, D), "zeros")
    ep.add("mask_drug_w", (1, D))
    ep.add("mask_drug_b", (1, D), "zeros")

    # ---- ICU kernel pack (width 4D) ----
    ip = ParamPack(4 * D)
    ip.add("wih1", (N_FEAT, 4 * D)); ip.add("whh1", (D, 4 * D)); ip.add("b1", (1, 4 * D), "zeros")
    ip.add("ln_g", (1, D), "ones"); ip.add("ln_b", (1, D), "zeros")
    ip.add("wih2", (D, 4 * D)); ip.add("whh2", (D, 4 * D)); ip.add("b2", (1, 4 * D), "zeros")
    ip.add("wih3", (D, 4 * D)); ip.add("whh3", (D, 4 * D)); ip.add("b3", (1, 4 * D), "zeros")
    ip.add("tb_w1", (TB_IN, TB_HID)); ip.add("tb_b1", (1, TB_HID), "zeros")
    ip.add("tb_w2", (TB_HID, D)); ip.add("tb_b2", (1, D), "zeros")
    ip.add("wqkv", (D, 3 * D)); ip.add("bqkv", (1, 3 * D), "zeros")
    ip.add("ffn_w1", (D, Dh)); ip.add("ffn_b1", (1, Dh), "zeros")
    ip.add("ffn_w2", (Dh, D)); ip.add("ffn_b2", (1, D), "zeros")
    ip.add("ffn_g", (1, D), "ones"); ip.add("ffn_be", (1, D), "zeros")
    ip.add("emb3_w", (3 * D, D)); ip.add("emb3_b", (1, D), "zeros")
    ip.add("emb3_g", (1, D), "ones"); ip.add("emb3_be", (1, D), "zeros")

    # ---- fusion-groups kernel pack (width 4D) ----
    gp = ParamPack(4 * D)
    gp.add("wqkv", (D, 3 * D)); gp.add("bqkv", (1, 3 * D), "zeros")
    for i in range(1, 6):
        p = "f%d_" % i
        gp.add(p + "w1", (D, Dh)); gp.add(p + "b1", (1, Dh), "zeros")
        gp.add(p + "w2", (Dh, D)); gp.add(p + "b2", (1, D), "zeros")
        gp.add(p + "g", (1, D), "ones"); gp.add(p + "be", (1, D), "zeros")
    gp.add("out1_w", (D, V1)); gp.add("out1_b", (1, V1), "zeros")
    gp.add("out2_w", (D, V2)); gp.add("out2_b", (1, V2), "zeros")
    return ep, ip, gp


EMB_PACK, ICU_PACK, GRP_PACK = _make_packs()


# ===================================== in-kernel helpers (traced) =============================

def _mm(a, b):
    # bf16 MXU operands, f32 accumulation (halves MXU passes on v5e/v6e/v7x).
    return jnp.dot(a.astype(jnp.bfloat16), b.astype(jnp.bfloat16),
                   preferred_element_type=jnp.float32)


def _ln(x, g, b):
    mu = jnp.mean(x, axis=-1, keepdims=True)
    var = jnp.mean((x - mu) ** 2, axis=-1, keepdims=True)
    return (x - mu) * lax.rsqrt(var + LN_EPS) * g + b


def _ffn_block(x, w1, b1, w2, b2, g, be):
    # TODO(synk): FFN definition not in reference; assume Linear(d,4d)-ReLU-Linear(4d,d)
    #             + residual + LayerNorm (position-wise).
    h = jnp.maximum(_mm(x, w1) + b1, 0.0)
    y = x + _mm(h, w2) + b2
    return _ln(y, g, be)


def _attend(qs, ks, vs, scale):
    # Single-head scaled dot-product attention over a short (<=4) list of positions,
    # expressed with 2-D ops only; one approx EUP reciprocal per query position.
    L = len(qs)
    outs = []
    for qi in range(L):
        s = [jnp.sum(qs[qi] * ks[kj], axis=-1, keepdims=True) * scale for kj in range(L)]
        m = s[0]
        for kj in range(1, L):
            m = jnp.maximum(m, s[kj])
        e = [jnp.exp(sk - m) for sk in s]
        denom = e[0]
        for kj in range(1, L):
            denom = denom + e[kj]
        inv = pl.reciprocal(denom, approx=True)
        o = (e[0] * inv) * vs[0]
        for kj in range(1, L):
            o = o + (e[kj] * inv) * vs[kj]
        outs.append(o)
    return outs


# ======================================= Pallas kernels =======================================

def _emb_kernel(x1_ref, mx1_ref, n1_ref, x2_ref, mx2_ref, n2_ref, doc_ref, w_ref, o_ref, *, pack):
    # Fused icd / drug / doc embeddings (clean + masked variants share weights) in one launch.
    # Output rows: [x1e | masked_x1 | x2e | masked_x2 | doc], each a (B, D) slab.
    bsz = x1_ref.shape[0]
    gp = lambda n: pack.get(w_ref, n)

    def two_layer(x, w1, b1, g1, be1, w2, b2, g2, be2):
        h = _mm(x, w1) + b1
        h = jnp.maximum(_ln(h, g1, be1), 0.0)
        h = _mm(h, w2) + b2
        return jnp.maximum(_ln(h, g2, be2), 0.0)

    names = ("w1", "b1", "g1", "be1", "w2", "b2", "g2", "be2")
    icd_p = tuple(gp("icd_" + n) for n in names)
    drug_p = tuple(gp("drug_" + n) for n in names)

    o_ref[0 * bsz:1 * bsz, :] = two_layer(x1_ref[...], *icd_p)
    o_ref[1 * bsz:2 * bsz, :] = (two_layer(mx1_ref[...], *icd_p)
                                 + n1_ref[...] * gp("mask_icd_w") + gp("mask_icd_b"))
    o_ref[2 * bsz:3 * bsz, :] = two_layer(x2_ref[...], *drug_p)
    o_ref[3 * bsz:4 * bsz, :] = (two_layer(mx2_ref[...], *drug_p)
                                 + n2_ref[...] * gp("mask_drug_w") + gp("mask_drug_b"))
    h = _mm(doc_ref[...], gp("doc_w")) + gp("doc_b")
    o_ref[4 * bsz:5 * bsz, :] = jnp.maximum(_ln(h, gp("doc_g"), gp("doc_be")), 0.0)


def _icu_kernel(ts_ref, tb_ref, w_ref, o_ref, *, pack):
    # Fused ICU encoder for all 3 branches (shared weights, batched as G = 3*B rows):
    # 3-layer LSTM (batched input projections, statically unrolled recurrence) -> LayerNorm ->
    # table encoder -> bimodal self-attn (fused QKV) -> FFN -> maxpool -> branch concat ->
    # embbedding3 (Linear + LN + ReLU).  Output: (B, D).
    gp = lambda n: pack.get(w_ref, n)
    G = tb_ref.shape[0]
    bsz = G // 3
    T = ts_ref.shape[0] // G
    H = D_MODEL

    def recur(gx, whh, need_seq):
        # gx: (T*G, 4H) precomputed input projections; serial part is only h @ Whh + gate math.
        whh_b = whh.astype(jnp.bfloat16)
        h = jnp.zeros((G, H), jnp.float32)
        c = jnp.zeros((G, H), jnp.float32)
        ys = []
        for t in range(T):                      # static unroll: full LLO visibility (T = 8)
            gates = gx[t * G:(t + 1) * G, :] + jnp.dot(
                h.astype(jnp.bfloat16), whh_b, preferred_element_type=jnp.float32)
            i_g = jax.nn.sigmoid(gates[:, 0:H])          # PyTorch gate order i, f, g, o
            f_g = jax.nn.sigmoid(gates[:, H:2 * H])
            g_g = jnp.tanh(gates[:, 2 * H:3 * H])
            o_g = jax.nn.sigmoid(gates[:, 3 * H:4 * H])
            c = f_g * c + i_g * g_g
            h = o_g * jnp.tanh(c)
            if need_seq:
                ys.append(h)
        return (jnp.concatenate(ys, axis=0) if need_seq else None), c

    # ---- rnn1 (1 layer): one batched input projection, then the unrolled recurrence ----
    gx = _mm(ts_ref[...], gp("wih1")) + gp("b1")          # (T*G, 4H)
    y1, _ = recur(gx, gp("whh1"), True)                   # (T*G, H)
    # ---- dropout (eval: identity) + LayerNorm + rnn2 layer 0 ----
    y1n = _ln(y1, gp("ln_g"), gp("ln_b"))
    gx = _mm(y1n, gp("wih2")) + gp("b2")
    y2, _ = recur(gx, gp("whh2"), True)
    # ---- rnn2 layer 1: only the final cell state is used downstream ----
    gx = _mm(y2, gp("wih3")) + gp("b3")
    _, cell = recur(gx, gp("whh3"), False)                # (G, H)

    # ---- table encoder ----
    ht = jnp.maximum(_mm(tb_ref[...], gp("tb_w1")) + gp("tb_b1"), 0.0)
    tb = _mm(ht, gp("tb_w2")) + gp("tb_b2")               # (G, D)

    # ---- bimodal self-attention over [cell, tb] with a fused QKV projection ----
    D = H
    wqkv, bqkv = gp("wqkv"), gp("bqkv")
    qkv0 = _mm(cell, wqkv) + bqkv                         # (G, 3D)
    qkv1 = _mm(tb, wqkv) + bqkv
    o0, o1 = _attend([qkv0[:, 0:D], qkv1[:, 0:D]],
                     [qkv0[:, D:2 * D], qkv1[:, D:2 * D]],
                     [qkv0[:, 2 * D:3 * D], qkv1[:, 2 * D:3 * D]],
                     1.0 / math.sqrt(D))

    # ---- shared-weight FFN + maxpool over the two positions ----
    fp = tuple(gp("ffn_" + n) for n in ("w1", "b1", "w2", "b2", "g", "be"))
    icu = jnp.maximum(_ffn_block(o0, *fp), _ffn_block(o1, *fp))        # (G, D)

    # ---- branch concat (rows are [branch0 | branch1 | branch2] blocks of B) + embbedding3 ----
    icu_cat = jnp.concatenate([icu[0:bsz], icu[bsz:2 * bsz], icu[2 * bsz:3 * bsz]], axis=1)
    rep = _mm(icu_cat, gp("emb3_w")) + gp("emb3_b")
    o_ref[...] = jnp.maximum(_ln(rep, gp("emb3_g"), gp("emb3_be")), 0.0)


# position indices inside the packed embedding input (rows [i*B:(i+1)*B]) plus the ICU rep.
_X1E, _MX1, _X2E, _MX2, _DOC, _ICU = range(6)


def _groups_kernel(emb_ref, icu_ref, w_ref, doc_ref, x1_ref, x2_ref, m1_ref, m2_ref, *, pack):
    # Fused top-level fusion groups.  Attention weights are shared across all five sequences, so
    # the Q/K/V projection for all six distinct position embeddings is just two matmuls; the
    # per-sequence attention (L = 3 or 4), maxpool, per-sequence FFN and the two sigmoid output
    # heads all run in the same body (position selection by static slicing, no host-side stacks).
    gp = lambda n: pack.get(w_ref, n)
    bsz = icu_ref.shape[0]
    D = D_MODEL
    scale = 1.0 / math.sqrt(D)

    wqkv, bqkv = gp("wqkv"), gp("bqkv")
    qkv_e = _mm(emb_ref[...], wqkv) + bqkv                # (5B, 3D)
    qkv_i = _mm(icu_ref[...], wqkv) + bqkv                # (B, 3D)

    def qkv(idx):
        src = qkv_i if idx == _ICU else qkv_e[idx * bsz:(idx + 1) * bsz, :]
        return src[:, 0:D], src[:, D:2 * D], src[:, 2 * D:3 * D]

    def group(pos_ids, pre):
        qs, ks, vs = zip(*[qkv(p) for p in pos_ids])
        outs = _attend(list(qs), list(ks), list(vs), scale)
        pooled = outs[0]
        for o in outs[1:]:
            pooled = jnp.maximum(pooled, o)               # MaxPoolLayer: max over positions
        fp = tuple(gp(pre + n) for n in ("w1", "b1", "w2", "b2", "g", "be"))
        return _ffn_block(pooled, *fp)

    doc_ref[...] = group([_X1E, _X2E, _ICU], "f1_")                    # doc_rep
    x1_ref[...] = group([_DOC, _X2E, _ICU], "f2_")                     # x1_rep
    x2_ref[...] = group([_DOC, _X1E, _ICU], "f3_")                     # x2_rep
    y4 = group([_DOC, _MX1, _X2E, _ICU], "f4_")                        # masked icd sequence
    y5 = group([_DOC, _X1E, _MX2, _ICU], "f5_")                        # masked drug sequence
    m1_ref[...] = jax.nn.sigmoid(_mm(y4, gp("out1_w")) + gp("out1_b"))
    m2_ref[...] = jax.nn.sigmoid(_mm(y5, gp("out2_w")) + gp("out2_b"))


# ======================================= pallas_call wrappers =================================

def _emb_forward(x1, mx1, n1, x2, mx2, n2, doc, emb_w):
    bsz = x1.shape[0]
    return pl.pallas_call(
        functools.partial(_emb_kernel, pack=EMB_PACK),
        out_shape=jax.ShapeDtypeStruct((5 * bsz, D_MODEL), jnp.float32),
        in_specs=[VMEM] * 8,
        out_specs=VMEM,
    )(x1, mx1, n1, x2, mx2, n2, doc, emb_w)


def _icu_forward(ts_flat, tb_flat, icu_w):
    bsz = tb_flat.shape[0] // 3
    return pl.pallas_call(
        functools.partial(_icu_kernel, pack=ICU_PACK),
        out_shape=jax.ShapeDtypeStruct((bsz, D_MODEL), jnp.float32),
        in_specs=[VMEM] * 3,
        out_specs=VMEM,
    )(ts_flat, tb_flat, icu_w)


def _groups_forward(emb, icu_rep, grp_w):
    bsz = icu_rep.shape[0]
    f32 = jnp.float32
    return pl.pallas_call(
        functools.partial(_groups_kernel, pack=GRP_PACK),
        out_shape=(jax.ShapeDtypeStruct((bsz, D_MODEL), f32),
                   jax.ShapeDtypeStruct((bsz, D_MODEL), f32),
                   jax.ShapeDtypeStruct((bsz, D_MODEL), f32),
                   jax.ShapeDtypeStruct((bsz, V1), f32),
                   jax.ShapeDtypeStruct((bsz, V2), f32)),
        in_specs=[VMEM] * 3,
        out_specs=(VMEM,) * 5,
    )(emb, icu_rep, grp_w)


# ======================================= model composition ====================================

def t5_cls_forward(params, x1, x2, nums_icd, nums_drug, X, S, doc_emb, masked_icd, masked_drug):
    bsz = x1.shape[0]
    t, f = X.shape[2], X.shape[3]

    # --- launch 1: all static embeddings (icd / drug / doc, clean + masked) ---
    emb = _emb_forward(x1, masked_icd, nums_icd, x2, masked_drug, nums_drug, doc_emb,
                       params["emb_w"])                               # (5B, D)

    # --- launch 2: ICU encoder over the 3 branches (shared weights) + embbedding3 ---
    # Only remaining host glue: time-major reorder of the tiny ICU inputs.
    ts_flat = jnp.transpose(X, (2, 1, 0, 3)).reshape(t * 3 * bsz, f)   # row = t*3B + k*B + b
    tb_flat = jnp.transpose(S, (1, 0, 2)).reshape(3 * bsz, S.shape[2])  # row = k*B + b
    icu_rep = _icu_forward(ts_flat, tb_flat, params["icu_w"])          # (B, D)

    # --- launch 3: the five fusion sequences + masked-code-modeling heads ---
    doc_rep, x1_rep, x2_rep, mcm_x1_rep, mcm_x2_rep = _groups_forward(
        emb, icu_rep, params["grp_w"])

    doc = emb[4 * bsz:5 * bsz]
    x1e = emb[0:bsz]
    x2e = emb[2 * bsz:3 * bsz]
    return doc, doc_rep, x1e, x1_rep, x2e, x2_rep, mcm_x1_rep, mcm_x2_rep


# ======================================= parameter init =======================================

def init_params(key):
    return {
        "emb_w": EMB_PACK.build(EMB_PACK.init_arrays(jax.random.fold_in(key, 1))),
        "icu_w": ICU_PACK.build(ICU_PACK.init_arrays(jax.random.fold_in(key, 2))),
        "grp_w": GRP_PACK.build(GRP_PACK.init_arrays(jax.random.fold_in(key, 3))),
    }


# ======================================= main ================================================

if __name__ == "__main__":
    key = jax.random.PRNGKey(0)
    params = init_params(jax.random.fold_in(key, 1000))

    ks = [jax.random.fold_in(key, i) for i in range(9)]
    x1 = jax.random.normal(ks[0], (B, V1), jnp.float32)
    x2 = jax.random.normal(ks[1], (B, V2), jnp.float32)
    nums_icd = jax.random.normal(ks[2], (B, 1), jnp.float32)
    nums_drug = jax.random.normal(ks[3], (B, 1), jnp.float32)
    X = jax.random.normal(ks[4], (B, 3, SEQ_LEN, N_FEAT), jnp.float32)
    S = jax.random.normal(ks[5], (B, 3, TB_IN), jnp.float32)
    doc_emb = jax.random.normal(ks[6], (B, DOC_DIM), jnp.float32)
    masked_icd = jax.random.normal(ks[7], (B, V1), jnp.float32)
    masked_drug = jax.random.normal(ks[8], (B, V2), jnp.float32)

    fwd = jax.jit(t5_cls_forward)
    outs = fwd(params, x1, x2, nums_icd, nums_drug, X, S, doc_emb, masked_icd, masked_drug)
    outs = jax.block_until_ready(outs)

    expected_shapes = [(B, D_MODEL)] * 6 + [(B, V1), (B, V2)]
    assert len(outs) == 8
    for o, s in zip(outs, expected_shapes):
        assert o.shape == s, (o.shape, s)
        assert bool(jnp.all(jnp.isfinite(o)))

    print("KERNEL_OK")
</pallas_src>

<mosaic_0001>
module attributes {stable_mosaic.version = 11 : i64} {
  func.func @_emb_kernel(%arg0: memref<2x16xf32, #tpu.memory_space<vmem>>, %arg1: memref<2x16xf32, #tpu.memory_space<vmem>>, %arg2: memref<2x1xf32, #tpu.memory_space<vmem>>, %arg3: memref<2x24xf32, #tpu.memory_space<vmem>>, %arg4: memref<2x24xf32, #tpu.memory_space<vmem>>, %arg5: memref<2x1xf32, #tpu.memory_space<vmem>>, %arg6: memref<2x768xf32, #tpu.memory_space<vmem>>, %arg7: memref<1024x32xf32, #tpu.memory_space<vmem>>, %arg8: memref<10x32xf32, #tpu.memory_space<vmem>>) attributes {dimension_semantics = [], scalar_prefetch = 0 : i64, scratch_operands = 0 : i64, tpu.core_type = #tpu.core_type<tc>} {
    %c0 = arith.constant 0 : index
    %c0_0 = arith.constant 0 : index
    %0 = vector.load %arg7[%c0, %c0_0] : memref<1024x32xf32, #tpu.memory_space<vmem>>, vector<16x32xf32>
    %c16 = arith.constant 16 : index
    %c0_1 = arith.constant 0 : index
    %1 = vector.load %arg7[%c16, %c0_1] : memref<1024x32xf32, #tpu.memory_space<vmem>>, vector<1x32xf32>
    %c24 = arith.constant 24 : index
    %c0_2 = arith.constant 0 : index
    %2 = vector.load %arg7[%c24, %c0_2] : memref<1024x32xf32, #tpu.memory_space<vmem>>, vector<1x32xf32>
    %c32 = arith.constant 32 : index
    %c0_3 = arith.constant 0 : index
    %3 = vector.load %arg7[%c32, %c0_3] : memref<1024x32xf32, #tpu.memory_space<vmem>>, vector<1x32xf32>
    %c40 = arith.constant 40 : index
    %c0_4 = arith.constant 0 : index
    %4 = vector.load %arg7[%c40, %c0_4] : memref<1024x32xf32, #tpu.memory_space<vmem>>, vector<32x32xf32>
    %c72 = arith.constant 72 : index
    %c0_5 = arith.constant 0 : index
    %5 = vector.load %arg7[%c72, %c0_5] : memref<1024x32xf32, #tpu.memory_space<vmem>>, vector<1x32xf32>
    %c80 = arith.constant 80 : index
    %c0_6 = arith.constant 0 : index
    %6 = vector.load %arg7[%c80, %c0_6] : memref<1024x32xf32, #tpu.memory_space<vmem>>, vector<1x32xf32>
    %c88 = arith.constant 88 : index
    %c0_7 = arith.constant 0 : index
    %7 = vector.load %arg7[%c88, %c0_7] : memref<1024x32xf32, #tpu.memory_space<vmem>>, vector<1x32xf32>
    %c96 = arith.constant 96 : index
    %c0_8 = arith.constant 0 : index
    %8 = vector.load %arg7[%c96, %c0_8] : memref<1024x32xf32, #tpu.memory_space<vmem>>, vector<24x32xf32>
    %c120 = arith.constant 120 : index
    %c0_9 = arith.constant 0 : index
    %9 = vector.load %arg7[%c120, %c0_9] : memref<1024x32xf32, #tpu.memory_space<vmem>>, vector<1x32xf32>
    %c128 = arith.constant 128 : index
    %c0_10 = arith.constant 0 : index
    %10 = vector.load %arg7[%c128, %c0_10] : memref<1024x32xf32, #tpu.memory_space<vmem>>, vector<1x32xf32>
    %c136 = arith.constant 136 : index
    %c0_11 = arith.constant 0 : index
    %11 = vector.load %arg7[%c136, %c0_11] : memref<1024x32xf32, #tpu.memory_space<vmem>>, vector<1x32xf32>
    %c144 = arith.constant 144 : index
    %c0_12 = arith.constant 0 : index
    %12 = vector.load %arg7[%c144, %c0_12] : memref<1024x32xf32, #tpu.memory_space<vmem>>, vector<32x32xf32>
    %c176 = arith.constant 176 : index
    %c0_13 = arith.constant 0 : index
    %13 = vector.load %arg7[%c176, %c0_13] : memref<1024x32xf32, #tpu.memory_space<vmem>>, vector<1x32xf32>
    %c184 = arith.constant 184 : index
    %c0_14 = arith.constant 0 : index
    %14 = vector.load %arg7[%c184, %c0_14] : memref<1024x32xf32, #tpu.memory_space<vmem>>, vector<1x32xf32>
    %c192 = arith.constant 192 : index
    %c0_15 = arith.constant 0 : index
    %15 = vector.load %arg7[%c192, %c0_15] : memref<1024x32xf32, #tpu.memory_space<vmem>>, vector<1x32xf32>
    %c0_16 = arith.constant 0 : index
    %c0_17 = arith.constant 0 : index
    %16 = vector.load %arg0[%c0_16, %c0_17] : memref<2x16xf32, #tpu.memory_space<vmem>>, vector<2x16xf32>
    %17 = arith.truncf %16 : vector<2x16xf32> to vector<2x16xbf16>
    %18 = arith.truncf %0 : vector<16x32xf32> to vector<16x32xbf16>
    %cst = arith.constant dense<0.000000e+00> : vector<2x32xf32>
    %19 = tpu.matmul %17, %18, %cst {dimension_numbers = #tpu.dot_dimension_numbers<[1], [0], [0], [1], [0, 0, 1, 1], [], []>} : vector<2x16xbf16>, vector<16x32xbf16>, vector<2x32xf32> -> vector<2x32xf32>
    %20 = vector.broadcast %1 : vector<1x32xf32> to vector<2x32xf32>
    %21 = arith.addf %19, %20 : vector<2x32xf32>
    %cst_18 = arith.constant dense<0.000000e+00> : vector<2xf32>
    %22 = vector.multi_reduction <add>, %21, %cst_18 [1] : vector<2x32xf32> to vector<2xf32>
    %23 = vector.shape_cast %22 : vector<2xf32> to vector<2x1xf32>
    %cst_19 = arith.constant 3.200000e+01 : f32
    %24 = vector.broadcast %cst_19 : f32 to vector<2x1xf32>
    %25 = arith.divf %23, %24 : vector<2x1xf32>
    %26 = vector.broadcast %25 : vector<2x1xf32> to vector<2x32xf32>
    %27 = arith.subf %21, %26 : vector<2x32xf32>
    %28 = arith.mulf %27, %27 : vector<2x32xf32>
    %cst_20 = arith.constant dense<0.000000e+00> : vector<2xf32>
    %29 = vector.multi_reduction <add>, %28, %cst_20 [1] : vector<2x32xf32> to vector<2xf32>
    %30 = vector.shape_cast %29 : vector<2xf32> to vector<2x1xf32>
    %cst_21 = arith.constant 3.200000e+01 : f32
    %31 = vector.broadcast %cst_21 : f32 to vector<2x1xf32>
    %32 = arith.divf %30, %31 : vector<2x1xf32>
    %33 = vector.broadcast %25 : vector<2x1xf32> to vector<2x32xf32>
    %34 = arith.subf %21, %33 : vector<2x32xf32>
    %cst_22 = arith.constant 9.99999974E-6 : f32
    %35 = vector.broadcast %cst_22 : f32 to vector<2x1xf32>
    %36 = arith.addf %32, %35 : vector<2x1xf32>
    %37 = math.rsqrt %36 : vector<2x1xf32>
    %38 = vector.broadcast %37 : vector<2x1xf32> to vector<2x32xf32>
    %39 = arith.mulf %34, %38 : vector<2x32xf32>
    %40 = vector.broadcast %2 : vector<1x32xf32> to vector<2x32xf32>
    %41 = arith.mulf %39, %40 : vector<2x32xf32>
    %42 = vector.broadcast %3 : vector<1x32xf32> to vector<2x32xf32>
    %43 = arith.addf %41, %42 : vector<2x32xf32>
    %cst_23 = arith.constant 0.000000e+00 : f32
    %44 = vector.broadcast %cst_23 : f32 to vector<2x32xf32>
    %45 = arith.maximumf %43, %44 : vector<2x32xf32>
    %46 = arith.truncf %45 : vector<2x32xf32> to vector<2x32xbf16>
    %47 = arith.truncf %4 : vector<32x32xf32> to vector<32x32xbf16>
    %cst_24 = arith.constant dense<0.000000e+00> : vector<2x32xf32>
    %48 = tpu.matmul %46, %47, %cst_24 {dimension_numbers = #tpu.dot_dimension_numbers<[1], [0], [0], [1], [0, 0, 1, 1], [], []>} : vector<2x32xbf16>, vector<32x32xbf16>, vector<2x32xf32> -> vector<2x32xf32>
    %49 = vector.broadcast %5 : vector<1x32xf32> to vector<2x32xf32>
    %50 = arith.addf %48, %49 : vector<2x32xf32>
    %cst_25 = arith.constant dense<0.000000e+00> : vector<2xf32>
    %51 = vector.multi_reduction <add>, %50, %cst_25 [1] : vector<2x32xf32> to vector<2xf32>
    %52 = vector.shape_cast %51 : vector<2xf32> to vector<2x1xf32>
    %cst_26 = arith.constant 3.200000e+01 : f32
    %53 = vector.broadcast %cst_26 : f32 to vector<2x1xf32>
    %54 = arith.divf %52, %53 : vector<2x1xf32>
    %55 = vector.broadcast %54 : vector<2x1xf32> to vector<2x32xf32>
    %56 = arith.subf %50, %55 : vector<2x32xf32>
    %57 = arith.mulf %56, %56 : vector<2x32xf32>
    %cst_27 = arith.constant dense<0.000000e+00> : vector<2xf32>
    %58 = vector.multi_reduction <add>, %57, %cst_27 [1] : vector<2x32xf32> to vector<2xf32>
    %59 = vector.shape_cast %58 : vector<2xf32> to vector<2x1xf32>
    %cst_28 = arith.constant 3.200000e+01 : f32
    %60 = vector.broadcast %cst_28 : f32 to vector<2x1xf32>
    %61 = arith.divf %59, %60 : vector<2x1xf32>
    %62 = vector.broadcast %54 : vector<2x1xf32> to vector<2x32xf32>
    %63 = arith.subf %50, %62 : vector<2x32xf32>
    %cst_29 = arith.constant 9.99999974E-6 : f32
    %64 = vector.broadcast %cst_29 : f32 to vector<2x1xf32>
    %65 = arith.addf %61, %64 : vector<2x1xf32>
    %66 = math.rsqrt %65 : vector<2x1xf32>
    %67 = vector.broadcast %66 : vector<2x1xf32> to vector<2x32xf32>
    %68 = arith.mulf %63, %67 : vector<2x32xf32>
    %69 = vector.broadcast %6 : vector<1x32xf32> to vector<2x32xf32>
    %70 = arith.mulf %68, %69 : vector<2x32xf32>
    %71 = vector.broadcast %7 : vector<1x32xf32> to vector<2x32xf32>
    %72 = arith.addf %70, %71 : vector<2x32xf32>
    %cst_30 = arith.constant 0.000000e+00 : f32
    %73 = vector.broadcast %cst_30 : f32 to vector<2x32xf32>
    %74 = arith.maximumf %72, %73 : vector<2x32xf32>
    %c0_31 = arith.constant 0 : index
    %c0_32 = arith.constant 0 : index
    %75 = vector.load %arg8[%c0_31, %c0_32] : memref<10x32xf32, #tpu.memory_space<vmem>>, vector<2x32xf32>
    tpu.vector_store %arg8[%c0_31, %c0_32], %74 {strides = array<i32>} : memref<10x32xf32, #tpu.memory_space<vmem>>, vector<2x32xf32>,
    %c0_33 = arith.constant 0 : index
    %c0_34 = arith.constant 0 : index
    %76 = vector.load %arg1[%c0_33, %c0_34] : memref<2x16xf32, #tpu.memory_space<vmem>>, vector<2x16xf32>
    %77 = arith.truncf %76 : vector<2x16xf32> to vector<2x16xbf16>
    %78 = arith.truncf %0 : vector<16x32xf32> to vector<16x32xbf16>
    %cst_35 = arith.constant dense<0.000000e+00> : vector<2x32xf32>
    %79 = tpu.matmul %77, %78, %cst_35 {dimension_numbers = #tpu.dot_dimension_numbers<[1], [0], [0], [1], [0, 0, 1, 1], [], []>} : vector<2x16xbf16>, vector<16x32xbf16>, vector<2x32xf32> -> vector<2x32xf32>
    %80 = vector.broadcast %1 : vector<1x32xf32> to vector<2x32xf32>
    %81 = arith.addf %79, %80 : vector<2x32xf32>
    %cst_36 = arith.constant dense<0.000000e+00> : vector<2xf32>
    %82 = vector.multi_reduction <add>, %81, %cst_36 [1] : vector<2x32xf32> to vector<2xf32>
    %83 = vector.shape_cast %82 : vector<2xf32> to vector<2x1xf32>
    %cst_37 = arith.constant 3.200000e+01 : f32
    %84 = vector.broadcast %cst_37 : f32 to vector<2x1xf32>
    %85 = arith.divf %83, %84 : vector<2x1xf32>
    %86 = vector.broadcast %85 : vector<2x1xf32> to vector<2x32xf32>
    %87 = arith.subf %81, %86 : vector<2x32xf32>
    %88 = arith.mulf %87, %87 : vector<2x32xf32>
    %cst_38 = arith.constant dense<0.000000e+00> : vector<2xf32>
    %89 = vector.multi_reduction <add>, %88, %cst_38 [1] : vector<2x32xf32> to vector<2xf32>
    %90 = vector.shape_cast %89 : vector<2xf32> to vector<2x1xf32>
    %cst_39 = arith.constant 3.200000e+01 : f32
    %91 = vector.broadcast %cst_39 : f32 to vector<2x1xf32>
    %92 = arith.divf %90, %91 : vector<2x1xf32>
    %93 = vector.broadcast %85 : vector<2x1xf32> to vector<2x32xf32>
    %94 = arith.subf %81, %93 : vector<2x32xf32>
    %cst_40 = arith.constant 9.99999974E-6 : f32
    %95 = vector.broadcast %cst_40 : f32 to vector<2x1xf32>
    %96 = arith.addf %92, %95 : vector<2x1xf32>
    %97 = math.rsqrt %96 : vector<2x1xf32>
    %98 = vector.broadcast %97 : vector<2x1xf32> to vector<2x32xf32>
    %99 = arith.mulf %94, %98 : vector<2x32xf32>
    %100 = vector.broadcast %2 : vector<1x32xf32> to vector<2x32xf32>
    %101 = arith.mulf %99, %100 : vector<2x32xf32>
    %102 = vector.broadcast %3 : vector<1x32xf32> to vector<2x32xf32>
    %103 = arith.addf %101, %102 : vector<2x32xf32>
    %cst_41 = arith.constant 0.000000e+00 : f32
    %104 = vector.broadcast %cst_41 : f32 to vector<2x32xf32>
    %105 = arith.maximumf %103, %104 : vector<2x32xf32>
    %106 = arith.truncf %105 : vector<2x32xf32> to vector<2x32xbf16>
    %107 = arith.truncf %4 : vector<32x32xf32> to vector<32x32xbf16>
    %cst_42 = arith.constant dense<0.000000e+00> : vector<2x32xf32>
    %108 = tpu.matmul %106, %107, %cst_42 {dimension_numbers = #tpu.dot_dimension_numbers<[1], [0], [0], [1], [0, 0, 1, 1], [], []>} : vector<2x32xbf16>, vector<32x32xbf16>, vector<2x32xf32> -> vector<2x32xf32>
    %109 = vector.broadcast %5 : vector<1x32xf32> to vector<2x32xf32>
    %110 = arith.addf %108, %109 : vector<2x32xf32>
    %cst_43 = arith.constant dense<0.000000e+00> : vector<2xf32>
    %111 = vector.multi_reduction <add>, %110, %cst_43 [1] : vector<2x32xf32> to vector<2xf32>
    %112 = vector.shape_cast %111 : vector<2xf32> to vector<2x1xf32>
    %cst_44 = arith.constant 3.200000e+01 : f32
    %113 = vector.broadcast %cst_44 : f32 to vector<2x1xf32>
    %114 = arith.divf %112, %113 : vector<2x1xf32>
    %115 = vector.broadcast %114 : vector<2x1xf32> to vector<2x32xf32>
    %116 = arith.subf %110, %115 : vector<2x32xf32>
    %117 = arith.mulf %116, %116 : vector<2x32xf32>
    %cst_45 = arith.constant dense<0.000000e+00> : vector<2xf32>
    %118 = vector.multi_reduction <add>, %117, %cst_45 [1] : vector<2x32xf32> to vector<2xf32>
    %119 = vector.shape_cast %118 : vector<2xf32> to vector<2x1xf32>
    %cst_46 = arith.constant 3.200000e+01 : f32
    %120 = vector.broadcast %cst_46 : f32 to vector<2x1xf32>
    %121 = arith.divf %119, %120 : vector<2x1xf32>
    %122 = vector.broadcast %114 : vector<2x1xf32> to vector<2x32xf32>
    %123 = arith.subf %110, %122 : vector<2x32xf32>
    %cst_47 = arith.constant 9.99999974E-6 : f32
    %124 = vector.broadcast %cst_47 : f32 to vector<2x1xf32>
    %125 = arith.addf %121, %124 : vector<2x1xf32>
    %126 = math.rsqrt %125 : vector<2x1xf32>
    %127 = vector.broadcast %126 : vector<2x1xf32> to vector<2x32xf32>
    %128 = arith.mulf %123, %127 : vector<2x32xf32>
    %129 = vector.broadcast %6 : vector<1x32xf32> to vector<2x32xf32>
    %130 = arith.mulf %128, %129 : vector<2x32xf32>
    %131 = vector.broadcast %7 : vector<1x32xf32> to vector<2x32xf32>
    %132 = arith.addf %130, %131 : vector<2x32xf32>
    %cst_48 = arith.constant 0.000000e+00 : f32
    %133 = vector.broadcast %cst_48 : f32 to vector<2x32xf32>
    %134 = arith.maximumf %132, %133 : vector<2x32xf32>
    %c0_49 = arith.constant 0 : index
    %c0_50 = arith.constant 0 : index
    %135 = vector.load %arg2[%c0_49, %c0_50] : memref<2x1xf32, #tpu.memory_space<vmem>>, vector<2x1xf32>
    %c992 = arith.constant 992 : index
    %c0_51 = arith.constant 0 : index
    %136 = vector.load %arg7[%c992, %c0_51] : memref<1024x32xf32, #tpu.memory_space<vmem>>, vector<1x32xf32>
    %137 = vector.broadcast %135 : vector<2x1xf32> to vector<2x32xf32>
    %138 = vector.broadcast %136 : vector<1x32xf32> to vector<2x32xf32>
    %139 = arith.mulf %137, %138 : vector<2x32xf32>
    %140 = arith.addf %134, %139 : vector<2x32xf32>
    %c1000 = arith.constant 1000 : index
    %c0_52 = arith.constant 0 : index
    %141 = vector.load %arg7[%c1000, %c0_52] : memref<1024x32xf32, #tpu.memory_space<vmem>>, vector<1x32xf32>
    %142 = vector.broadcast %141 : vector<1x32xf32> to vector<2x32xf32>
    %143 = arith.addf %140, %142 : vector<2x32xf32>
    %c2 = arith.constant 2 : index
    %c0_53 = arith.constant 0 : index
    %144 = vector.load %arg8[%c2, %c0_53] : memref<10x32xf32, #tpu.memory_space<vmem>>, vector<2x32xf32>
    tpu.vector_store %arg8[%c2, %c0_53], %143 {strides = array<i32>} : memref<10x32xf32, #tpu.memory_space<vmem>>, vector<2x32xf32>,
    %c0_54 = arith.constant 0 : index
    %c0_55 = arith.constant 0 : index
    %145 = vector.load %arg3[%c0_54, %c0_55] : memref<2x24xf32, #tpu.memory_space<vmem>>, vector<2x24xf32>
    %146 = arith.truncf %145 : vector<2x24xf32> to vector<2x24xbf16>
    %147 = arith.truncf %8 : vector<24x32xf32> to vector<24x32xbf16>
    %cst_56 = arith.constant dense<0.000000e+00> : vector<2x32xf32>
    %148 = tpu.matmul %146, %147, %cst_56 {dimension_numbers = #tpu.dot_dimension_numbers<[1], [0], [0], [1], [0, 0, 1, 1], [], []>} : vector<2x24xbf16>, vector<24x32xbf16>, vector<2x32xf32> -> vector<2x32xf32>
    %149 = vector.broadcast %9 : vector<1x32xf32> to vector<2x32xf32>
    %150 = arith.addf %148, %149 : vector<2x32xf32>
    %cst_57 = arith.constant dense<0.000000e+00> : vector<2xf32>
    %151 = vector.multi_reduction <add>, %150, %cst_57 [1] : vector<2x32xf32> to vector<2xf32>
    %152 = vector.shape_cast %151 : vector<2xf32> to vector<2x1xf32>
    %cst_58 = arith.constant 3.200000e+01 : f32
    %153 = vector.broadcast %cst_58 : f32 to vector<2x1xf32>
    %154 = arith.divf %152, %153 : vector<2x1xf32>
    %155 = vector.broadcast %154 : vector<2x1xf32> to vector<2x32xf32>
    %156 = arith.subf %150, %155 : vector<2x32xf32>
    %157 = arith.mulf %156, %156 : vector<2x32xf32>
    %cst_59 = arith.constant dense<0.000000e+00> : vector<2xf32>
    %158 = vector.multi_reduction <add>, %157, %cst_59 [1] : vector<2x32xf32> to vector<2xf32>
    %159 = vector.shape_cast %158 : vector<2xf32> to vector<2x1xf32>
    %cst_60 = arith.constant 3.200000e+01 : f32
    %160 = vector.broadcast %cst_60 : f32 to vector<2x1xf32>
    %161 = arith.divf %159, %160 : vector<2x1xf32>
    %162 = vector.broadcast %154 : vector<2x1xf32> to vector<2x32xf32>
    %163 = arith.subf %150, %162 : vector<2x32xf32>
    %cst_61 = arith.constant 9.99999974E-6 : f32
    %164 = vector.broadcast %cst_61 : f32 to vector<2x1xf32>
    %165 = arith.addf %161, %164 : vector<2x1xf32>
    %166 = math.rsqrt %165 : vector<2x1xf32>
    %167 = vector.broadcast %166 : vector<2x1xf32> to vector<2x32xf32>
    %168 = arith.mulf %163, %167 : vector<2x32xf32>
    %169 = vector.broadcast %10 : vector<1x32xf32> to vector<2x32xf32>
    %170 = arith.mulf %168, %169 : vector<2x32xf32>
    %171 = vector.broadcast %11 : vector<1x32xf32> to vector<2x32xf32>
    %172 = arith.addf %170, %171 : vector<2x32xf32>
    %cst_62 = arith.constant 0.000000e+00 : f32
    %173 = vector.broadcast %cst_62 : f32 to vector<2x32xf32>
    %174 = arith.maximumf %172, %173 : vector<2x32xf32>
    %175 = arith.truncf %174 : vector<2x32xf32> to vector<2x32xbf16>
    %176 = arith.truncf %12 : vector<32x32xf32> to vector<32x32xbf16>
    %cst_63 = arith.constant dense<0.000000e+00> : vector<2x32xf32>
    %177 = tpu.matmul %175, %176, %cst_63 {dimension_numbers = #tpu.dot_dimension_numbers<[1], [0], [0], [1], [0, 0, 1, 1], [], []>} : vector<2x32xbf16>, vector<32x32xbf16>, vector<2x32xf32> -> vector<2x32xf32>
    %178 = vector.broadcast %13 : vector<1x32xf32> to vector<2x32xf32>
    %179 = arith.addf %177, %178 : vector<2x32xf32>
    %cst_64 = arith.constant dense<0.000000e+00> : vector<2xf32>
    %180 = vector.multi_reduction <add>, %179, %cst_64 [1] : vector<2x32xf32> to vector<2xf32>
    %181 = vector.shape_cast %180 : vector<2xf32> to vector<2x1xf32>
    %cst_65 = arith.constant 3.200000e+01 : f32
    %182 = vector.broadcast %cst_65 : f32 to vector<2x1xf32>
    %183 = arith.divf %181, %182 : vector<2x1xf32>
    %184 = vector.broadcast %183 : vector<2x1xf32> to vector<2x32xf32>
    %185 = arith.subf %179, %184 : vector<2x32xf32>
    %186 = arith.mulf %185, %185 : vector<2x32xf32>
    %cst_66 = arith.constant dense<0.000000e+00> : vector<2xf32>
    %187 = vector.multi_reduction <add>, %186, %cst_66 [1] : vector<2x32xf32> to vector<2xf32>
    %188 = vector.shape_cast %187 : vector<2xf32> to vector<2x1xf32>
    %cst_67 = arith.constant 3.200000e+01 : f32
    %189 = vector.broadcast %cst_67 : f32 to vector<2x1xf32>
    %190 = arith.divf %188, %189 : vector<2x1xf32>
    %191 = vector.broadcast %183 : vector<2x1xf32> to vector<2x32xf32>
    %192 = arith.subf %179, %191 : vector<2x32xf32>
    %cst_68 = arith.constant 9.99999974E-6 : f32
    %193 = vector.broadcast %cst_68 : f32 to vector<2x1xf32>
    %194 = arith.addf %190, %193 : vector<2x1xf32>
    %195 = math.rsqrt %194 : vector<2x1xf32>
    %196 = vector.broadcast %195 : vector<2x1xf32> to vector<2x32xf32>
    %197 = arith.mulf %192, %196 : vector<2x32xf32>
    %198 = vector.broadcast %14 : vector<1x32xf32> to vector<2x32xf32>
    %199 = arith.mulf %197, %198 : vector<2x32xf32>
    %200 = vector.broadcast %15 : vector<1x32xf32> to vector<2x32xf32>
    %201 = arith.addf %199, %200 : vector<2x32xf32>
    %cst_69 = arith.constant 0.000000e+00 : f32
    %202 = vector.broadcast %cst_69 : f32 to vector<2x32xf32>
    %203 = arith.maximumf %201, %202 : vector<2x32xf32>
    %c4 = arith.constant 4 : index
    %c0_70 = arith.constant 0 : index
    %204 = vector.load %arg8[%c4, %c0_70] : memref<10x32xf32, #tpu.memory_space<vmem>>, vector<2x32xf32>
    tpu.vector_store %arg8[%c4, %c0_70], %203 {strides = array<i32>} : memref<10x32xf32, #tpu.memory_space<vmem>>, vector<2x32xf32>,
    %c0_71 = arith.constant 0 : index
    %c0_72 = arith.constant 0 : index
    %205 = vector.load %arg4[%c0_71, %c0_72] : memref<2x24xf32, #tpu.memory_space<vmem>>, vector<2x24xf32>
    %206 = arith.truncf %205 : vector<2x24xf32> to vector<2x24xbf16>
    %207 = arith.truncf %8 : vector<24x32xf32> to vector<24x32xbf16>
    %cst_73 = arith.constant dense<0.000000e+00> : vector<2x32xf32>
    %208 = tpu.matmul %206, %207, %cst_73 {dimension_numbers = #tpu.dot_dimension_numbers<[1], [0], [0], [1], [0, 0, 1, 1], [], []>} : vector<2x24xbf16>, vector<24x32xbf16>, vector<2x32xf32> -> vector<2x32xf32>
    %209 = vector.broadcast %9 : vector<1x32xf32> to vector<2x32xf32>
    %210 = arith.addf %208, %209 : vector<2x32xf32>
    %cst_74 = arith.constant dense<0.000000e+00> : vector<2xf32>
    %211 = vector.multi_reduction <add>, %210, %cst_74 [1] : vector<2x32xf32> to vector<2xf32>
    %212 = vector.shape_cast %211 : vector<2xf32> to vector<2x1xf32>
    %cst_75 = arith.constant 3.200000e+01 : f32
    %213 = vector.broadcast %cst_75 : f32 to vector<2x1xf32>
    %214 = arith.divf %212, %213 : vector<2x1xf32>
    %215 = vector.broadcast %214 : vector<2x1xf32> to vector<2x32xf32>
    %216 = arith.subf %210, %215 : vector<2x32xf32>
    %217 = arith.mulf %216, %216 : vector<2x32xf32>
    %cst_76 = arith.constant dense<0.000000e+00> : vector<2xf32>
    %218 = vector.multi_reduction <add>, %217, %cst_76 [1] : vector<2x32xf32> to vector<2xf32>
    %219 = vector.shape_cast %218 : vector<2xf32> to vector<2x1xf32>
    %cst_77 = arith.constant 3.200000e+01 : f32
    %220 = vector.broadcast %cst_77 : f32 to vector<2x1xf32>
    %221 = arith.divf %219, %220 : vector<2x1xf32>
    %222 = vector.broadcast %214 : vector<2x1xf32> to vector<2x32xf32>
    %223 = arith.subf %210, %222 : vector<2x32xf32>
    %cst_78 = arith.constant 9.99999974E-6 : f32
    %224 = vector.broadcast %cst_78 : f32 to vector<2x1xf32>
    %225 = arith.addf %221, %224 : vector<2x1xf32>
    %226 = math.rsqrt %225 : vector<2x1xf32>
    %227 = vector.broadcast %226 : vector<2x1xf32> to vector<2x32xf32>
    %228 = arith.mulf %223, %227 : vector<2x32xf32>
    %229 = vector.broadcast %10 : vector<1x32xf32> to vector<2x32xf32>
    %230 = arith.mulf %228, %229 : vector<2x32xf32>
    %231 = vector.broadcast %11 : vector<1x32xf32> to vector<2x32xf32>
    %232 = arith.addf %230, %231 : vector<2x32xf32>
    %cst_79 = arith.constant 0.000000e+00 : f32
    %233 = vector.broadcast %cst_79 : f32 to vector<2x32xf32>
    %234 = arith.maximumf %232, %233 : vector<2x32xf32>
    %235 = arith.truncf %234 : vector<2x32xf32> to vector<2x32xbf16>
    %236 = arith.truncf %12 : vector<32x32xf32> to vector<32x32xbf16>
    %cst_80 = arith.constant dense<0.000000e+00> : vector<2x32xf32>
    %237 = tpu.matmul %235, %236, %cst_80 {dimension_numbers = #tpu.dot_dimension_numbers<[1], [0], [0], [1], [0, 0, 1, 1], [], []>} : vector<2x32xbf16>, vector<32x32xbf16>, vector<2x32xf32> -> vector<2x32xf32>
    %238 = vector.broadcast %13 : vector<1x32xf32> to vector<2x32xf32>
    %239 = arith.addf %237, %238 : vector<2x32xf32>
    %cst_81 = arith.constant dense<0.000000e+00> : vector<2xf32>
    %240 = vector.multi_reduction <add>, %239, %cst_81 [1] : vector<2x32xf32> to vector<2xf32>
    %241 = vector.shape_cast %240 : vector<2xf32> to vector<2x1xf32>
    %cst_82 = arith.constant 3.200000e+01 : f32
    %242 = vector.broadcast %cst_82 : f32 to vector<2x1xf32>
    %243 = arith.divf %241, %242 : vector<2x1xf32>
    %244 = vector.broadcast %243 : vector<2x1xf32> to vector<2x32xf32>
    %245 = arith.subf %239, %244 : vector<2x32xf32>
    %246 = arith.mulf %245, %245 : vector<2x32xf32>
    %cst_83 = arith.constant dense<0.000000e+00> : vector<2xf32>
    %247 = vector.multi_reduction <add>, %246, %cst_83 [1] : vector<2x32xf32> to vector<2xf32>
    %248 = vector.shape_cast %247 : vector<2xf32> to vector<2x1xf32>
    %cst_84 = arith.constant 3.200000e+01 : f32
    %249 = vector.broadcast %cst_84 : f32 to vector<2x1xf32>
    %250 = arith.divf %248, %249 : vector<2x1xf32>
    %251 = vector.broadcast %243 : vector<2x1xf32> to vector<2x32xf32>
    %252 = arith.subf %239, %251 : vector<2x32xf32>
    %cst_85 = arith.constant 9.99999974E-6 : f32
    %253 = vector.broadcast %cst_85 : f32 to vector<2x1xf32>
    %254 = arith.addf %250, %253 : vector<2x1xf32>
    %255 = math.rsqrt %254 : vector<2x1xf32>
    %256 = vector.broadcast %255 : vector<2x1xf32> to vector<2x32xf32>
    %257 = arith.mulf %252, %256 : vector<2x32xf32>
    %258 = vector.broadcast %14 : vector<1x32xf32> to vector<2x32xf32>
    %259 = arith.mulf %257, %258 : vector<2x32xf32>
    %260 = vector.broadcast %15 : vector<1x32xf32> to vector<2x32xf32>
    %261 = arith.addf %259, %260 : vector<2x32xf32>
    %cst_86 = arith.constant 0.000000e+00 : f32
    %262 = vector.broadcast %cst_86 : f32 to vector<2x32xf32>
    %263 = arith.maximumf %261, %262 : vector<2x32xf32>
    %c0_87 = arith.constant 0 : index
    %c0_88 = arith.constant 0 : index
    %264 = vector.load %arg5[%c0_87, %c0_88] : memref<2x1xf32, #tpu.memory_space<vmem>>, vector<2x1xf32>
    %c1008 = arith.constant 1008 : index
    %c0_89 = arith.constant 0 : index
    %265 = vector.load %arg7[%c1008, %c0_89] : memref<1024x32xf32, #tpu.memory_space<vmem>>, vector<1x32xf32>
    %266 = vector.broadcast %264 : vector<2x1xf32> to vector<2x32xf32>
    %267 = vector.broadcast %265 : vector<1x32xf32> to vector<2x32xf32>
    %268 = arith.mulf %266, %267 : vector<2x32xf32>
    %269 = arith.addf %263, %268 : vector<2x32xf32>
    %c1016 = arith.constant 1016 : index
    %c0_90 = arith.constant 0 : index
    %270 = vector.load %arg7[%c1016, %c0_90] : memref<1024x32xf32, #tpu.memory_space<vmem>>, vector<1x32xf32>
    %271 = vector.broadcast %270 : vector<1x32xf32> to vector<2x32xf32>
    %272 = arith.addf %269, %271 : vector<2x32xf32>
    %c6 = arith.constant 6 : index
    %c0_91 = arith.constant 0 : index
    %273 = vector.load %arg8[%c6, %c0_91] : memref<10x32xf32, #tpu.memory_space<vmem>>, vector<2x32xf32>
    tpu.vector_store %arg8[%c6, %c0_91], %272 {strides = array<i32>} : memref<10x32xf32, #tpu.memory_space<vmem>>, vector<2x32xf32>,
    %c0_92 = arith.constant 0 : index
    %c0_93 = arith.constant 0 : index
    %274 = vector.load %arg6[%c0_92, %c0_93] : memref<2x768xf32, #tpu.memory_space<vmem>>, vector<2x768xf32>
    %c200 = arith.constant 200 : index
    %c0_94 = arith.constant 0 : index
    %275 = vector.load %arg7[%c200, %c0_94] : memref<1024x32xf32, #tpu.memory_space<vmem>>, vector<768x32xf32>
    %276 = arith.truncf %274 : vector<2x768xf32> to vector<2x768xbf16>
    %277 = arith.truncf %275 : vector<768x32xf32> to vector<768x32xbf16>
    %cst_95 = arith.constant dense<0.000000e+00> : vector<2x32xf32>
    %278 = tpu.matmul %276, %277, %cst_95 {dimension_numbers = #tpu.dot_dimension_numbers<[1], [0], [0], [1], [0, 0, 1, 1], [], []>} : vector<2x768xbf16>, vector<768x32xbf16>, vector<2x32xf32> -> vector<2x32xf32>
    %c968 = arith.constant 968 : index
    %c0_96 = arith.constant 0 : index
    %279 = vector.load %arg7[%c968, %c0_96] : memref<1024x32xf32, #tpu.memory_space<vmem>>, vector<1x32xf32>
    %280 = vector.broadcast %279 : vector<1x32xf32> to vector<2x32xf32>
    %281 = arith.addf %278, %280 : vector<2x32xf32>
    %c976 = arith.constant 976 : index
    %c0_97 = arith.constant 0 : index
    %282 = vector.load %arg7[%c976, %c0_97] : memref<1024x32xf32, #tpu.memory_space<vmem>>, vector<1x32xf32>
    %c984 = arith.constant 984 : index
    %c0_98 = arith.constant 0 : index
    %283 = vector.load %arg7[%c984, %c0_98] : memref<1024x32xf32, #tpu.memory_space<vmem>>, vector<1x32xf32>
    %cst_99 = arith.constant dense<0.000000e+00> : vector<2xf32>
    %284 = vector.multi_reduction <add>, %281, %cst_99 [1] : vector<2x32xf32> to vector<2xf32>
    %285 = vector.shape_cast %284 : vector<2xf32> to vector<2x1xf32>
    %cst_100 = arith.constant 3.200000e+01 : f32
    %286 = vector.broadcast %cst_100 : f32 to vector<2x1xf32>
    %287 = arith.divf %285, %286 : vector<2x1xf32>
    %288 = vector.broadcast %287 : vector<2x1xf32> to vector<2x32xf32>
    %289 = arith.subf %281, %288 : vector<2x32xf32>
    %290 = arith.mulf %289, %289 : vector<2x32xf32>
    %cst_101 = arith.constant dense<0.000000e+00> : vector<2xf32>
    %291 = vector.multi_reduction <add>, %290, %cst_101 [1] : vector<2x32xf32> to vector<2xf32>
    %292 = vector.shape_cast %291 : vector<2xf32> to vector<2x1xf32>
    %cst_102 = arith.constant 3.200000e+01 : f32
    %293 = vector.broadcast %cst_102 : f32 to vector<2x1xf32>
    %294 = arith.divf %292, %293 : vector<2x1xf32>
    %295 = vector.broadcast %287 : vector<2x1xf32> to vector<2x32xf32>
    %296 = arith.subf %281, %295 : vector<2x32xf32>
    %cst_103 = arith.constant 9.99999974E-6 : f32
    %297 = vector.broadcast %cst_103 : f32 to vector<2x1xf32>
    %298 = arith.addf %294, %297 : vector<2x1xf32>
    %299 = math.rsqrt %298 : vector<2x1xf32>
    %300 = vector.broadcast %299 : vector<2x1xf32> to vector<2x32xf32>
    %301 = arith.mulf %296, %300 : vector<2x32xf32>
    %302 = vector.broadcast %282 : vector<1x32xf32> to vector<2x32xf32>
    %303 = arith.mulf %301, %302 : vector<2x32xf32>
    %304 = vector.broadcast %283 : vector<1x32xf32> to vector<2x32xf32>
    %305 = arith.addf %303, %304 : vector<2x32xf32>
    %cst_104 = arith.constant 0.000000e+00 : f32
    %306 = vector.broadcast %cst_104 : f32 to vector<2x32xf32>
    %307 = arith.maximumf %305, %306 : vector<2x32xf32>
    %c8 = arith.constant 8 : index
    %c0_105 = arith.constant 0 : index
    %308 = vector.load %arg8[%c8, %c0_105] : memref<10x32xf32, #tpu.memory_space<vmem>>, vector<2x32xf32>
    tpu.vector_store %arg8[%c8, %c0_105], %307 {strides = array<i32>} : memref<10x32xf32, #tpu.memory_space<vmem>>, vector<2x32xf32>,
    return
  }
}

module attributes {stable_mosaic.version = 11 : i64} {
  func.func @_groups_kernel(%arg0: memref<10x32xf32, #tpu.memory_space<vmem>>, %arg1: memref<2x32xf32, #tpu.memory_space<vmem>>, %arg2: memref<1080x128xf32, #tpu.memory_space<vmem>>, %arg3: memref<2x32xf32, #tpu.memory_space<vmem>>, %arg4: memref<2x32xf32, #tpu.memory_space<vmem>>, %arg5: memref<2x32xf32, #tpu.memory_space<vmem>>, %arg6: memref<2x16xf32, #tpu.memory_space<vmem>>, %arg7: memref<2x24xf32, #tpu.memory_space<vmem>>) attributes {dimension_semantics = [], scalar_prefetch = 0 : i64, scratch_operands = 0 : i64, tpu.core_type = #tpu.core_type<tc>} {
    %c0 = arith.constant 0 : index
    %c0_0 = arith.constant 0 : index
    %0 = vector.load %arg2[%c0, %c0_0] : memref<1080x128xf32, #tpu.memory_space<vmem>>, vector<32x96xf32>
    %c32 = arith.constant 32 : index
    %c0_1 = arith.constant 0 : index
    %1 = vector.load %arg2[%c32, %c0_1] : memref<1080x128xf32, #tpu.memory_space<vmem>>, vector<1x96xf32>
    %c0_2 = arith.constant 0 : index
    %c0_3 = arith.constant 0 : index
    %2 = vector.load %arg0[%c0_2, %c0_3] : memref<10x32xf32, #tpu.memory_space<vmem>>, vector<10x32xf32>
    %3 = arith.truncf %2 : vector<10x32xf32> to vector<10x32xbf16>
    %4 = arith.truncf %0 : vector<32x96xf32> to vector<32x96xbf16>
    %cst = arith.constant dense<0.000000e+00> : vector<10x96xf32>
    %5 = tpu.matmul %3, %4, %cst {dimension_numbers = #tpu.dot_dimension_numbers<[1], [0], [0], [1], [0, 0, 1, 1], [], []>} : vector<10x32xbf16>, vector<32x96xbf16>, vector<10x96xf32> -> vector<10x96xf32>
    %6 = vector.broadcast %1 : vector<1x96xf32> to vector<10x96xf32>
    %7 = arith.addf %5, %6 : vector<10x96xf32>
    %c0_4 = arith.constant 0 : index
    %c0_5 = arith.constant 0 : index
    %8 = vector.load %arg1[%c0_4, %c0_5] : memref<2x32xf32, #tpu.memory_space<vmem>>, vector<2x32xf32>
    %9 = arith.truncf %8 : vector<2x32xf32> to vector<2x32xbf16>
    %10 = arith.truncf %0 : vector<32x96xf32> to vector<32x96xbf16>
    %cst_6 = arith.constant dense<0.000000e+00> : vector<2x96xf32>
    %11 = tpu.matmul %9, %10, %cst_6 {dimension_numbers = #tpu.dot_dimension_numbers<[1], [0], [0], [1], [0, 0, 1, 1], [], []>} : vector<2x32xbf16>, vector<32x96xbf16>, vector<2x96xf32> -> vector<2x96xf32>
    %12 = vector.broadcast %1 : vector<1x96xf32> to vector<2x96xf32>
    %13 = arith.addf %11, %12 : vector<2x96xf32>
    %14 = vector.extract_strided_slice %7 {offsets = [0, 0], sizes = [2, 96], strides = [1, 1]} : vector<10x96xf32> to vector<2x96xf32>
    %15 = vector.extract_strided_slice %14 {offsets = [0, 0], sizes = [2, 32], strides = [1, 1]} : vector<2x96xf32> to vector<2x32xf32>
    %16 = vector.extract_strided_slice %14 {offsets = [0, 32], sizes = [2, 32], strides = [1, 1]} : vector<2x96xf32> to vector<2x32xf32>
    %17 = vector.extract_strided_slice %14 {offsets = [0, 64], sizes = [2, 32], strides = [1, 1]} : vector<2x96xf32> to vector<2x32xf32>
    %18 = vector.extract_strided_slice %7 {offsets = [4, 0], sizes = [2, 96], strides = [1, 1]} : vector<10x96xf32> to vector<2x96xf32>
    %19 = vector.extract_strided_slice %18 {offsets = [0, 0], sizes = [2, 32], strides = [1, 1]} : vector<2x96xf32> to vector<2x32xf32>
    %20 = vector.extract_strided_slice %18 {offsets = [0, 32], sizes = [2, 32], strides = [1, 1]} : vector<2x96xf32> to vector<2x32xf32>
    %21 = vector.extract_strided_slice %18 {offsets = [0, 64], sizes = [2, 32], strides = [1, 1]} : vector<2x96xf32> to vector<2x32xf32>
    %22 = vector.extract_strided_slice %13 {offsets = [0, 0], sizes = [2, 32], strides = [1, 1]} : vector<2x96xf32> to vector<2x32xf32>
    %23 = vector.extract_strided_slice %13 {offsets = [0, 32], sizes = [2, 32], strides = [1, 1]} : vector<2x96xf32> to vector<2x32xf32>
    %24 = vector.extract_strided_slice %13 {offsets = [0, 64], sizes = [2, 32], strides = [1, 1]} : vector<2x96xf32> to vector<2x32xf32>
    %25 = arith.mulf %15, %16 : vector<2x32xf32>
    %cst_7 = arith.constant dense<0.000000e+00> : vector<2xf32>
    %26 = vector.multi_reduction <add>, %25, %cst_7 [1] : vector<2x32xf32> to vector<2xf32>
    %27 = vector.shape_cast %26 : vector<2xf32> to vector<2x1xf32>
    %cst_8 = arith.constant 0.176776692 : f32
    %28 = vector.broadcast %cst_8 : f32 to vector<2x1xf32>
    %29 = arith.mulf %27, %28 : vector<2x1xf32>
    %30 = arith.mulf %15, %20 : vector<2x32xf32>
    %cst_9 = arith.constant dense<0.000000e+00> : vector<2xf32>
    %31 = vector.multi_reduction <add>, %30, %cst_9 [1] : vector<2x32xf32> to vector<2xf32>
    %32 = vector.shape_cast %31 : vector<2xf32> to vector<2x1xf32>
    %cst_10 = arith.constant 0.176776692 : f32
    %33 = vector.broadcast %cst_10 : f32 to vector<2x1xf32>
    %34 = arith.mulf %32, %33 : vector<2x1xf32>
    %35 = arith.mulf %15, %23 : vector<2x32xf32>
    %cst_11 = arith.constant dense<0.000000e+00> : vector<2xf32>
    %36 = vector.multi_reduction <add>, %35, %cst_11 [1] : vector<2x32xf32> to vector<2xf32>
    %37 = vector.shape_cast %36 : vector<2xf32> to vector<2x1xf32>
    %cst_12 = arith.constant 0.176776692 : f32
    %38 = vector.broadcast %cst_12 : f32 to vector<2x1xf32>
    %39 = arith.mulf %37, %38 : vector<2x1xf32>
    %40 = arith.maximumf %29, %34 : vector<2x1xf32>
    %41 = arith.maximumf %40, %39 : vector<2x1xf32>
    %42 = arith.subf %29, %41 : vector<2x1xf32>
    %43 = math.exp %42 : vector<2x1xf32>
    %44 = arith.subf %34, %41 : vector<2x1xf32>
    %45 = math.exp %44 : vector<2x1xf32>
    %46 = arith.subf %39, %41 : vector<2x1xf32>
    %47 = math.exp %46 : vector<2x1xf32>
    %48 = arith.addf %43, %45 : vector<2x1xf32>
    %49 = arith.addf %48, %47 : vector<2x1xf32>
    %50 = tpu.reciprocal %49 {approx = true} : vector<2x1xf32> -> vector<2x1xf32>
    %51 = arith.mulf %43, %50 : vector<2x1xf32>
    %52 = vector.broadcast %51 : vector<2x1xf32> to vector<2x32xf32>
    %53 = arith.mulf %52, %17 : vector<2x32xf32>
    %54 = arith.mulf %45, %50 : vector<2x1xf32>
    %55 = vector.broadcast %54 : vector<2x1xf32> to vector<2x32xf32>
    %56 = arith.mulf %55, %21 : vector<2x32xf32>
    %57 = arith.addf %53, %56 : vector<2x32xf32>
    %58 = arith.mulf %47, %50 : vector<2x1xf32>
    %59 = vector.broadcast %58 : vector<2x1xf32> to vector<2x32xf32>
    %60 = arith.mulf %59, %24 : vector<2x32xf32>
    %61 = arith.addf %57, %60 : vector<2x32xf32>
    %62 = arith.mulf %19, %16 : vector<2x32xf32>
    %cst_13 = arith.constant dense<0.000000e+00> : vector<2xf32>
    %63 = vector.multi_reduction <add>, %62, %cst_13 [1] : vector<2x32xf32> to vector<2xf32>
    %64 = vector.shape_cast %63 : vector<2xf32> to vector<2x1xf32>
    %cst_14 = arith.constant 0.176776692 : f32
    %65 = vector.broadcast %cst_14 : f32 to vector<2x1xf32>
    %66 = arith.mulf %64, %65 : vector<2x1xf32>
    %67 = arith.mulf %19, %20 : vector<2x32xf32>
    %cst_15 = arith.constant dense<0.000000e+00> : vector<2xf32>
    %68 = vector.multi_reduction <add>, %67, %cst_15 [1] : vector<2x32xf32> to vector<2xf32>
    %69 = vector.shape_cast %68 : vector<2xf32> to vector<2x1xf32>
    %cst_16 = arith.constant 0.176776692 : f32
    %70 = vector.broadcast %cst_16 : f32 to vector<2x1xf32>
    %71 = arith.mulf %69, %70 : vector<2x1xf32>
    %72 = arith.mulf %19, %23 : vector<2x32xf32>
    %cst_17 = arith.constant dense<0.000000e+00> : vector<2xf32>
    %73 = vector.multi_reduction <add>, %72, %cst_17 [1] : vector<2x32xf32> to vector<2xf32>
    %74 = vector.shape_cast %73 : vector<2xf32> to vector<2x1xf32>
    %cst_18 = arith.constant 0.176776692 : f32
    %75 = vector.broadcast %cst_18 : f32 to vector<2x1xf32>
    %76 = arith.mulf %74, %75 : vector<2x1xf32>
    %77 = arith.maximumf %66, %71 : vector<2x1xf32>
    %78 = arith.maximumf %77, %76 : vector<2x1xf32>
    %79 = arith.subf %66, %78 : vector<2x1xf32>
    %80 = math.exp %79 : vector<2x1xf32>
    %81 = arith.subf %71, %78 : vector<2x1xf32>
    %82 = math.exp %81 : vector<2x1xf32>
    %83 = arith.subf %76, %78 : vector<2x1xf32>
    %84 = math.exp %83 : vector<2x1xf32>
    %85 = arith.addf %80, %82 : vector<2x1xf32>
    %86 = arith.addf %85, %84 : vector<2x1xf32>
    %87 = tpu.reciprocal %86 {approx = true} : vector<2x1xf32> -> vector<2x1xf32>
    %88 = arith.mulf %80, %87 : vector<2x1xf32>
    %89 = vector.broadcast %88 : vector<2x1xf32> to vector<2x32xf32>
    %90 = arith.mulf %89, %17 : vector<2x32xf32>
    %91 = arith.mulf %82, %87 : vector<2x1xf32>
    %92 = vector.broadcast %91 : vector<2x1xf32> to vector<2x32xf32>
    %93 = arith.mulf %92, %21 : vector<2x32xf32>
    %94 = arith.addf %90, %93 : vector<2x32xf32>
    %95 = arith.mulf %84, %87 : vector<2x1xf32>
    %96 = vector.broadcast %95 : vector<2x1xf32> to vector<2x32xf32>
    %97 = arith.mulf %96, %24 : vector<2x32xf32>
    %98 = arith.addf %94, %97 : vector<2x32xf32>
    %99 = arith.mulf %22, %16 : vector<2x32xf32>
    %cst_19 = arith.constant dense<0.000000e+00> : vector<2xf32>
    %100 = vector.multi_reduction <add>, %99, %cst_19 [1] : vector<2x32xf32> to vector<2xf32>
    %101 = vector.shape_cast %100 : vector<2xf32> to vector<2x1xf32>
    %cst_20 = arith.constant 0.176776692 : f32
    %102 = vector.broadcast %cst_20 : f32 to vector<2x1xf32>
    %103 = arith.mulf %101, %102 : vector<2x1xf32>
    %104 = arith.mulf %22, %20 : vector<2x32xf32>
    %cst_21 = arith.constant dense<0.000000e+00> : vector<2xf32>
    %105 = vector.multi_reduction <add>, %104, %cst_21 [1] : vector<2x32xf32> to vector<2xf32>
    %106 = vector.shape_cast %105 : vector<2xf32> to vector<2x1xf32>
    %cst_22 = arith.constant 0.176776692 : f32
    %107 = vector.broadcast %cst_22 : f32 to vector<2x1xf32>
    %108 = arith.mulf %106, %107 : vector<2x1xf32>
    %109 = arith.mulf %22, %23 : vector<2x32xf32>
    %cst_23 = arith.constant dense<0.000000e+00> : vector<2xf32>
    %110 = vector.multi_reduction <add>, %109, %cst_23 [1] : vector<2x32xf32> to vector<2xf32>
    %111 = vector.shape_cast %110 : vector<2xf32> to vector<2x1xf32>
    %cst_24 = arith.constant 0.176776692 : f32
    %112 = vector.broadcast %cst_24 : f32 to vector<2x1xf32>
    %113 = arith.mulf %111, %112 : vector<2x1xf32>
    %114 = arith.maximumf %103, %108 : vector<2x1xf32>
    %115 = arith.maximumf %114, %113 : vector<2x1xf32>
    %116 = arith.subf %103, %115 : vector<2x1xf32>
    %117 = math.exp %116 : vector<2x1xf32>
    %118 = arith.subf %108, %115 : vector<2x1xf32>
    %119 = math.exp %118 : vector<2x1xf32>
    %120 = arith.subf %113, %115 : vector<2x1xf32>
    %121 = math.exp %120 : vector<2x1xf32>
    %122 = arith.addf %117, %119 : vector<2x1xf32>
    %123 = arith.addf %122, %121 : vector<2x1xf32>
    %124 = tpu.reciprocal %123 {approx = true} : vector<2x1xf32> -> vector<2x1xf32>
    %125 = arith.mulf %117, %124 : vector<2x1xf32>
    %126 = vector.broadcast %125 : vector<2x1xf32> to vector<2x32xf32>
    %127 = arith.mulf %126, %17 : vector<2x32xf32>
    %128 = arith.mulf %119, %124 : vector<2x1xf32>
    %129 = vector.broadcast %128 : vector<2x1xf32> to vector<2x32xf32>
    %130 = arith.mulf %129, %21 : vector<2x32xf32>
    %131 = arith.addf %127, %130 : vector<2x32xf32>
    %132 = arith.mulf %121, %124 : vector<2x1xf32>
    %133 = vector.broadcast %132 : vector<2x1xf32> to vector<2x32xf32>
    %134 = arith.mulf %133, %24 : vector<2x32xf32>
    %135 = arith.addf %131, %134 : vector<2x32xf32>
    %136 = arith.maximumf %61, %98 : vector<2x32xf32>
    %137 = arith.maximumf %136, %135 : vector<2x32xf32>
    %c40 = arith.constant 40 : index
    %c0_25 = arith.constant 0 : index
    %138 = vector.load %arg2[%c40, %c0_25] : memref<1080x128xf32, #tpu.memory_space<vmem>>, vector<32x128xf32>
    %c72 = arith.constant 72 : index
    %c0_26 = arith.constant 0 : index
    %139 = vector.load %arg2[%c72, %c0_26] : memref<1080x128xf32, #tpu.memory_space<vmem>>, vector<1x128xf32>
    %c80 = arith.constant 80 : index
    %c0_27 = arith.constant 0 : index
    %140 = vector.load %arg2[%c80, %c0_27] : memref<1080x128xf32, #tpu.memory_space<vmem>>, vector<128x32xf32>
    %c208 = arith.constant 208 : index
    %c0_28 = arith.constant 0 : index
    %141 = vector.load %arg2[%c208, %c0_28] : memref<1080x128xf32, #tpu.memory_space<vmem>>, vector<1x32xf32>
    %c216 = arith.constant 216 : index
    %c0_29 = arith.constant 0 : index
    %142 = vector.load %arg2[%c216, %c0_29] : memref<1080x128xf32, #tpu.memory_space<vmem>>, vector<1x32xf32>
    %c224 = arith.constant 224 : index
    %c0_30 = arith.constant 0 : index
    %143 = vector.load %arg2[%c224, %c0_30] : memref<1080x128xf32, #tpu.memory_space<vmem>>, vector<1x32xf32>
    %144 = arith.truncf %137 : vector<2x32xf32> to vector<2x32xbf16>
    %145 = arith.truncf %138 : vector<32x128xf32> to vector<32x128xbf16>
    %cst_31 = arith.constant dense<0.000000e+00> : vector<2x128xf32>
    %146 = tpu.matmul %144, %145, %cst_31 {dimension_numbers = #tpu.dot_dimension_numbers<[1], [0], [0], [1], [0, 0, 1, 1], [], []>} : vector<2x32xbf16>, vector<32x128xbf16>, vector<2x128xf32> -> vector<2x128xf32>
    %147 = vector.broadcast %139 : vector<1x128xf32> to vector<2x128xf32>
    %148 = arith.addf %146, %147 : vector<2x128xf32>
    %cst_32 = arith.constant 0.000000e+00 : f32
    %149 = vector.broadcast %cst_32 : f32 to vector<2x128xf32>
    %150 = arith.maximumf %148, %149 : vector<2x128xf32>
    %151 = arith.truncf %150 : vector<2x128xf32> to vector<2x128xbf16>
    %152 = arith.truncf %140 : vector<128x32xf32> to vector<128x32xbf16>
    %cst_33 = arith.constant dense<0.000000e+00> : vector<2x32xf32>
    %153 = tpu.matmul %151, %152, %cst_33 {dimension_numbers = #tpu.dot_dimension_numbers<[1], [0], [0], [1], [0, 0, 1, 1], [], []>} : vector<2x128xbf16>, vector<128x32xbf16>, vector<2x32xf32> -> vector<2x32xf32>
    %154 = arith.addf %137, %153 : vector<2x32xf32>
    %155 = vector.broadcast %141 : vector<1x32xf32> to vector<2x32xf32>
    %156 = arith.addf %154, %155 : vector<2x32xf32>
    %cst_34 = arith.constant dense<0.000000e+00> : vector<2xf32>
    %157 = vector.multi_reduction <add>, %156, %cst_34 [1] : vector<2x32xf32> to vector<2xf32>
    %158 = vector.shape_cast %157 : vector<2xf32> to vector<2x1xf32>
    %cst_35 = arith.constant 3.200000e+01 : f32
    %159 = vector.broadcast %cst_35 : f32 to vector<2x1xf32>
    %160 = arith.divf %158, %159 : vector<2x1xf32>
    %161 = vector.broadcast %160 : vector<2x1xf32> to vector<2x32xf32>
    %162 = arith.subf %156, %161 : vector<2x32xf32>
    %163 = arith.mulf %162, %162 : vector<2x32xf32>
    %cst_36 = arith.constant dense<0.000000e+00> : vector<2xf32>
    %164 = vector.multi_reduction <add>, %163, %cst_36 [1] : vector<2x32xf32> to vector<2xf32>
    %165 = vector.shape_cast %164 : vector<2xf32> to vector<2x1xf32>
    %cst_37 = arith.constant 3.200000e+01 : f32
    %166 = vector.broadcast %cst_37 : f32 to vector<2x1xf32>
    %167 = arith.divf %165, %166 : vector<2x1xf32>
    %168 = vector.broadcast %160 : vector<2x1xf32> to vector<2x32xf32>
    %169 = arith.subf %156, %168 : vector<2x32xf32>
    %cst_38 = arith.constant 9.99999974E-6 : f32
    %170 = vector.broadcast %cst_38 : f32 to vector<2x1xf32>
    %171 = arith.addf %167, %170 : vector<2x1xf32>
    %172 = math.rsqrt %171 : vector<2x1xf32>
    %173 = vector.broadcast %172 : vector<2x1xf32> to vector<2x32xf32>
    %174 = arith.mulf %169, %173 : vector<2x32xf32>
    %175 = vector.broadcast %142 : vector<1x32xf32> to vector<2x32xf32>
    %176 = arith.mulf %174, %175 : vector<2x32xf32>
    %177 = vector.broadcast %143 : vector<1x32xf32> to vector<2x32xf32>
    %178 = arith.addf %176, %177 : vector<2x32xf32>
    %c0_39 = arith.constant 0 : index
    %c0_40 = arith.constant 0 : index
    %179 = vector.load %arg3[%c0_39, %c0_40] : memref<2x32xf32, #tpu.memory_space<vmem>>, vector<2x32xf32>
    tpu.vector_store %arg3[%c0_39, %c0_40], %178 {strides = array<i32>} : memref<2x32xf32, #tpu.memory_space<vmem>>, vector<2x32xf32>,
    %180 = vector.extract_strided_slice %7 {offsets = [8, 0], sizes = [2, 96], strides = [1, 1]} : vector<10x96xf32> to vector<2x96xf32>
    %181 = vector.extract_strided_slice %180 {offsets = [0, 0], sizes = [2, 32], strides = [1, 1]} : vector<2x96xf32> to vector<2x32xf32>
    %182 = vector.extract_strided_slice %180 {offsets = [0, 32], sizes = [2, 32], strides = [1, 1]} : vector<2x96xf32> to vector<2x32xf32>
    %183 = vector.extract_strided_slice %180 {offsets = [0, 64], sizes = [2, 32], strides = [1, 1]} : vector<2x96xf32> to vector<2x32xf32>
    %184 = vector.extract_strided_slice %7 {offsets = [4, 0], sizes = [2, 96], strides = [1, 1]} : vector<10x96xf32> to vector<2x96xf32>
    %185 = vector.extract_strided_slice %184 {offsets = [0, 0], sizes = [2, 32], strides = [1, 1]} : vector<2x96xf32> to vector<2x32xf32>
    %186 = vector.extract_strided_slice %184 {offsets = [0, 32], sizes = [2, 32], strides = [1, 1]} : vector<2x96xf32> to vector<2x32xf32>
    %187 = vector.extract_strided_slice %184 {offsets = [0, 64], sizes = [2, 32], strides = [1, 1]} : vector<2x96xf32> to vector<2x32xf32>
    %188 = vector.extract_strided_slice %13 {offsets = [0, 0], sizes = [2, 32], strides = [1, 1]} : vector<2x96xf32> to vector<2x32xf32>
    %189 = vector.extract_strided_slice %13 {offsets = [0, 32], sizes = [2, 32], strides = [1, 1]} : vector<2x96xf32> to vector<2x32xf32>
    %190 = vector.extract_strided_slice %13 {offsets = [0, 64], sizes = [2, 32], strides = [1, 1]} : vector<2x96xf32> to vector<2x32xf32>
    %191 = arith.mulf %181, %182 : vector<2x32xf32>
    %cst_41 = arith.constant dense<0.000000e+00> : vector<2xf32>
    %192 = vector.multi_reduction <add>, %191, %cst_41 [1] : vector<2x32xf32> to vector<2xf32>
    %193 = vector.shape_cast %192 : vector<2xf32> to vector<2x1xf32>
    %cst_42 = arith.constant 0.176776692 : f32
    %194 = vector.broadcast %cst_42 : f32 to vector<2x1xf32>
    %195 = arith.mulf %193, %194 : vector<2x1xf32>
    %196 = arith.mulf %181, %186 : vector<2x32xf32>
    %cst_43 = arith.constant dense<0.000000e+00> : vector<2xf32>
    %197 = vector.multi_reduction <add>, %196, %cst_43 [1] : vector<2x32xf32> to vector<2xf32>
    %198 = vector.shape_cast %197 : vector<2xf32> to vector<2x1xf32>
    %cst_44 = arith.constant 0.176776692 : f32
    %199 = vector.broadcast %cst_44 : f32 to vector<2x1xf32>
    %200 = arith.mulf %198, %199 : vector<2x1xf32>
    %201 = arith.mulf %181, %189 : vector<2x32xf32>
    %cst_45 = arith.constant dense<0.000000e+00> : vector<2xf32>
    %202 = vector.multi_reduction <add>, %201, %cst_45 [1] : vector<2x32xf32> to vector<2xf32>
    %203 = vector.shape_cast %202 : vector<2xf32> to vector<2x1xf32>
    %cst_46 = arith.constant 0.176776692 : f32
    %204 = vector.broadcast %cst_46 : f32 to vector<2x1xf32>
    %205 = arith.mulf %203, %204 : vector<2x1xf32>
    %206 = arith.maximumf %195, %200 : vector<2x1xf32>
    %207 = arith.maximumf %206, %205 : vector<2x1xf32>
    %208 = arith.subf %195, %207 : vector<2x1xf32>
    %209 = math.exp %208 : vector<2x1xf32>
    %210 = arith.subf %200, %207 : vector<2x1xf32>
    %211 = math.exp %210 : vector<2x1xf32>
    %212 = arith.subf %205, %207 : vector<2x1xf32>
    %213 = math.exp %212 : vector<2x1xf32>
    %214 = arith.addf %209, %211 : vector<2x1xf32>
    %215 = arith.addf %214, %213 : vector<2x1xf32>
    %216 = tpu.reciprocal %215 {approx = true} : vector<2x1xf32> -> vector<2x1xf32>
    %217 = arith.mulf %209, %216 : vector<2x1xf32>
    %218 = vector.broadcast %217 : vector<2x1xf32> to vector<2x32xf32>
    %219 = arith.mulf %218, %183 : vector<2x32xf32>
    %220 = arith.mulf %211, %216 : vector<2x1xf32>
    %221 = vector.broadcast %220 : vector<2x1xf32> to vector<2x32xf32>
    %222 = arith.mulf %221, %187 : vector<2x32xf32>
    %223 = arith.addf %219, %222 : vector<2x32xf32>
    %224 = arith.mulf %213, %216 : vector<2x1xf32>
    %225 = vector.broadcast %224 : vector<2x1xf32> to vector<2x32xf32>
    %226 = arith.mulf %225, %190 : vector<2x32xf32>
    %227 = arith.addf %223, %226 : vector<2x32xf32>
    %228 = arith.mulf %185, %182 : vector<2x32xf32>
    %cst_47 = arith.constant dense<0.000000e+00> : vector<2xf32>
    %229 = vector.multi_reduction <add>, %228, %cst_47 [1] : vector<2x32xf32> to vector<2xf32>
    %230 = vector.shape_cast %229 : vector<2xf32> to vector<2x1xf32>
    %cst_48 = arith.constant 0.176776692 : f32
    %231 = vector.broadcast %cst_48 : f32 to vector<2x1xf32>
    %232 = arith.mulf %230, %231 : vector<2x1xf32>
    %233 = arith.mulf %185, %186 : vector<2x32xf32>
    %cst_49 = arith.constant dense<0.000000e+00> : vector<2xf32>
    %234 = vector.multi_reduction <add>, %233, %cst_49 [1] : vector<2x32xf32> to vector<2xf32>
    %235 = vector.shape_cast %234 : vector<2xf32> to vector<2x1xf32>
    %cst_50 = arith.constant 0.176776692 : f32
    %236 = vector.broadcast %cst_50 : f32 to vector<2x1xf32>
    %237 = arith.mulf %235, %236 : vector<2x1xf32>
    %238 = arith.mulf %185, %189 : vector<2x32xf32>
    %cst_51 = arith.constant dense<0.000000e+00> : vector<2xf32>
    %239 = vector.multi_reduction <add>, %238, %cst_51 [1] : vector<2x32xf32> to vector<2xf32>
    %240 = vector.shape_cast %239 : vector<2xf32> to vector<2x1xf32>
    %cst_52 = arith.constant 0.176776692 : f32
    %241 = vector.broadcast %cst_52 : f32 to vector<2x1xf32>
    %242 = arith.mulf %240, %241 : vector<2x1xf32>
    %243 = arith.maximumf %232, %237 : vector<2x1xf32>
    %244 = arith.maximumf %243, %242 : vector<2x1xf32>
    %245 = arith.subf %232, %244 : vector<2x1xf32>
    %246 = math.exp %245 : vector<2x1xf32>
    %247 = arith.subf %237, %244 : vector<2x1xf32>
    %248 = math.exp %247 : vector<2x1xf32>
    %249 = arith.subf %242, %244 : vector<2x1xf32>
    %250 = math.exp %249 : vector<2x1xf32>
    %251 = arith.addf %246, %248 : vector<2x1xf32>
    %252 = arith.addf %251, %250 : vector<2x1xf32>
    %253 = tpu.reciprocal %252 {approx = true} : vector<2x1xf32> -> vector<2x1xf32>
    %254 = arith.mulf %246, %253 : vector<2x1xf32>
    %255 = vector.broadcast %254 : vector<2x1xf32> to vector<2x32xf32>
    %256 = arith.mulf %255, %183 : vector<2x32xf32>
    %257 = arith.mulf %248, %253 : vector<2x1xf32>
    %258 = vector.broadcast %257 : vector<2x1xf32> to vector<2x32xf32>
    %259 = arith.mulf %258, %187 : vector<2x32xf32>
    %260 = arith.addf %256, %259 : vector<2x32xf32>
    %261 = arith.mulf %250, %253 : vector<2x1xf32>
    %262 = vector.broadcast %261 : vector<2x1xf32> to vector<2x32xf32>
    %263 = arith.mulf %262, %190 : vector<2x32xf32>
    %264 = arith.addf %260, %263 : vector<2x32xf32>
    %265 = arith.mulf %188, %182 : vector<2x32xf32>
    %cst_53 = arith.constant dense<0.000000e+00> : vector<2xf32>
    %266 = vector.multi_reduction <add>, %265, %cst_53 [1] : vector<2x32xf32> to vector<2xf32>
    %267 = vector.shape_cast %266 : vector<2xf32> to vector<2x1xf32>
    %cst_54 = arith.constant 0.176776692 : f32
    %268 = vector.broadcast %cst_54 : f32 to vector<2x1xf32>
    %269 = arith.mulf %267, %268 : vector<2x1xf32>
    %270 = arith.mulf %188, %186 : vector<2x32xf32>
    %cst_55 = arith.constant dense<0.000000e+00> : vector<2xf32>
    %271 = vector.multi_reduction <add>, %270, %cst_55 [1] : vector<2x32xf32> to vector<2xf32>
    %272 = vector.shape_cast %271 : vector<2xf32> to vector<2x1xf32>
    %cst_56 = arith.constant 0.176776692 : f32
    %273 = vector.broadcast %cst_56 : f32 to vector<2x1xf32>
    %274 = arith.mulf %272, %273 : vector<2x1xf32>
    %275 = arith.mulf %188, %189 : vector<2x32xf32>
    %cst_57 = arith.constant dense<0.000000e+00> : vector<2xf32>
    %276 = vector.multi_reduction <add>, %275, %cst_57 [1] : vector<2x32xf32> to vector<2xf32>
    %277 = vector.shape_cast %276 : vector<2xf32> to vector<2x1xf32>
    %cst_58 = arith.constant 0.176776692 : f32
    %278 = vector.broadcast %cst_58 : f32 to vector<2x1xf32>
    %279 = arith.mulf %277, %278 : vector<2x1xf32>
    %280 = arith.maximumf %269, %274 : vector<2x1xf32>
    %281 = arith.maximumf %280, %279 : vector<2x1xf32>
    %282 = arith.subf %269, %281 : vector<2x1xf32>
    %283 = math.exp %282 : vector<2x1xf32>
    %284 = arith.subf %274, %281 : vector<2x1xf32>
    %285 = math.exp %284 : vector<2x1xf32>
    %286 = arith.subf %279, %281 : vector<2x1xf32>
    %287 = math.exp %286 : vector<2x1xf32>
    %288 = arith.addf %283, %285 : vector<2x1xf32>
    %289 = arith.addf %288, %287 : vector<2x1xf32>
    %290 = tpu.reciprocal %289 {approx = true} : vector<2x1xf32> -> vector<2x1xf32>
    %291 = arith.mulf %283, %290 : vector<2x1xf32>
    %292 = vector.broadcast %291 : vector<2x1xf32> to vector<2x32xf32>
    %293 = arith.mulf %292, %183 : vector<2x32xf32>
    %294 = arith.mulf %285, %290 : vector<2x1xf32>
    %295 = vector.broadcast %294 : vector<2x1xf32> to vector<2x32xf32>
    %296 = arith.mulf %295, %187 : vector<2x32xf32>
    %297 = arith.addf %293, %296 : vector<2x32xf32>
    %298 = arith.mulf %287, %290 : vector<2x1xf32>
    %299 = vector.broadcast %298 : vector<2x1xf32> to vector<2x32xf32>
    %300 = arith.mulf %299, %190 : vector<2x32xf32>
    %301 = arith.addf %297, %300 : vector<2x32xf32>
    %302 = arith.maximumf %227, %264 : vector<2x32xf32>
    %303 = arith.maximumf %302, %301 : vector<2x32xf32>
    %c232 = arith.constant 232 : index
    %c0_59 = arith.constant 0 : index
    %304 = vector.load %arg2[%c232, %c0_59] : memref<1080x128xf32, #tpu.memory_space<vmem>>, vector<32x128xf32>
    %c264 = arith.constant 264 : index
    %c0_60 = arith.constant 0 : index
    %305 = vector.load %arg2[%c264, %c0_60] : memref<1080x128xf32, #tpu.memory_space<vmem>>, vector<1x128xf32>
    %c272 = arith.constant 272 : index
    %c0_61 = arith.constant 0 : index
    %306 = vector.load %arg2[%c272, %c0_61] : memref<1080x128xf32, #tpu.memory_space<vmem>>, vector<128x32xf32>
    %c400 = arith.constant 400 : index
    %c0_62 = arith.constant 0 : index
    %307 = vector.load %arg2[%c400, %c0_62] : memref<1080x128xf32, #tpu.memory_space<vmem>>, vector<1x32xf32>
    %c408 = arith.constant 408 : index
    %c0_63 = arith.constant 0 : index
    %308 = vector.load %arg2[%c408, %c0_63] : memref<1080x128xf32, #tpu.memory_space<vmem>>, vector<1x32xf32>
    %c416 = arith.constant 416 : index
    %c0_64 = arith.constant 0 : index
    %309 = vector.load %arg2[%c416, %c0_64] : memref<1080x128xf32, #tpu.memory_space<vmem>>, vector<1x32xf32>
    %310 = arith.truncf %303 : vector<2x32xf32> to vector<2x32xbf16>
    %311 = arith.truncf %304 : vector<32x128xf32> to vector<32x128xbf16>
    %cst_65 = arith.constant dense<0.000000e+00> : vector<2x128xf32>
    %312 = tpu.matmul %310, %311, %cst_65 {dimension_numbers = #tpu.dot_dimension_numbers<[1], [0], [0], [1], [0, 0, 1, 1], [], []>} : vector<2x32xbf16>, vector<32x128xbf16>, vector<2x128xf32> -> vector<2x128xf32>
    %313 = vector.broadcast %305 : vector<1x128xf32> to vector<2x128xf32>
    %314 = arith.addf %312, %313 : vector<2x128xf32>
    %cst_66 = arith.constant 0.000000e+00 : f32
    %315 = vector.broadcast %cst_66 : f32 to vector<2x128xf32>
    %316 = arith.maximumf %314, %315 : vector<2x128xf32>
    %317 = arith.truncf %316 : vector<2x128xf32> to vector<2x128xbf16>
    %318 = arith.truncf %306 : vector<128x32xf32> to vector<128x32xbf16>
    %cst_67 = arith.constant dense<0.000000e+00> : vector<2x32xf32>
    %319 = tpu.matmul %317, %318, %cst_67 {dimension_numbers = #tpu.dot_dimension_numbers<[1], [0], [0], [1], [0, 0, 1, 1], [], []>} : vector<2x128xbf16>, vector<128x32xbf16>, vector<2x32xf32> -> vector<2x32xf32>
    %320 = arith.addf %303, %319 : vector<2x32xf32>
    %321 = vector.broadcast %307 : vector<1x32xf32> to vector<2x32xf32>
    %322 = arith.addf %320, %321 : vector<2x32xf32>
    %cst_68 = arith.constant dense<0.000000e+00> : vector<2xf32>
    %323 = vector.multi_reduction <add>, %322, %cst_68 [1] : vector<2x32xf32> to vector<2xf32>
    %324 = vector.shape_cast %323 : vector<2xf32> to vector<2x1xf32>
    %cst_69 = arith.constant 3.200000e+01 : f32
    %325 = vector.broadcast %cst_69 : f32 to vector<2x1xf32>
    %326 = arith.divf %324, %325 : vector<2x1xf32>
    %327 = vector.broadcast %326 : vector<2x1xf32> to vector<2x32xf32>
    %328 = arith.subf %322, %327 : vector<2x32xf32>
    %329 = arith.mulf %328, %328 : vector<2x32xf32>
    %cst_70 = arith.constant dense<0.000000e+00> : vector<2xf32>
    %330 = vector.multi_reduction <add>, %329, %cst_70 [1] : vector<2x32xf32> to vector<2xf32>
    %331 = vector.shape_cast %330 : vector<2xf32> to vector<2x1xf32>
    %cst_71 = arith.constant 3.200000e+01 : f32
    %332 = vector.broadcast %cst_71 : f32 to vector<2x1xf32>
    %333 = arith.divf %331, %332 : vector<2x1xf32>
    %334 = vector.broadcast %326 : vector<2x1xf32> to vector<2x32xf32>
    %335 = arith.subf %322, %334 : vector<2x32xf32>
    %cst_72 = arith.constant 9.99999974E-6 : f32
    %336 = vector.broadcast %cst_72 : f32 to vector<2x1xf32>
    %337 = arith.addf %333, %336 : vector<2x1xf32>
    %338 = math.rsqrt %337 : vector<2x1xf32>
    %339 = vector.broadcast %338 : vector<2x1xf32> to vector<2x32xf32>
    %340 = arith.mulf %335, %339 : vector<2x32xf32>
    %341 = vector.broadcast %308 : vector<1x32xf32> to vector<2x32xf32>
    %342 = arith.mulf %340, %341 : vector<2x32xf32>
    %343 = vector.broadcast %309 : vector<1x32xf32> to vector<2x32xf32>
    %344 = arith.addf %342, %343 : vector<2x32xf32>
    %c0_73 = arith.constant 0 : index
    %c0_74 = arith.constant 0 : index
    %345 = vector.load %arg4[%c0_73, %c0_74] : memref<2x32xf32, #tpu.memory_space<vmem>>, vector<2x32xf32>
    tpu.vector_store %arg4[%c0_73, %c0_74], %344 {strides = array<i32>} : memref<2x32xf32, #tpu.memory_space<vmem>>, vector<2x32xf32>,
    %346 = vector.extract_strided_slice %7 {offsets = [8, 0], sizes = [2, 96], strides = [1, 1]} : vector<10x96xf32> to vector<2x96xf32>
    %347 = vector.extract_strided_slice %346 {offsets = [0, 0], sizes = [2, 32], strides = [1, 1]} : vector<2x96xf32> to vector<2x32xf32>
    %348 = vector.extract_strided_slice %346 {offsets = [0, 32], sizes = [2, 32], strides = [1, 1]} : vector<2x96xf32> to vector<2x32xf32>
    %349 = vector.extract_strided_slice %346 {offsets = [0, 64], sizes = [2, 32], strides = [1, 1]} : vector<2x96xf32> to vector<2x32xf32>
    %350 = vector.extract_strided_slice %7 {offsets = [0, 0], sizes = [2, 96], strides = [1, 1]} : vector<10x96xf32> to vector<2x96xf32>
    %351 = vector.extract_strided_slice %350 {offsets = [0, 0], sizes = [2, 32], strides = [1, 1]} : vector<2x96xf32> to vector<2x32xf32>
    %352 = vector.extract_strided_slice %350 {offsets = [0, 32], sizes = [2, 32], strides = [1, 1]} : vector<2x96xf32> to vector<2x32xf32>
    %353 = vector.extract_strided_slice %350 {offsets = [0, 64], sizes = [2, 32], strides = [1, 1]} : vector<2x96xf32> to vector<2x32xf32>
    %354 = vector.extract_strided_slice %13 {offsets = [0, 0], sizes = [2, 32], strides = [1, 1]} : vector<2x96xf32> to vector<2x32xf32>
    %355 = vector.extract_strided_slice %13 {offsets = [0, 32], sizes = [2, 32], strides = [1, 1]} : vector<2x96xf32> to vector<2x32xf32>
    %356 = vector.extract_strided_slice %13 {offsets = [0, 64], sizes = [2, 32], strides = [1, 1]} : vector<2x96xf32> to vector<2x32xf32>
    %357 = arith.mulf %347, %348 : vector<2x32xf32>
    %cst_75 = arith.constant dense<0.000000e+00> : vector<2xf32>
    %358 = vector.multi_reduction <add>, %357, %cst_75 [1] : vector<2x32xf32> to vector<2xf32>
    %359 = vector.shape_cast %358 : vector<2xf32> to vector<2x1xf32>
    %cst_76 = arith.constant 0.176776692 : f32
    %360 = vector.broadcast %cst_76 : f32 to vector<2x1xf32>
    %361 = arith.mulf %359, %360 : vector<2x1xf32>
    %362 = arith.mulf %347, %352 : vector<2x32xf32>
    %cst_77 = arith.constant dense<0.000000e+00> : vector<2xf32>
    %363 = vector.multi_reduction <add>, %362, %cst_77 [1] : vector<2x32xf32> to vector<2xf32>
    %364 = vector.shape_cast %363 : vector<2xf32> to vector<2x1xf32>
    %cst_78 = arith.constant 0.176776692 : f32
    %365 = vector.broadcast %cst_78 : f32 to vector<2x1xf32>
    %366 = arith.mulf %364, %365 : vector<2x1xf32>
    %367 = arith.mulf %347, %355 : vector<2x32xf32>
    %cst_79 = arith.constant dense<0.000000e+00> : vector<2xf32>
    %368 = vector.multi_reduction <add>, %367, %cst_79 [1] : vector<2x32xf32> to vector<2xf32>
    %369 = vector.shape_cast %368 : vector<2xf32> to vector<2x1xf32>
    %cst_80 = arith.constant 0.176776692 : f32
    %370 = vector.broadcast %cst_80 : f32 to vector<2x1xf32>
    %371 = arith.mulf %369, %370 : vector<2x1xf32>
    %372 = arith.maximumf %361, %366 : vector<2x1xf32>
    %373 = arith.maximumf %372, %371 : vector<2x1xf32>
    %374 = arith.subf %361, %373 : vector<2x1xf32>
    %375 = math.exp %374 : vector<2x1xf32>
    %376 = arith.subf %366, %373 : vector<2x1xf32>
    %377 = math.exp %376 : vector<2x1xf32>
    %378 = arith.subf %371, %373 : vector<2x1xf32>
    %379 = math.exp %378 : vector<2x1xf32>
    %380 = arith.addf %375, %377 : vector<2x1xf32>
    %381 = arith.addf %380, %379 : vector<2x1xf32>
    %382 = tpu.reciprocal %381 {approx = true} : vector<2x1xf32> -> vector<2x1xf32>
    %383 = arith.mulf %375, %382 : vector<2x1xf32>
    %384 = vector.broadcast %383 : vector<2x1xf32> to vector<2x32xf32>
    %385 = arith.mulf %384, %349 : vector<2x32xf32>
    %386 = arith.mulf %377, %382 : vector<2x1xf32>
    %387 = vector.broadcast %386 : vector<2x1xf32> to vector<2x32xf32>
    %388 = arith.mulf %387, %353 : vector<2x32xf32>
    %389 = arith.addf %385, %388 : vector<2x32xf32>
    %390 = arith.mulf %379, %382 : vector<2x1xf32>
    %391 = vector.broadcast %390 : vector<2x1xf32> to vector<2x32xf32>
    %392 = arith.mulf %391, %356 : vector<2x32xf32>
    %393 = arith.addf %389, %392 : vector<2x32xf32>
    %394 = arith.mulf %351, %348 : vector<2x32xf32>
    %cst_81 = arith.constant dense<0.000000e+00> : vector<2xf32>
    %395 = vector.multi_reduction <add>, %394, %cst_81 [1] : vector<2x32xf32> to vector<2xf32>
    %396 = vector.shape_cast %395 : vector<2xf32> to vector<2x1xf32>
    %cst_82 = arith.constant 0.176776692 : f32
    %397 = vector.broadcast %cst_82 : f32 to vector<2x1xf32>
    %398 = arith.mulf %396, %397 : vector<2x1xf32>
    %399 = arith.mulf %351, %352 : vector<2x32xf32>
    %cst_83 = arith.constant dense<0.000000e+00> : vector<2xf32>
    %400 = vector.multi_reduction <add>, %399, %cst_83 [1] : vector<2x32xf32> to vector<2xf32>
    %401 = vector.shape_cast %400 : vector<2xf32> to vector<2x1xf32>
    %cst_84 = arith.constant 0.176776692 : f32
    %402 = vector.broadcast %cst_84 : f32 to vector<2x1xf32>
    %403 = arith.mulf %401, %402 : vector<2x1xf32>
    %404 = arith.mulf %351, %355 : vector<2x32xf32>
    %cst_85 = arith.constant dense<0.000000e+00> : vector<2xf32>
    %405 = vector.multi_reduction <add>, %404, %cst_85 [1] : vector<2x32xf32> to vector<2xf32>
    %406 = vector.shape_cast %405 : vector<2xf32> to vector<2x1xf32>
    %cst_86 = arith.constant 0.176776692 : f32
    %407 = vector.broadcast %cst_86 : f32 to vector<2x1xf32>
    %408 = arith.mulf %406, %407 : vector<2x1xf32>
    %409 = arith.maximumf %398, %403 : vector<2x1xf32>
    %410 = arith.maximumf %409, %408 : vector<2x1xf32>
    %411 = arith.subf %398, %410 : vector<2x1xf32>
    %412 = math.exp %411 : vector<2x1xf32>
    %413 = arith.subf %403, %410 : vector<2x1xf32>
    %414 = math.exp %413 : vector<2x1xf32>
    %415 = arith.subf %408, %410 : vector<2x1xf32>
    %416 = math.exp %415 : vector<2x1xf32>
    %417 = arith.addf %412, %414 : vector<2x1xf32>
    %418 = arith.addf %417, %416 : vector<2x1xf32>
    %419 = tpu.reciprocal %418 {approx = true} : vector<2x1xf32> -> vector<2x1xf32>
    %420 = arith.mulf %412, %419 : vector<2x1xf32>
    %421 = vector.broadcast %420 : vector<2x1xf32> to vector<2x32xf32>
    %422 = arith.mulf %421, %349 : vector<2x32xf32>
    %423 = arith.mulf %414, %419 : vector<2x1xf32>
    %424 = vector.broadcast %423 : vector<2x1xf32> to vector<2x32xf32>
    %425 = arith.mulf %424, %353 : vector<2x32xf32>
    %426 = arith.addf %422, %425 : vector<2x32xf32>
    %427 = arith.mulf %416, %419 : vector<2x1xf32>
    %428 = vector.broadcast %427 : vector<2x1xf32> to vector<2x32xf32>
    %429 = arith.mulf %428, %356 : vector<2x32xf32>
    %430 = arith.addf %426, %429 : vector<2x32xf32>
    %431 = arith.mulf %354, %348 : vector<2x32xf32>
    %cst_87 = arith.constant dense<0.000000e+00> : vector<2xf32>
    %432 = vector.multi_reduction <add>, %431, %cst_87 [1] : vector<2x32xf32> to vector<2xf32>
    %433 = vector.shape_cast %432 : vector<2xf32> to vector<2x1xf32>
    %cst_88 = arith.constant 0.176776692 : f32
    %434 = vector.broadcast %cst_88 : f32 to vector<2x1xf32>
    %435 = arith.mulf %433, %434 : vector<2x1xf32>
    %436 = arith.mulf %354, %352 : vector<2x32xf32>
    %cst_89 = arith.constant dense<0.000000e+00> : vector<2xf32>
    %437 = vector.multi_reduction <add>, %436, %cst_89 [1] : vector<2x32xf32> to vector<2xf32>
    %438 = vector.shape_cast %437 : vector<2xf32> to vector<2x1xf32>
    %cst_90 = arith.constant 0.176776692 : f32
    %439 = vector.broadcast %cst_90 : f32 to vector<2x1xf32>
    %440 = arith.mulf %438, %439 : vector<2x1xf32>
    %441 = arith.mulf %354, %355 : vector<2x32xf32>
    %cst_91 = arith.constant dense<0.000000e+00> : vector<2xf32>
    %442 = vector.multi_reduction <add>, %441, %cst_91 [1] : vector<2x32xf32> to vector<2xf32>
    %443 = vector.shape_cast %442 : vector<2xf32> to vector<2x1xf32>
    %cst_92 = arith.constant 0.176776692 : f32
    %444 = vector.broadcast %cst_92 : f32 to vector<2x1xf32>
    %445 = arith.mulf %443, %444 : vector<2x1xf32>
    %446 = arith.maximumf %435, %440 : vector<2x1xf32>
    %447 = arith.maximumf %446, %445 : vector<2x1xf32>
    %448 = arith.subf %435, %447 : vector<2x1xf32>
    %449 = math.exp %448 : vector<2x1xf32>
    %450 = arith.subf %440, %447 : vector<2x1xf32>
    %451 = math.exp %450 : vector<2x1xf32>
    %452 = arith.subf %445, %447 : vector<2x1xf32>
    %453 = math.exp %452 : vector<2x1xf32>
    %454 = arith.addf %449, %451 : vector<2x1xf32>
    %455 = arith.addf %454, %453 : vector<2x1xf32>
    %456 = tpu.reciprocal %455 {approx = true} : vector<2x1xf32> -> vector<2x1xf32>
    %457 = arith.mulf %449, %456 : vector<2x1xf32>
    %458 = vector.broadcast %457 : vector<2x1xf32> to vector<2x32xf32>
    %459 = arith.mulf %458, %349 : vector<2x32xf32>
    %460 = arith.mulf %451, %456 : vector<2x1xf32>
    %461 = vector.broadcast %460 : vector<2x1xf32> to vector<2x32xf32>
    %462 = arith.mulf %461, %353 : vector<2x32xf32>
    %463 = arith.addf %459, %462 : vector<2x32xf32>
    %464 = arith.mulf %453, %456 : vector<2x1xf32>
    %465 = vector.broadcast %464 : vector<2x1xf32> to vector<2x32xf32>
    %466 = arith.mulf %465, %356 : vector<2x32xf32>
    %467 = arith.addf %463, %466 : vector<2x32xf32>
    %468 = arith.maximumf %393, %430 : vector<2x32xf32>
    %469 = arith.maximumf %468, %467 : vector<2x32xf32>
    %c424 = arith.constant 424 : index
    %c0_93 = arith.constant 0 : index
    %470 = vector.load %arg2[%c424, %c0_93] : memref<1080x128xf32, #tpu.memory_space<vmem>>, vector<32x128xf32>
    %c456 = arith.constant 456 : index
    %c0_94 = arith.constant 0 : index
    %471 = vector.load %arg2[%c456, %c0_94] : memref<1080x128xf32, #tpu.memory_space<vmem>>, vector<1x128xf32>
    %c464 = arith.constant 464 : index
    %c0_95 = arith.constant 0 : index
    %472 = vector.load %arg2[%c464, %c0_95] : memref<1080x128xf32, #tpu.memory_space<vmem>>, vector<128x32xf32>
    %c592 = arith.constant 592 : index
    %c0_96 = arith.constant 0 : index
    %473 = vector.load %arg2[%c592, %c0_96] : memref<1080x128xf32, #tpu.memory_space<vmem>>, vector<1x32xf32>
    %c600 = arith.constant 600 : index
    %c0_97 = arith.constant 0 : index
    %474 = vector.load %arg2[%c600, %c0_97] : memref<1080x128xf32, #tpu.memory_space<vmem>>, vector<1x32xf32>
    %c608 = arith.constant 608 : index
    %c0_98 = arith.constant 0 : index
    %475 = vector.load %arg2[%c608, %c0_98] : memref<1080x128xf32, #tpu.memory_space<vmem>>, vector<1x32xf32>
    %476 = arith.truncf %469 : vector<2x32xf32> to vector<2x32xbf16>
    %477 = arith.truncf %470 : vector<32x128xf32> to vector<32x128xbf16>
    %cst_99 = arith.constant dense<0.000000e+00> : vector<2x128xf32>
    %478 = tpu.matmul %476, %477, %cst_99 {dimension_numbers = #tpu.dot_dimension_numbers<[1], [0], [0], [1], [0, 0, 1, 1], [], []>} : vector<2x32xbf16>, vector<32x128xbf16>, vector<2x128xf32> -> vector<2x128xf32>
    %479 = vector.broadcast %471 : vector<1x128xf32> to vector<2x128xf32>
    %480 = arith.addf %478, %479 : vector<2x128xf32>
    %cst_100 = arith.constant 0.000000e+00 : f32
    %481 = vector.broadcast %cst_100 : f32 to vector<2x128xf32>
    %482 = arith.maximumf %480, %481 : vector<2x128xf32>
    %483 = arith.truncf %482 : vector<2x128xf32> to vector<2x128xbf16>
    %484 = arith.truncf %472 : vector<128x32xf32> to vector<128x32xbf16>
    %cst_101 = arith.constant dense<0.000000e+00> : vector<2x32xf32>
    %485 = tpu.matmul %483, %484, %cst_101 {dimension_numbers = #tpu.dot_dimension_numbers<[1], [0], [0], [1], [0, 0, 1, 1], [], []>} : vector<2x128xbf16>, vector<128x32xbf16>, vector<2x32xf32> -> vector<2x32xf32>
    %486 = arith.addf %469, %485 : vector<2x32xf32>
    %487 = vector.broadcast %473 : vector<1x32xf32> to vector<2x32xf32>
    %488 = arith.addf %486, %487 : vector<2x32xf32>
    %cst_102 = arith.constant dense<0.000000e+00> : vector<2xf32>
    %489 = vector.multi_reduction <add>, %488, %cst_102 [1] : vector<2x32xf32> to vector<2xf32>
    %490 = vector.shape_cast %489 : vector<2xf32> to vector<2x1xf32>
    %cst_103 = arith.constant 3.200000e+01 : f32
    %491 = vector.broadcast %cst_103 : f32 to vector<2x1xf32>
    %492 = arith.divf %490, %491 : vector<2x1xf32>
    %493 = vector.broadcast %492 : vector<2x1xf32> to vector<2x32xf32>
    %494 = arith.subf %488, %493 : vector<2x32xf32>
    %495 = arith.mulf %494, %494 : vector<2x32xf32>
    %cst_104 = arith.constant dense<0.000000e+00> : vector<2xf32>
    %496 = vector.multi_reduction <add>, %495, %cst_104 [1] : vector<2x32xf32> to vector<2xf32>
    %497 = vector.shape_cast %496 : vector<2xf32> to vector<2x1xf32>
    %cst_105 = arith.constant 3.200000e+01 : f32
    %498 = vector.broadcast %cst_105 : f32 to vector<2x1xf32>
    %499 = arith.divf %497, %498 : vector<2x1xf32>
    %500 = vector.broadcast %492 : vector<2x1xf32> to vector<2x32xf32>
    %501 = arith.subf %488, %500 : vector<2x32xf32>
    %cst_106 = arith.constant 9.99999974E-6 : f32
    %502 = vector.broadcast %cst_106 : f32 to vector<2x1xf32>
    %503 = arith.addf %499, %502 : vector<2x1xf32>
    %504 = math.rsqrt %503 : vector<2x1xf32>
    %505 = vector.broadcast %504 : vector<2x1xf32> to vector<2x32xf32>
    %506 = arith.mulf %501, %505 : vector<2x32xf32>
    %507 = vector.broadcast %474 : vector<1x32xf32> to vector<2x32xf32>
    %508 = arith.mulf %506, %507 : vector<2x32xf32>
    %509 = vector.broadcast %475 : vector<1x32xf32> to vector<2x32xf32>
    %510 = arith.addf %508, %509 : vector<2x32xf32>
    %c0_107 = arith.constant 0 : index
    %c0_108 = arith.constant 0 : index
    %511 = vector.load %arg5[%c0_107, %c0_108] : memref<2x32xf32, #tpu.memory_space<vmem>>, vector<2x32xf32>
    tpu.vector_store %arg5[%c0_107, %c0_108], %510 {strides = array<i32>} : memref<2x32xf32, #tpu.memory_space<vmem>>, vector<2x32xf32>,
    %512 = vector.extract_strided_slice %7 {offsets = [8, 0], sizes = [2, 96], strides = [1, 1]} : vector<10x96xf32> to vector<2x96xf32>
    %513 = vector.extract_strided_slice %512 {offsets = [0, 0], sizes = [2, 32], strides = [1, 1]} : vector<2x96xf32> to vector<2x32xf32>
    %514 = vector.extract_strided_slice %512 {offsets = [0, 32], sizes = [2, 32], strides = [1, 1]} : vector<2x96xf32> to vector<2x32xf32>
    %515 = vector.extract_strided_slice %512 {offsets = [0, 64], sizes = [2, 32], strides = [1, 1]} : vector<2x96xf32> to vector<2x32xf32>
    %516 = vector.extract_strided_slice %7 {offsets = [2, 0], sizes = [2, 96], strides = [1, 1]} : vector<10x96xf32> to vector<2x96xf32>
    %517 = vector.extract_strided_slice %516 {offsets = [0, 0], sizes = [2, 32], strides = [1, 1]} : vector<2x96xf32> to vector<2x32xf32>
    %518 = vector.extract_strided_slice %516 {offsets = [0, 32], sizes = [2, 32], strides = [1, 1]} : vector<2x96xf32> to vector<2x32xf32>
    %519 = vector.extract_strided_slice %516 {offsets = [0, 64], sizes = [2, 32], strides = [1, 1]} : vector<2x96xf32> to vector<2x32xf32>
    %520 = vector.extract_strided_slice %7 {offsets = [4, 0], sizes = [2, 96], strides = [1, 1]} : vector<10x96xf32> to vector<2x96xf32>
    %521 = vector.extract_strided_slice %520 {offsets = [0, 0], sizes = [2, 32], strides = [1, 1]} : vector<2x96xf32> to vector<2x32xf32>
    %522 = vector.extract_strided_slice %520 {offsets = [0, 32], sizes = [2, 32], strides = [1, 1]} : vector<2x96xf32> to vector<2x32xf32>
    %523 = vector.extract_strided_slice %520 {offsets = [0, 64], sizes = [2, 32], strides = [1, 1]} : vector<2x96xf32> to vector<2x32xf32>
    %524 = vector.extract_strided_slice %13 {offsets = [0, 0], sizes = [2, 32], strides = [1, 1]} : vector<2x96xf32> to vector<2x32xf32>
    %525 = vector.extract_strided_slice %13 {offsets = [0, 32], sizes = [2, 32], strides = [1, 1]} : vector<2x96xf32> to vector<2x32xf32>
    %526 = vector.extract_strided_slice %13 {offsets = [0, 64], sizes = [2, 32], strides = [1, 1]} : vector<2x96xf32> to vector<2x32xf32>
    %527 = arith.mulf %513, %514 : vector<2x32xf32>
    %cst_109 = arith.constant dense<0.000000e+00> : vector<2xf32>
    %528 = vector.multi_reduction <add>, %527, %cst_109 [1] : vector<2x32xf32> to vector<2xf32>
    %529 = vector.shape_cast %528 : vector<2xf32> to vector<2x1xf32>
    %cst_110 = arith.constant 0.176776692 : f32
    %530 = vector.broadcast %cst_110 : f32 to vector<2x1xf32>
    %531 = arith.mulf %529, %530 : vector<2x1xf32>
    %532 = arith.mulf %513, %518 : vector<2x32xf32>
    %cst_111 = arith.constant dense<0.000000e+00> : vector<2xf32>
    %533 = vector.multi_reduction <add>, %532, %cst_111 [1] : vector<2x32xf32> to vector<2xf32>
    %534 = vector.shape_cast %533 : vector<2xf32> to vector<2x1xf32>
    %cst_112 = arith.constant 0.176776692 : f32
    %535 = vector.broadcast %cst_112 : f32 to vector<2x1xf32>
    %536 = arith.mulf %534, %535 : vector<2x1xf32>
    %537 = arith.mulf %513, %522 : vector<2x32xf32>
    %cst_113 = arith.constant dense<0.000000e+00> : vector<2xf32>
    %538 = vector.multi_reduction <add>, %537, %cst_113 [1] : vector<2x32xf32> to vector<2xf32>
    %539 = vector.shape_cast %538 : vector<2xf32> to vector<2x1xf32>
    %cst_114 = arith.constant 0.176776692 : f32
    %540 = vector.broadcast %cst_114 : f32 to vector<2x1xf32>
    %541 = arith.mulf %539, %540 : vector<2x1xf32>
    %542 = arith.mulf %513, %525 : vector<2x32xf32>
    %cst_115 = arith.constant dense<0.000000e+00> : vector<2xf32>
    %543 = vector.multi_reduction <add>, %542, %cst_115 [1] : vector<2x32xf32> to vector<2xf32>
    %544 = vector.shape_cast %543 : vector<2xf32> to vector<2x1xf32>
    %cst_116 = arith.constant 0.176776692 : f32
    %545 = vector.broadcast %cst_116 : f32 to vector<2x1xf32>
    %546 = arith.mulf %544, %545 : vector<2x1xf32>
    %547 = arith.maximumf %531, %536 : vector<2x1xf32>
    %548 = arith.maximumf %547, %541 : vector<2x1xf32>
    %549 = arith.maximumf %548, %546 : vector<2x1xf32>
    %550 = arith.subf %531, %549 : vector<2x1xf32>
    %551 = math.exp %550 : vector<2x1xf32>
    %552 = arith.subf %536, %549 : vector<2x1xf32>
    %553 = math.exp %552 : vector<2x1xf32>
    %554 = arith.subf %541, %549 : vector<2x1xf32>
    %555 = math.exp %554 : vector<2x1xf32>
    %556 = arith.subf %546, %549 : vector<2x1xf32>
    %557 = math.exp %556 : vector<2x1xf32>
    %558 = arith.addf %551, %553 : vector<2x1xf32>
    %559 = arith.addf %558, %555 : vector<2x1xf32>
    %560 = arith.addf %559, %557 : vector<2x1xf32>
    %561 = tpu.reciprocal %560 {approx = true} : vector<2x1xf32> -> vector<2x1xf32>
    %562 = arith.mulf %551, %561 : vector<2x1xf32>
    %563 = vector.broadcast %562 : vector<2x1xf32> to vector<2x32xf32>
    %564 = arith.mulf %563, %515 : vector<2x32xf32>
    %565 = arith.mulf %553, %561 : vector<2x1xf32>
    %566 = vector.broadcast %565 : vector<2x1xf32> to vector<2x32xf32>
    %567 = arith.mulf %566, %519 : vector<2x32xf32>
    %568 = arith.addf %564, %567 : vector<2x32xf32>
    %569 = arith.mulf %555, %561 : vector<2x1xf32>
    %570 = vector.broadcast %569 : vector<2x1xf32> to vector<2x32xf32>
    %571 = arith.mulf %570, %523 : vector<2x32xf32>
    %572 = arith.addf %568, %571 : vector<2x32xf32>
    %573 = arith.mulf %557, %561 : vector<2x1xf32>
    %574 = vector.broadcast %573 : vector<2x1xf32> to vector<2x32xf32>
    %575 = arith.mulf %574, %526 : vector<2x32xf32>
    %576 = arith.addf %572, %575 : vector<2x32xf32>
    %577 = arith.mulf %517, %514 : vector<2x32xf32>
    %cst_117 = arith.constant dense<0.000000e+00> : vector<2xf32>
    %578 = vector.multi_reduction <add>, %577, %cst_117 [1] : vector<2x32xf32> to vector<2xf32>
    %579 = vector.shape_cast %578 : vector<2xf32> to vector<2x1xf32>
    %cst_118 = arith.constant 0.176776692 : f32
    %580 = vector.broadcast %cst_118 : f32 to vector<2x1xf32>
    %581 = arith.mulf %579, %580 : vector<2x1xf32>
    %582 = arith.mulf %517, %518 : vector<2x32xf32>
    %cst_119 = arith.constant dense<0.000000e+00> : vector<2xf32>
    %583 = vector.multi_reduction <add>, %582, %cst_119 [1] : vector<2x32xf32> to vector<2xf32>
    %584 = vector.shape_cast %583 : vector<2xf32> to vector<2x1xf32>
    %cst_120 = arith.constant 0.176776692 : f32
    %585 = vector.broadcast %cst_120 : f32 to vector<2x1xf32>
    %586 = arith.mulf %584, %585 : vector<2x1xf32>
    %587 = arith.mulf %517, %522 : vector<2x32xf32>
    %cst_121 = arith.constant dense<0.000000e+00> : vector<2xf32>
    %588 = vector.multi_reduction <add>, %587, %cst_121 [1] : vector<2x32xf32> to vector<2xf32>
    %589 = vector.shape_cast %588 : vector<2xf32> to vector<2x1xf32>
    %cst_122 = arith.constant 0.176776692 : f32
    %590 = vector.broadcast %cst_122 : f32 to vector<2x1xf32>
    %591 = arith.mulf %589, %590 : vector<2x1xf32>
    %592 = arith.mulf %517, %525 : vector<2x32xf32>
    %cst_123 = arith.constant dense<0.000000e+00> : vector<2xf32>
    %593 = vector.multi_reduction <add>, %592, %cst_123 [1] : vector<2x32xf32> to vector<2xf32>
    %594 = vector.shape_cast %593 : vector<2xf32> to vector<2x1xf32>
    %cst_124 = arith.constant 0.176776692 : f32
    %595 = vector.broadcast %cst_124 : f32 to vector<2x1xf32>
    %596 = arith.mulf %594, %595 : vector<2x1xf32>
    %597 = arith.maximumf %581, %586 : vector<2x1xf32>
    %598 = arith.maximumf %597, %591 : vector<2x1xf32>
    %599 = arith.maximumf %598, %596 : vector<2x1xf32>
    %600 = arith.subf %581, %599 : vector<2x1xf32>
    %601 = math.exp %600 : vector<2x1xf32>
    %602 = arith.subf %586, %599 : vector<2x1xf32>
    %603 = math.exp %602 : vector<2x1xf32>
    %604 = arith.subf %591, %599 : vector<2x1xf32>
    %605 = math.exp %604 : vector<2x1xf32>
    %606 = arith.subf %596, %599 : vector<2x1xf32>
    %607 = math.exp %606 : vector<2x1xf32>
    %608 = arith.addf %601, %603 : vector<2x1xf32>
    %609 = arith.addf %608, %605 : vector<2x1xf32>
    %610 = arith.addf %609, %607 : vector<2x1xf32>
    %611 = tpu.reciprocal %610 {approx = true} : vector<2x1xf32> -> vector<2x1xf32>
    %612 = arith.mulf %601, %611 : vector<2x1xf32>
    %613 = vector.broadcast %612 : vector<2x1xf32> to vector<2x32xf32>
    %614 = arith.mulf %613, %515 : vector<2x32xf32>
    %615 = arith.mulf %603, %611 : vector<2x1xf32>
    %616 = vector.broadcast %615 : vector<2x1xf32> to vector<2x32xf32>
    %617 = arith.mulf %616, %519 : vector<2x32xf32>
    %618 = arith.addf %614, %617 : vector<2x32xf32>
    %619 = arith.mulf %605, %611 : vector<2x1xf32>
    %620 = vector.broadcast %619 : vector<2x1xf32> to vector<2x32xf32>
    %621 = arith.mulf %620, %523 : vector<2x32xf32>
    %622 = arith.addf %618, %621 : vector<2x32xf32>
    %623 = arith.mulf %607, %611 : vector<2x1xf32>
    %624 = vector.broadcast %623 : vector<2x1xf32> to vector<2x32xf32>
    %625 = arith.mulf %624, %526 : vector<2x32xf32>
    %626 = arith.addf %622, %625 : vector<2x32xf32>
    %627 = arith.mulf %521, %514 : vector<2x32xf32>
    %cst_125 = arith.constant dense<0.000000e+00> : vector<2xf32>
    %628 = vector.multi_reduction <add>, %627, %cst_125 [1] : vector<2x32xf32> to vector<2xf32>
    %629 = vector.shape_cast %628 : vector<2xf32> to vector<2x1xf32>
    %cst_126 = arith.constant 0.176776692 : f32
    %630 = vector.broadcast %cst_126 : f32 to vector<2x1xf32>
    %631 = arith.mulf %629, %630 : vector<2x1xf32>
    %632 = arith.mulf %521, %518 : vector<2x32xf32>
    %cst_127 = arith.constant dense<0.000000e+00> : vector<2xf32>
    %633 = vector.multi_reduction <add>, %632, %cst_127 [1] : vector<2x32xf32> to vector<2xf32>
    %634 = vector.shape_cast %633 : vector<2xf32> to vector<2x1xf32>
    %cst_128 = arith.constant 0.176776692 : f32
    %635 = vector.broadcast %cst_128 : f32 to vector<2x1xf32>
    %636 = arith.mulf %634, %635 : vector<2x1xf32>
    %637 = arith.mulf %521, %522 : vector<2x32xf32>
    %cst_129 = arith.constant dense<0.000000e+00> : vector<2xf32>
    %638 = vector.multi_reduction <add>, %637, %cst_129 [1] : vector<2x32xf32> to vector<2xf32>
    %639 = vector.shape_cast %638 : vector<2xf32> to vector<2x1xf32>
    %cst_130 = arith.constant 0.176776692 : f32
    %640 = vector.broadcast %cst_130 : f32 to vector<2x1xf32>
    %641 = arith.mulf %639, %640 : vector<2x1xf32>
    %642 = arith.mulf %521, %525 : vector<2x32xf32>
    %cst_131 = arith.constant dense<0.000000e+00> : vector<2xf32>
    %643 = vector.multi_reduction <add>, %642, %cst_131 [1] : vector<2x32xf32> to vector<2xf32>
    %644 = vector.shape_cast %643 : vector<2xf32> to vector<2x1xf32>
    %cst_132 = arith.constant 0.176776692 : f32
    %645 = vector.broadcast %cst_132 : f32 to vector<2x1xf32>
    %646 = arith.mulf %644, %645 : vector<2x1xf32>
    %647 = arith.maximumf %631, %636 : vector<2x1xf32>
    %648 = arith.maximumf %647, %641 : vector<2x1xf32>
    %649 = arith.maximumf %648, %646 : vector<2x1xf32>
    %650 = arith.subf %631, %649 : vector<2x1xf32>
    %651 = math.exp %650 : vector<2x1xf32>
    %652 = arith.subf %636, %649 : vector<2x1xf32>
    %653 = math.exp %652 : vector<2x1xf32>
    %654 = arith.subf %641, %649 : vector<2x1xf32>
    %655 = math.exp %654 : vector<2x1xf32>
    %656 = arith.subf %646, %649 : vector<2x1xf32>
    %657 = math.exp %656 : vector<2x1xf32>
    %658 = arith.addf %651, %653 : vector<2x1xf32>
    %659 = arith.addf %658, %655 : vector<2x1xf32>
    %660 = arith.addf %659, %657 : vector<2x1xf32>
    %661 = tpu.reciprocal %660 {approx = true} : vector<2x1xf32> -> vector<2x1xf32>
    %662 = arith.mulf %651, %661 : vector<2x1xf32>
    %663 = vector.broadcast %662 : vector<2x1xf32> to vector<2x32xf32>
    %664 = arith.mulf %663, %515 : vector<2x32xf32>
    %665 = arith.mulf %653, %661 : vector<2x1xf32>
    %666 = vector.broadcast %665 : vector<2x1xf32> to vector<2x32xf32>
    %667 = arith.mulf %666, %519 : vector<2x32xf32>
    %668 = arith.addf %664, %667 : vector<2x32xf32>
    %669 = arith.mulf %655, %661 : vector<2x1xf32>
    %670 = vector.broadcast %669 : vector<2x1xf32> to vector<2x32xf32>
    %671 = arith.mulf %670, %523 : vector<2x32xf32>
    %672 = arith.addf %668, %671 : vector<2x32xf32>
    %673 = arith.mulf %657, %661 : vector<2x1xf32>
    %674 = vector.broadcast %673 : vector<2x1xf32> to vector<2x32xf32>
    %675 = arith.mulf %674, %526 : vector<2x32xf32>
    %676 = arith.addf %672, %675 : vector<2x32xf32>
    %677 = arith.mulf %524, %514 : vector<2x32xf32>
    %cst_133 = arith.constant dense<0.000000e+00> : vector<2xf32>
    %678 = vector.multi_reduction <add>, %677, %cst_133 [1] : vector<2x32xf32> to vector<2xf32>
    %679 = vector.shape_cast %678 : vector<2xf32> to vector<2x1xf32>
    %cst_134 = arith.constant 0.176776692 : f32
    %680 = vector.broadcast %cst_134 : f32 to vector<2x1xf32>
    %681 = arith.mulf %679, %680 : vector<2x1xf32>
    %682 = arith.mulf %524, %518 : vector<2x32xf32>
    %cst_135 = arith.constant dense<0.000000e+00> : vector<2xf32>
    %683 = vector.multi_reduction <add>, %682, %cst_135 [1] : vector<2x32xf32> to vector<2xf32>
    %684 = vector.shape_cast %683 : vector<2xf32> to vector<2x1xf32>
    %cst_136 = arith.constant 0.176776692 : f32
    %685 = vector.broadcast %cst_136 : f32 to vector<2x1xf32>
    %686 = arith.mulf %684, %685 : vector<2x1xf32>
    %687 = arith.mulf %524, %522 : vector<2x32xf32>
    %cst_137 = arith.constant dense<0.000000e+00> : vector<2xf32>
    %688 = vector.multi_reduction <add>, %687, %cst_137 [1] : vector<2x32xf32> to vector<2xf32>
    %689 = vector.shape_cast %688 : vector<2xf32> to vector<2x1xf32>
    %cst_138 = arith.constant 0.176776692 : f32
    %690 = vector.broadcast %cst_138 : f32 to vector<2x1xf32>
    %691 = arith.mulf %689, %690 : vector<2x1xf32>
    %692 = arith.mulf %524, %525 : vector<2x32xf32>
    %cst_139 = arith.constant dense<0.000000e+00> : vector<2xf32>
    %693 = vector.multi_reduction <add>, %692, %cst_139 [1] : vector<2x32xf32> to vector<2xf32>
    %694 = vector.shape_cast %693 : vector<2xf32> to vector<2x1xf32>
    %cst_140 = arith.constant 0.176776692 : f32
    %695 = vector.broadcast %cst_140 : f32 to vector<2x1xf32>
    %696 = arith.mulf %694, %695 : vector<2x1xf32>
    %697 = arith.maximumf %681, %686 : vector<2x1xf32>
    %698 = arith.maximumf %697, %691 : vector<2x1xf32>
    %699 = arith.maximumf %698, %696 : vector<2x1xf32>
    %700 = arith.subf %681, %699 : vector<2x1xf32>
    %701 = math.exp %700 : vector<2x1xf32>
    %702 = arith.subf %686, %699 : vector<2x1xf32>
    %703 = math.exp %702 : vector<2x1xf32>
    %704 = arith.subf %691, %699 : vector<2x1xf32>
    %705 = math.exp %704 : vector<2x1xf32>
    %706 = arith.subf %696, %699 : vector<2x1xf32>
    %707 = math.exp %706 : vector<2x1xf32>
    %708 = arith.addf %701, %703 : vector<2x1xf32>
    %709 = arith.addf %708, %705 : vector<2x1xf32>
    %710 = arith.addf %709, %707 : vector<2x1xf32>
    %711 = tpu.reciprocal %710 {approx = true} : vector<2x1xf32> -> vector<2x1xf32>
    %712 = arith.mulf %701, %711 : vector<2x1xf32>
    %713 = vector.broadcast %712 : vector<2x1xf32> to vector<2x32xf32>
    %714 = arith.mulf %713, %515 : vector<2x32xf32>
    %715 = arith.mulf %703, %711 : vector<2x1xf32>
    %716 = vector.broadcast %715 : vector<2x1xf32> to vector<2x32xf32>
    %717 = arith.mulf %716, %519 : vector<2x32xf32>
    %718 = arith.addf %714, %717 : vector<2x32xf32>
    %719 = arith.mulf %705, %711 : vector<2x1xf32>
    %720 = vector.broadcast %719 : vector<2x1xf32> to vector<2x32xf32>
    %721 = arith.mulf %720, %523 : vector<2x32xf32>
    %722 = arith.addf %718, %721 : vector<2x32xf32>
    %723 = arith.mulf %707, %711 : vector<2x1xf32>
    %724 = vector.broadcast %723 : vector<2x1xf32> to vector<2x32xf32>
    %725 = arith.mulf %724, %526 : vector<2x32xf32>
    %726 = arith.addf %722, %725 : vector<2x32xf32>
    %727 = arith.maximumf %576, %626 : vector<2x32xf32>
    %728 = arith.maximumf %727, %676 : vector<2x32xf32>
    %729 = arith.maximumf %728, %726 : vector<2x32xf32>
    %c616 = arith.constant 616 : index
    %c0_141 = arith.constant 0 : index
    %730 = vector.load %arg2[%c616, %c0_141] : memref<1080x128xf32, #tpu.memory_space<vmem>>, vector<32x128xf32>
    %c648 = arith.constant 648 : index
    %c0_142 = arith.constant 0 : index
    %731 = vector.load %arg2[%c648, %c0_142] : memref<1080x128xf32, #tpu.memory_space<vmem>>, vector<1x128xf32>
    %c656 = arith.constant 656 : index
    %c0_143 = arith.constant 0 : index
    %732 = vector.load %arg2[%c656, %c0_143] : memref<1080x128xf32, #tpu.memory_space<vmem>>, vector<128x32xf32>
    %c784 = arith.constant 784 : index
    %c0_144 = arith.constant 0 : index
    %733 = vector.load %arg2[%c784, %c0_144] : memref<1080x128xf32, #tpu.memory_space<vmem>>, vector<1x32xf32>
    %c792 = arith.constant 792 : index
    %c0_145 = arith.constant 0 : index
    %734 = vector.load %arg2[%c792, %c0_145] : memref<1080x128xf32, #tpu.memory_space<vmem>>, vector<1x32xf32>
    %c800 = arith.constant 800 : index
    %c0_146 = arith.constant 0 : index
    %735 = vector.load %arg2[%c800, %c0_146] : memref<1080x128xf32, #tpu.memory_space<vmem>>, vector<1x32xf32>
    %736 = arith.truncf %729 : vector<2x32xf32> to vector<2x32xbf16>
    %737 = arith.truncf %730 : vector<32x128xf32> to vector<32x128xbf16>
    %cst_147 = arith.constant dense<0.000000e+00> : vector<2x128xf32>
    %738 = tpu.matmul %736, %737, %cst_147 {dimension_numbers = #tpu.dot_dimension_numbers<[1], [0], [0], [1], [0, 0, 1, 1], [], []>} : vector<2x32xbf16>, vector<32x128xbf16>, vector<2x128xf32> -> vector<2x128xf32>
    %739 = vector.broadcast %731 : vector<1x128xf32> to vector<2x128xf32>
    %740 = arith.addf %738, %739 : vector<2x128xf32>
    %cst_148 = arith.constant 0.000000e+00 : f32
    %741 = vector.broadcast %cst_148 : f32 to vector<2x128xf32>
    %742 = arith.maximumf %740, %741 : vector<2x128xf32>
    %743 = arith.truncf %742 : vector<2x128xf32> to vector<2x128xbf16>
    %744 = arith.truncf %732 : vector<128x32xf32> to vector<128x32xbf16>
    %cst_149 = arith.constant dense<0.000000e+00> : vector<2x32xf32>
    %745 = tpu.matmul %743, %744, %cst_149 {dimension_numbers = #tpu.dot_dimension_numbers<[1], [0], [0], [1], [0, 0, 1, 1], [], []>} : vector<2x128xbf16>, vector<128x32xbf16>, vector<2x32xf32> -> vector<2x32xf32>
    %746 = arith.addf %729, %745 : vector<2x32xf32>
    %747 = vector.broadcast %733 : vector<1x32xf32> to vector<2x32xf32>
    %748 = arith.addf %746, %747 : vector<2x32xf32>
    %cst_150 = arith.constant dense<0.000000e+00> : vector<2xf32>
    %749 = vector.multi_reduction <add>, %748, %cst_150 [1] : vector<2x32xf32> to vector<2xf32>
    %750 = vector.shape_cast %749 : vector<2xf32> to vector<2x1xf32>
    %cst_151 = arith.constant 3.200000e+01 : f32
    %751 = vector.broadcast %cst_151 : f32 to vector<2x1xf32>
    %752 = arith.divf %750, %751 : vector<2x1xf32>
    %753 = vector.broadcast %752 : vector<2x1xf32> to vector<2x32xf32>
    %754 = arith.subf %748, %753 : vector<2x32xf32>
    %755 = arith.mulf %754, %754 : vector<2x32xf32>
    %cst_152 = arith.constant dense<0.000000e+00> : vector<2xf32>
    %756 = vector.multi_reduction <add>, %755, %cst_152 [1] : vector<2x32xf32> to vector<2xf32>
    %757 = vector.shape_cast %756 : vector<2xf32> to vector<2x1xf32>
    %cst_153 = arith.constant 3.200000e+01 : f32
    %758 = vector.broadcast %cst_153 : f32 to vector<2x1xf32>
    %759 = arith.divf %757, %758 : vector<2x1xf32>
    %760 = vector.broadcast %752 : vector<2x1xf32> to vector<2x32xf32>
    %761 = arith.subf %748, %760 : vector<2x32xf32>
    %cst_154 = arith.constant 9.99999974E-6 : f32
    %762 = vector.broadcast %cst_154 : f32 to vector<2x1xf32>
    %763 = arith.addf %759, %762 : vector<2x1xf32>
    %764 = math.rsqrt %763 : vector<2x1xf32>
    %765 = vector.broadcast %764 : vector<2x1xf32> to vector<2x32xf32>
    %766 = arith.mulf %761, %765 : vector<2x32xf32>
    %767 = vector.broadcast %734 : vector<1x32xf32> to vector<2x32xf32>
    %768 = arith.mulf %766, %767 : vector<2x32xf32>
    %769 = vector.broadcast %735 : vector<1x32xf32> to vector<2x32xf32>
    %770 = arith.addf %768, %769 : vector<2x32xf32>
    %771 = vector.extract_strided_slice %7 {offsets = [8, 0], sizes = [2, 96], strides = [1, 1]} : vector<10x96xf32> to vector<2x96xf32>
    %772 = vector.extract_strided_slice %771 {offsets = [0, 0], sizes = [2, 32], strides = [1, 1]} : vector<2x96xf32> to vector<2x32xf32>
    %773 = vector.extract_strided_slice %771 {offsets = [0, 32], sizes = [2, 32], strides = [1, 1]} : vector<2x96xf32> to vector<2x32xf32>
    %774 = vector.extract_strided_slice %771 {offsets = [0, 64], sizes = [2, 32], strides = [1, 1]} : vector<2x96xf32> to vector<2x32xf32>
    %775 = vector.extract_strided_slice %7 {offsets = [0, 0], sizes = [2, 96], strides = [1, 1]} : vector<10x96xf32> to vector<2x96xf32>
    %776 = vector.extract_strided_slice %775 {offsets = [0, 0], sizes = [2, 32], strides = [1, 1]} : vector<2x96xf32> to vector<2x32xf32>
    %777 = vector.extract_strided_slice %775 {offsets = [0, 32], sizes = [2, 32], strides = [1, 1]} : vector<2x96xf32> to vector<2x32xf32>
    %778 = vector.extract_strided_slice %775 {offsets = [0, 64], sizes = [2, 32], strides = [1, 1]} : vector<2x96xf32> to vector<2x32xf32>
    %779 = vector.extract_strided_slice %7 {offsets = [6, 0], sizes = [2, 96], strides = [1, 1]} : vector<10x96xf32> to vector<2x96xf32>
    %780 = vector.extract_strided_slice %779 {offsets = [0, 0], sizes = [2, 32], strides = [1, 1]} : vector<2x96xf32> to vector<2x32xf32>
    %781 = vector.extract_strided_slice %779 {offsets = [0, 32], sizes = [2, 32], strides = [1, 1]} : vector<2x96xf32> to vector<2x32xf32>
    %782 = vector.extract_strided_slice %779 {offsets = [0, 64], sizes = [2, 32], strides = [1, 1]} : vector<2x96xf32> to vector<2x32xf32>
    %783 = vector.extract_strided_slice %13 {offsets = [0, 0], sizes = [2, 32], strides = [1, 1]} : vector<2x96xf32> to vector<2x32xf32>
    %784 = vector.extract_strided_slice %13 {offsets = [0, 32], sizes = [2, 32], strides = [1, 1]} : vector<2x96xf32> to vector<2x32xf32>
    %785 = vector.extract_strided_slice %13 {offsets = [0, 64], sizes = [2, 32], strides = [1, 1]} : vector<2x96xf32> to vector<2x32xf32>
    %786 = arith.mulf %772, %773 : vector<2x32xf32>
    %cst_155 = arith.constant dense<0.000000e+00> : vector<2xf32>
    %787 = vector.multi_reduction <add>, %786, %cst_155 [1] : vector<2x32xf32> to vector<2xf32>
    %788 = vector.shape_cast %787 : vector<2xf32> to vector<2x1xf32>
    %cst_156 = arith.constant 0.176776692 : f32
    %789 = vector.broadcast %cst_156 : f32 to vector<2x1xf32>
    %790 = arith.mulf %788, %789 : vector<2x1xf32>
    %791 = arith.mulf %772, %777 : vector<2x32xf32>
    %cst_157 = arith.constant dense<0.000000e+00> : vector<2xf32>
    %792 = vector.multi_reduction <add>, %791, %cst_157 [1] : vector<2x32xf32> to vector<2xf32>
    %793 = vector.shape_cast %792 : vector<2xf32> to vector<2x1xf32>
    %cst_158 = arith.constant 0.176776692 : f32
    %794 = vector.broadcast %cst_158 : f32 to vector<2x1xf32>
    %795 = arith.mulf %793, %794 : vector<2x1xf32>
    %796 = arith.mulf %772, %781 : vector<2x32xf32>
    %cst_159 = arith.constant dense<0.000000e+00> : vector<2xf32>
    %797 = vector.multi_reduction <add>, %796, %cst_159 [1] : vector<2x32xf32> to vector<2xf32>
    %798 = vector.shape_cast %797 : vector<2xf32> to vector<2x1xf32>
    %cst_160 = arith.constant 0.176776692 : f32
    %799 = vector.broadcast %cst_160 : f32 to vector<2x1xf32>
    %800 = arith.mulf %798, %799 : vector<2x1xf32>
    %801 = arith.mulf %772, %784 : vector<2x32xf32>
    %cst_161 = arith.constant dense<0.000000e+00> : vector<2xf32>
    %802 = vector.multi_reduction <add>, %801, %cst_161 [1] : vector<2x32xf32> to vector<2xf32>
    %803 = vector.shape_cast %802 : vector<2xf32> to vector<2x1xf32>
    %cst_162 = arith.constant 0.176776692 : f32
    %804 = vector.broadcast %cst_162 : f32 to vector<2x1xf32>
    %805 = arith.mulf %803, %804 : vector<2x1xf32>
    %806 = arith.maximumf %790, %795 : vector<2x1xf32>
    %807 = arith.maximumf %806, %800 : vector<2x1xf32>
    %808 = arith.maximumf %807, %805 : vector<2x1xf32>
    %809 = arith.subf %790, %808 : vector<2x1xf32>
    %810 = math.exp %809 : vector<2x1xf32>
    %811 = arith.subf %795, %808 : vector<2x1xf32>
    %812 = math.exp %811 : vector<2x1xf32>
    %813 = arith.subf %800, %808 : vector<2x1xf32>
    %814 = math.exp %813 : vector<2x1xf32>
    %815 = arith.subf %805, %808 : vector<2x1xf32>
    %816 = math.exp %815 : vector<2x1xf32>
    %817 = arith.addf %810, %812 : vector<2x1xf32>
    %818 = arith.addf %817, %814 : vector<2x1xf32>
    %819 = arith.addf %818, %816 : vector<2x1xf32>
    %820 = tpu.reciprocal %819 {approx = true} : vector<2x1xf32> -> vector<2x1xf32>
    %821 = arith.mulf %810, %820 : vector<2x1xf32>
    %822 = vector.broadcast %821 : vector<2x1xf32> to vector<2x32xf32>
    %823 = arith.mulf %822, %774 : vector<2x32xf32>
    %824 = arith.mulf %812, %820 : vector<2x1xf32>
    %825 = vector.broadcast %824 : vector<2x1xf32> to vector<2x32xf32>
    %826 = arith.mulf %825, %778 : vector<2x32xf32>
    %827 = arith.addf %823, %826 : vector<2x32xf32>
    %828 = arith.mulf %814, %820 : vector<2x1xf32>
    %829 = vector.broadcast %828 : vector<2x1xf32> to vector<2x32xf32>
    %830 = arith.mulf %829, %782 : vector<2x32xf32>
    %831 = arith.addf %827, %830 : vector<2x32xf32>
    %832 = arith.mulf %816, %820 : vector<2x1xf32>
    %833 = vector.broadcast %832 : vector<2x1xf32> to vector<2x32xf32>
    %834 = arith.mulf %833, %785 : vector<2x32xf32>
    %835 = arith.addf %831, %834 : vector<2x32xf32>
    %836 = arith.mulf %776, %773 : vector<2x32xf32>
    %cst_163 = arith.constant dense<0.000000e+00> : vector<2xf32>
    %837 = vector.multi_reduction <add>, %836, %cst_163 [1] : vector<2x32xf32> to vector<2xf32>
    %838 = vector.shape_cast %837 : vector<2xf32> to vector<2x1xf32>
    %cst_164 = arith.constant 0.176776692 : f32
    %839 = vector.broadcast %cst_164 : f32 to vector<2x1xf32>
    %840 = arith.mulf %838, %839 : vector<2x1xf32>
    %841 = arith.mulf %776, %777 : vector<2x32xf32>
    %cst_165 = arith.constant dense<0.000000e+00> : vector<2xf32>
    %842 = vector.multi_reduction <add>, %841, %cst_165 [1] : vector<2x32xf32> to vector<2xf32>
    %843 = vector.shape_cast %842 : vector<2xf32> to vector<2x1xf32>
    %cst_166 = arith.constant 0.176776692 : f32
    %844 = vector.broadcast %cst_166 : f32 to vector<2x1xf32>
    %845 = arith.mulf %843, %844 : vector<2x1xf32>
    %846 = arith.mulf %776, %781 : vector<2x32xf32>
    %cst_167 = arith.constant dense<0.000000e+00> : vector<2xf32>
    %847 = vector.multi_reduction <add>, %846, %cst_167 [1] : vector<2x32xf32> to vector<2xf32>
    %848 = vector.shape_cast %847 : vector<2xf32> to vector<2x1xf32>
    %cst_168 = arith.constant 0.176776692 : f32
    %849 = vector.broadcast %cst_168 : f32 to vector<2x1xf32>
    %850 = arith.mulf %848, %849 : vector<2x1xf32>
    %851 = arith.mulf %776, %784 : vector<2x32xf32>
    %cst_169 = arith.constant dense<0.000000e+00> : vector<2xf32>
    %852 = vector.multi_reduction <add>, %851, %cst_169 [1] : vector<2x32xf32> to vector<2xf32>
    %853 = vector.shape_cast %852 : vector<2xf32> to vector<2x1xf32>
    %cst_170 = arith.constant 0.176776692 : f32
    %854 = vector.broadcast %cst_170 : f32 to vector<2x1xf32>
    %855 = arith.mulf %853, %854 : vector<2x1xf32>
    %856 = arith.maximumf %840, %845 : vector<2x1xf32>
    %857 = arith.maximumf %856, %850 : vector<2x1xf32>
    %858 = arith.maximumf %857, %855 : vector<2x1xf32>
    %859 = arith.subf %840, %858 : vector<2x1xf32>
    %860 = math.exp %859 : vector<2x1xf32>
    %861 = arith.subf %845, %858 : vector<2x1xf32>
    %862 = math.exp %861 : vector<2x1xf32>
    %863 = arith.subf %850, %858 : vector<2x1xf32>
    %864 = math.exp %863 : vector<2x1xf32>
    %865 = arith.subf %855, %858 : vector<2x1xf32>
    %866 = math.exp %865 : vector<2x1xf32>
    %867 = arith.addf %860, %862 : vector<2x1xf32>
    %868 = arith.addf %867, %864 : vector<2x1xf32>
    %869 = arith.addf %868, %866 : vector<2x1xf32>
    %870 = tpu.reciprocal %869 {approx = true} : vector<2x1xf32> -> vector<2x1xf32>
    %871 = arith.mulf %860, %870 : vector<2x1xf32>
    %872 = vector.broadcast %871 : vector<2x1xf32> to vector<2x32xf32>
    %873 = arith.mulf %872, %774 : vector<2x32xf32>
    %874 = arith.mulf %862, %870 : vector<2x1xf32>
    %875 = vector.broadcast %874 : vector<2x1xf32> to vector<2x32xf32>
    %876 = arith.mulf %875, %778 : vector<2x32xf32>
    %877 = arith.addf %873, %876 : vector<2x32xf32>
    %878 = arith.mulf %864, %870 : vector<2x1xf32>
    %879 = vector.broadcast %878 : vector<2x1xf32> to vector<2x32xf32>
    %880 = arith.mulf %879, %782 : vector<2x32xf32>
    %881 = arith.addf %877, %880 : vector<2x32xf32>
    %882 = arith.mulf %866, %870 : vector<2x1xf32>
    %883 = vector.broadcast %882 : vector<2x1xf32> to vector<2x32xf32>
    %884 = arith.mulf %883, %785 : vector<2x32xf32>
    %885 = arith.addf %881, %884 : vector<2x32xf32>
    %886 = arith.mulf %780, %773 : vector<2x32xf32>
    %cst_171 = arith.constant dense<0.000000e+00> : vector<2xf32>
    %887 = vector.multi_reduction <add>, %886, %cst_171 [1] : vector<2x32xf32> to vector<2xf32>
    %888 = vector.shape_cast %887 : vector<2xf32> to vector<2x1xf32>
    %cst_172 = arith.constant 0.176776692 : f32
    %889 = vector.broadcast %cst_172 : f32 to vector<2x1xf32>
    %890 = arith.mulf %888, %889 : vector<2x1xf32>
    %891 = arith.mulf %780, %777 : vector<2x32xf32>
    %cst_173 = arith.constant dense<0.000000e+00> : vector<2xf32>
    %892 = vector.multi_reduction <add>, %891, %cst_173 [1] : vector<2x32xf32> to vector<2xf32>
    %893 = vector.shape_cast %892 : vector<2xf32> to vector<2x1xf32>
    %cst_174 = arith.constant 0.176776692 : f32
    %894 = vector.broadcast %cst_174 : f32 to vector<2x1xf32>
    %895 = arith.mulf %893, %894 : vector<2x1xf32>
    %896 = arith.mulf %780, %781 : vector<2x32xf32>
    %cst_175 = arith.constant dense<0.000000e+00> : vector<2xf32>
    %897 = vector.multi_reduction <add>, %896, %cst_175 [1] : vector<2x32xf32> to vector<2xf32>
    %898 = vector.shape_cast %897 : vector<2xf32> to vector<2x1xf32>
    %cst_176 = arith.constant 0.176776692 : f32
    %899 = vector.broadcast %cst_176 : f32 to vector<2x1xf32>
    %900 = arith.mulf %898, %899 : vector<2x1xf32>
    %901 = arith.mulf %780, %784 : vector<2x32xf32>
    %cst_177 = arith.constant dense<0.000000e+00> : vector<2xf32>
    %902 = vector.multi_reduction <add>, %901, %cst_177 [1] : vector<2x32xf32> to vector<2xf32>
    %903 = vector.shape_cast %902 : vector<2xf32> to vector<2x1xf32>
    %cst_178 = arith.constant 0.176776692 : f32
    %904 = vector.broadcast %cst_178 : f32 to vector<2x1xf32>
    %905 = arith.mulf %903, %904 : vector<2x1xf32>
    %906 = arith.maximumf %890, %895 : vector<2x1xf32>
    %907 = arith.maximumf %906, %900 : vector<2x1xf32>
    %908 = arith.maximumf %907, %905 : vector<2x1xf32>
    %909 = arith.subf %890, %908 : vector<2x1xf32>
    %910 = math.exp %909 : vector<2x1xf32>
    %911 = arith.subf %895, %908 : vector<2x1xf32>
    %912 = math.exp %911 : vector<2x1xf32>
    %913 = arith.subf %900, %908 : vector<2x1xf32>
    %914 = math.exp %913 : vector<2x1xf32>
    %915 = arith.subf %905, %908 : vector<2x1xf32>
    %916 = math.exp %915 : vector<2x1xf32>
    %917 = arith.addf %910, %912 : vector<2x1xf32>
    %918 = arith.addf %917, %914 : vector<2x1xf32>
    %919 = arith.addf %918, %916 : vector<2x1xf32>
    %920 = tpu.reciprocal %919 {approx = true} : vector<2x1xf32> -> vector<2x1xf32>
    %921 = arith.mulf %910, %920 : vector<2x1xf32>
    %922 = vector.broadcast %921 : vector<2x1xf32> to vector<2x32xf32>
    %923 = arith.mulf %922, %774 : vector<2x32xf32>
    %924 = arith.mulf %912, %920 : vector<2x1xf32>
    %925 = vector.broadcast %924 : vector<2x1xf32> to vector<2x32xf32>
    %926 = arith.mulf %925, %778 : vector<2x32xf32>
    %927 = arith.addf %923, %926 : vector<2x32xf32>
    %928 = arith.mulf %914, %920 : vector<2x1xf32>
    %929 = vector.broadcast %928 : vector<2x1xf32> to vector<2x32xf32>
    %930 = arith.mulf %929, %782 : vector<2x32xf32>
    %931 = arith.addf %927, %930 : vector<2x32xf32>
    %932 = arith.mulf %916, %920 : vector<2x1xf32>
    %933 = vector.broadcast %932 : vector<2x1xf32> to vector<2x32xf32>
    %934 = arith.mulf %933, %785 : vector<2x32xf32>
    %935 = arith.addf %931, %934 : vector<2x32xf32>
    %936 = arith.mulf %783, %773 : vector<2x32xf32>
    %cst_179 = arith.constant dense<0.000000e+00> : vector<2xf32>
    %937 = vector.multi_reduction <add>, %936, %cst_179 [1] : vector<2x32xf32> to vector<2xf32>
    %938 = vector.shape_cast %937 : vector<2xf32> to vector<2x1xf32>
    %cst_180 = arith.constant 0.176776692 : f32
    %939 = vector.broadcast %cst_180 : f32 to vector<2x1xf32>
    %940 = arith.mulf %938, %939 : vector<2x1xf32>
    %941 = arith.mulf %783, %777 : vector<2x32xf32>
    %cst_181 = arith.constant dense<0.000000e+00> : vector<2xf32>
    %942 = vector.multi_reduction <add>, %941, %cst_181 [1] : vector<2x32xf32> to vector<2xf32>
    %943 = vector.shape_cast %942 : vector<2xf32> to vector<2x1xf32>
    %cst_182 = arith.constant 0.176776692 : f32
    %944 = vector.broadcast %cst_182 : f32 to vector<2x1xf32>
    %945 = arith.mulf %943, %944 : vector<2x1xf32>
    %946 = arith.mulf %783, %781 : vector<2x32xf32>
    %cst_183 = arith.constant dense<0.000000e+00> : vector<2xf32>
    %947 = vector.multi_reduction <add>, %946, %cst_183 [1] : vector<2x32xf32> to vector<2xf32>
    %948 = vector.shape_cast %947 : vector<2xf32> to vector<2x1xf32>
    %cst_184 = arith.constant 0.176776692 : f32
    %949 = vector.broadcast %cst_184 : f32 to vector<2x1xf32>
    %950 = arith.mulf %948, %949 : vector<2x1xf32>
    %951 = arith.mulf %783, %784 : vector<2x32xf32>
    %cst_185 = arith.constant dense<0.000000e+00> : vector<2xf32>
    %952 = vector.multi_reduction <add>, %951, %cst_185 [1] : vector<2x32xf32> to vector<2xf32>
    %953 = vector.shape_cast %952 : vector<2xf32> to vector<2x1xf32>
    %cst_186 = arith.constant 0.176776692 : f32
    %954 = vector.broadcast %cst_186 : f32 to vector<2x1xf32>
    %955 = arith.mulf %953, %954 : vector<2x1xf32>
    %956 = arith.maximumf %940, %945 : vector<2x1xf32>
    %957 = arith.maximumf %956, %950 : vector<2x1xf32>
    %958 = arith.maximumf %957, %955 : vector<2x1xf32>
    %959 = arith.subf %940, %958 : vector<2x1xf32>
    %960 = math.exp %959 : vector<2x1xf32>
    %961 = arith.subf %945, %958 : vector<2x1xf32>
    %962 = math.exp %961 : vector<2x1xf32>
    %963 = arith.subf %950, %958 : vector<2x1xf32>
    %964 = math.exp %963 : vector<2x1xf32>
    %965 = arith.subf %955, %958 : vector<2x1xf32>
    %966 = math.exp %965 : vector<2x1xf32>
    %967 = arith.addf %960, %962 : vector<2x1xf32>
    %968 = arith.addf %967, %964 : vector<2x1xf32>
    %969 = arith.addf %968, %966 : vector<2x1xf32>
    %970 = tpu.reciprocal %969 {approx = true} : vector<2x1xf32> -> vector<2x1xf32>
    %971 = arith.mulf %960, %970 : vector<2x1xf32>
    %972 = vector.broadcast %971 : vector<2x1xf32> to vector<2x32xf32>
    %973 = arith.mulf %972, %774 : vector<2x32xf32>
    %974 = arith.mulf %962, %970 : vector<2x1xf32>
    %975 = vector.broadcast %974 : vector<2x1xf32> to vector<2x32xf32>
    %976 = arith.mulf %975, %778 : vector<2x32xf32>
    %977 = arith.addf %973, %976 : vector<2x32xf32>
    %978 = arith.mulf %964, %970 : vector<2x1xf32>
    %979 = vector.broadcast %978 : vector<2x1xf32> to vector<2x32xf32>
    %980 = arith.mulf %979, %782 : vector<2x32xf32>
    %981 = arith.addf %977, %980 : vector<2x32xf32>
    %982 = arith.mulf %966, %970 : vector<2x1xf32>
    %983 = vector.broadcast %982 : vector<2x1xf32> to vector<2x32xf32>
    %984 = arith.mulf %983, %785 : vector<2x32xf32>
    %985 = arith.addf %981, %984 : vector<2x32xf32>
    %986 = arith.maximumf %835, %885 : vector<2x32xf32>
    %987 = arith.maximumf %986, %935 : vector<2x32xf32>
    %988 = arith.maximumf %987, %985 : vector<2x32xf32>
    %c808 = arith.constant 808 : index
    %c0_187 = arith.constant 0 : index
    %989 = vector.load %arg2[%c808, %c0_187] : memref<1080x128xf32, #tpu.memory_space<vmem>>, vector<32x128xf32>
    %c840 = arith.constant 840 : index
    %c0_188 = arith.constant 0 : index
    %990 = vector.load %arg2[%c840, %c0_188] : memref<1080x128xf32, #tpu.memory_space<vmem>>, vector<1x128xf32>
    %c848 = arith.constant 848 : index
    %c0_189 = arith.constant 0 : index
    %991 = vector.load %arg2[%c848, %c0_189] : memref<1080x128xf32, #tpu.memory_space<vmem>>, vector<128x32xf32>
    %c976 = arith.constant 976 : index
    %c0_190 = arith.constant 0 : index
    %992 = vector.load %arg2[%c976, %c0_190] : memref<1080x128xf32, #tpu.memory_space<vmem>>, vector<1x32xf32>
    %c984 = arith.constant 984 : index
    %c0_191 = arith.constant 0 : index
    %993 = vector.load %arg2[%c984, %c0_191] : memref<1080x128xf32, #tpu.memory_space<vmem>>, vector<1x32xf32>
    %c992 = arith.constant 992 : index
    %c0_192 = arith.constant 0 : index
    %994 = vector.load %arg2[%c992, %c0_192] : memref<1080x128xf32, #tpu.memory_space<vmem>>, vector<1x32xf32>
    %995 = arith.truncf %988 : vector<2x32xf32> to vector<2x32xbf16>
    %996 = arith.truncf %989 : vector<32x128xf32> to vector<32x128xbf16>
    %cst_193 = arith.constant dense<0.000000e+00> : vector<2x128xf32>
    %997 = tpu.matmul %995, %996, %cst_193 {dimension_numbers = #tpu.dot_dimension_numbers<[1], [0], [0], [1], [0, 0, 1, 1], [], []>} : vector<2x32xbf16>, vector<32x128xbf16>, vector<2x128xf32> -> vector<2x128xf32>
    %998 = vector.broadcast %990 : vector<1x128xf32> to vector<2x128xf32>
    %999 = arith.addf %997, %998 : vector<2x128xf32>
    %cst_194 = arith.constant 0.000000e+00 : f32
    %1000 = vector.broadcast %cst_194 : f32 to vector<2x128xf32>
    %1001 = arith.maximumf %999, %1000 : vector<2x128xf32>
    %1002 = arith.truncf %1001 : vector<2x128xf32> to vector<2x128xbf16>
    %1003 = arith.truncf %991 : vector<128x32xf32> to vector<128x32xbf16>
    %cst_195 = arith.constant dense<0.000000e+00> : vector<2x32xf32>
    %1004 = tpu.matmul %1002, %1003, %cst_195 {dimension_numbers = #tpu.dot_dimension_numbers<[1], [0], [0], [1], [0, 0, 1, 1], [], []>} : vector<2x128xbf16>, vector<128x32xbf16>, vector<2x32xf32> -> vector<2x32xf32>
    %1005 = arith.addf %988, %1004 : vector<2x32xf32>
    %1006 = vector.broadcast %992 : vector<1x32xf32> to vector<2x32xf32>
    %1007 = arith.addf %1005, %1006 : vector<2x32xf32>
    %cst_196 = arith.constant dense<0.000000e+00> : vector<2xf32>
    %1008 = vector.multi_reduction <add>, %1007, %cst_196 [1] : vector<2x32xf32> to vector<2xf32>
    %1009 = vector.shape_cast %1008 : vector<2xf32> to vector<2x1xf32>
    %cst_197 = arith.constant 3.200000e+01 : f32
    %1010 = vector.broadcast %cst_197 : f32 to vector<2x1xf32>
    %1011 = arith.divf %1009, %1010 : vector<2x1xf32>
    %1012 = vector.broadcast %1011 : vector<2x1xf32> to vector<2x32xf32>
    %1013 = arith.subf %1007, %1012 : vector<2x32xf32>
    %1014 = arith.mulf %1013, %1013 : vector<2x32xf32>
    %cst_198 = arith.constant dense<0.000000e+00> : vector<2xf32>
    %1015 = vector.multi_reduction <add>, %1014, %cst_198 [1] : vector<2x32xf32> to vector<2xf32>
    %1016 = vector.shape_cast %1015 : vector<2xf32> to vector<2x1xf32>
    %cst_199 = arith.constant 3.200000e+01 : f32
    %1017 = vector.broadcast %cst_199 : f32 to vector<2x1xf32>
    %1018 = arith.divf %1016, %1017 : vector<2x1xf32>
    %1019 = vector.broadcast %1011 : vector<2x1xf32> to vector<2x32xf32>
    %1020 = arith.subf %1007, %1019 : vector<2x32xf32>
    %cst_200 = arith.constant 9.99999974E-6 : f32
    %1021 = vector.broadcast %cst_200 : f32 to vector<2x1xf32>
    %1022 = arith.addf %1018, %1021 : vector<2x1xf32>
    %1023 = math.rsqrt %1022 : vector<2x1xf32>
    %1024 = vector.broadcast %1023 : vector<2x1xf32> to vector<2x32xf32>
    %1025 = arith.mulf %1020, %1024 : vector<2x32xf32>
    %1026 = vector.broadcast %993 : vector<1x32xf32> to vector<2x32xf32>
    %1027 = arith.mulf %1025, %1026 : vector<2x32xf32>
    %1028 = vector.broadcast %994 : vector<1x32xf32> to vector<2x32xf32>
    %1029 = arith.addf %1027, %1028 : vector<2x32xf32>
    %c1000 = arith.constant 1000 : index
    %c0_201 = arith.constant 0 : index
    %1030 = vector.load %arg2[%c1000, %c0_201] : memref<1080x128xf32, #tpu.memory_space<vmem>>, vector<32x16xf32>
    %1031 = arith.truncf %770 : vector<2x32xf32> to vector<2x32xbf16>
    %1032 = arith.truncf %1030 : vector<32x16xf32> to vector<32x16xbf16>
    %cst_202 = arith.constant dense<0.000000e+00> : vector<2x16xf32>
    %1033 = tpu.matmul %1031, %1032, %cst_202 {dimension_numbers = #tpu.dot_dimension_numbers<[1], [0], [0], [1], [0, 0, 1, 1], [], []>} : vector<2x32xbf16>, vector<32x16xbf16>, vector<2x16xf32> -> vector<2x16xf32>
    %c1032 = arith.constant 1032 : index
    %c0_203 = arith.constant 0 : index
    %1034 = vector.load %arg2[%c1032, %c0_203] : memref<1080x128xf32, #tpu.memory_space<vmem>>, vector<1x16xf32>
    %1035 = vector.broadcast %1034 : vector<1x16xf32> to vector<2x16xf32>
    %1036 = arith.addf %1033, %1035 : vector<2x16xf32>
    %1037 = arith.negf %1036 : vector<2x16xf32>
    %1038 = math.exp %1037 : vector<2x16xf32>
    %cst_204 = arith.constant 1.000000e+00 : f32
    %1039 = vector.broadcast %cst_204 : f32 to vector<2x16xf32>
    %1040 = arith.addf %1039, %1038 : vector<2x16xf32>
    %1041 = arith.divf %1039, %1040 : vector<2x16xf32>
    %c0_205 = arith.constant 0 : index
    %c0_206 = arith.constant 0 : index
    %1042 = vector.load %arg6[%c0_205, %c0_206] : memref<2x16xf32, #tpu.memory_space<vmem>>, vector<2x16xf32>
    tpu.vector_store %arg6[%c0_205, %c0_206], %1041 {strides = array<i32>} : memref<2x16xf32, #tpu.memory_space<vmem>>, vector<2x16xf32>,
    %c1040 = arith.constant 1040 : index
    %c0_207 = arith.constant 0 : index
    %1043 = vector.load %arg2[%c1040, %c0_207] : memref<1080x128xf32, #tpu.memory_space<vmem>>, vector<32x24xf32>
    %1044 = arith.truncf %1029 : vector<2x32xf32> to vector<2x32xbf16>
    %1045 = arith.truncf %1043 : vector<32x24xf32> to vector<32x24xbf16>
    %cst_208 = arith.constant dense<0.000000e+00> : vector<2x24xf32>
    %1046 = tpu.matmul %1044, %1045, %cst_208 {dimension_numbers = #tpu.dot_dimension_numbers<[1], [0], [0], [1], [0, 0, 1, 1], [], []>} : vector<2x32xbf16>, vector<32x24xbf16>, vector<2x24xf32> -> vector<2x24xf32>
    %c1072 = arith.constant 1072 : index
    %c0_209 = arith.constant 0 : index
    %1047 = vector.load %arg2[%c1072, %c0_209] : memref<1080x128xf32, #tpu.memory_space<vmem>>, vector<1x24xf32>
    %1048 = vector.broadcast %1047 : vector<1x24xf32> to vector<2x24xf32>
    %1049 = arith.addf %1046, %1048 : vector<2x24xf32>
    %1050 = arith.negf %1049 : vector<2x24xf32>
    %1051 = math.exp %1050 : vector<2x24xf32>
    %cst_210 = arith.constant 1.000000e+00 : f32
    %1052 = vector.broadcast %cst_210 : f32 to vector<2x24xf32>
    %1053 = arith.addf %1052, %1051 : vector<2x24xf32>
    %1054 = arith.divf %1052, %1053 : vector<2x24xf32>
    %c0_211 = arith.constant 0 : index
    %c0_212 = arith.constant 0 : index
    %1055 = vector.load %arg7[%c0_211, %c0_212] : memref<2x24xf32, #tpu.memory_space<vmem>>, vector<2x24xf32>
    tpu.vector_store %arg7[%c0_211, %c0_212], %1054 {strides = array<i32>} : memref<2x24xf32, #tpu.memory_space<vmem>>, vector<2x24xf32>,
    return
  }
}

module attributes {stable_mosaic.version = 11 : i64} {
  func.func @_icu_kernel(%arg0: memref<48x12xf32, #tpu.memory_space<vmem>>, %arg1: memref<6x73xf32, #tpu.memory_space<vmem>>, %arg2: memref<728x128xf32, #tpu.memory_space<vmem>>, %arg3: memref<2x32xf32, #tpu.memory_space<vmem>>) attributes {dimension_semantics = [], scalar_prefetch = 0 : i64, scratch_operands = 0 : i64, tpu.core_type = #tpu.core_type<tc>} {
    %c0 = arith.constant 0 : index
    %c0_0 = arith.constant 0 : index
    %0 = vector.load %arg0[%c0, %c0_0] : memref<48x12xf32, #tpu.memory_space<vmem>>, vector<48x12xf32>
    %c0_1 = arith.constant 0 : index
    %c0_2 = arith.constant 0 : index
    %1 = vector.load %arg2[%c0_1, %c0_2] : memref<728x128xf32, #tpu.memory_space<vmem>>, vector<12x128xf32>
    %2 = arith.truncf %0 : vector<48x12xf32> to vector<48x12xbf16>
    %3 = arith.truncf %1 : vector<12x128xf32> to vector<12x128xbf16>
    %cst = arith.constant dense<0.000000e+00> : vector<48x128xf32>
    %4 = tpu.matmul %2, %3, %cst {dimension_numbers = #tpu.dot_dimension_numbers<[1], [0], [0], [1], [0, 0, 1, 1], [], []>} : vector<48x12xbf16>, vector<12x128xbf16>, vector<48x128xf32> -> vector<48x128xf32>
    %c48 = arith.constant 48 : index
    %c0_3 = arith.constant 0 : index
    %5 = vector.load %arg2[%c48, %c0_3] : memref<728x128xf32, #tpu.memory_space<vmem>>, vector<1x128xf32>
    %6 = vector.broadcast %5 : vector<1x128xf32> to vector<48x128xf32>
    %7 = arith.addf %4, %6 : vector<48x128xf32>
    %c16 = arith.constant 16 : index
    %c0_4 = arith.constant 0 : index
    %8 = vector.load %arg2[%c16, %c0_4] : memref<728x128xf32, #tpu.memory_space<vmem>>, vector<32x128xf32>
    %9 = arith.truncf %8 : vector<32x128xf32> to vector<32x128xbf16>
    %cst_5 = arith.constant 0.000000e+00 : f32
    %10 = vector.broadcast %cst_5 : f32 to vector<6x32xf32>
    %cst_6 = arith.constant 0.000000e+00 : f32
    %11 = vector.broadcast %cst_6 : f32 to vector<6x32xf32>
    %12 = vector.extract_strided_slice %7 {offsets = [0, 0], sizes = [6, 128], strides = [1, 1]} : vector<48x128xf32> to vector<6x128xf32>
    %13 = arith.truncf %10 : vector<6x32xf32> to vector<6x32xbf16>
    %cst_7 = arith.constant dense<0.000000e+00> : vector<6x128xf32>
    %14 = tpu.matmul %13, %9, %cst_7 {dimension_numbers = #tpu.dot_dimension_numbers<[1], [0], [0], [1], [0, 0, 1, 1], [], []>} : vector<6x32xbf16>, vector<32x128xbf16>, vector<6x128xf32> -> vector<6x128xf32>
    %15 = arith.addf %12, %14 : vector<6x128xf32>
    %16 = vector.extract_strided_slice %15 {offsets = [0, 0], sizes = [6, 32], strides = [1, 1]} : vector<6x128xf32> to vector<6x32xf32>
    %17 = arith.negf %16 : vector<6x32xf32>
    %18 = math.exp %17 : vector<6x32xf32>
    %cst_8 = arith.constant 1.000000e+00 : f32
    %19 = vector.broadcast %cst_8 : f32 to vector<6x32xf32>
    %20 = arith.addf %19, %18 : vector<6x32xf32>
    %21 = arith.divf %19, %20 : vector<6x32xf32>
    %22 = vector.extract_strided_slice %15 {offsets = [0, 32], sizes = [6, 32], strides = [1, 1]} : vector<6x128xf32> to vector<6x32xf32>
    %23 = arith.negf %22 : vector<6x32xf32>
    %24 = math.exp %23 : vector<6x32xf32>
    %cst_9 = arith.constant 1.000000e+00 : f32
    %25 = vector.broadcast %cst_9 : f32 to vector<6x32xf32>
    %26 = arith.addf %25, %24 : vector<6x32xf32>
    %27 = arith.divf %25, %26 : vector<6x32xf32>
    %28 = vector.extract_strided_slice %15 {offsets = [0, 64], sizes = [6, 32], strides = [1, 1]} : vector<6x128xf32> to vector<6x32xf32>
    %29 = math.tanh %28 : vector<6x32xf32>
    %30 = vector.extract_strided_slice %15 {offsets = [0, 96], sizes = [6, 32], strides = [1, 1]} : vector<6x128xf32> to vector<6x32xf32>
    %31 = arith.negf %30 : vector<6x32xf32>
    %32 = math.exp %31 : vector<6x32xf32>
    %cst_10 = arith.constant 1.000000e+00 : f32
    %33 = vector.broadcast %cst_10 : f32 to vector<6x32xf32>
    %34 = arith.addf %33, %32 : vector<6x32xf32>
    %35 = arith.divf %33, %34 : vector<6x32xf32>
    %36 = arith.mulf %27, %11 : vector<6x32xf32>
    %37 = arith.mulf %21, %29 : vector<6x32xf32>
    %38 = arith.addf %36, %37 : vector<6x32xf32>
    %39 = math.tanh %38 : vector<6x32xf32>
    %40 = arith.mulf %35, %39 : vector<6x32xf32>
    %41 = vector.extract_strided_slice %7 {offsets = [6, 0], sizes = [6, 128], strides = [1, 1]} : vector<48x128xf32> to vector<6x128xf32>
    %42 = arith.truncf %40 : vector<6x32xf32> to vector<6x32xbf16>
    %cst_11 = arith.constant dense<0.000000e+00> : vector<6x128xf32>
    %43 = tpu.matmul %42, %9, %cst_11 {dimension_numbers = #tpu.dot_dimension_numbers<[1], [0], [0], [1], [0, 0, 1, 1], [], []>} : vector<6x32xbf16>, vector<32x128xbf16>, vector<6x128xf32> -> vector<6x128xf32>
    %44 = arith.addf %41, %43 : vector<6x128xf32>
    %45 = vector.extract_strided_slice %44 {offsets = [0, 0], sizes = [6, 32], strides = [1, 1]} : vector<6x128xf32> to vector<6x32xf32>
    %46 = arith.negf %45 : vector<6x32xf32>
    %47 = math.exp %46 : vector<6x32xf32>
    %cst_12 = arith.constant 1.000000e+00 : f32
    %48 = vector.broadcast %cst_12 : f32 to vector<6x32xf32>
    %49 = arith.addf %48, %47 : vector<6x32xf32>
    %50 = arith.divf %48, %49 : vector<6x32xf32>
    %51 = vector.extract_strided_slice %44 {offsets = [0, 32], sizes = [6, 32], strides = [1, 1]} : vector<6x128xf32> to vector<6x32xf32>
    %52 = arith.negf %51 : vector<6x32xf32>
    %53 = math.exp %52 : vector<6x32xf32>
    %cst_13 = arith.constant 1.000000e+00 : f32
    %54 = vector.broadcast %cst_13 : f32 to vector<6x32xf32>
    %55 = arith.addf %54, %53 : vector<6x32xf32>
    %56 = arith.divf %54, %55 : vector<6x32xf32>
    %57 = vector.extract_strided_slice %44 {offsets = [0, 64], sizes = [6, 32], strides = [1, 1]} : vector<6x128xf32> to vector<6x32xf32>
    %58 = math.tanh %57 : vector<6x32xf32>
    %59 = vector.extract_strided_slice %44 {offsets = [0, 96], sizes = [6, 32], strides = [1, 1]} : vector<6x128xf32> to vector<6x32xf32>
    %60 = arith.negf %59 : vector<6x32xf32>
    %61 = math.exp %60 : vector<6x32xf32>
    %cst_14 = arith.constant 1.000000e+00 : f32
    %62 = vector.broadcast %cst_14 : f32 to vector<6x32xf32>
    %63 = arith.addf %62, %61 : vector<6x32xf32>
    %64 = arith.divf %62, %63 : vector<6x32xf32>
    %65 = arith.mulf %56, %38 : vector<6x32xf32>
    %66 = arith.mulf %50, %58 : vector<6x32xf32>
    %67 = arith.addf %65, %66 : vector<6x32xf32>
    %68 = math.tanh %67 : vector<6x32xf32>
    %69 = arith.mulf %64, %68 : vector<6x32xf32>
    %70 = vector.extract_strided_slice %7 {offsets = [12, 0], sizes = [6, 128], strides = [1, 1]} : vector<48x128xf32> to vector<6x128xf32>
    %71 = arith.truncf %69 : vector<6x32xf32> to vector<6x32xbf16>
    %cst_15 = arith.constant dense<0.000000e+00> : vector<6x128xf32>
    %72 = tpu.matmul %71, %9, %cst_15 {dimension_numbers = #tpu.dot_dimension_numbers<[1], [0], [0], [1], [0, 0, 1, 1], [], []>} : vector<6x32xbf16>, vector<32x128xbf16>, vector<6x128xf32> -> vector<6x128xf32>
    %73 = arith.addf %70, %72 : vector<6x128xf32>
    %74 = vector.extract_strided_slice %73 {offsets = [0, 0], sizes = [6, 32], strides = [1, 1]} : vector<6x128xf32> to vector<6x32xf32>
    %75 = arith.negf %74 : vector<6x32xf32>
    %76 = math.exp %75 : vector<6x32xf32>
    %cst_16 = arith.constant 1.000000e+00 : f32
    %77 = vector.broadcast %cst_16 : f32 to vector<6x32xf32>
    %78 = arith.addf %77, %76 : vector<6x32xf32>
    %79 = arith.divf %77, %78 : vector<6x32xf32>
    %80 = vector.extract_strided_slice %73 {offsets = [0, 32], sizes = [6, 32], strides = [1, 1]} : vector<6x128xf32> to vector<6x32xf32>
    %81 = arith.negf %80 : vector<6x32xf32>
    %82 = math.exp %81 : vector<6x32xf32>
    %cst_17 = arith.constant 1.000000e+00 : f32
    %83 = vector.broadcast %cst_17 : f32 to vector<6x32xf32>
    %84 = arith.addf %83, %82 : vector<6x32xf32>
    %85 = arith.divf %83, %84 : vector<6x32xf32>
    %86 = vector.extract_strided_slice %73 {offsets = [0, 64], sizes = [6, 32], strides = [1, 1]} : vector<6x128xf32> to vector<6x32xf32>
    %87 = math.tanh %86 : vector<6x32xf32>
    %88 = vector.extract_strided_slice %73 {offsets = [0, 96], sizes = [6, 32], strides = [1, 1]} : vector<6x128xf32> to vector<6x32xf32>
    %89 = arith.negf %88 : vector<6x32xf32>
    %90 = math.exp %89 : vector<6x32xf32>
    %cst_18 = arith.constant 1.000000e+00 : f32
    %91 = vector.broadcast %cst_18 : f32 to vector<6x32xf32>
    %92 = arith.addf %91, %90 : vector<6x32xf32>
    %93 = arith.divf %91, %92 : vector<6x32xf32>
    %94 = arith.mulf %85, %67 : vector<6x32xf32>
    %95 = arith.mulf %79, %87 : vector<6x32xf32>
    %96 = arith.addf %94, %95 : vector<6x32xf32>
    %97 = math.tanh %96 : vector<6x32xf32>
    %98 = arith.mulf %93, %97 : vector<6x32xf32>
    %99 = vector.extract_strided_slice %7 {offsets = [18, 0], sizes = [6, 128], strides = [1, 1]} : vector<48x128xf32> to vector<6x128xf32>
    %100 = arith.truncf %98 : vector<6x32xf32> to vector<6x32xbf16>
    %cst_19 = arith.constant dense<0.000000e+00> : vector<6x128xf32>
    %101 = tpu.matmul %100, %9, %cst_19 {dimension_numbers = #tpu.dot_dimension_numbers<[1], [0], [0], [1], [0, 0, 1, 1], [], []>} : vector<6x32xbf16>, vector<32x128xbf16>, vector<6x128xf32> -> vector<6x128xf32>
    %102 = arith.addf %99, %101 : vector<6x128xf32>
    %103 = vector.extract_strided_slice %102 {offsets = [0, 0], sizes = [6, 32], strides = [1, 1]} : vector<6x128xf32> to vector<6x32xf32>
    %104 = arith.negf %103 : vector<6x32xf32>
    %105 = math.exp %104 : vector<6x32xf32>
    %cst_20 = arith.constant 1.000000e+00 : f32
    %106 = vector.broadcast %cst_20 : f32 to vector<6x32xf32>
    %107 = arith.addf %106, %105 : vector<6x32xf32>
    %108 = arith.divf %106, %107 : vector<6x32xf32>
    %109 = vector.extract_strided_slice %102 {offsets = [0, 32], sizes = [6, 32], strides = [1, 1]} : vector<6x128xf32> to vector<6x32xf32>
    %110 = arith.negf %109 : vector<6x32xf32>
    %111 = math.exp %110 : vector<6x32xf32>
    %cst_21 = arith.constant 1.000000e+00 : f32
    %112 = vector.broadcast %cst_21 : f32 to vector<6x32xf32>
    %113 = arith.addf %112, %111 : vector<6x32xf32>
    %114 = arith.divf %112, %113 : vector<6x32xf32>
    %115 = vector.extract_strided_slice %102 {offsets = [0, 64], sizes = [6, 32], strides = [1, 1]} : vector<6x128xf32> to vector<6x32xf32>
    %116 = math.tanh %115 : vector<6x32xf32>
    %117 = vector.extract_strided_slice %102 {offsets = [0, 96], sizes = [6, 32], strides = [1, 1]} : vector<6x128xf32> to vector<6x32xf32>
    %118 = arith.negf %117 : vector<6x32xf32>
    %119 = math.exp %118 : vector<6x32xf32>
    %cst_22 = arith.constant 1.000000e+00 : f32
    %120 = vector.broadcast %cst_22 : f32 to vector<6x32xf32>
    %121 = arith.addf %120, %119 : vector<6x32xf32>
    %122 = arith.divf %120, %121 : vector<6x32xf32>
    %123 = arith.mulf %114, %96 : vector<6x32xf32>
    %124 = arith.mulf %108, %116 : vector<6x32xf32>
    %125 = arith.addf %123, %124 : vector<6x32xf32>
    %126 = math.tanh %125 : vector<6x32xf32>
    %127 = arith.mulf %122, %126 : vector<6x32xf32>
    %128 = vector.extract_strided_slice %7 {offsets = [24, 0], sizes = [6, 128], strides = [1, 1]} : vector<48x128xf32> to vector<6x128xf32>
    %129 = arith.truncf %127 : vector<6x32xf32> to vector<6x32xbf16>
    %cst_23 = arith.constant dense<0.000000e+00> : vector<6x128xf32>
    %130 = tpu.matmul %129, %9, %cst_23 {dimension_numbers = #tpu.dot_dimension_numbers<[1], [0], [0], [1], [0, 0, 1, 1], [], []>} : vector<6x32xbf16>, vector<32x128xbf16>, vector<6x128xf32> -> vector<6x128xf32>
    %131 = arith.addf %128, %130 : vector<6x128xf32>
    %132 = vector.extract_strided_slice %131 {offsets = [0, 0], sizes = [6, 32], strides = [1, 1]} : vector<6x128xf32> to vector<6x32xf32>
    %133 = arith.negf %132 : vector<6x32xf32>
    %134 = math.exp %133 : vector<6x32xf32>
    %cst_24 = arith.constant 1.000000e+00 : f32
    %135 = vector.broadcast %cst_24 : f32 to vector<6x32xf32>
    %136 = arith.addf %135, %134 : vector<6x32xf32>
    %137 = arith.divf %135, %136 : vector<6x32xf32>
    %138 = vector.extract_strided_slice %131 {offsets = [0, 32], sizes = [6, 32], strides = [1, 1]} : vector<6x128xf32> to vector<6x32xf32>
    %139 = arith.negf %138 : vector<6x32xf32>
    %140 = math.exp %139 : vector<6x32xf32>
    %cst_25 = arith.constant 1.000000e+00 : f32
    %141 = vector.broadcast %cst_25 : f32 to vector<6x32xf32>
    %142 = arith.addf %141, %140 : vector<6x32xf32>
    %143 = arith.divf %141, %142 : vector<6x32xf32>
    %144 = vector.extract_strided_slice %131 {offsets = [0, 64], sizes = [6, 32], strides = [1, 1]} : vector<6x128xf32> to vector<6x32xf32>
    %145 = math.tanh %144 : vector<6x32xf32>
    %146 = vector.extract_strided_slice %131 {offsets = [0, 96], sizes = [6, 32], strides = [1, 1]} : vector<6x128xf32> to vector<6x32xf32>
    %147 = arith.negf %146 : vector<6x32xf32>
    %148 = math.exp %147 : vector<6x32xf32>
    %cst_26 = arith.constant 1.000000e+00 : f32
    %149 = vector.broadcast %cst_26 : f32 to vector<6x32xf32>
    %150 = arith.addf %149, %148 : vector<6x32xf32>
    %151 = arith.divf %149, %150 : vector<6x32xf32>
    %152 = arith.mulf %143, %125 : vector<6x32xf32>
    %153 = arith.mulf %137, %145 : vector<6x32xf32>
    %154 = arith.addf %152, %153 : vector<6x32xf32>
    %155 = math.tanh %154 : vector<6x32xf32>
    %156 = arith.mulf %151, %155 : vector<6x32xf32>
    %157 = vector.extract_strided_slice %7 {offsets = [30, 0], sizes = [6, 128], strides = [1, 1]} : vector<48x128xf32> to vector<6x128xf32>
    %158 = arith.truncf %156 : vector<6x32xf32> to vector<6x32xbf16>
    %cst_27 = arith.constant dense<0.000000e+00> : vector<6x128xf32>
    %159 = tpu.matmul %158, %9, %cst_27 {dimension_numbers = #tpu.dot_dimension_numbers<[1], [0], [0], [1], [0, 0, 1, 1], [], []>} : vector<6x32xbf16>, vector<32x128xbf16>, vector<6x128xf32> -> vector<6x128xf32>
    %160 = arith.addf %157, %159 : vector<6x128xf32>
    %161 = vector.extract_strided_slice %160 {offsets = [0, 0], sizes = [6, 32], strides = [1, 1]} : vector<6x128xf32> to vector<6x32xf32>
    %162 = arith.negf %161 : vector<6x32xf32>
    %163 = math.exp %162 : vector<6x32xf32>
    %cst_28 = arith.constant 1.000000e+00 : f32
    %164 = vector.broadcast %cst_28 : f32 to vector<6x32xf32>
    %165 = arith.addf %164, %163 : vector<6x32xf32>
    %166 = arith.divf %164, %165 : vector<6x32xf32>
    %167 = vector.extract_strided_slice %160 {offsets = [0, 32], sizes = [6, 32], strides = [1, 1]} : vector<6x128xf32> to vector<6x32xf32>
    %168 = arith.negf %167 : vector<6x32xf32>
    %169 = math.exp %168 : vector<6x32xf32>
    %cst_29 = arith.constant 1.000000e+00 : f32
    %170 = vector.broadcast %cst_29 : f32 to vector<6x32xf32>
    %171 = arith.addf %170, %169 : vector<6x32xf32>
    %172 = arith.divf %170, %171 : vector<6x32xf32>
    %173 = vector.extract_strided_slice %160 {offsets = [0, 64], sizes = [6, 32], strides = [1, 1]} : vector<6x128xf32> to vector<6x32xf32>
    %174 = math.tanh %173 : vector<6x32xf32>
    %175 = vector.extract_strided_slice %160 {offsets = [0, 96], sizes = [6, 32], strides = [1, 1]} : vector<6x128xf32> to vector<6x32xf32>
    %176 = arith.negf %175 : vector<6x32xf32>
    %177 = math.exp %176 : vector<6x32xf32>
    %cst_30 = arith.constant 1.000000e+00 : f32
    %178 = vector.broadcast %cst_30 : f32 to vector<6x32xf32>
    %179 = arith.addf %178, %177 : vector<6x32xf32>
    %180 = arith.divf %178, %179 : vector<6x32xf32>
    %181 = arith.mulf %172, %154 : vector<6x32xf32>
    %182 = arith.mulf %166, %174 : vector<6x32xf32>
    %183 = arith.addf %181, %182 : vector<6x32xf32>
    %184 = math.tanh %183 : vector<6x32xf32>
    %185 = arith.mulf %180, %184 : vector<6x32xf32>
    %186 = vector.extract_strided_slice %7 {offsets = [36, 0], sizes = [6, 128], strides = [1, 1]} : vector<48x128xf32> to vector<6x128xf32>
    %187 = arith.truncf %185 : vector<6x32xf32> to vector<6x32xbf16>
    %cst_31 = arith.constant dense<0.000000e+00> : vector<6x128xf32>
    %188 = tpu.matmul %187, %9, %cst_31 {dimension_numbers = #tpu.dot_dimension_numbers<[1], [0], [0], [1], [0, 0, 1, 1], [], []>} : vector<6x32xbf16>, vector<32x128xbf16>, vector<6x128xf32> -> vector<6x128xf32>
    %189 = arith.addf %186, %188 : vector<6x128xf32>
    %190 = vector.extract_strided_slice %189 {offsets = [0, 0], sizes = [6, 32], strides = [1, 1]} : vector<6x128xf32> to vector<6x32xf32>
    %191 = arith.negf %190 : vector<6x32xf32>
    %192 = math.exp %191 : vector<6x32xf32>
    %cst_32 = arith.constant 1.000000e+00 : f32
    %193 = vector.broadcast %cst_32 : f32 to vector<6x32xf32>
    %194 = arith.addf %193, %192 : vector<6x32xf32>
    %195 = arith.divf %193, %194 : vector<6x32xf32>
    %196 = vector.extract_strided_slice %189 {offsets = [0, 32], sizes = [6, 32], strides = [1, 1]} : vector<6x128xf32> to vector<6x32xf32>
    %197 = arith.negf %196 : vector<6x32xf32>
    %198 = math.exp %197 : vector<6x32xf32>
    %cst_33 = arith.constant 1.000000e+00 : f32
    %199 = vector.broadcast %cst_33 : f32 to vector<6x32xf32>
    %200 = arith.addf %199, %198 : vector<6x32xf32>
    %201 = arith.divf %199, %200 : vector<6x32xf32>
    %202 = vector.extract_strided_slice %189 {offsets = [0, 64], sizes = [6, 32], strides = [1, 1]} : vector<6x128xf32> to vector<6x32xf32>
    %203 = math.tanh %202 : vector<6x32xf32>
    %204 = vector.extract_strided_slice %189 {offsets = [0, 96], sizes = [6, 32], strides = [1, 1]} : vector<6x128xf32> to vector<6x32xf32>
    %205 = arith.negf %204 : vector<6x32xf32>
    %206 = math.exp %205 : vector<6x32xf32>
    %cst_34 = arith.constant 1.000000e+00 : f32
    %207 = vector.broadcast %cst_34 : f32 to vector<6x32xf32>
    %208 = arith.addf %207, %206 : vector<6x32xf32>
    %209 = arith.divf %207, %208 : vector<6x32xf32>
    %210 = arith.mulf %201, %183 : vector<6x32xf32>
    %211 = arith.mulf %195, %203 : vector<6x32xf32>
    %212 = arith.addf %210, %211 : vector<6x32xf32>
    %213 = math.tanh %212 : vector<6x32xf32>
    %214 = arith.mulf %209, %213 : vector<6x32xf32>
    %215 = vector.extract_strided_slice %7 {offsets = [42, 0], sizes = [6, 128], strides = [1, 1]} : vector<48x128xf32> to vector<6x128xf32>
    %216 = arith.truncf %214 : vector<6x32xf32> to vector<6x32xbf16>
    %cst_35 = arith.constant dense<0.000000e+00> : vector<6x128xf32>
    %217 = tpu.matmul %216, %9, %cst_35 {dimension_numbers = #tpu.dot_dimension_numbers<[1], [0], [0], [1], [0, 0, 1, 1], [], []>} : vector<6x32xbf16>, vector<32x128xbf16>, vector<6x128xf32> -> vector<6x128xf32>
    %218 = arith.addf %215, %217 : vector<6x128xf32>
    %219 = vector.extract_strided_slice %218 {offsets = [0, 0], sizes = [6, 32], strides = [1, 1]} : vector<6x128xf32> to vector<6x32xf32>
    %220 = arith.negf %219 : vector<6x32xf32>
    %221 = math.exp %220 : vector<6x32xf32>
    %cst_36 = arith.constant 1.000000e+00 : f32
    %222 = vector.broadcast %cst_36 : f32 to vector<6x32xf32>
    %223 = arith.addf %222, %221 : vector<6x32xf32>
    %224 = arith.divf %222, %223 : vector<6x32xf32>
    %225 = vector.extract_strided_slice %218 {offsets = [0, 32], sizes = [6, 32], strides = [1, 1]} : vector<6x128xf32> to vector<6x32xf32>
    %226 = arith.negf %225 : vector<6x32xf32>
    %227 = math.exp %226 : vector<6x32xf32>
    %cst_37 = arith.constant 1.000000e+00 : f32
    %228 = vector.broadcast %cst_37 : f32 to vector<6x32xf32>
    %229 = arith.addf %228, %227 : vector<6x32xf32>
    %230 = arith.divf %228, %229 : vector<6x32xf32>
    %231 = vector.extract_strided_slice %218 {offsets = [0, 64], sizes = [6, 32], strides = [1, 1]} : vector<6x128xf32> to vector<6x32xf32>
    %232 = math.tanh %231 : vector<6x32xf32>
    %233 = vector.extract_strided_slice %218 {offsets = [0, 96], sizes = [6, 32], strides = [1, 1]} : vector<6x128xf32> to vector<6x32xf32>
    %234 = arith.negf %233 : vector<6x32xf32>
    %235 = math.exp %234 : vector<6x32xf32>
    %cst_38 = arith.constant 1.000000e+00 : f32
    %236 = vector.broadcast %cst_38 : f32 to vector<6x32xf32>
    %237 = arith.addf %236, %235 : vector<6x32xf32>
    %238 = arith.divf %236, %237 : vector<6x32xf32>
    %239 = arith.mulf %230, %212 : vector<6x32xf32>
    %240 = arith.mulf %224, %232 : vector<6x32xf32>
    %241 = arith.addf %239, %240 : vector<6x32xf32>
    %242 = math.tanh %241 : vector<6x32xf32>
    %243 = arith.mulf %238, %242 : vector<6x32xf32>
    %244 = tpu.concatenate %40, %69, %98, %127, %156, %185, %214, %243 in 0 : vector<6x32xf32>, vector<6x32xf32>, vector<6x32xf32>, vector<6x32xf32>, vector<6x32xf32>, vector<6x32xf32>, vector<6x32xf32>, vector<6x32xf32> -> vector<48x32xf32>
    %c56 = arith.constant 56 : index
    %c0_39 = arith.constant 0 : index
    %245 = vector.load %arg2[%c56, %c0_39] : memref<728x128xf32, #tpu.memory_space<vmem>>, vector<1x32xf32>
    %c64 = arith.constant 64 : index
    %c0_40 = arith.constant 0 : index
    %246 = vector.load %arg2[%c64, %c0_40] : memref<728x128xf32, #tpu.memory_space<vmem>>, vector<1x32xf32>
    %cst_41 = arith.constant dense<0.000000e+00> : vector<48xf32>
    %247 = vector.multi_reduction <add>, %244, %cst_41 [1] : vector<48x32xf32> to vector<48xf32>
    %248 = vector.shape_cast %247 : vector<48xf32> to vector<48x1xf32>
    %cst_42 = arith.constant 3.200000e+01 : f32
    %249 = vector.broadcast %cst_42 : f32 to vector<48x1xf32>
    %250 = arith.divf %248, %249 : vector<48x1xf32>
    %251 = vector.broadcast %250 : vector<48x1xf32> to vector<48x32xf32>
    %252 = arith.subf %244, %251 : vector<48x32xf32>
    %253 = arith.mulf %252, %252 : vector<48x32xf32>
    %cst_43 = arith.constant dense<0.000000e+00> : vector<48xf32>
    %254 = vector.multi_reduction <add>, %253, %cst_43 [1] : vector<48x32xf32> to vector<48xf32>
    %255 = vector.shape_cast %254 : vector<48xf32> to vector<48x1xf32>
    %cst_44 = arith.constant 3.200000e+01 : f32
    %256 = vector.broadcast %cst_44 : f32 to vector<48x1xf32>
    %257 = arith.divf %255, %256 : vector<48x1xf32>
    %258 = vector.broadcast %250 : vector<48x1xf32> to vector<48x32xf32>
    %259 = arith.subf %244, %258 : vector<48x32xf32>
    %cst_45 = arith.constant 9.99999974E-6 : f32
    %260 = vector.broadcast %cst_45 : f32 to vector<48x1xf32>
    %261 = arith.addf %257, %260 : vector<48x1xf32>
    %262 = math.rsqrt %261 : vector<48x1xf32>
    %263 = vector.broadcast %262 : vector<48x1xf32> to vector<48x32xf32>
    %264 = arith.mulf %259, %263 : vector<48x32xf32>
    %265 = vector.broadcast %245 : vector<1x32xf32> to vector<48x32xf32>
    %266 = arith.mulf %264, %265 : vector<48x32xf32>
    %267 = vector.broadcast %246 : vector<1x32xf32> to vector<48x32xf32>
    %268 = arith.addf %266, %267 : vector<48x32xf32>
    %c72 = arith.constant 72 : index
    %c0_46 = arith.constant 0 : index
    %269 = vector.load %arg2[%c72, %c0_46] : memref<728x128xf32, #tpu.memory_space<vmem>>, vector<32x128xf32>
    %270 = arith.truncf %268 : vector<48x32xf32> to vector<48x32xbf16>
    %271 = arith.truncf %269 : vector<32x128xf32> to vector<32x128xbf16>
    %cst_47 = arith.constant dense<0.000000e+00> : vector<48x128xf32>
    %272 = tpu.matmul %270, %271, %cst_47 {dimension_numbers = #tpu.dot_dimension_numbers<[1], [0], [0], [1], [0, 0, 1, 1], [], []>} : vector<48x32xbf16>, vector<32x128xbf16>, vector<48x128xf32> -> vector<48x128xf32>
    %c136 = arith.constant 136 : index
    %c0_48 = arith.constant 0 : index
    %273 = vector.load %arg2[%c136, %c0_48] : memref<728x128xf32, #tpu.memory_space<vmem>>, vector<1x128xf32>
    %274 = vector.broadcast %273 : vector<1x128xf32> to vector<48x128xf32>
    %275 = arith.addf %272, %274 : vector<48x128xf32>
    %c104 = arith.constant 104 : index
    %c0_49 = arith.constant 0 : index
    %276 = vector.load %arg2[%c104, %c0_49] : memref<728x128xf32, #tpu.memory_space<vmem>>, vector<32x128xf32>
    %277 = arith.truncf %276 : vector<32x128xf32> to vector<32x128xbf16>
    %cst_50 = arith.constant 0.000000e+00 : f32
    %278 = vector.broadcast %cst_50 : f32 to vector<6x32xf32>
    %cst_51 = arith.constant 0.000000e+00 : f32
    %279 = vector.broadcast %cst_51 : f32 to vector<6x32xf32>
    %280 = vector.extract_strided_slice %275 {offsets = [0, 0], sizes = [6, 128], strides = [1, 1]} : vector<48x128xf32> to vector<6x128xf32>
    %281 = arith.truncf %278 : vector<6x32xf32> to vector<6x32xbf16>
    %cst_52 = arith.constant dense<0.000000e+00> : vector<6x128xf32>
    %282 = tpu.matmul %281, %277, %cst_52 {dimension_numbers = #tpu.dot_dimension_numbers<[1], [0], [0], [1], [0, 0, 1, 1], [], []>} : vector<6x32xbf16>, vector<32x128xbf16>, vector<6x128xf32> -> vector<6x128xf32>
    %283 = arith.addf %280, %282 : vector<6x128xf32>
    %284 = vector.extract_strided_slice %283 {offsets = [0, 0], sizes = [6, 32], strides = [1, 1]} : vector<6x128xf32> to vector<6x32xf32>
    %285 = arith.negf %284 : vector<6x32xf32>
    %286 = math.exp %285 : vector<6x32xf32>
    %cst_53 = arith.constant 1.000000e+00 : f32
    %287 = vector.broadcast %cst_53 : f32 to vector<6x32xf32>
    %288 = arith.addf %287, %286 : vector<6x32xf32>
    %289 = arith.divf %287, %288 : vector<6x32xf32>
    %290 = vector.extract_strided_slice %283 {offsets = [0, 32], sizes = [6, 32], strides = [1, 1]} : vector<6x128xf32> to vector<6x32xf32>
    %291 = arith.negf %290 : vector<6x32xf32>
    %292 = math.exp %291 : vector<6x32xf32>
    %cst_54 = arith.constant 1.000000e+00 : f32
    %293 = vector.broadcast %cst_54 : f32 to vector<6x32xf32>
    %294 = arith.addf %293, %292 : vector<6x32xf32>
    %295 = arith.divf %293, %294 : vector<6x32xf32>
    %296 = vector.extract_strided_slice %283 {offsets = [0, 64], sizes = [6, 32], strides = [1, 1]} : vector<6x128xf32> to vector<6x32xf32>
    %297 = math.tanh %296 : vector<6x32xf32>
    %298 = vector.extract_strided_slice %283 {offsets = [0, 96], sizes = [6, 32], strides = [1, 1]} : vector<6x128xf32> to vector<6x32xf32>
    %299 = arith.negf %298 : vector<6x32xf32>
    %300 = math.exp %299 : vector<6x32xf32>
    %cst_55 = arith.constant 1.000000e+00 : f32
    %301 = vector.broadcast %cst_55 : f32 to vector<6x32xf32>
    %302 = arith.addf %301, %300 : vector<6x32xf32>
    %303 = arith.divf %301, %302 : vector<6x32xf32>
    %304 = arith.mulf %295, %279 : vector<6x32xf32>
    %305 = arith.mulf %289, %297 : vector<6x32xf32>
    %306 = arith.addf %304, %305 : vector<6x32xf32>
    %307 = math.tanh %306 : vector<6x32xf32>
    %308 = arith.mulf %303, %307 : vector<6x32xf32>
    %309 = vector.extract_strided_slice %275 {offsets = [6, 0], sizes = [6, 128], strides = [1, 1]} : vector<48x128xf32> to vector<6x128xf32>
    %310 = arith.truncf %308 : vector<6x32xf32> to vector<6x32xbf16>
    %cst_56 = arith.constant dense<0.000000e+00> : vector<6x128xf32>
    %311 = tpu.matmul %310, %277, %cst_56 {dimension_numbers = #tpu.dot_dimension_numbers<[1], [0], [0], [1], [0, 0, 1, 1], [], []>} : vector<6x32xbf16>, vector<32x128xbf16>, vector<6x128xf32> -> vector<6x128xf32>
    %312 = arith.addf %309, %311 : vector<6x128xf32>
    %313 = vector.extract_strided_slice %312 {offsets = [0, 0], sizes = [6, 32], strides = [1, 1]} : vector<6x128xf32> to vector<6x32xf32>
    %314 = arith.negf %313 : vector<6x32xf32>
    %315 = math.exp %314 : vector<6x32xf32>
    %cst_57 = arith.constant 1.000000e+00 : f32
    %316 = vector.broadcast %cst_57 : f32 to vector<6x32xf32>
    %317 = arith.addf %316, %315 : vector<6x32xf32>
    %318 = arith.divf %316, %317 : vector<6x32xf32>
    %319 = vector.extract_strided_slice %312 {offsets = [0, 32], sizes = [6, 32], strides = [1, 1]} : vector<6x128xf32> to vector<6x32xf32>
    %320 = arith.negf %319 : vector<6x32xf32>
    %321 = math.exp %320 : vector<6x32xf32>
    %cst_58 = arith.constant 1.000000e+00 : f32
    %322 = vector.broadcast %cst_58 : f32 to vector<6x32xf32>
    %323 = arith.addf %322, %321 : vector<6x32xf32>
    %324 = arith.divf %322, %323 : vector<6x32xf32>
    %325 = vector.extract_strided_slice %312 {offsets = [0, 64], sizes = [6, 32], strides = [1, 1]} : vector<6x128xf32> to vector<6x32xf32>
    %326 = math.tanh %325 : vector<6x32xf32>
    %327 = vector.extract_strided_slice %312 {offsets = [0, 96], sizes = [6, 32], strides = [1, 1]} : vector<6x128xf32> to vector<6x32xf32>
    %328 = arith.negf %327 : vector<6x32xf32>
    %329 = math.exp %328 : vector<6x32xf32>
    %cst_59 = arith.constant 1.000000e+00 : f32
    %330 = vector.broadcast %cst_59 : f32 to vector<6x32xf32>
    %331 = arith.addf %330, %329 : vector<6x32xf32>
    %332 = arith.divf %330, %331 : vector<6x32xf32>
    %333 = arith.mulf %324, %306 : vector<6x32xf32>
    %334 = arith.mulf %318, %326 : vector<6x32xf32>
    %335 = arith.addf %333, %334 : vector<6x32xf32>
    %336 = math.tanh %335 : vector<6x32xf32>
    %337 = arith.mulf %332, %336 : vector<6x32xf32>
    %338 = vector.extract_strided_slice %275 {offsets = [12, 0], sizes = [6, 128], strides = [1, 1]} : vector<48x128xf32> to vector<6x128xf32>
    %339 = arith.truncf %337 : vector<6x32xf32> to vector<6x32xbf16>
    %cst_60 = arith.constant dense<0.000000e+00> : vector<6x128xf32>
    %340 = tpu.matmul %339, %277, %cst_60 {dimension_numbers = #tpu.dot_dimension_numbers<[1], [0], [0], [1], [0, 0, 1, 1], [], []>} : vector<6x32xbf16>, vector<32x128xbf16>, vector<6x128xf32> -> vector<6x128xf32>
    %341 = arith.addf %338, %340 : vector<6x128xf32>
    %342 = vector.extract_strided_slice %341 {offsets = [0, 0], sizes = [6, 32], strides = [1, 1]} : vector<6x128xf32> to vector<6x32xf32>
    %343 = arith.negf %342 : vector<6x32xf32>
    %344 = math.exp %343 : vector<6x32xf32>
    %cst_61 = arith.constant 1.000000e+00 : f32
    %345 = vector.broadcast %cst_61 : f32 to vector<6x32xf32>
    %346 = arith.addf %345, %344 : vector<6x32xf32>
    %347 = arith.divf %345, %346 : vector<6x32xf32>
    %348 = vector.extract_strided_slice %341 {offsets = [0, 32], sizes = [6, 32], strides = [1, 1]} : vector<6x128xf32> to vector<6x32xf32>
    %349 = arith.negf %348 : vector<6x32xf32>
    %350 = math.exp %349 : vector<6x32xf32>
    %cst_62 = arith.constant 1.000000e+00 : f32
    %351 = vector.broadcast %cst_62 : f32 to vector<6x32xf32>
    %352 = arith.addf %351, %350 : vector<6x32xf32>
    %353 = arith.divf %351, %352 : vector<6x32xf32>
    %354 = vector.extract_strided_slice %341 {offsets = [0, 64], sizes = [6, 32], strides = [1, 1]} : vector<6x128xf32> to vector<6x32xf32>
    %355 = math.tanh %354 : vector<6x32xf32>
    %356 = vector.extract_strided_slice %341 {offsets = [0, 96], sizes = [6, 32], strides = [1, 1]} : vector<6x128xf32> to vector<6x32xf32>
    %357 = arith.negf %356 : vector<6x32xf32>
    %358 = math.exp %357 : vector<6x32xf32>
    %cst_63 = arith.constant 1.000000e+00 : f32
    %359 = vector.broadcast %cst_63 : f32 to vector<6x32xf32>
    %360 = arith.addf %359, %358 : vector<6x32xf32>
    %361 = arith.divf %359, %360 : vector<6x32xf32>
    %362 = arith.mulf %353, %335 : vector<6x32xf32>
    %363 = arith.mulf %347, %355 : vector<6x32xf32>
    %364 = arith.addf %362, %363 : vector<6x32xf32>
    %365 = math.tanh %364 : vector<6x32xf32>
    %366 = arith.mulf %361, %365 : vector<6x32xf32>
    %367 = vector.extract_strided_slice %275 {offsets = [18, 0], sizes = [6, 128], strides = [1, 1]} : vector<48x128xf32> to vector<6x128xf32>
    %368 = arith.truncf %366 : vector<6x32xf32> to vector<6x32xbf16>
    %cst_64 = arith.constant dense<0.000000e+00> : vector<6x128xf32>
    %369 = tpu.matmul %368, %277, %cst_64 {dimension_numbers = #tpu.dot_dimension_numbers<[1], [0], [0], [1], [0, 0, 1, 1], [], []>} : vector<6x32xbf16>, vector<32x128xbf16>, vector<6x128xf32> -> vector<6x128xf32>
    %370 = arith.addf %367, %369 : vector<6x128xf32>
    %371 = vector.extract_strided_slice %370 {offsets = [0, 0], sizes = [6, 32], strides = [1, 1]} : vector<6x128xf32> to vector<6x32xf32>
    %372 = arith.negf %371 : vector<6x32xf32>
    %373 = math.exp %372 : vector<6x32xf32>
    %cst_65 = arith.constant 1.000000e+00 : f32
    %374 = vector.broadcast %cst_65 : f32 to vector<6x32xf32>
    %375 = arith.addf %374, %373 : vector<6x32xf32>
    %376 = arith.divf %374, %375 : vector<6x32xf32>
    %377 = vector.extract_strided_slice %370 {offsets = [0, 32], sizes = [6, 32], strides = [1, 1]} : vector<6x128xf32> to vector<6x32xf32>
    %378 = arith.negf %377 : vector<6x32xf32>
    %379 = math.exp %378 : vector<6x32xf32>
    %cst_66 = arith.constant 1.000000e+00 : f32
    %380 = vector.broadcast %cst_66 : f32 to vector<6x32xf32>
    %381 = arith.addf %380, %379 : vector<6x32xf32>
    %382 = arith.divf %380, %381 : vector<6x32xf32>
    %383 = vector.extract_strided_slice %370 {offsets = [0, 64], sizes = [6, 32], strides = [1, 1]} : vector<6x128xf32> to vector<6x32xf32>
    %384 = math.tanh %383 : vector<6x32xf32>
    %385 = vector.extract_strided_slice %370 {offsets = [0, 96], sizes = [6, 32], strides = [1, 1]} : vector<6x128xf32> to vector<6x32xf32>
    %386 = arith.negf %385 : vector<6x32xf32>
    %387 = math.exp %386 : vector<6x32xf32>
    %cst_67 = arith.constant 1.000000e+00 : f32
    %388 = vector.broadcast %cst_67 : f32 to vector<6x32xf32>
    %389 = arith.addf %388, %387 : vector<6x32xf32>
    %390 = arith.divf %388, %389 : vector<6x32xf32>
    %391 = arith.mulf %382, %364 : vector<6x32xf32>
    %392 = arith.mulf %376, %384 : vector<6x32xf32>
    %393 = arith.addf %391, %392 : vector<6x32xf32>
    %394 = math.tanh %393 : vector<6x32xf32>
    %395 = arith.mulf %390, %394 : vector<6x32xf32>
    %396 = vector.extract_strided_slice %275 {offsets = [24, 0], sizes = [6, 128], strides = [1, 1]} : vector<48x128xf32> to vector<6x128xf32>
    %397 = arith.truncf %395 : vector<6x32xf32> to vector<6x32xbf16>
    %cst_68 = arith.constant dense<0.000000e+00> : vector<6x128xf32>
    %398 = tpu.matmul %397, %277, %cst_68 {dimension_numbers = #tpu.dot_dimension_numbers<[1], [0], [0], [1], [0, 0, 1, 1], [], []>} : vector<6x32xbf16>, vector<32x128xbf16>, vector<6x128xf32> -> vector<6x128xf32>
    %399 = arith.addf %396, %398 : vector<6x128xf32>
    %400 = vector.extract_strided_slice %399 {offsets = [0, 0], sizes = [6, 32], strides = [1, 1]} : vector<6x128xf32> to vector<6x32xf32>
    %401 = arith.negf %400 : vector<6x32xf32>
    %402 = math.exp %401 : vector<6x32xf32>
    %cst_69 = arith.constant 1.000000e+00 : f32
    %403 = vector.broadcast %cst_69 : f32 to vector<6x32xf32>
    %404 = arith.addf %403, %402 : vector<6x32xf32>
    %405 = arith.divf %403, %404 : vector<6x32xf32>
    %406 = vector.extract_strided_slice %399 {offsets = [0, 32], sizes = [6, 32], strides = [1, 1]} : vector<6x128xf32> to vector<6x32xf32>
    %407 = arith.negf %406 : vector<6x32xf32>
    %408 = math.exp %407 : vector<6x32xf32>
    %cst_70 = arith.constant 1.000000e+00 : f32
    %409 = vector.broadcast %cst_70 : f32 to vector<6x32xf32>
    %410 = arith.addf %409, %408 : vector<6x32xf32>
    %411 = arith.divf %409, %410 : vector<6x32xf32>
    %412 = vector.extract_strided_slice %399 {offsets = [0, 64], sizes = [6, 32], strides = [1, 1]} : vector<6x128xf32> to vector<6x32xf32>
    %413 = math.tanh %412 : vector<6x32xf32>
    %414 = vector.extract_strided_slice %399 {offsets = [0, 96], sizes = [6, 32], strides = [1, 1]} : vector<6x128xf32> to vector<6x32xf32>
    %415 = arith.negf %414 : vector<6x32xf32>
    %416 = math.exp %415 : vector<6x32xf32>
    %cst_71 = arith.constant 1.000000e+00 : f32
    %417 = vector.broadcast %cst_71 : f32 to vector<6x32xf32>
    %418 = arith.addf %417, %416 : vector<6x32xf32>
    %419 = arith.divf %417, %418 : vector<6x32xf32>
    %420 = arith.mulf %411, %393 : vector<6x32xf32>
    %421 = arith.mulf %405, %413 : vector<6x32xf32>
    %422 = arith.addf %420, %421 : vector<6x32xf32>
    %423 = math.tanh %422 : vector<6x32xf32>
    %424 = arith.mulf %419, %423 : vector<6x32xf32>
    %425 = vector.extract_strided_slice %275 {offsets = [30, 0], sizes = [6, 128], strides = [1, 1]} : vector<48x128xf32> to vector<6x128xf32>
    %426 = arith.truncf %424 : vector<6x32xf32> to vector<6x32xbf16>
    %cst_72 = arith.constant dense<0.000000e+00> : vector<6x128xf32>
    %427 = tpu.matmul %426, %277, %cst_72 {dimension_numbers = #tpu.dot_dimension_numbers<[1], [0], [0], [1], [0, 0, 1, 1], [], []>} : vector<6x32xbf16>, vector<32x128xbf16>, vector<6x128xf32> -> vector<6x128xf32>
    %428 = arith.addf %425, %427 : vector<6x128xf32>
    %429 = vector.extract_strided_slice %428 {offsets = [0, 0], sizes = [6, 32], strides = [1, 1]} : vector<6x128xf32> to vector<6x32xf32>
    %430 = arith.negf %429 : vector<6x32xf32>
    %431 = math.exp %430 : vector<6x32xf32>
    %cst_73 = arith.constant 1.000000e+00 : f32
    %432 = vector.broadcast %cst_73 : f32 to vector<6x32xf32>
    %433 = arith.addf %432, %431 : vector<6x32xf32>
    %434 = arith.divf %432, %433 : vector<6x32xf32>
    %435 = vector.extract_strided_slice %428 {offsets = [0, 32], sizes = [6, 32], strides = [1, 1]} : vector<6x128xf32> to vector<6x32xf32>
    %436 = arith.negf %435 : vector<6x32xf32>
    %437 = math.exp %436 : vector<6x32xf32>
    %cst_74 = arith.constant 1.000000e+00 : f32
    %438 = vector.broadcast %cst_74 : f32 to vector<6x32xf32>
    %439 = arith.addf %438, %437 : vector<6x32xf32>
    %440 = arith.divf %438, %439 : vector<6x32xf32>
    %441 = vector.extract_strided_slice %428 {offsets = [0, 64], sizes = [6, 32], strides = [1, 1]} : vector<6x128xf32> to vector<6x32xf32>
    %442 = math.tanh %441 : vector<6x32xf32>
    %443 = vector.extract_strided_slice %428 {offsets = [0, 96], sizes = [6, 32], strides = [1, 1]} : vector<6x128xf32> to vector<6x32xf32>
    %444 = arith.negf %443 : vector<6x32xf32>
    %445 = math.exp %444 : vector<6x32xf32>
    %cst_75 = arith.constant 1.000000e+00 : f32
    %446 = vector.broadcast %cst_75 : f32 to vector<6x32xf32>
    %447 = arith.addf %446, %445 : vector<6x32xf32>
    %448 = arith.divf %446, %447 : vector<6x32xf32>
    %449 = arith.mulf %440, %422 : vector<6x32xf32>
    %450 = arith.mulf %434, %442 : vector<6x32xf32>
    %451 = arith.addf %449, %450 : vector<6x32xf32>
    %452 = math.tanh %451 : vector<6x32xf32>
    %453 = arith.mulf %448, %452 : vector<6x32xf32>
    %454 = vector.extract_strided_slice %275 {offsets = [36, 0], sizes = [6, 128], strides = [1, 1]} : vector<48x128xf32> to vector<6x128xf32>
    %455 = arith.truncf %453 : vector<6x32xf32> to vector<6x32xbf16>
    %cst_76 = arith.constant dense<0.000000e+00> : vector<6x128xf32>
    %456 = tpu.matmul %455, %277, %cst_76 {dimension_numbers = #tpu.dot_dimension_numbers<[1], [0], [0], [1], [0, 0, 1, 1], [], []>} : vector<6x32xbf16>, vector<32x128xbf16>, vector<6x128xf32> -> vector<6x128xf32>
    %457 = arith.addf %454, %456 : vector<6x128xf32>
    %458 = vector.extract_strided_slice %457 {offsets = [0, 0], sizes = [6, 32], strides = [1, 1]} : vector<6x128xf32> to vector<6x32xf32>
    %459 = arith.negf %458 : vector<6x32xf32>
    %460 = math.exp %459 : vector<6x32xf32>
    %cst_77 = arith.constant 1.000000e+00 : f32
    %461 = vector.broadcast %cst_77 : f32 to vector<6x32xf32>
    %462 = arith.addf %461, %460 : vector<6x32xf32>
    %463 = arith.divf %461, %462 : vector<6x32xf32>
    %464 = vector.extract_strided_slice %457 {offsets = [0, 32], sizes = [6, 32], strides = [1, 1]} : vector<6x128xf32> to vector<6x32xf32>
    %465 = arith.negf %464 : vector<6x32xf32>
    %466 = math.exp %465 : vector<6x32xf32>
    %cst_78 = arith.constant 1.000000e+00 : f32
    %467 = vector.broadcast %cst_78 : f32 to vector<6x32xf32>
    %468 = arith.addf %467, %466 : vector<6x32xf32>
    %469 = arith.divf %467, %468 : vector<6x32xf32>
    %470 = vector.extract_strided_slice %457 {offsets = [0, 64], sizes = [6, 32], strides = [1, 1]} : vector<6x128xf32> to vector<6x32xf32>
    %471 = math.tanh %470 : vector<6x32xf32>
    %472 = vector.extract_strided_slice %457 {offsets = [0, 96], sizes = [6, 32], strides = [1, 1]} : vector<6x128xf32> to vector<6x32xf32>
    %473 = arith.negf %472 : vector<6x32xf32>
    %474 = math.exp %473 : vector<6x32xf32>
    %cst_79 = arith.constant 1.000000e+00 : f32
    %475 = vector.broadcast %cst_79 : f32 to vector<6x32xf32>
    %476 = arith.addf %475, %474 : vector<6x32xf32>
    %477 = arith.divf %475, %476 : vector<6x32xf32>
    %478 = arith.mulf %469, %451 : vector<6x32xf32>
    %479 = arith.mulf %463, %471 : vector<6x32xf32>
    %480 = arith.addf %478, %479 : vector<6x32xf32>
    %481 = math.tanh %480 : vector<6x32xf32>
    %482 = arith.mulf %477, %481 : vector<6x32xf32>
    %483 = vector.extract_strided_slice %275 {offsets = [42, 0], sizes = [6, 128], strides = [1, 1]} : vector<48x128xf32> to vector<6x128xf32>
    %484 = arith.truncf %482 : vector<6x32xf32> to vector<6x32xbf16>
    %cst_80 = arith.constant dense<0.000000e+00> : vector<6x128xf32>
    %485 = tpu.matmul %484, %277, %cst_80 {dimension_numbers = #tpu.dot_dimension_numbers<[1], [0], [0], [1], [0, 0, 1, 1], [], []>} : vector<6x32xbf16>, vector<32x128xbf16>, vector<6x128xf32> -> vector<6x128xf32>
    %486 = arith.addf %483, %485 : vector<6x128xf32>
    %487 = vector.extract_strided_slice %486 {offsets = [0, 0], sizes = [6, 32], strides = [1, 1]} : vector<6x128xf32> to vector<6x32xf32>
    %488 = arith.negf %487 : vector<6x32xf32>
    %489 = math.exp %488 : vector<6x32xf32>
    %cst_81 = arith.constant 1.000000e+00 : f32
    %490 = vector.broadcast %cst_81 : f32 to vector<6x32xf32>
    %491 = arith.addf %490, %489 : vector<6x32xf32>
    %492 = arith.divf %490, %491 : vector<6x32xf32>
    %493 = vector.extract_strided_slice %486 {offsets = [0, 32], sizes = [6, 32], strides = [1, 1]} : vector<6x128xf32> to vector<6x32xf32>
    %494 = arith.negf %493 : vector<6x32xf32>
    %495 = math.exp %494 : vector<6x32xf32>
    %cst_82 = arith.constant 1.000000e+00 : f32
    %496 = vector.broadcast %cst_82 : f32 to vector<6x32xf32>
    %497 = arith.addf %496, %495 : vector<6x32xf32>
    %498 = arith.divf %496, %497 : vector<6x32xf32>
    %499 = vector.extract_strided_slice %486 {offsets = [0, 64], sizes = [6, 32], strides = [1, 1]} : vector<6x128xf32> to vector<6x32xf32>
    %500 = math.tanh %499 : vector<6x32xf32>
    %501 = vector.extract_strided_slice %486 {offsets = [0, 96], sizes = [6, 32], strides = [1, 1]} : vector<6x128xf32> to vector<6x32xf32>
    %502 = arith.negf %501 : vector<6x32xf32>
    %503 = math.exp %502 : vector<6x32xf32>
    %cst_83 = arith.constant 1.000000e+00 : f32
    %504 = vector.broadcast %cst_83 : f32 to vector<6x32xf32>
    %505 = arith.addf %504, %503 : vector<6x32xf32>
    %506 = arith.divf %504, %505 : vector<6x32xf32>
    %507 = arith.mulf %498, %480 : vector<6x32xf32>
    %508 = arith.mulf %492, %500 : vector<6x32xf32>
    %509 = arith.addf %507, %508 : vector<6x32xf32>
    %510 = math.tanh %509 : vector<6x32xf32>
    %511 = arith.mulf %506, %510 : vector<6x32xf32>
    %512 = tpu.concatenate %308, %337, %366, %395, %424, %453, %482, %511 in 0 : vector<6x32xf32>, vector<6x32xf32>, vector<6x32xf32>, vector<6x32xf32>, vector<6x32xf32>, vector<6x32xf32>, vector<6x32xf32>, vector<6x32xf32> -> vector<48x32xf32>
    %c144 = arith.constant 144 : index
    %c0_84 = arith.constant 0 : index
    %513 = vector.load %arg2[%c144, %c0_84] : memref<728x128xf32, #tpu.memory_space<vmem>>, vector<32x128xf32>
    %514 = arith.truncf %512 : vector<48x32xf32> to vector<48x32xbf16>
    %515 = arith.truncf %513 : vector<32x128xf32> to vector<32x128xbf16>
    %cst_85 = arith.constant dense<0.000000e+00> : vector<48x128xf32>
    %516 = tpu.matmul %514, %515, %cst_85 {dimension_numbers = #tpu.dot_dimension_numbers<[1], [0], [0], [1], [0, 0, 1, 1], [], []>} : vector<48x32xbf16>, vector<32x128xbf16>, vector<48x128xf32> -> vector<48x128xf32>
    %c208 = arith.constant 208 : index
    %c0_86 = arith.constant 0 : index
    %517 = vector.load %arg2[%c208, %c0_86] : memref<728x128xf32, #tpu.memory_space<vmem>>, vector<1x128xf32>
    %518 = vector.broadcast %517 : vector<1x128xf32> to vector<48x128xf32>
    %519 = arith.addf %516, %518 : vector<48x128xf32>
    %c176 = arith.constant 176 : index
    %c0_87 = arith.constant 0 : index
    %520 = vector.load %arg2[%c176, %c0_87] : memref<728x128xf32, #tpu.memory_space<vmem>>, vector<32x128xf32>
    %521 = arith.truncf %520 : vector<32x128xf32> to vector<32x128xbf16>
    %cst_88 = arith.constant 0.000000e+00 : f32
    %522 = vector.broadcast %cst_88 : f32 to vector<6x32xf32>
    %cst_89 = arith.constant 0.000000e+00 : f32
    %523 = vector.broadcast %cst_89 : f32 to vector<6x32xf32>
    %524 = vector.extract_strided_slice %519 {offsets = [0, 0], sizes = [6, 128], strides = [1, 1]} : vector<48x128xf32> to vector<6x128xf32>
    %525 = arith.truncf %522 : vector<6x32xf32> to vector<6x32xbf16>
    %cst_90 = arith.constant dense<0.000000e+00> : vector<6x128xf32>
    %526 = tpu.matmul %525, %521, %cst_90 {dimension_numbers = #tpu.dot_dimension_numbers<[1], [0], [0], [1], [0, 0, 1, 1], [], []>} : vector<6x32xbf16>, vector<32x128xbf16>, vector<6x128xf32> -> vector<6x128xf32>
    %527 = arith.addf %524, %526 : vector<6x128xf32>
    %528 = vector.extract_strided_slice %527 {offsets = [0, 0], sizes = [6, 32], strides = [1, 1]} : vector<6x128xf32> to vector<6x32xf32>
    %529 = arith.negf %528 : vector<6x32xf32>
    %530 = math.exp %529 : vector<6x32xf32>
    %cst_91 = arith.constant 1.000000e+00 : f32
    %531 = vector.broadcast %cst_91 : f32 to vector<6x32xf32>
    %532 = arith.addf %531, %530 : vector<6x32xf32>
    %533 = arith.divf %531, %532 : vector<6x32xf32>
    %534 = vector.extract_strided_slice %527 {offsets = [0, 32], sizes = [6, 32], strides = [1, 1]} : vector<6x128xf32> to vector<6x32xf32>
    %535 = arith.negf %534 : vector<6x32xf32>
    %536 = math.exp %535 : vector<6x32xf32>
    %cst_92 = arith.constant 1.000000e+00 : f32
    %537 = vector.broadcast %cst_92 : f32 to vector<6x32xf32>
    %538 = arith.addf %537, %536 : vector<6x32xf32>
    %539 = arith.divf %537, %538 : vector<6x32xf32>
    %540 = vector.extract_strided_slice %527 {offsets = [0, 64], sizes = [6, 32], strides = [1, 1]} : vector<6x128xf32> to vector<6x32xf32>
    %541 = math.tanh %540 : vector<6x32xf32>
    %542 = vector.extract_strided_slice %527 {offsets = [0, 96], sizes = [6, 32], strides = [1, 1]} : vector<6x128xf32> to vector<6x32xf32>
    %543 = arith.negf %542 : vector<6x32xf32>
    %544 = math.exp %543 : vector<6x32xf32>
    %cst_93 = arith.constant 1.000000e+00 : f32
    %545 = vector.broadcast %cst_93 : f32 to vector<6x32xf32>
    %546 = arith.addf %545, %544 : vector<6x32xf32>
    %547 = arith.divf %545, %546 : vector<6x32xf32>
    %548 = arith.mulf %539, %523 : vector<6x32xf32>
    %549 = arith.mulf %533, %541 : vector<6x32xf32>
    %550 = arith.addf %548, %549 : vector<6x32xf32>
    %551 = math.tanh %550 : vector<6x32xf32>
    %552 = arith.mulf %547, %551 : vector<6x32xf32>
    %553 = vector.extract_strided_slice %519 {offsets = [6, 0], sizes = [6, 128], strides = [1, 1]} : vector<48x128xf32> to vector<6x128xf32>
    %554 = arith.truncf %552 : vector<6x32xf32> to vector<6x32xbf16>
    %cst_94 = arith.constant dense<0.000000e+00> : vector<6x128xf32>
    %555 = tpu.matmul %554, %521, %cst_94 {dimension_numbers = #tpu.dot_dimension_numbers<[1], [0], [0], [1], [0, 0, 1, 1], [], []>} : vector<6x32xbf16>, vector<32x128xbf16>, vector<6x128xf32> -> vector<6x128xf32>
    %556 = arith.addf %553, %555 : vector<6x128xf32>
    %557 = vector.extract_strided_slice %556 {offsets = [0, 0], sizes = [6, 32], strides = [1, 1]} : vector<6x128xf32> to vector<6x32xf32>
    %558 = arith.negf %557 : vector<6x32xf32>
    %559 = math.exp %558 : vector<6x32xf32>
    %cst_95 = arith.constant 1.000000e+00 : f32
    %560 = vector.broadcast %cst_95 : f32 to vector<6x32xf32>
    %561 = arith.addf %560, %559 : vector<6x32xf32>
    %562 = arith.divf %560, %561 : vector<6x32xf32>
    %563 = vector.extract_strided_slice %556 {offsets = [0, 32], sizes = [6, 32], strides = [1, 1]} : vector<6x128xf32> to vector<6x32xf32>
    %564 = arith.negf %563 : vector<6x32xf32>
    %565 = math.exp %564 : vector<6x32xf32>
    %cst_96 = arith.constant 1.000000e+00 : f32
    %566 = vector.broadcast %cst_96 : f32 to vector<6x32xf32>
    %567 = arith.addf %566, %565 : vector<6x32xf32>
    %568 = arith.divf %566, %567 : vector<6x32xf32>
    %569 = vector.extract_strided_slice %556 {offsets = [0, 64], sizes = [6, 32], strides = [1, 1]} : vector<6x128xf32> to vector<6x32xf32>
    %570 = math.tanh %569 : vector<6x32xf32>
    %571 = vector.extract_strided_slice %556 {offsets = [0, 96], sizes = [6, 32], strides = [1, 1]} : vector<6x128xf32> to vector<6x32xf32>
    %572 = arith.negf %571 : vector<6x32xf32>
    %573 = math.exp %572 : vector<6x32xf32>
    %cst_97 = arith.constant 1.000000e+00 : f32
    %574 = vector.broadcast %cst_97 : f32 to vector<6x32xf32>
    %575 = arith.addf %574, %573 : vector<6x32xf32>
    %576 = arith.divf %574, %575 : vector<6x32xf32>
    %577 = arith.mulf %568, %550 : vector<6x32xf32>
    %578 = arith.mulf %562, %570 : vector<6x32xf32>
    %579 = arith.addf %577, %578 : vector<6x32xf32>
    %580 = math.tanh %579 : vector<6x32xf32>
    %581 = arith.mulf %576, %580 : vector<6x32xf32>
    %582 = vector.extract_strided_slice %519 {offsets = [12, 0], sizes = [6, 128], strides = [1, 1]} : vector<48x128xf32> to vector<6x128xf32>
    %583 = arith.truncf %581 : vector<6x32xf32> to vector<6x32xbf16>
    %cst_98 = arith.constant dense<0.000000e+00> : vector<6x128xf32>
    %584 = tpu.matmul %583, %521, %cst_98 {dimension_numbers = #tpu.dot_dimension_numbers<[1], [0], [0], [1], [0, 0, 1, 1], [], []>} : vector<6x32xbf16>, vector<32x128xbf16>, vector<6x128xf32> -> vector<6x128xf32>
    %585 = arith.addf %582, %584 : vector<6x128xf32>
    %586 = vector.extract_strided_slice %585 {offsets = [0, 0], sizes = [6, 32], strides = [1, 1]} : vector<6x128xf32> to vector<6x32xf32>
    %587 = arith.negf %586 : vector<6x32xf32>
    %588 = math.exp %587 : vector<6x32xf32>
    %cst_99 = arith.constant 1.000000e+00 : f32
    %589 = vector.broadcast %cst_99 : f32 to vector<6x32xf32>
    %590 = arith.addf %589, %588 : vector<6x32xf32>
    %591 = arith.divf %589, %590 : vector<6x32xf32>
    %592 = vector.extract_strided_slice %585 {offsets = [0, 32], sizes = [6, 32], strides = [1, 1]} : vector<6x128xf32> to vector<6x32xf32>
    %593 = arith.negf %592 : vector<6x32xf32>
    %594 = math.exp %593 : vector<6x32xf32>
    %cst_100 = arith.constant 1.000000e+00 : f32
    %595 = vector.broadcast %cst_100 : f32 to vector<6x32xf32>
    %596 = arith.addf %595, %594 : vector<6x32xf32>
    %597 = arith.divf %595, %596 : vector<6x32xf32>
    %598 = vector.extract_strided_slice %585 {offsets = [0, 64], sizes = [6, 32], strides = [1, 1]} : vector<6x128xf32> to vector<6x32xf32>
    %599 = math.tanh %598 : vector<6x32xf32>
    %600 = vector.extract_strided_slice %585 {offsets = [0, 96], sizes = [6, 32], strides = [1, 1]} : vector<6x128xf32> to vector<6x32xf32>
    %601 = arith.negf %600 : vector<6x32xf32>
    %602 = math.exp %601 : vector<6x32xf32>
    %cst_101 = arith.constant 1.000000e+00 : f32
    %603 = vector.broadcast %cst_101 : f32 to vector<6x32xf32>
    %604 = arith.addf %603, %602 : vector<6x32xf32>
    %605 = arith.divf %603, %604 : vector<6x32xf32>
    %606 = arith.mulf %597, %579 : vector<6x32xf32>
    %607 = arith.mulf %591, %599 : vector<6x32xf32>
    %608 = arith.addf %606, %607 : vector<6x32xf32>
    %609 = math.tanh %608 : vector<6x32xf32>
    %610 = arith.mulf %605, %609 : vector<6x32xf32>
    %611 = vector.extract_strided_slice %519 {offsets = [18, 0], sizes = [6, 128], strides = [1, 1]} : vector<48x128xf32> to vector<6x128xf32>
    %612 = arith.truncf %610 : vector<6x32xf32> to vector<6x32xbf16>
    %cst_102 = arith.constant dense<0.000000e+00> : vector<6x128xf32>
    %613 = tpu.matmul %612, %521, %cst_102 {dimension_numbers = #tpu.dot_dimension_numbers<[1], [0], [0], [1], [0, 0, 1, 1], [], []>} : vector<6x32xbf16>, vector<32x128xbf16>, vector<6x128xf32> -> vector<6x128xf32>
    %614 = arith.addf %611, %613 : vector<6x128xf32>
    %615 = vector.extract_strided_slice %614 {offsets = [0, 0], sizes = [6, 32], strides = [1, 1]} : vector<6x128xf32> to vector<6x32xf32>
    %616 = arith.negf %615 : vector<6x32xf32>
    %617 = math.exp %616 : vector<6x32xf32>
    %cst_103 = arith.constant 1.000000e+00 : f32
    %618 = vector.broadcast %cst_103 : f32 to vector<6x32xf32>
    %619 = arith.addf %618, %617 : vector<6x32xf32>
    %620 = arith.divf %618, %619 : vector<6x32xf32>
    %621 = vector.extract_strided_slice %614 {offsets = [0, 32], sizes = [6, 32], strides = [1, 1]} : vector<6x128xf32> to vector<6x32xf32>
    %622 = arith.negf %621 : vector<6x32xf32>
    %623 = math.exp %622 : vector<6x32xf32>
    %cst_104 = arith.constant 1.000000e+00 : f32
    %624 = vector.broadcast %cst_104 : f32 to vector<6x32xf32>
    %625 = arith.addf %624, %623 : vector<6x32xf32>
    %626 = arith.divf %624, %625 : vector<6x32xf32>
    %627 = vector.extract_strided_slice %614 {offsets = [0, 64], sizes = [6, 32], strides = [1, 1]} : vector<6x128xf32> to vector<6x32xf32>
    %628 = math.tanh %627 : vector<6x32xf32>
    %629 = vector.extract_strided_slice %614 {offsets = [0, 96], sizes = [6, 32], strides = [1, 1]} : vector<6x128xf32> to vector<6x32xf32>
    %630 = arith.negf %629 : vector<6x32xf32>
    %631 = math.exp %630 : vector<6x32xf32>
    %cst_105 = arith.constant 1.000000e+00 : f32
    %632 = vector.broadcast %cst_105 : f32 to vector<6x32xf32>
    %633 = arith.addf %632, %631 : vector<6x32xf32>
    %634 = arith.divf %632, %633 : vector<6x32xf32>
    %635 = arith.mulf %626, %608 : vector<6x32xf32>
    %636 = arith.mulf %620, %628 : vector<6x32xf32>
    %637 = arith.addf %635, %636 : vector<6x32xf32>
    %638 = math.tanh %637 : vector<6x32xf32>
    %639 = arith.mulf %634, %638 : vector<6x32xf32>
    %640 = vector.extract_strided_slice %519 {offsets = [24, 0], sizes = [6, 128], strides = [1, 1]} : vector<48x128xf32> to vector<6x128xf32>
    %641 = arith.truncf %639 : vector<6x32xf32> to vector<6x32xbf16>
    %cst_106 = arith.constant dense<0.000000e+00> : vector<6x128xf32>
    %642 = tpu.matmul %641, %521, %cst_106 {dimension_numbers = #tpu.dot_dimension_numbers<[1], [0], [0], [1], [0, 0, 1, 1], [], []>} : vector<6x32xbf16>, vector<32x128xbf16>, vector<6x128xf32> -> vector<6x128xf32>
    %643 = arith.addf %640, %642 : vector<6x128xf32>
    %644 = vector.extract_strided_slice %643 {offsets = [0, 0], sizes = [6, 32], strides = [1, 1]} : vector<6x128xf32> to vector<6x32xf32>
    %645 = arith.negf %644 : vector<6x32xf32>
    %646 = math.exp %645 : vector<6x32xf32>
    %cst_107 = arith.constant 1.000000e+00 : f32
    %647 = vector.broadcast %cst_107 : f32 to vector<6x32xf32>
    %648 = arith.addf %647, %646 : vector<6x32xf32>
    %649 = arith.divf %647, %648 : vector<6x32xf32>
    %650 = vector.extract_strided_slice %643 {offsets = [0, 32], sizes = [6, 32], strides = [1, 1]} : vector<6x128xf32> to vector<6x32xf32>
    %651 = arith.negf %650 : vector<6x32xf32>
    %652 = math.exp %651 : vector<6x32xf32>
    %cst_108 = arith.constant 1.000000e+00 : f32
    %653 = vector.broadcast %cst_108 : f32 to vector<6x32xf32>
    %654 = arith.addf %653, %652 : vector<6x32xf32>
    %655 = arith.divf %653, %654 : vector<6x32xf32>
    %656 = vector.extract_strided_slice %643 {offsets = [0, 64], sizes = [6, 32], strides = [1, 1]} : vector<6x128xf32> to vector<6x32xf32>
    %657 = math.tanh %656 : vector<6x32xf32>
    %658 = vector.extract_strided_slice %643 {offsets = [0, 96], sizes = [6, 32], strides = [1, 1]} : vector<6x128xf32> to vector<6x32xf32>
    %659 = arith.negf %658 : vector<6x32xf32>
    %660 = math.exp %659 : vector<6x32xf32>
    %cst_109 = arith.constant 1.000000e+00 : f32
    %661 = vector.broadcast %cst_109 : f32 to vector<6x32xf32>
    %662 = arith.addf %661, %660 : vector<6x32xf32>
    %663 = arith.divf %661, %662 : vector<6x32xf32>
    %664 = arith.mulf %655, %637 : vector<6x32xf32>
    %665 = arith.mulf %649, %657 : vector<6x32xf32>
    %666 = arith.addf %664, %665 : vector<6x32xf32>
    %667 = math.tanh %666 : vector<6x32xf32>
    %668 = arith.mulf %663, %667 : vector<6x32xf32>
    %669 = vector.extract_strided_slice %519 {offsets = [30, 0], sizes = [6, 128], strides = [1, 1]} : vector<48x128xf32> to vector<6x128xf32>
    %670 = arith.truncf %668 : vector<6x32xf32> to vector<6x32xbf16>
    %cst_110 = arith.constant dense<0.000000e+00> : vector<6x128xf32>
    %671 = tpu.matmul %670, %521, %cst_110 {dimension_numbers = #tpu.dot_dimension_numbers<[1], [0], [0], [1], [0, 0, 1, 1], [], []>} : vector<6x32xbf16>, vector<32x128xbf16>, vector<6x128xf32> -> vector<6x128xf32>
    %672 = arith.addf %669, %671 : vector<6x128xf32>
    %673 = vector.extract_strided_slice %672 {offsets = [0, 0], sizes = [6, 32], strides = [1, 1]} : vector<6x128xf32> to vector<6x32xf32>
    %674 = arith.negf %673 : vector<6x32xf32>
    %675 = math.exp %674 : vector<6x32xf32>
    %cst_111 = arith.constant 1.000000e+00 : f32
    %676 = vector.broadcast %cst_111 : f32 to vector<6x32xf32>
    %677 = arith.addf %676, %675 : vector<6x32xf32>
    %678 = arith.divf %676, %677 : vector<6x32xf32>
    %679 = vector.extract_strided_slice %672 {offsets = [0, 32], sizes = [6, 32], strides = [1, 1]} : vector<6x128xf32> to vector<6x32xf32>
    %680 = arith.negf %679 : vector<6x32xf32>
    %681 = math.exp %680 : vector<6x32xf32>
    %cst_112 = arith.constant 1.000000e+00 : f32
    %682 = vector.broadcast %cst_112 : f32 to vector<6x32xf32>
    %683 = arith.addf %682, %681 : vector<6x32xf32>
    %684 = arith.divf %682, %683 : vector<6x32xf32>
    %685 = vector.extract_strided_slice %672 {offsets = [0, 64], sizes = [6, 32], strides = [1, 1]} : vector<6x128xf32> to vector<6x32xf32>
    %686 = math.tanh %685 : vector<6x32xf32>
    %687 = vector.extract_strided_slice %672 {offsets = [0, 96], sizes = [6, 32], strides = [1, 1]} : vector<6x128xf32> to vector<6x32xf32>
    %688 = arith.negf %687 : vector<6x32xf32>
    %689 = math.exp %688 : vector<6x32xf32>
    %cst_113 = arith.constant 1.000000e+00 : f32
    %690 = vector.broadcast %cst_113 : f32 to vector<6x32xf32>
    %691 = arith.addf %690, %689 : vector<6x32xf32>
    %692 = arith.divf %690, %691 : vector<6x32xf32>
    %693 = arith.mulf %684, %666 : vector<6x32xf32>
    %694 = arith.mulf %678, %686 : vector<6x32xf32>
    %695 = arith.addf %693, %694 : vector<6x32xf32>
    %696 = math.tanh %695 : vector<6x32xf32>
    %697 = arith.mulf %692, %696 : vector<6x32xf32>
    %698 = vector.extract_strided_slice %519 {offsets = [36, 0], sizes = [6, 128], strides = [1, 1]} : vector<48x128xf32> to vector<6x128xf32>
    %699 = arith.truncf %697 : vector<6x32xf32> to vector<6x32xbf16>
    %cst_114 = arith.constant dense<0.000000e+00> : vector<6x128xf32>
    %700 = tpu.matmul %699, %521, %cst_114 {dimension_numbers = #tpu.dot_dimension_numbers<[1], [0], [0], [1], [0, 0, 1, 1], [], []>} : vector<6x32xbf16>, vector<32x128xbf16>, vector<6x128xf32> -> vector<6x128xf32>
    %701 = arith.addf %698, %700 : vector<6x128xf32>
    %702 = vector.extract_strided_slice %701 {offsets = [0, 0], sizes = [6, 32], strides = [1, 1]} : vector<6x128xf32> to vector<6x32xf32>
    %703 = arith.negf %702 : vector<6x32xf32>
    %704 = math.exp %703 : vector<6x32xf32>
    %cst_115 = arith.constant 1.000000e+00 : f32
    %705 = vector.broadcast %cst_115 : f32 to vector<6x32xf32>
    %706 = arith.addf %705, %704 : vector<6x32xf32>
    %707 = arith.divf %705, %706 : vector<6x32xf32>
    %708 = vector.extract_strided_slice %701 {offsets = [0, 32], sizes = [6, 32], strides = [1, 1]} : vector<6x128xf32> to vector<6x32xf32>
    %709 = arith.negf %708 : vector<6x32xf32>
    %710 = math.exp %709 : vector<6x32xf32>
    %cst_116 = arith.constant 1.000000e+00 : f32
    %711 = vector.broadcast %cst_116 : f32 to vector<6x32xf32>
    %712 = arith.addf %711, %710 : vector<6x32xf32>
    %713 = arith.divf %711, %712 : vector<6x32xf32>
    %714 = vector.extract_strided_slice %701 {offsets = [0, 64], sizes = [6, 32], strides = [1, 1]} : vector<6x128xf32> to vector<6x32xf32>
    %715 = math.tanh %714 : vector<6x32xf32>
    %716 = vector.extract_strided_slice %701 {offsets = [0, 96], sizes = [6, 32], strides = [1, 1]} : vector<6x128xf32> to vector<6x32xf32>
    %717 = arith.negf %716 : vector<6x32xf32>
    %718 = math.exp %717 : vector<6x32xf32>
    %cst_117 = arith.constant 1.000000e+00 : f32
    %719 = vector.broadcast %cst_117 : f32 to vector<6x32xf32>
    %720 = arith.addf %719, %718 : vector<6x32xf32>
    %721 = arith.divf %719, %720 : vector<6x32xf32>
    %722 = arith.mulf %713, %695 : vector<6x32xf32>
    %723 = arith.mulf %707, %715 : vector<6x32xf32>
    %724 = arith.addf %722, %723 : vector<6x32xf32>
    %725 = math.tanh %724 : vector<6x32xf32>
    %726 = arith.mulf %721, %725 : vector<6x32xf32>
    %727 = vector.extract_strided_slice %519 {offsets = [42, 0], sizes = [6, 128], strides = [1, 1]} : vector<48x128xf32> to vector<6x128xf32>
    %728 = arith.truncf %726 : vector<6x32xf32> to vector<6x32xbf16>
    %cst_118 = arith.constant dense<0.000000e+00> : vector<6x128xf32>
    %729 = tpu.matmul %728, %521, %cst_118 {dimension_numbers = #tpu.dot_dimension_numbers<[1], [0], [0], [1], [0, 0, 1, 1], [], []>} : vector<6x32xbf16>, vector<32x128xbf16>, vector<6x128xf32> -> vector<6x128xf32>
    %730 = arith.addf %727, %729 : vector<6x128xf32>
    %731 = vector.extract_strided_slice %730 {offsets = [0, 0], sizes = [6, 32], strides = [1, 1]} : vector<6x128xf32> to vector<6x32xf32>
    %732 = arith.negf %731 : vector<6x32xf32>
    %733 = math.exp %732 : vector<6x32xf32>
    %cst_119 = arith.constant 1.000000e+00 : f32
    %734 = vector.broadcast %cst_119 : f32 to vector<6x32xf32>
    %735 = arith.addf %734, %733 : vector<6x32xf32>
    %736 = arith.divf %734, %735 : vector<6x32xf32>
    %737 = vector.extract_strided_slice %730 {offsets = [0, 32], sizes = [6, 32], strides = [1, 1]} : vector<6x128xf32> to vector<6x32xf32>
    %738 = arith.negf %737 : vector<6x32xf32>
    %739 = math.exp %738 : vector<6x32xf32>
    %cst_120 = arith.constant 1.000000e+00 : f32
    %740 = vector.broadcast %cst_120 : f32 to vector<6x32xf32>
    %741 = arith.addf %740, %739 : vector<6x32xf32>
    %742 = arith.divf %740, %741 : vector<6x32xf32>
    %743 = vector.extract_strided_slice %730 {offsets = [0, 64], sizes = [6, 32], strides = [1, 1]} : vector<6x128xf32> to vector<6x32xf32>
    %744 = math.tanh %743 : vector<6x32xf32>
    %745 = arith.mulf %742, %724 : vector<6x32xf32>
    %746 = arith.mulf %736, %744 : vector<6x32xf32>
    %747 = arith.addf %745, %746 : vector<6x32xf32>
    %c0_121 = arith.constant 0 : index
    %c0_122 = arith.constant 0 : index
    %748 = vector.load %arg1[%c0_121, %c0_122] : memref<6x73xf32, #tpu.memory_space<vmem>>, vector<6x73xf32>
    %c216 = arith.constant 216 : index
    %c0_123 = arith.constant 0 : index
    %749 = vector.load %arg2[%c216, %c0_123] : memref<728x128xf32, #tpu.memory_space<vmem>>, vector<73x64xf32>
    %750 = arith.truncf %748 : vector<6x73xf32> to vector<6x73xbf16>
    %751 = arith.truncf %749 : vector<73x64xf32> to vector<73x64xbf16>
    %cst_124 = arith.constant dense<0.000000e+00> : vector<6x64xf32>
    %752 = tpu.matmul %750, %751, %cst_124 {dimension_numbers = #tpu.dot_dimension_numbers<[1], [0], [0], [1], [0, 0, 1, 1], [], []>} : vector<6x73xbf16>, vector<73x64xbf16>, vector<6x64xf32> -> vector<6x64xf32>
    %c296 = arith.constant 296 : index
    %c0_125 = arith.constant 0 : index
    %753 = vector.load %arg2[%c296, %c0_125] : memref<728x128xf32, #tpu.memory_space<vmem>>, vector<1x64xf32>
    %754 = vector.broadcast %753 : vector<1x64xf32> to vector<6x64xf32>
    %755 = arith.addf %752, %754 : vector<6x64xf32>
    %cst_126 = arith.constant 0.000000e+00 : f32
    %756 = vector.broadcast %cst_126 : f32 to vector<6x64xf32>
    %757 = arith.maximumf %755, %756 : vector<6x64xf32>
    %c304 = arith.constant 304 : index
    %c0_127 = arith.constant 0 : index
    %758 = vector.load %arg2[%c304, %c0_127] : memref<728x128xf32, #tpu.memory_space<vmem>>, vector<64x32xf32>
    %759 = arith.truncf %757 : vector<6x64xf32> to vector<6x64xbf16>
    %760 = arith.truncf %758 : vector<64x32xf32> to vector<64x32xbf16>
    %cst_128 = arith.constant dense<0.000000e+00> : vector<6x32xf32>
    %761 = tpu.matmul %759, %760, %cst_128 {dimension_numbers = #tpu.dot_dimension_numbers<[1], [0], [0], [1], [0, 0, 1, 1], [], []>} : vector<6x64xbf16>, vector<64x32xbf16>, vector<6x32xf32> -> vector<6x32xf32>
    %c368 = arith.constant 368 : index
    %c0_129 = arith.constant 0 : index
    %762 = vector.load %arg2[%c368, %c0_129] : memref<728x128xf32, #tpu.memory_space<vmem>>, vector<1x32xf32>
    %763 = vector.broadcast %762 : vector<1x32xf32> to vector<6x32xf32>
    %764 = arith.addf %761, %763 : vector<6x32xf32>
    %c376 = arith.constant 376 : index
    %c0_130 = arith.constant 0 : index
    %765 = vector.load %arg2[%c376, %c0_130] : memref<728x128xf32, #tpu.memory_space<vmem>>, vector<32x96xf32>
    %c408 = arith.constant 408 : index
    %c0_131 = arith.constant 0 : index
    %766 = vector.load %arg2[%c408, %c0_131] : memref<728x128xf32, #tpu.memory_space<vmem>>, vector<1x96xf32>
    %767 = arith.truncf %747 : vector<6x32xf32> to vector<6x32xbf16>
    %768 = arith.truncf %765 : vector<32x96xf32> to vector<32x96xbf16>
    %cst_132 = arith.constant dense<0.000000e+00> : vector<6x96xf32>
    %769 = tpu.matmul %767, %768, %cst_132 {dimension_numbers = #tpu.dot_dimension_numbers<[1], [0], [0], [1], [0, 0, 1, 1], [], []>} : vector<6x32xbf16>, vector<32x96xbf16>, vector<6x96xf32> -> vector<6x96xf32>
    %770 = vector.broadcast %766 : vector<1x96xf32> to vector<6x96xf32>
    %771 = arith.addf %769, %770 : vector<6x96xf32>
    %772 = arith.truncf %764 : vector<6x32xf32> to vector<6x32xbf16>
    %773 = arith.truncf %765 : vector<32x96xf32> to vector<32x96xbf16>
    %cst_133 = arith.constant dense<0.000000e+00> : vector<6x96xf32>
    %774 = tpu.matmul %772, %773, %cst_133 {dimension_numbers = #tpu.dot_dimension_numbers<[1], [0], [0], [1], [0, 0, 1, 1], [], []>} : vector<6x32xbf16>, vector<32x96xbf16>, vector<6x96xf32> -> vector<6x96xf32>
    %775 = vector.broadcast %766 : vector<1x96xf32> to vector<6x96xf32>
    %776 = arith.addf %774, %775 : vector<6x96xf32>
    %777 = vector.extract_strided_slice %771 {offsets = [0, 0], sizes = [6, 32], strides = [1, 1]} : vector<6x96xf32> to vector<6x32xf32>
    %778 = vector.extract_strided_slice %776 {offsets = [0, 0], sizes = [6, 32], strides = [1, 1]} : vector<6x96xf32> to vector<6x32xf32>
    %779 = vector.extract_strided_slice %771 {offsets = [0, 32], sizes = [6, 32], strides = [1, 1]} : vector<6x96xf32> to vector<6x32xf32>
    %780 = vector.extract_strided_slice %776 {offsets = [0, 32], sizes = [6, 32], strides = [1, 1]} : vector<6x96xf32> to vector<6x32xf32>
    %781 = vector.extract_strided_slice %771 {offsets = [0, 64], sizes = [6, 32], strides = [1, 1]} : vector<6x96xf32> to vector<6x32xf32>
    %782 = vector.extract_strided_slice %776 {offsets = [0, 64], sizes = [6, 32], strides = [1, 1]} : vector<6x96xf32> to vector<6x32xf32>
    %783 = arith.mulf %777, %779 : vector<6x32xf32>
    %cst_134 = arith.constant dense<0.000000e+00> : vector<6xf32>
    %784 = vector.multi_reduction <add>, %783, %cst_134 [1] : vector<6x32xf32> to vector<6xf32>
    %785 = vector.shape_cast %784 : vector<6xf32> to vector<6x1xf32>
    %cst_135 = arith.constant 0.176776692 : f32
    %786 = vector.broadcast %cst_135 : f32 to vector<6x1xf32>
    %787 = arith.mulf %785, %786 : vector<6x1xf32>
    %788 = arith.mulf %777, %780 : vector<6x32xf32>
    %cst_136 = arith.constant dense<0.000000e+00> : vector<6xf32>
    %789 = vector.multi_reduction <add>, %788, %cst_136 [1] : vector<6x32xf32> to vector<6xf32>
    %790 = vector.shape_cast %789 : vector<6xf32> to vector<6x1xf32>
    %cst_137 = arith.constant 0.176776692 : f32
    %791 = vector.broadcast %cst_137 : f32 to vector<6x1xf32>
    %792 = arith.mulf %790, %791 : vector<6x1xf32>
    %793 = arith.maximumf %787, %792 : vector<6x1xf32>
    %794 = arith.subf %787, %793 : vector<6x1xf32>
    %795 = math.exp %794 : vector<6x1xf32>
    %796 = arith.subf %792, %793 : vector<6x1xf32>
    %797 = math.exp %796 : vector<6x1xf32>
    %798 = arith.addf %795, %797 : vector<6x1xf32>
    %799 = tpu.reciprocal %798 {approx = true} : vector<6x1xf32> -> vector<6x1xf32>
    %800 = arith.mulf %795, %799 : vector<6x1xf32>
    %801 = vector.broadcast %800 : vector<6x1xf32> to vector<6x32xf32>
    %802 = arith.mulf %801, %781 : vector<6x32xf32>
    %803 = arith.mulf %797, %799 : vector<6x1xf32>
    %804 = vector.broadcast %803 : vector<6x1xf32> to vector<6x32xf32>
    %805 = arith.mulf %804, %782 : vector<6x32xf32>
    %806 = arith.addf %802, %805 : vector<6x32xf32>
    %807 = arith.mulf %778, %779 : vector<6x32xf32>
    %cst_138 = arith.constant dense<0.000000e+00> : vector<6xf32>
    %808 = vector.multi_reduction <add>, %807, %cst_138 [1] : vector<6x32xf32> to vector<6xf32>
    %809 = vector.shape_cast %808 : vector<6xf32> to vector<6x1xf32>
    %cst_139 = arith.constant 0.176776692 : f32
    %810 = vector.broadcast %cst_139 : f32 to vector<6x1xf32>
    %811 = arith.mulf %809, %810 : vector<6x1xf32>
    %812 = arith.mulf %778, %780 : vector<6x32xf32>
    %cst_140 = arith.constant dense<0.000000e+00> : vector<6xf32>
    %813 = vector.multi_reduction <add>, %812, %cst_140 [1] : vector<6x32xf32> to vector<6xf32>
    %814 = vector.shape_cast %813 : vector<6xf32> to vector<6x1xf32>
    %cst_141 = arith.constant 0.176776692 : f32
    %815 = vector.broadcast %cst_141 : f32 to vector<6x1xf32>
    %816 = arith.mulf %814, %815 : vector<6x1xf32>
    %817 = arith.maximumf %811, %816 : vector<6x1xf32>
    %818 = arith.subf %811, %817 : vector<6x1xf32>
    %819 = math.exp %818 : vector<6x1xf32>
    %820 = arith.subf %816, %817 : vector<6x1xf32>
    %821 = math.exp %820 : vector<6x1xf32>
    %822 = arith.addf %819, %821 : vector<6x1xf32>
    %823 = tpu.reciprocal %822 {approx = true} : vector<6x1xf32> -> vector<6x1xf32>
    %824 = arith.mulf %819, %823 : vector<6x1xf32>
    %825 = vector.broadcast %824 : vector<6x1xf32> to vector<6x32xf32>
    %826 = arith.mulf %825, %781 : vector<6x32xf32>
    %827 = arith.mulf %821, %823 : vector<6x1xf32>
    %828 = vector.broadcast %827 : vector<6x1xf32> to vector<6x32xf32>
    %829 = arith.mulf %828, %782 : vector<6x32xf32>
    %830 = arith.addf %826, %829 : vector<6x32xf32>
    %c416 = arith.constant 416 : index
    %c0_142 = arith.constant 0 : index
    %831 = vector.load %arg2[%c416, %c0_142] : memref<728x128xf32, #tpu.memory_space<vmem>>, vector<32x128xf32>
    %c448 = arith.constant 448 : index
    %c0_143 = arith.constant 0 : index
    %832 = vector.load %arg2[%c448, %c0_143] : memref<728x128xf32, #tpu.memory_space<vmem>>, vector<1x128xf32>
    %c456 = arith.constant 456 : index
    %c0_144 = arith.constant 0 : index
    %833 = vector.load %arg2[%c456, %c0_144] : memref<728x128xf32, #tpu.memory_space<vmem>>, vector<128x32xf32>
    %c584 = arith.constant 584 : index
    %c0_145 = arith.constant 0 : index
    %834 = vector.load %arg2[%c584, %c0_145] : memref<728x128xf32, #tpu.memory_space<vmem>>, vector<1x32xf32>
    %c592 = arith.constant 592 : index
    %c0_146 = arith.constant 0 : index
    %835 = vector.load %arg2[%c592, %c0_146] : memref<728x128xf32, #tpu.memory_space<vmem>>, vector<1x32xf32>
    %c600 = arith.constant 600 : index
    %c0_147 = arith.constant 0 : index
    %836 = vector.load %arg2[%c600, %c0_147] : memref<728x128xf32, #tpu.memory_space<vmem>>, vector<1x32xf32>
    %837 = arith.truncf %806 : vector<6x32xf32> to vector<6x32xbf16>
    %838 = arith.truncf %831 : vector<32x128xf32> to vector<32x128xbf16>
    %cst_148 = arith.constant dense<0.000000e+00> : vector<6x128xf32>
    %839 = tpu.matmul %837, %838, %cst_148 {dimension_numbers = #tpu.dot_dimension_numbers<[1], [0], [0], [1], [0, 0, 1, 1], [], []>} : vector<6x32xbf16>, vector<32x128xbf16>, vector<6x128xf32> -> vector<6x128xf32>
    %840 = vector.broadcast %832 : vector<1x128xf32> to vector<6x128xf32>
    %841 = arith.addf %839, %840 : vector<6x128xf32>
    %cst_149 = arith.constant 0.000000e+00 : f32
    %842 = vector.broadcast %cst_149 : f32 to vector<6x128xf32>
    %843 = arith.maximumf %841, %842 : vector<6x128xf32>
    %844 = arith.truncf %843 : vector<6x128xf32> to vector<6x128xbf16>
    %845 = arith.truncf %833 : vector<128x32xf32> to vector<128x32xbf16>
    %cst_150 = arith.constant dense<0.000000e+00> : vector<6x32xf32>
    %846 = tpu.matmul %844, %845, %cst_150 {dimension_numbers = #tpu.dot_dimension_numbers<[1], [0], [0], [1], [0, 0, 1, 1], [], []>} : vector<6x128xbf16>, vector<128x32xbf16>, vector<6x32xf32> -> vector<6x32xf32>
    %847 = arith.addf %806, %846 : vector<6x32xf32>
    %848 = vector.broadcast %834 : vector<1x32xf32> to vector<6x32xf32>
    %849 = arith.addf %847, %848 : vector<6x32xf32>
    %cst_151 = arith.constant dense<0.000000e+00> : vector<6xf32>
    %850 = vector.multi_reduction <add>, %849, %cst_151 [1] : vector<6x32xf32> to vector<6xf32>
    %851 = vector.shape_cast %850 : vector<6xf32> to vector<6x1xf32>
    %cst_152 = arith.constant 3.200000e+01 : f32
    %852 = vector.broadcast %cst_152 : f32 to vector<6x1xf32>
    %853 = arith.divf %851, %852 : vector<6x1xf32>
    %854 = vector.broadcast %853 : vector<6x1xf32> to vector<6x32xf32>
    %855 = arith.subf %849, %854 : vector<6x32xf32>
    %856 = arith.mulf %855, %855 : vector<6x32xf32>
    %cst_153 = arith.constant dense<0.000000e+00> : vector<6xf32>
    %857 = vector.multi_reduction <add>, %856, %cst_153 [1] : vector<6x32xf32> to vector<6xf32>
    %858 = vector.shape_cast %857 : vector<6xf32> to vector<6x1xf32>
    %cst_154 = arith.constant 3.200000e+01 : f32
    %859 = vector.broadcast %cst_154 : f32 to vector<6x1xf32>
    %860 = arith.divf %858, %859 : vector<6x1xf32>
    %861 = vector.broadcast %853 : vector<6x1xf32> to vector<6x32xf32>
    %862 = arith.subf %849, %861 : vector<6x32xf32>
    %cst_155 = arith.constant 9.99999974E-6 : f32
    %863 = vector.broadcast %cst_155 : f32 to vector<6x1xf32>
    %864 = arith.addf %860, %863 : vector<6x1xf32>
    %865 = math.rsqrt %864 : vector<6x1xf32>
    %866 = vector.broadcast %865 : vector<6x1xf32> to vector<6x32xf32>
    %867 = arith.mulf %862, %866 : vector<6x32xf32>
    %868 = vector.broadcast %835 : vector<1x32xf32> to vector<6x32xf32>
    %869 = arith.mulf %867, %868 : vector<6x32xf32>
    %870 = vector.broadcast %836 : vector<1x32xf32> to vector<6x32xf32>
    %871 = arith.addf %869, %870 : vector<6x32xf32>
    %872 = arith.truncf %830 : vector<6x32xf32> to vector<6x32xbf16>
    %873 = arith.truncf %831 : vector<32x128xf32> to vector<32x128xbf16>
    %cst_156 = arith.constant dense<0.000000e+00> : vector<6x128xf32>
    %874 = tpu.matmul %872, %873, %cst_156 {dimension_numbers = #tpu.dot_dimension_numbers<[1], [0], [0], [1], [0, 0, 1, 1], [], []>} : vector<6x32xbf16>, vector<32x128xbf16>, vector<6x128xf32> -> vector<6x128xf32>
    %875 = vector.broadcast %832 : vector<1x128xf32> to vector<6x128xf32>
    %876 = arith.addf %874, %875 : vector<6x128xf32>
    %cst_157 = arith.constant 0.000000e+00 : f32
    %877 = vector.broadcast %cst_157 : f32 to vector<6x128xf32>
    %878 = arith.maximumf %876, %877 : vector<6x128xf32>
    %879 = arith.truncf %878 : vector<6x128xf32> to vector<6x128xbf16>
    %880 = arith.truncf %833 : vector<128x32xf32> to vector<128x32xbf16>
    %cst_158 = arith.constant dense<0.000000e+00> : vector<6x32xf32>
    %881 = tpu.matmul %879, %880, %cst_158 {dimension_numbers = #tpu.dot_dimension_numbers<[1], [0], [0], [1], [0, 0, 1, 1], [], []>} : vector<6x128xbf16>, vector<128x32xbf16>, vector<6x32xf32> -> vector<6x32xf32>
    %882 = arith.addf %830, %881 : vector<6x32xf32>
    %883 = vector.broadcast %834 : vector<1x32xf32> to vector<6x32xf32>
    %884 = arith.addf %882, %883 : vector<6x32xf32>
    %cst_159 = arith.constant dense<0.000000e+00> : vector<6xf32>
    %885 = vector.multi_reduction <add>, %884, %cst_159 [1] : vector<6x32xf32> to vector<6xf32>
    %886 = vector.shape_cast %885 : vector<6xf32> to vector<6x1xf32>
    %cst_160 = arith.constant 3.200000e+01 : f32
    %887 = vector.broadcast %cst_160 : f32 to vector<6x1xf32>
    %888 = arith.divf %886, %887 : vector<6x1xf32>
    %889 = vector.broadcast %888 : vector<6x1xf32> to vector<6x32xf32>
    %890 = arith.subf %884, %889 : vector<6x32xf32>
    %891 = arith.mulf %890, %890 : vector<6x32xf32>
    %cst_161 = arith.constant dense<0.000000e+00> : vector<6xf32>
    %892 = vector.multi_reduction <add>, %891, %cst_161 [1] : vector<6x32xf32> to vector<6xf32>
    %893 = vector.shape_cast %892 : vector<6xf32> to vector<6x1xf32>
    %cst_162 = arith.constant 3.200000e+01 : f32
    %894 = vector.broadcast %cst_162 : f32 to vector<6x1xf32>
    %895 = arith.divf %893, %894 : vector<6x1xf32>
    %896 = vector.broadcast %888 : vector<6x1xf32> to vector<6x32xf32>
    %897 = arith.subf %884, %896 : vector<6x32xf32>
    %cst_163 = arith.constant 9.99999974E-6 : f32
    %898 = vector.broadcast %cst_163 : f32 to vector<6x1xf32>
    %899 = arith.addf %895, %898 : vector<6x1xf32>
    %900 = math.rsqrt %899 : vector<6x1xf32>
    %901 = vector.broadcast %900 : vector<6x1xf32> to vector<6x32xf32>
    %902 = arith.mulf %897, %901 : vector<6x32xf32>
    %903 = vector.broadcast %835 : vector<1x32xf32> to vector<6x32xf32>
    %904 = arith.mulf %902, %903 : vector<6x32xf32>
    %905 = vector.broadcast %836 : vector<1x32xf32> to vector<6x32xf32>
    %906 = arith.addf %904, %905 : vector<6x32xf32>
    %907 = arith.maximumf %871, %906 : vector<6x32xf32>
    %908 = vector.extract_strided_slice %907 {offsets = [0, 0], sizes = [2, 32], strides = [1, 1]} : vector<6x32xf32> to vector<2x32xf32>
    %909 = vector.extract_strided_slice %907 {offsets = [2, 0], sizes = [2, 32], strides = [1, 1]} : vector<6x32xf32> to vector<2x32xf32>
    %910 = vector.extract_strided_slice %907 {offsets = [4, 0], sizes = [2, 32], strides = [1, 1]} : vector<6x32xf32> to vector<2x32xf32>
    %911 = tpu.concatenate %908, %909, %910 in 1 : vector<2x32xf32>, vector<2x32xf32>, vector<2x32xf32> -> vector<2x96xf32>
    %c608 = arith.constant 608 : index
    %c0_164 = arith.constant 0 : index
    %912 = vector.load %arg2[%c608, %c0_164] : memref<728x128xf32, #tpu.memory_space<vmem>>, vector<96x32xf32>
    %913 = arith.truncf %911 : vector<2x96xf32> to vector<2x96xbf16>
    %914 = arith.truncf %912 : vector<96x32xf32> to vector<96x32xbf16>
    %cst_165 = arith.constant dense<0.000000e+00> : vector<2x32xf32>
    %915 = tpu.matmul %913, %914, %cst_165 {dimension_numbers = #tpu.dot_dimension_numbers<[1], [0], [0], [1], [0, 0, 1, 1], [], []>} : vector<2x96xbf16>, vector<96x32xbf16>, vector<2x32xf32> -> vector<2x32xf32>
    %c704 = arith.constant 704 : index
    %c0_166 = arith.constant 0 : index
    %916 = vector.load %arg2[%c704, %c0_166] : memref<728x128xf32, #tpu.memory_space<vmem>>, vector<1x32xf32>
    %917 = vector.broadcast %916 : vector<1x32xf32> to vector<2x32xf32>
    %918 = arith.addf %915, %917 : vector<2x32xf32>
    %c712 = arith.constant 712 : index
    %c0_167 = arith.constant 0 : index
    %919 = vector.load %arg2[%c712, %c0_167] : memref<728x128xf32, #tpu.memory_space<vmem>>, vector<1x32xf32>
    %c720 = arith.constant 720 : index
    %c0_168 = arith.constant 0 : index
    %920 = vector.load %arg2[%c720, %c0_168] : memref<728x128xf32, #tpu.memory_space<vmem>>, vector<1x32xf32>
    %cst_169 = arith.constant dense<0.000000e+00> : vector<2xf32>
    %921 = vector.multi_reduction <add>, %918, %cst_169 [1] : vector<2x32xf32> to vector<2xf32>
    %922 = vector.shape_cast %921 : vector<2xf32> to vector<2x1xf32>
    %cst_170 = arith.constant 3.200000e+01 : f32
    %923 = vector.broadcast %cst_170 : f32 to vector<2x1xf32>
    %924 = arith.divf %922, %923 : vector<2x1xf32>
    %925 = vector.broadcast %924 : vector<2x1xf32> to vector<2x32xf32>
    %926 = arith.subf %918, %925 : vector<2x32xf32>
    %927 = arith.mulf %926, %926 : vector<2x32xf32>
    %cst_171 = arith.constant dense<0.000000e+00> : vector<2xf32>
    %928 = vector.multi_reduction <add>, %927, %cst_171 [1] : vector<2x32xf32> to vector<2xf32>
    %929 = vector.shape_cast %928 : vector<2xf32> to vector<2x1xf32>
    %cst_172 = arith.constant 3.200000e+01 : f32
    %930 = vector.broadcast %cst_172 : f32 to vector<2x1xf32>
    %931 = arith.divf %929, %930 : vector<2x1xf32>
    %932 = vector.broadcast %924 : vector<2x1xf32> to vector<2x32xf32>
    %933 = arith.subf %918, %932 : vector<2x32xf32>
    %cst_173 = arith.constant 9.99999974E-6 : f32
    %934 = vector.broadcast %cst_173 : f32 to vector<2x1xf32>
    %935 = arith.addf %931, %934 : vector<2x1xf32>
    %936 = math.rsqrt %935 : vector<2x1xf32>
    %937 = vector.broadcast %936 : vector<2x1xf32> to vector<2x32xf32>
    %938 = arith.mulf %933, %937 : vector<2x32xf32>
    %939 = vector.broadcast %919 : vector<1x32xf32> to vector<2x32xf32>
    %940 = arith.mulf %938, %939 : vector<2x32xf32>
    %941 = vector.broadcast %920 : vector<1x32xf32> to vector<2x32xf32>
    %942 = arith.addf %940, %941 : vector<2x32xf32>
    %cst_174 = arith.constant 0.000000e+00 : f32
    %943 = vector.broadcast %cst_174 : f32 to vector<2x32xf32>
    %944 = arith.maximumf %942, %943 : vector<2x32xf32>
    %c0_175 = arith.constant 0 : index
    %c0_176 = arith.constant 0 : index
    %945 = vector.load %arg3[%c0_175, %c0_176] : memref<2x32xf32, #tpu.memory_space<vmem>>, vector<2x32xf32>
    tpu.vector_store %arg3[%c0_175, %c0_176], %944 {strides = array<i32>} : memref<2x32xf32, #tpu.memory_space<vmem>>, vector<2x32xf32>,
    return
  }
}

</mosaic_0001>

<llo_original>
// kernel: t5_cls_forward.3
$region0: #{t5_cls_forward.3}
  #allocation0 [shape = 'u32[]', space=smem, size = 0x4, offset = 0x4, fixed_abs, tag = 'smem constant byte address 0x4 - core index']
  #allocation1 [shape = 'u32[144,128]{1,0:T(1,128)}', space=vmem, size = 0x12000, scoped, tag = 'internal scratch']
  %s0 = inlined_call_operand.vmem [shape: f32[2,16], index: 0, kind: input, shape index: {}]
  %s1 = inlined_call_operand.vmem [shape: f32[2,16], index: 1, kind: input, shape index: {}]
  %s2 = inlined_call_operand.vmem [shape: f32[2,1], index: 2, kind: input, shape index: {}]
  %s3 = inlined_call_operand.vmem [shape: f32[2,24], index: 3, kind: input, shape index: {}]
  %s4 = inlined_call_operand.vmem [shape: f32[2,24], index: 4, kind: input, shape index: {}]
  %s5 = inlined_call_operand.vmem [shape: f32[2,1], index: 5, kind: input, shape index: {}]
  %s6 = inlined_call_operand.vmem [shape: f32[2,768], index: 6, kind: input, shape index: {}]
  %s7 = inlined_call_operand.vmem [shape: f32[1024,32], index: 7, kind: input, shape index: {}]
  %s8 = inlined_call_operand.vmem [shape: f32[10,32], index: 8, kind: output, shape index: {}]
  %s9 = sld [smem:[#allocation0]]
  $region42: #{t5_cls_forward.3} parent=0
    _
  %s11 = ssub.s32 1, %s9
  %s12 = scalar_select 0, %s11, %s9
  // Predicated region
  $region2: #{t5_cls_forward.3} parent=0 // pred_check
    _
  $region3: #{t5_cls_forward.3} parent=0 // pred_check_branch
    %14 = sbr.rel (0) target = $region5
  $region4: #{t5_cls_forward.3} parent=0 // pred_region
    _
  $region5: #{t5_cls_forward.3} parent=0 // pred_fallthru
    _
  // Predicated region
  $region6: #{t5_cls_forward.3} parent=0 // pred_check
    _
  $region7: #{t5_cls_forward.3} parent=0 // pred_check_branch
    %16 = sbr.rel (0) target = $region9
  $region8: #{t5_cls_forward.3} parent=0 // pred_region
    _
  $region9: #{t5_cls_forward.3} parent=0 // pred_fallthru
    _
  // Predicated region
  $region10: #{t5_cls_forward.3} parent=0 // pred_check
    _
  $region11: #{t5_cls_forward.3} parent=0 // pred_check_branch
    %18 = sbr.rel (0) target = $region13
  $region12: #{t5_cls_forward.3} parent=0 // pred_region
    _
  $region13: #{t5_cls_forward.3} parent=0 // pred_fallthru
    _
  // Predicated region
  $region14: #{t5_cls_forward.3} parent=0 // pred_check
    _
  $region15: #{t5_cls_forward.3} parent=0 // pred_check_branch
    %20 = sbr.rel (0) target = $region17
  $region16: #{t5_cls_forward.3} parent=0 // pred_region
    _
  $region17: #{t5_cls_forward.3} parent=0 // pred_fallthru
    _
  // Predicated region
  $region18: #{t5_cls_forward.3} parent=0 // pred_check
    _
  $region19: #{t5_cls_forward.3} parent=0 // pred_check_branch
    %22 = sbr.rel (0) target = $region21
  $region20: #{t5_cls_forward.3} parent=0 // pred_region
    _
  $region21: #{t5_cls_forward.3} parent=0 // pred_fallthru
    _
  // Predicated region
  $region22: #{t5_cls_forward.3} parent=0 // pred_check
    _
  $region23: #{t5_cls_forward.3} parent=0 // pred_check_branch
    %24 = sbr.rel (0) target = $region25
  $region24: #{t5_cls_forward.3} parent=0 // pred_region
    _
  $region25: #{t5_cls_forward.3} parent=0 // pred_fallthru
    _
  // Predicated region
  $region26: #{t5_cls_forward.3} parent=0 // pred_check
    _
  $region27: #{t5_cls_forward.3} parent=0 // pred_check_branch
    %26 = sbr.rel (0) target = $region29
  $region28: #{t5_cls_forward.3} parent=0 // pred_region
    _
  $region29: #{t5_cls_forward.3} parent=0 // pred_fallthru
    _
  // Predicated region
  $region30: #{t5_cls_forward.3} parent=0 // pred_check
    _
  $region31: #{t5_cls_forward.3} parent=0 // pred_check_branch
    %28 = sbr.rel (0) target = $region33
  $region32: #{t5_cls_forward.3} parent=0 // pred_region
    _
  $region33: #{t5_cls_forward.3} parent=0 // pred_fallthru
    _
  %v30 = vld [vmem:[%s7] sm:$0xff]
  %v31 = vld [vmem:[%s7 + $0x8] sm:$0xff]
  %v32 = vld [vmem:[%s7 + $0x10] sm:$0x1]
  %v33 = vld [vmem:[%s7 + $0x18] sm:$0x1]
  %v34 = vld [vmem:[%s7 + $0x20] sm:$0x1]
  %v35 = vld [vmem:[%s7 + $0x28] sm:$0xff]
  %v36 = vld [vmem:[%s7 + $0x30] sm:$0xff]
  %v37 = vld [vmem:[%s7 + $0x38] sm:$0xff]
  %v38 = vld [vmem:[%s7 + $0x40] sm:$0xff]
  %v39 = vld [vmem:[%s7 + $0x48] sm:$0x1]
  %v40 = vld [vmem:[%s7 + $0x50] sm:$0x1]
  %v41 = vld [vmem:[%s7 + $0x58] sm:$0x1]
  %v42 = vld [vmem:[%s7 + $0x60] sm:$0xff]
  %v43 = vld [vmem:[%s7 + $0x68] sm:$0xff]
  %v44 = vld [vmem:[%s7 + $0x70] sm:$0xff]
  %v45 = vld [vmem:[%s7 + $0x78] sm:$0x1]
  %v46 = vld [vmem:[%s7 + $0x80] sm:$0x1]
  %v47 = vld [vmem:[%s7 + $0x88] sm:$0x1]
  %v48 = vld [vmem:[%s7 + $0x90] sm:$0xff]
  %v49 = vld [vmem:[%s7 + $0x98] sm:$0xff]
  %v50 = vld [vmem:[%s7 + $0xa0] sm:$0xff]
  %v51 = vld [vmem:[%s7 + $0xa8] sm:$0xff]
  %v52 = vld [vmem:[%s7 + $0xb0] sm:$0x1]
  %v53 = vld [vmem:[%s7 + $0xb8] sm:$0x1]
  %v54 = vld [vmem:[%s7 + $0xc0] sm:$0x1]
  %v55 = vld [vmem:[%s0] sm:$0x3]
  %v56 = vpack.c.bf16 %v55, %v55
  %v57 = vpack.c.bf16 %v31, %v30
  %v58 = vlaneseq
  %v59 = vshrl.u32 %v58, 7
  %v60 = vsub.s32 0, %v59
  %v61 = vrot.slane %v32, %v60
  %vm62 = vcmask 130048
  %v64 = vsel %vm62, %v56, 0
  %66 = vmatprep.subr.bf16.mxu0 0
  %67 = vmatpush1.bf16.msra.mxu0 0
  %68 = vmatprep.subr.bf16.mxu0 0
  %69 = vmatpush1.bf16.msra.mxu0 0
  %70 = vmatprep.subr.bf16.mxu0 0
  %71 = vmatpush1.bf16.msra.mxu0 0
  %72 = vmatprep.subr.bf16.mxu0 0
  %73 = vmatpush1.bf16.msra.mxu0 0
  %74 = vmatprep.subr.bf16.mxu0 0
  %75 = vmatpush1.bf16.msra.mxu0 0
  %76 = vmatprep.subr.bf16.mxu0 0
  %77 = vmatpush1.bf16.msra.mxu0 0
  %78 = vmatprep.subr.bf16.mxu0 0
  %79 = vmatpush1.bf16.msra.mxu0 0
  %80 = vmatprep.subr.bf16.mxu0 0
  %81 = vmatpush1.bf16.msra.mxu0 %v57
  %82 = vmatprep.subr.bf16.mxu0 0
  %83 = vmatpush2.bf16.msra.mxu0 0
  %84 = vmatprep.subr.bf16.mxu0 0
  %85 = vmatpush2.bf16.msra.mxu0 0
  %86 = vmatprep.subr.bf16.mxu0 0
  %87 = vmatpush2.bf16.msra.mxu0 0
  %88 = vmatprep.subr.bf16.mxu0 0
  %89 = vmatpush2.bf16.msra.mxu0 0
  %90 = vmatprep.subr.bf16.mxu0 0
  %91 = vmatpush2.bf16.msra.mxu0 0
  %92 = vmatprep.subr.bf16.mxu0 0
  %93 = vmatpush2.bf16.msra.mxu0 0
  %94 = vmatprep.subr.bf16.mxu0 0
  %95 = vmatpush2.bf16.msra.mxu0 0
  %96 = vmatprep.subr.bf16.mxu0 0
  %97 = vmatpush2.bf16.msra.mxu0 0
  %98 = vmatprep.mubr.bf16.mxu0 0
  %99 = vmatmul.mubr.bf16.gmra.mxu0 %v64
  %v100 = vpop.f32.mrf.mxu0
  %v101 = vadd.f32 %v61, %v100
  %v102 = vpop.f32.mrf.mxu0
  %v103 = vpop.f32.mrf.mxu0
  %v104 = vpop.f32.mrf.mxu0
  %105 = vdwg.mxu0
  %vm106 = vcmask 254976
  %v107 = vsel %vm106, %v101, 0.0
  %108 = vadd.xlane.f32.xlu0 %v107
  %v109 = vpop.xlane.xlu0 %108
  %v110 = vrcp.pop 32.0
  %v111 = vmul.f32 %v109, %v110
  %v112 = vsub.f32 %v101, %v111
  %v113 = vmul.f32 %v112, %v112
  %v114 = vsel %vm106, %v113, 0.0
  %115 = vadd.xlane.f32.xlu0 %v114
  %v116 = vpop.xlane.xlu0 %115
  %v117 = vmul.f32 %v116, %v110
  %v118 = vadd.f32 %v117, 1e-05
  %v119 = vrsqrt.pop %v118
  %v120 = vmul.f32 %v112, %v119
  %v121 = vlaneseq
  %v122 = vshrl.u32 %v121, 7
  %v123 = vsub.s32 0, %v122
  %v124 = vrot.slane %v33, %v123
  %v125 = vmul.f32 %v120, %v124
  %v126 = vlaneseq
  %v127 = vshrl.u32 %v126, 7
  %v128 = vsub.s32 0, %v127
  %v129 = vrot.slane %v34, %v128
  %v130 = vadd.f32 %v125, %v129
  %v131 = vmax.f32 %v130, 0.0
  %v132 = vpack.c.bf16 %v131, %v131
  %v133 = vpack.c.bf16 %v36, %v35
  %v134 = vpack.c.bf16 %v38, %v37
  %v135 = vlaneseq
  %v136 = vshrl.u32 %v135, 7
  %v137 = vsub.s32 0, %v136
  %v138 = vrot.slane %v39, %v137
  %vm139 = vcmask 261120
  %v141 = vsel %vm139, %v132, 0
  %143 = vmatprep.subr.bf16.mxu0 0
  %144 = vmatpush1.bf16.msra.mxu0 0
  %145 = vmatprep.subr.bf16.mxu0 0
  %146 = vmatpush1.bf16.msra.mxu0 0
  %147 = vmatprep.subr.bf16.mxu0 0
  %148 = vmatpush1.bf16.msra.mxu0 0
  %149 = vmatprep.subr.bf16.mxu0 0
  %150 = vmatpush1.bf16.msra.mxu0 0
  %151 = vmatprep.subr.bf16.mxu0 0
  %152 = vmatpush1.bf16.msra.mxu0 0
  %153 = vmatprep.subr.bf16.mxu0 0
  %154 = vmatpush1.bf16.msra.mxu0 0
  %155 = vmatprep.subr.bf16.mxu0 0
  %156 = vmatpush1.bf16.msra.mxu0 %v134
  %157 = vmatprep.subr.bf16.mxu0 0
  %158 = vmatpush1.bf16.msra.mxu0 %v133
  %159 = vmatprep.subr.bf16.mxu0 0
  %160 = vmatpush2.bf16.msra.mxu0 0
  %161 = vmatprep.subr.bf16.mxu0 0
  %162 = vmatpush2.bf16.msra.mxu0 0
  %163 = vmatprep.subr.bf16.mxu0 0
  %164 = vmatpush2.bf16.msra.mxu0 0
  %165 = vmatprep.subr.bf16.mxu0 0
  %166 = vmatpush2.bf16.msra.mxu0 0
  %167 = vmatprep.subr.bf16.mxu0 0
  %168 = vmatpush2.bf16.msra.mxu0 0
  %169 = vmatprep.subr.bf16.mxu0 0
  %170 = vmatpush2.bf16.msra.mxu0 0
  %171 = vmatprep.subr.bf16.mxu0 0
  %172 = vmatpush2.bf16.msra.mxu0 0
  %173 = vmatprep.subr.bf16.mxu0 0
  %174 = vmatpush2.bf16.msra.mxu0 0
  %175 = vmatprep.mubr.bf16.mxu0 0
  %176 = vmatmul.mubr.bf16.gmra.mxu0 %v141
  %v177 = vpop.f32.mrf.mxu0
  %v178 = vadd.f32 %v138, %v177
  %v179 = vpop.f32.mrf.mxu0
  %v180 = vpop.f32.mrf.mxu0
  %v181 = vpop.f32.mrf.mxu0
  %182 = vdwg.mxu0
  %v183 = vsel %vm106, %v178, 0.0
  %184 = vadd.xlane.f32.xlu0 %v183
  %v185 = vpop.xlane.xlu0 %184
  %v186 = vmul.f32 %v185, %v110
  %v187 = vsub.f32 %v178, %v186
  %v188 = vmul.f32 %v187, %v187
  %v189 = vsel %vm106, %v188, 0.0
  %190 = vadd.xlane.f32.xlu0 %v189
  %v191 = vpop.xlane.xlu0 %190
  %v192 = vmul.f32 %v191, %v110
  %v193 = vadd.f32 %v192, 1e-05
  %v194 = vrsqrt.pop %v193
  %v195 = vmul.f32 %v187, %v194
  %v196 = vlaneseq
  %v197 = vshrl.u32 %v196, 7
  %v198 = vsub.s32 0, %v197
  %v199 = vrot.slane %v40, %v198
  %v200 = vmul.f32 %v195, %v199
  %v201 = vlaneseq
  %v202 = vshrl.u32 %v201, 7
  %v203 = vsub.s32 0, %v202
  %v204 = vrot.slane %v41, %v203
  %v205 = vadd.f32 %v200, %v204
  %v206 = vmax.f32 %v205, 0.0
  %207 = vst.msk [vmem:[%s8] sm:$0x3] %vm106, %v206
  %v208 = vld [vmem:[%s1] sm:$0x3]
  %v209 = vpack.c.bf16 %v208, %v208
  %v211 = vsel %vm62, %v209, 0
  %213 = vmatprep.subr.bf16.mxu0 0
  %214 = vmatpush1.bf16.msra.mxu0 0
  %215 = vmatprep.subr.bf16.mxu0 0
  %216 = vmatpush1.bf16.msra.mxu0 0
  %217 = vmatprep.subr.bf16.mxu0 0
  %218 = vmatpush1.bf16.msra.mxu0 0
  %219 = vmatprep.subr.bf16.mxu0 0
  %220 = vmatpush1.bf16.msra.mxu0 0
  %221 = vmatprep.subr.bf16.mxu0 0
  %222 = vmatpush1.bf16.msra.mxu0 0
  %223 = vmatprep.subr.bf16.mxu0 0
  %224 = vmatpush1.bf16.msra.mxu0 0
  %225 = vmatprep.subr.bf16.mxu0 0
  %226 = vmatpush1.bf16.msra.mxu0 0
  %227 = vmatprep.subr.bf16.mxu0 0
  %228 = vmatpush1.bf16.msra.mxu0 %v57
  %229 = vmatprep.subr.bf16.mxu0 0
  %230 = vmatpush2.bf16.msra.mxu0 0
  %231 = vmatprep.subr.bf16.mxu0 0
  %232 = vmatpush2.bf16.msra.mxu0 0
  %233 = vmatprep.subr.bf16.mxu0 0
  %234 = vmatpush2.bf16.msra.mxu0 0
  %235 = vmatprep.subr.bf16.mxu0 0
  %236 = vmatpush2.bf16.msra.mxu0 0
  %237 = vmatprep.subr.bf16.mxu0 0
  %238 = vmatpush2.bf16.msra.mxu0 0
  %239 = vmatprep.subr.bf16.mxu0 0
  %240 = vmatpush2.bf16.msra.mxu0 0
  %241 = vmatprep.subr.bf16.mxu0 0
  %242 = vmatpush2.bf16.msra.mxu0 0
  %243 = vmatprep.subr.bf16.mxu0 0
  %244 = vmatpush2.bf16.msra.mxu0 0
  %245 = vmatprep.mubr.bf16.mxu0 0
  %246 = vmatmul.mubr.bf16.gmra.mxu0 %v211
  %v247 = vpop.f32.mrf.mxu0
  %v248 = vadd.f32 %v61, %v247
  %v249 = vpop.f32.mrf.mxu0
  %v250 = vpop.f32.mrf.mxu0
  %v251 = vpop.f32.mrf.mxu0
  %252 = vdwg.mxu0
  %v253 = vsel %vm106, %v248, 0.0
  %254 = vadd.xlane.f32.xlu0 %v253
  %v255 = vpop.xlane.xlu0 %254
  %v256 = vmul.f32 %v255, %v110
  %v257 = vsub.f32 %v248, %v256
  %v258 = vmul.f32 %v257, %v257
  %v259 = vsel %vm106, %v258, 0.0
  %260 = vadd.xlane.f32.xlu0 %v259
  %v261 = vpop.xlane.xlu0 %260
  %v262 = vmul.f32 %v261, %v110
  %v263 = vadd.f32 %v262, 1e-05
  %v264 = vrsqrt.pop %v263
  %v265 = vmul.f32 %v257, %v264
  %v266 = vmul.f32 %v265, %v124
  %v267 = vadd.f32 %v266, %v129
  %v268 = vmax.f32 %v267, 0.0
  %v269 = vpack.c.bf16 %v268, %v268
  %v271 = vsel %vm139, %v269, 0
  %273 = vmatprep.subr.bf16.mxu0 0
  %274 = vmatpush1.bf16.msra.mxu0 0
  %275 = vmatprep.subr.bf16.mxu0 0
  %276 = vmatpush1.bf16.msra.mxu0 0
  %277 = vmatprep.subr.bf16.mxu0 0
  %278 = vmatpush1.bf16.msra.mxu0 0
  %279 = vmatprep.subr.bf16.mxu0 0
  %280 = vmatpush1.bf16.msra.mxu0 0
  %281 = vmatprep.subr.bf16.mxu0 0
  %282 = vmatpush1.bf16.msra.mxu0 0
  %283 = vmatprep.subr.bf16.mxu0 0
  %284 = vmatpush1.bf16.msra.mxu0 0
  %285 = vmatprep.subr.bf16.mxu0 0
  %286 = vmatpush1.bf16.msra.mxu0 %v134
  %287 = vmatprep.subr.bf16.mxu0 0
  %288 = vmatpush1.bf16.msra.mxu0 %v133
  %289 = vmatprep.subr.bf16.mxu0 0
  %290 = vmatpush2.bf16.msra.mxu0 0
  %291 = vmatprep.subr.bf16.mxu0 0
  %292 = vmatpush2.bf16.msra.mxu0 0
  %293 = vmatprep.subr.bf16.mxu0 0
  %294 = vmatpush2.bf16.msra.mxu0 0
  %295 = vmatprep.subr.bf16.mxu0 0
  %296 = vmatpush2.bf16.msra.mxu0 0
  %297 = vmatprep.subr.bf16.mxu0 0
  %298 = vmatpush2.bf16.msra.mxu0 0
  %299 = vmatprep.subr.bf16.mxu0 0
  %300 = vmatpush2.bf16.msra.mxu0 0
  %301 = vmatprep.subr.bf16.mxu0 0
  %302 = vmatpush2.bf16.msra.mxu0 0
  %303 = vmatprep.subr.bf16.mxu0 0
  %304 = vmatpush2.bf16.msra.mxu0 0
  %305 = vmatprep.mubr.bf16.mxu0 0
  %306 = vmatmul.mubr.bf16.gmra.mxu0 %v271
  %v307 = vpop.f32.mrf.mxu0
  %v308 = vadd.f32 %v138, %v307
  %v309 = vpop.f32.mrf.mxu0
  %v310 = vpop.f32.mrf.mxu0
  %v311 = vpop.f32.mrf.mxu0
  %312 = vdwg.mxu0
  %v313 = vsel %vm106, %v308, 0.0
  %314 = vadd.xlane.f32.xlu0 %v313
  %v315 = vpop.xlane.xlu0 %314
  %v316 = vmul.f32 %v315, %v110
  %v317 = vsub.f32 %v308, %v316
  %v318 = vmul.f32 %v317, %v317
  %v319 = vsel %vm106, %v318, 0.0
  %320 = vadd.xlane.f32.xlu0 %v319
  %v321 = vpop.xlane.xlu0 %320
  %v322 = vmul.f32 %v321, %v110
  %v323 = vadd.f32 %v322, 1e-05
  %v324 = vrsqrt.pop %v323
  %v325 = vmul.f32 %v317, %v324
  %v326 = vmul.f32 %v325, %v199
  %v327 = vadd.f32 %v326, %v204
  %v328 = vmax.f32 %v327, 0.0
  %v329 = vld [vmem:[%s2] sm:$0x3]
  %v330 = vld [vmem:[%s7 + $0x3e0] sm:$0x1]
  %332 = vset.pattern.permute.xlu0 0
  %333 = vperm.xlu0 %332, %v329
  %v334 = vpop.permute.xlu0 %333
  %v336 = vlaneseq
  %v337 = vshrl.u32 %v336, 7
  %v338 = vsub.s32 0, %v337
  %v339 = vrot.slane %v330, %v338
  %v340 = vmul.f32 %v334, %v339
  %v341 = vadd.f32 %v328, %v340
  %v342 = vld [vmem:[%s7 + $0x3e8] sm:$0x1]
  %v343 = vlaneseq
  %v344 = vshrl.u32 %v343, 7
  %v345 = vsub.s32 0, %v344
  %v346 = vrot.slane %v342, %v345
  %v347 = vadd.f32 %v341, %v346
  %348 = vst.msk [vmem:[%s8 + $0x2] sm:$0x3] %vm106, %v347
  %v349 = vld [vmem:[%s3] sm:$0x3]
  %v350 = vpack.c.bf16 %v349, %v349
  %v351 = vpack.c.bf16 %v43, %v42
  %v352 = vpack.c.bf16 %v44, %v44
  %v353 = vlaneseq
  %v354 = vshrl.u32 %v353, 7
  %v355 = vsub.s32 0, %v354
  %v356 = vrot.slane %v45, %v355
  %vm357 = vcmask 195584
  %v359 = vsel %vm357, %v350, 0
  %vm361 = vcmask 1043456
  %v363 = vsel %vm361, %v352, 0
  %365 = vmatprep.subr.bf16.mxu0 0
  %366 = vmatpush1.bf16.msra.mxu0 0
  %367 = vmatprep.subr.bf16.mxu0 0
  %368 = vmatpush1.bf16.msra.mxu0 0
  %369 = vmatprep.subr.bf16.mxu0 0
  %370 = vmatpush1.bf16.msra.mxu0 0
  %371 = vmatprep.subr.bf16.mxu0 0
  %372 = vmatpush1.bf16.msra.mxu0 0
  %373 = vmatprep.subr.bf16.mxu0 0
  %374 = vmatpush1.bf16.msra.mxu0 0
  %375 = vmatprep.subr.bf16.mxu0 0
  %376 = vmatpush1.bf16.msra.mxu0 0
  %377 = vmatprep.subr.bf16.mxu0 0
  %378 = vmatpush1.bf16.msra.mxu0 %v363
  %379 = vmatprep.subr.bf16.mxu0 0
  %380 = vmatpush1.bf16.msra.mxu0 %v351
  %381 = vmatprep.subr.bf16.mxu0 0
  %382 = vmatpush2.bf16.msra.mxu0 0
  %383 = vmatprep.subr.bf16.mxu0 0
  %384 = vmatpush2.bf16.msra.mxu0 0
  %385 = vmatprep.subr.bf16.mxu0 0
  %386 = vmatpush2.bf16.msra.mxu0 0
  %387 = vmatprep.subr.bf16.mxu0 0
  %388 = vmatpush2.bf16.msra.mxu0 0
  %389 = vmatprep.subr.bf16.mxu0 0
  %390 = vmatpush2.bf16.msra.mxu0 0
  %391 = vmatprep.subr.bf16.mxu0 0
  %392 = vmatpush2.bf16.msra.mxu0 0
  %393 = vmatprep.subr.bf16.mxu0 0
  %394 = vmatpush2.bf16.msra.mxu0 0
  %395 = vmatprep.subr.bf16.mxu0 0
  %396 = vmatpush2.bf16.msra.mxu0 0
  %397 = vmatprep.mubr.bf16.mxu0 0
  %398 = vmatmul.mubr.bf16.gmra.mxu0 %v359
  %v399 = vpop.f32.mrf.mxu0
  %v400 = vadd.f32 %v356, %v399
  %v401 = vpop.f32.mrf.mxu0
  %v402 = vpop.f32.mrf.mxu0
  %v403 = vpop.f32.mrf.mxu0
  %404 = vdwg.mxu0
  %v405 = vsel %vm106, %v400, 0.0
  %406 = vadd.xlane.f32.xlu0 %v405
  %v407 = vpop.xlane.xlu0 %406
  %v408 = vmul.f32 %v407, %v110
  %v409 = vsub.f32 %v400, %v408
  %v410 = vmul.f32 %v409, %v409
  %v411 = vsel %vm106, %v410, 0.0
  %412 = vadd.xlane.f32.xlu0 %v411
  %v413 = vpop.xlane.xlu0 %412
  %v414 = vmul.f32 %v413, %v110
  %v415 = vadd.f32 %v414, 1e-05
  %v416 = vrsqrt.pop %v415
  %v417 = vmul.f32 %v409, %v416
  %v418 = vlaneseq
  %v419 = vshrl.u32 %v418, 7
  %v420 = vsub.s32 0, %v419
  %v421 = vrot.slane %v46, %v420
  %v422 = vmul.f32 %v417, %v421
  %v423 = vlaneseq
  %v424 = vshrl.u32 %v423, 7
  %v425 = vsub.s32 0, %v424
  %v426 = vrot.slane %v47, %v425
  %v427 = vadd.f32 %v422, %v426
  %v428 = vmax.f32 %v427, 0.0
  %v429 = vpack.c.bf16 %v428, %v428
  %v430 = vpack.c.bf16 %v49, %v48
  %v431 = vpack.c.bf16 %v51, %v50
  %v432 = vlaneseq
  %v433 = vshrl.u32 %v432, 7
  %v434 = vsub.s32 0, %v433
  %v435 = vrot.slane %v52, %v434
  %v437 = vsel %vm139, %v429, 0
  %439 = vmatprep.subr.bf16.mxu0 0
  %440 = vmatpush1.bf16.msra.mxu0 0
  %441 = vmatprep.subr.bf16.mxu0 0
  %442 = vmatpush1.bf16.msra.mxu0 0
  %443 = vmatprep.subr.bf16.mxu0 0
  %444 = vmatpush1.bf16.msra.mxu0 0
  %445 = vmatprep.subr.bf16.mxu0 0
  %446 = vmatpush1.bf16.msra.mxu0 0
  %447 = vmatprep.subr.bf16.mxu0 0
  %448 = vmatpush1.bf16.msra.mxu0 0
  %449 = vmatprep.subr.bf16.mxu0 0
  %450 = vmatpush1.bf16.msra.mxu0 0
  %451 = vmatprep.subr.bf16.mxu0 0
  %452 = vmatpush1.bf16.msra.mxu0 %v431
  %453 = vmatprep.subr.bf16.mxu0 0
  %454 = vmatpush1.bf16.msra.mxu0 %v430
  %455 = vmatprep.subr.bf16.mxu0 0
  %456 = vmatpush2.bf16.msra.mxu0 0
  %457 = vmatprep.subr.bf16.mxu0 0
  %458 = vmatpush2.bf16.msra.mxu0 0
  %459 = vmatprep.subr.bf16.mxu0 0
  %460 = vmatpush2.bf16.msra.mxu0 0
  %461 = vmatprep.subr.bf16.mxu0 0
  %462 = vmatpush2.bf16.msra.mxu0 0
  %463 = vmatprep.subr.bf16.mxu0 0
  %464 = vmatpush2.bf16.msra.mxu0 0
  %465 = vmatprep.subr.bf16.mxu0 0
  %466 = vmatpush2.bf16.msra.mxu0 0
  %467 = vmatprep.subr.bf16.mxu0 0
  %468 = vmatpush2.bf16.msra.mxu0 0
  %469 = vmatprep.subr.bf16.mxu0 0
  %470 = vmatpush2.bf16.msra.mxu0 0
  %471 = vmatprep.mubr.bf16.mxu0 0
  %472 = vmatmul.mubr.bf16.gmra.mxu0 %v437
  %v473 = vpop.f32.mrf.mxu0
  %v474 = vadd.f32 %v435, %v473
  %v475 = vpop.f32.mrf.mxu0
  %v476 = vpop.f32.mrf.mxu0
  %v477 = vpop.f32.mrf.mxu0
  %478 = vdwg.mxu0
  %v479 = vsel %vm106, %v474, 0.0
  %480 = vadd.xlane.f32.xlu0 %v479
  %v481 = vpop.xlane.xlu0 %480
  %v482 = vmul.f32 %v481, %v110
  %v483 = vsub.f32 %v474, %v482
  %v484 = vmul.f32 %v483, %v483
  %v485 = vsel %vm106, %v484, 0.0
  %486 = vadd.xlane.f32.xlu0 %v485
  %v487 = vpop.xlane.xlu0 %486
  %v488 = vmul.f32 %v487, %v110
  %v489 = vadd.f32 %v488, 1e-05
  %v490 = vrsqrt.pop %v489
  %v491 = vmul.f32 %v483, %v490
  %v492 = vlaneseq
  %v493 = vshrl.u32 %v492, 7
  %v494 = vsub.s32 0, %v493
  %v495 = vrot.slane %v53, %v494
  %v496 = vmul.f32 %v491, %v495
  %v497 = vlaneseq
  %v498 = vshrl.u32 %v497, 7
  %v499 = vsub.s32 0, %v498
  %v500 = vrot.slane %v54, %v499
  %v501 = vadd.f32 %v496, %v500
  %v502 = vmax.f32 %v501, 0.0
  %503 = vst.msk [vmem:[%s8 + $0x4] sm:$0x3] %vm106, %v502
  %v504 = vld [vmem:[%s4] sm:$0x3]
  %v505 = vpack.c.bf16 %v504, %v504
  %v507 = vsel %vm357, %v505, 0
  %509 = vmatprep.subr.bf16.mxu0 0
  %510 = vmatpush1.bf16.msra.mxu0 0
  %511 = vmatprep.subr.bf16.mxu0 0
  %512 = vmatpush1.bf16.msra.mxu0 0
  %513 = vmatprep.subr.bf16.mxu0 0
  %514 = vmatpush1.bf16.msra.mxu0 0
  %515 = vmatprep.subr.bf16.mxu0 0
  %516 = vmatpush1.bf16.msra.mxu0 0
  %517 = vmatprep.subr.bf16.mxu0 0
  %518 = vmatpush1.bf16.msra.mxu0 0
  %519 = vmatprep.subr.bf16.mxu0 0
  %520 = vmatpush1.bf16.msra.mxu0 0
  %521 = vmatprep.subr.bf16.mxu0 0
  %522 = vmatpush1.bf16.msra.mxu0 %v363
  %523 = vmatprep.subr.bf16.mxu0 0
  %524 = vmatpush1.bf16.msra.mxu0 %v351
  %525 = vmatprep.subr.bf16.mxu0 0
  %526 = vmatpush2.bf16.msra.mxu0 0
  %527 = vmatprep.subr.bf16.mxu0 0
  %528 = vmatpush2.bf16.msra.mxu0 0
  %529 = vmatprep.subr.bf16.mxu0 0
  %530 = vmatpush2.bf16.msra.mxu0 0
  %531 = vmatprep.subr.bf16.mxu0 0
  %532 = vmatpush2.bf16.msra.mxu0 0
  %533 = vmatprep.subr.bf16.mxu0 0
  %534 = vmatpush2.bf16.msra.mxu0 0
  %535 = vmatprep.subr.bf16.mxu0 0
  %536 = vmatpush2.bf16.msra.mxu0 0
  %537 = vmatprep.subr.bf16.mxu0 0
  %538 = vmatpush2.bf16.msra.mxu0 0
  %539 = vmatprep.subr.bf16.mxu0 0
  %540 = vmatpush2.bf16.msra.mxu0 0
  %541 = vmatprep.mubr.bf16.mxu0 0
  %542 = vmatmul.mubr.bf16.gmra.mxu0 %v507
  %v543 = vpop.f32.mrf.mxu0
  %v544 = vadd.f32 %v356, %v543
  %v545 = vpop.f32.mrf.mxu0
  %v546 = vpop.f32.mrf.mxu0
  %v547 = vpop.f32.mrf.mxu0
  %548 = vdwg.mxu0
  %v549 = vsel %vm106, %v544, 0.0
  %550 = vadd.xlane.f32.xlu0 %v549
  %v551 = vpop.xlane.xlu0 %550
  %v552 = vmul.f32 %v551, %v110
  %v553 = vsub.f32 %v544, %v552
  %v554 = vmul.f32 %v553, %v553
  %v555 = vsel %vm106, %v554, 0.0
  %556 = vadd.xlane.f32.xlu0 %v555
  %v557 = vpop.xlane.xlu0 %556
  %v558 = vmul.f32 %v557, %v110
  %v559 = vadd.f32 %v558, 1e-05
  %v560 = vrsqrt.pop %v559
  %v561 = vmul.f32 %v553, %v560
  %v562 = vmul.f32 %v561, %v421
  %v563 = vadd.f32 %v562, %v426
  %v564 = vmax.f32 %v563, 0.0
  %v565 = vpack.c.bf16 %v564, %v564
  %v567 = vsel %vm139, %v565, 0
  %569 = vmatprep.subr.bf16.mxu0 0
  %570 = vmatpush1.bf16.msra.mxu0 0
  %571 = vmatprep.subr.bf16.mxu0 0
  %572 = vmatpush1.bf16.msra.mxu0 0
  %573 = vmatprep.subr.bf16.mxu0 0
  %574 = vmatpush1.bf16.msra.mxu0 0
  %575 = vmatprep.subr.bf16.mxu0 0
  %576 = vmatpush1.bf16.msra.mxu0 0
  %577 = vmatprep.subr.bf16.mxu0 0
  %578 = vmatpush1.bf16.msra.mxu0 0
  %579 = vmatprep.subr.bf16.mxu0 0
  %580 = vmatpush1.bf16.msra.mxu0 0
  %581 = vmatprep.subr.bf16.mxu0 0
  %582 = vmatpush1.bf16.msra.mxu0 %v431
  %583 = vmatprep.subr.bf16.mxu0 0
  %584 = vmatpush1.bf16.msra.mxu0 %v430
  %585 = vmatprep.subr.bf16.mxu0 0
  %586 = vmatpush2.bf16.msra.mxu0 0
  %587 = vmatprep.subr.bf16.mxu0 0
  %588 = vmatpush2.bf16.msra.mxu0 0
  %589 = vmatprep.subr.bf16.mxu0 0
  %590 = vmatpush2.bf16.msra.mxu0 0
  %591 = vmatprep.subr.bf16.mxu0 0
  %592 = vmatpush2.bf16.msra.mxu0 0
  %593 = vmatprep.subr.bf16.mxu0 0
  %594 = vmatpush2.bf16.msra.mxu0 0
  %595 = vmatprep.subr.bf16.mxu0 0
  %596 = vmatpush2.bf16.msra.mxu0 0
  %597 = vmatprep.subr.bf16.mxu0 0
  %598 = vmatpush2.bf16.msra.mxu0 0
  %599 = vmatprep.subr.bf16.mxu0 0
  %600 = vmatpush2.bf16.msra.mxu0 0
  %601 = vmatprep.mubr.bf16.mxu0 0
  %602 = vmatmul.mubr.bf16.gmra.mxu0 %v567
  %v603 = vpop.f32.mrf.mxu0
  %v604 = vadd.f32 %v435, %v603
  %v605 = vpop.f32.mrf.mxu0
  %v606 = vpop.f32.mrf.mxu0
  %v607 = vpop.f32.mrf.mxu0
  %608 = vdwg.mxu0
  %v609 = vsel %vm106, %v604, 0.0
  %610 = vadd.xlane.f32.xlu0 %v609
  %v611 = vpop.xlane.xlu0 %610
  %v612 = vmul.f32 %v611, %v110
  %v613 = vsub.f32 %v604, %v612
  %v614 = vmul.f32 %v613, %v613
  %v615 = vsel %vm106, %v614, 0.0
  %616 = vadd.xlane.f32.xlu0 %v615
  %v617 = vpop.xlane.xlu0 %616
  %v618 = vmul.f32 %v617, %v110
  %v619 = vadd.f32 %v618, 1e-05
  %v620 = vrsqrt.pop %v619
  %v621 = vmul.f32 %v613, %v620
  %v622 = vmul.f32 %v621, %v495
  %v623 = vadd.f32 %v622, %v500
  %v624 = vmax.f32 %v623, 0.0
  %v625 = vld [vmem:[%s5] sm:$0x3]
  %v626 = vld [vmem:[%s7 + $0x3f0] sm:$0x1]
  %628 = vset.pattern.permute.xlu0 0
  %629 = vperm.xlu0 %628, %v625
  %v630 = vpop.permute.xlu0 %629
  %v632 = vlaneseq
  %v633 = vshrl.u32 %v632, 7
  %v634 = vsub.s32 0, %v633
  %v635 = vrot.slane %v626, %v634
  %v636 = vmul.f32 %v630, %v635
  %v637 = vadd.f32 %v624, %v636
  %v638 = vld [vmem:[%s7 + $0x3f8] sm:$0x1]
  %v639 = vlaneseq
  %v640 = vshrl.u32 %v639, 7
  %v641 = vsub.s32 0, %v640
  %v642 = vrot.slane %v638, %v641
  %v643 = vadd.f32 %v637, %v642
  %644 = vst.msk [vmem:[%s8 + $0x6] sm:$0x3] %vm106, %v643
  %v645 = vld [vmem:[%s6] sm:$0xff]
  %v646 = vld [vmem:[%s6 + $0x8] sm:$0xf]
  %v647 = vld [vmem:[%s7 + $0xc8] sm:$0xff]
  %v648 = vld [vmem:[%s7 + $0xd0] sm:$0xff]
  %v649 = vld [vmem:[%s7 + $0xd8] sm:$0xff]
  %v650 = vld [vmem:[%s7 + $0xe0] sm:$0xff]
  %v651 = vld [vmem:[%s7 + $0xe8] sm:$0xff]
  %v652 = vld [vmem:[%s7 + $0xf0] sm:$0xff]
  %v653 = vld [vmem:[%s7 + $0xf8] sm:$0xff]
  %v654 = vld [vmem:[%s7 + $0x100] sm:$0xff]
  %v655 = vld [vmem:[%s7 + $0x108] sm:$0xff]
  %v656 = vld [vmem:[%s7 + $0x110] sm:$0xff]
  %v657 = vld [vmem:[%s7 + $0x118] sm:$0xff]
  %v658 = vld [vmem:[%s7 + $0x120] sm:$0xff]
  %v659 = vld [vmem:[%s7 + $0x128] sm:$0xff]
  %v660 = vld [vmem:[%s7 + $0x130] sm:$0xff]
  %v661 = vld [vmem:[%s7 + $0x138] sm:$0xff]
  %v662 = vld [vmem:[%s7 + $0x140] sm:$0xff]
  %v663 = vld [vmem:[%s7 + $0x148] sm:$0xff]
  %v664 = vld [vmem:[%s7 + $0x150] sm:$0xff]
  %v665 = vld [vmem:[%s7 + $0x158] sm:$0xff]
  %v666 = vld [vmem:[%s7 + $0x160] sm:$0xff]
  %v667 = vld [vmem:[%s7 + $0x168] sm:$0xff]
  %v668 = vld [vmem:[%s7 + $0x170] sm:$0xff]
  %v669 = vld [vmem:[%s7 + $0x178] sm:$0xff]
  %v670 = vld [vmem:[%s7 + $0x180] sm:$0xff]
  %v671 = vld [vmem:[%s7 + $0x188] sm:$0xff]
  %v672 = vld [vmem:[%s7 + $0x190] sm:$0xff]
  %v673 = vld [vmem:[%s7 + $0x198] sm:$0xff]
  %v674 = vld [vmem:[%s7 + $0x1a0] sm:$0xff]
  %v675 = vld [vmem:[%s7 + $0x1a8] sm:$0xff]
  %v676 = vld [vmem:[%s7 + $0x1b0] sm:$0xff]
  %v677 = vld [vmem:[%s7 + $0x1b8] sm:$0xff]
  %v678 = vld [vmem:[%s7 + $0x1c0] sm:$0xff]
  %v679 = vld [vmem:[%s7 + $0x1c8] sm:$0xff]
  %v680 = vld [vmem:[%s7 + $0x1d0] sm:$0xff]
  %v681 = vld [vmem:[%s7 + $0x1d8] sm:$0xff]
  %v682 = vld [vmem:[%s7 + $0x1e0] sm:$0xff]
  %v683 = vld [vmem:[%s7 + $0x1e8] sm:$0xff]
  %v684 = vld [vmem:[%s7 + $0x1f0] sm:$0xff]
  %v685 = vld [vmem:[%s7 + $0x1f8] sm:$0xff]
  %v686 = vld [vmem:[%s7 + $0x200] sm:$0xff]
  %v687 = vld [vmem:[%s7 + $0x208] sm:$0xff]
  %v688 = vld [vmem:[%s7 + $0x210] sm:$0xff]
  %v689 = vld [vmem:[%s7 + $0x218] sm:$0xff]
  %v690 = vld [vmem:[%s7 + $0x220] sm:$0xff]
  %v691 = vld [vmem:[%s7 + $0x228] sm:$0xff]
  %v692 = vld [vmem:[%s7 + $0x230] sm:$0xff]
  %v693 = vld [vmem:[%s7 + $0x238] sm:$0xff]
  %v694 = vld [vmem:[%s7 + $0x240] sm:$0xff]
  %v695 = vld [vmem:[%s7 + $0x248] sm:$0xff]
  %v696 = vld [vmem:[%s7 + $0x250] sm:$0xff]
  %v697 = vld [vmem:[%s7 + $0x258] sm:$0xff]
  %v698 = vld [vmem:[%s7 + $0x260] sm:$0xff]
  %v699 = vld [vmem:[%s7 + $0x268] sm:$0xff]
  %v700 = vld [vmem:[%s7 + $0x270] sm:$0xff]
  %v701 = vld [vmem:[%s7 + $0x278] sm:$0xff]
  %v702 = vld [vmem:[%s7 + $0x280] sm:$0xff]
  %v703 = vld [vmem:[%s7 + $0x288] sm:$0xff]
  %v704 = vld [vmem:[%s7 + $0x290] sm:$0xff]
  %v705 = vld [vmem:[%s7 + $0x298] sm:$0xff]
  %v706 = vld [vmem:[%s7 + $0x2a0] sm:$0xff]
  %v707 = vld [vmem:[%s7 + $0x2a8] sm:$0xff]
  %v708 = vld [vmem:[%s7 + $0x2b0] sm:$0xff]
  %v709 = vld [vmem:[%s7 + $0x2b8] sm:$0xff]
  %v710 = vld [vmem:[%s7 + $0x2c0] sm:$0xff]
  %v711 = vld [vmem:[%s7 + $0x2c8] sm:$0xff]
  %v712 = vld [vmem:[%s7 + $0x2d0] sm:$0xff]
  %v713 = vld [vmem:[%s7 + $0x2d8] sm:$0xff]
  %v714 = vld [vmem:[%s7 + $0x2e0] sm:$0xff]
  %v715 = vld [vmem:[%s7 + $0x2e8] sm:$0xff]
  %v716 = vld [vmem:[%s7 + $0x2f0] sm:$0xff]
  %v717 = vld [vmem:[%s7 + $0x2f8] sm:$0xff]
  %v718 = vld [vmem:[%s7 + $0x300] sm:$0xff]
  %v719 = vld [vmem:[%s7 + $0x308] sm:$0xff]
  %v720 = vld [vmem:[%s7 + $0x310] sm:$0xff]
  %v721 = vld [vmem:[%s7 + $0x318] sm:$0xff]
  %v722 = vld [vmem:[%s7 + $0x320] sm:$0xff]
  %v723 = vld [vmem:[%s7 + $0x328] sm:$0xff]
  %v724 = vld [vmem:[%s7 + $0x330] sm:$0xff]
  %v725 = vld [vmem:[%s7 + $0x338] sm:$0xff]
  %v726 = vld [vmem:[%s7 + $0x340] sm:$0xff]
  %v727 = vld [vmem:[%s7 + $0x348] sm:$0xff]
  %v728 = vld [vmem:[%s7 + $0x350] sm:$0xff]
  %v729 = vld [vmem:[%s7 + $0x358] sm:$0xff]
  %v730 = vld [vmem:[%s7 + $0x360] sm:$0xff]
  %v731 = vld [vmem:[%s7 + $0x368] sm:$0xff]
  %v732 = vld [vmem:[%s7 + $0x370] sm:$0xff]
  %v733 = vld [vmem:[%s7 + $0x378] sm:$0xff]
  %v734 = vld [vmem:[%s7 + $0x380] sm:$0xff]
  %v735 = vld [vmem:[%s7 + $0x388] sm:$0xff]
  %v736 = vld [vmem:[%s7 + $0x390] sm:$0xff]
  %v737 = vld [vmem:[%s7 + $0x398] sm:$0xff]
  %v738 = vld [vmem:[%s7 + $0x3a0] sm:$0xff]
  %v739 = vld [vmem:[%s7 + $0x3a8] sm:$0xff]
  %v740 = vld [vmem:[%s7 + $0x3b0] sm:$0xff]
  %v741 = vld [vmem:[%s7 + $0x3b8] sm:$0xff]
  %v742 = vld [vmem:[%s7 + $0x3c0] sm:$0xff]
  %v745 = vcombine.high %v645, %v645
  %v747 = vunpack.c.l.s4 1983009808
  %v748 = vunpack.c.0.s8 %v747
  %v749 = vlaneseq
  %v750 = vshrl.u32 %v749, 7
  %v751 = vsub.s32 %v748, %v750
  %v752 = vrot.slane %v645, %v751
  %v754 = vunpack.c.l.s4 1983009808
  %v755 = vunpack.c.0.s8 %v754
  %v756 = vlaneseq
  %v757 = vshrl.u32 %v756, 7
  %v758 = vsub.s32 %v755, %v757
  %v759 = vrot.slane %v745, %v758
  %v760 = vcombine.high %v752, %v752
  %v761 = vcombine.high %v759, %v759
  %v763 = vunpack.c.l.s4 1983009808
  %v764 = vunpack.c.0.s8 %v763
  %v765 = vlaneseq
  %v766 = vshrl.u32 %v765, 7
  %v767 = vsub.s32 %v764, %v766
  %v768 = vrot.slane %v646, %v767
  %v769 = vcombine.high %v768, %v768
  %v776 = vpack.c.bf16 %v752, %v752
  %v777 = vpack.c.bf16 %v760, %v760
  %v778 = vpack.c.bf16 %v759, %v759
  %v779 = vpack.c.bf16 %v761, %v761
  %v780 = vpack.c.bf16 %v768, %v768
  %v781 = vpack.c.bf16 %v769, %v769
  %v782 = vpack.c.bf16 %v648, %v647
  %v783 = vpack.c.bf16 %v650, %v649
  %v784 = vpack.c.bf16 %v652, %v651
  %v785 = vpack.c.bf16 %v654, %v653
  %v786 = vpack.c.bf16 %v656, %v655
  %v787 = vpack.c.bf16 %v658, %v657
  %v788 = vpack.c.bf16 %v660, %v659
  %v789 = vpack.c.bf16 %v662, %v661
  %v790 = vpack.c.bf16 %v664, %v663
  %v791 = vpack.c.bf16 %v666, %v665
  %v792 = vpack.c.bf16 %v668, %v667
  %v793 = vpack.c.bf16 %v670, %v669
  %v794 = vpack.c.bf16 %v672, %v671
  %v795 = vpack.c.bf16 %v674, %v673
  %v796 = vpack.c.bf16 %v676, %v675
  %v797 = vpack.c.bf16 %v678, %v677
  %v798 = vpack.c.bf16 %v680, %v679
  %v799 = vpack.c.bf16 %v682, %v681
  %v800 = vpack.c.bf16 %v684, %v683
  %v801 = vpack.c.bf16 %v686, %v685
  %v802 = vpack.c.bf16 %v688, %v687
  %v803 = vpack.c.bf16 %v690, %v689
  %v804 = vpack.c.bf16 %v692, %v691
  %v805 = vpack.c.bf16 %v694, %v693
  %v806 = vpack.c.bf16 %v696, %v695
  %v807 = vpack.c.bf16 %v698, %v697
  %v808 = vpack.c.bf16 %v700, %v699
  %v809 = vpack.c.bf16 %v702, %v701
  %v810 = vpack.c.bf16 %v704, %v703
  %v811 = vpack.c.bf16 %v706, %v705
  %v812 = vpack.c.bf16 %v708, %v707
  %v813 = vpack.c.bf16 %v710, %v709
  %v814 = vpack.c.bf16 %v712, %v711
  %v815 = vpack.c.bf16 %v714, %v713
  %v816 = vpack.c.bf16 %v716, %v715
  %v817 = vpack.c.bf16 %v718, %v717
  %v818 = vpack.c.bf16 %v720, %v719
  %v819 = vpack.c.bf16 %v722, %v721
  %v820 = vpack.c.bf16 %v724, %v723
  %v821 = vpack.c.bf16 %v726, %v725
  %v822 = vpack.c.bf16 %v728, %v727
  %v823 = vpack.c.bf16 %v730, %v729
  %v824 = vpack.c.bf16 %v732, %v731
  %v825 = vpack.c.bf16 %v734, %v733
  %v826 = vpack.c.bf16 %v736, %v735
  %v827 = vpack.c.bf16 %v738, %v737
  %v828 = vpack.c.bf16 %v740, %v739
  %v829 = vpack.c.bf16 %v742, %v741
  %v830 = vld [vmem:[%s7 + $0x3c8] sm:$0x1]
  %v831 = vlaneseq
  %v832 = vshrl.u32 %v831, 7
  %v833 = vsub.s32 0, %v832
  %v834 = vrot.slane %v830, %v833
  %835 = vmatprep.subr.bf16.mxu0 0
  %836 = vmatpush1.bf16.msra.mxu0 %v789
  %837 = vmatprep.subr.bf16.mxu0 0
  %838 = vmatpush1.bf16.msra.mxu0 %v788
  %839 = vmatprep.subr.bf16.mxu0 0
  %840 = vmatpush1.bf16.msra.mxu0 %v787
  %841 = vmatprep.subr.bf16.mxu0 0
  %842 = vmatpush1.bf16.msra.mxu0 %v786
  %843 = vmatprep.subr.bf16.mxu0 0
  %844 = vmatpush1.bf16.msra.mxu0 %v785
  %845 = vmatprep.subr.bf16.mxu0 0
  %846 = vmatpush1.bf16.msra.mxu0 %v784
  %847 = vmatprep.subr.bf16.mxu0 0
  %848 = vmatpush1.bf16.msra.mxu0 %v783
  %849 = vmatprep.subr.bf16.mxu0 0
  %850 = vmatpush1.bf16.msra.mxu0 %v782
  %851 = vmatprep.subr.bf16.mxu0 0
  %852 = vmatpush2.bf16.msra.mxu0 %v797
  %853 = vmatprep.subr.bf16.mxu0 0
  %854 = vmatpush2.bf16.msra.mxu0 %v796
  %855 = vmatprep.subr.bf16.mxu0 0
  %856 = vmatpush2.bf16.msra.mxu0 %v795
  %857 = vmatprep.subr.bf16.mxu0 0
  %858 = vmatpush2.bf16.msra.mxu0 %v794
  %859 = vmatprep.subr.bf16.mxu0 0
  %860 = vmatpush2.bf16.msra.mxu0 %v793
  %861 = vmatprep.subr.bf16.mxu0 0
  %862 = vmatpush2.bf16.msra.mxu0 %v792
  %863 = vmatprep.subr.bf16.mxu0 0
  %864 = vmatpush2.bf16.msra.mxu0 %v791
  %865 = vmatprep.subr.bf16.mxu0 0
  %866 = vmatpush2.bf16.msra.mxu0 %v790
  %867 = vmatprep.mubr.bf16.mxu0 %v777
  %868 = vmatmul.mubr.bf16.gmra.mxu0 %v776
  %v869 = vpop.f32.mrf.mxu0
  %v870 = vadd.f32 %v834, %v869
  %v871 = vpop.f32.mrf.mxu0
  %v872 = vpop.f32.mrf.mxu0
  %v873 = vpop.f32.mrf.mxu0
  %874 = vdwg.mxu0
  %875 = vmatprep.subr.bf16.mxu0 0
  %876 = vmatpush1.bf16.msra.mxu0 %v805
  %877 = vmatprep.subr.bf16.mxu0 0
  %878 = vmatpush1.bf16.msra.mxu0 %v804
  %879 = vmatprep.subr.bf16.mxu0 0
  %880 = vmatpush1.bf16.msra.mxu0 %v803
  %881 = vmatprep.subr.bf16.mxu0 0
  %882 = vmatpush1.bf16.msra.mxu0 %v802
  %883 = vmatprep.subr.bf16.mxu0 0
  %884 = vmatpush1.bf16.msra.mxu0 %v801
  %885 = vmatprep.subr.bf16.mxu0 0
  %886 = vmatpush1.bf16.msra.mxu0 %v800
  %887 = vmatprep.subr.bf16.mxu0 0
  %888 = vmatpush1.bf16.msra.mxu0 %v799
  %889 = vmatprep.subr.bf16.mxu0 0
  %890 = vmatpush1.bf16.msra.mxu0 %v798
  %891 = vmatprep.subr.bf16.mxu0 0
  %892 = vmatpush2.bf16.msra.mxu0 %v813
  %893 = vmatprep.subr.bf16.mxu0 0
  %894 = vmatpush2.bf16.msra.mxu0 %v812
  %895 = vmatprep.subr.bf16.mxu0 0
  %896 = vmatpush2.bf16.msra.mxu0 %v811
  %897 = vmatprep.subr.bf16.mxu0 0
  %898 = vmatpush2.bf16.msra.mxu0 %v810
  %899 = vmatprep.subr.bf16.mxu0 0
  %900 = vmatpush2.bf16.msra.mxu0 %v809
  %901 = vmatprep.subr.bf16.mxu0 0
  %902 = vmatpush2.bf16.msra.mxu0 %v808
  %903 = vmatprep.subr.bf16.mxu0 0
  %904 = vmatpush2.bf16.msra.mxu0 %v807
  %905 = vmatprep.subr.bf16.mxu0 0
  %906 = vmatpush2.bf16.msra.mxu0 %v806
  %907 = vmatprep.mubr.bf16.mxu0 %v779
  %908 = vmatmul.mubr.bf16.gmra.mxu0 %v778
  %v909 = vpop.f32.mrf.mxu0
  %v910 = vadd.f32 %v870, %v909
  %v911 = vpop.f32.mrf.mxu0
  %v912 = vpop.f32.mrf.mxu0
  %v913 = vpop.f32.mrf.mxu0
  %914 = vdwg.mxu0
  %915 = vmatprep.subr.bf16.mxu0 0
  %916 = vmatpush1.bf16.msra.mxu0 %v821
  %917 = vmatprep.subr.bf16.mxu0 0
  %918 = vmatpush1.bf16.msra.mxu0 %v820
  %919 = vmatprep.subr.bf16.mxu0 0
  %920 = vmatpush1.bf16.msra.mxu0 %v819
  %921 = vmatprep.subr.bf16.mxu0 0
  %922 = vmatpush1.bf16.msra.mxu0 %v818
  %923 = vmatprep.subr.bf16.mxu0 0
  %924 = vmatpush1.bf16.msra.mxu0 %v817
  %925 = vmatprep.subr.bf16.mxu0 0
  %926 = vmatpush1.bf16.msra.mxu0 %v816
  %927 = vmatprep.subr.bf16.mxu0 0
  %928 = vmatpush1.bf16.msra.mxu0 %v815
  %929 = vmatprep.subr.bf16.mxu0 0
  %930 = vmatpush1.bf16.msra.mxu0 %v814
  %931 = vmatprep.subr.bf16.mxu0 0
  %932 = vmatpush2.bf16.msra.mxu0 %v829
  %933 = vmatprep.subr.bf16.mxu0 0
  %934 = vmatpush2.bf16.msra.mxu0 %v828
  %935 = vmatprep.subr.bf16.mxu0 0
  %936 = vmatpush2.bf16.msra.mxu0 %v827
  %937 = vmatprep.subr.bf16.mxu0 0
  %938 = vmatpush2.bf16.msra.mxu0 %v826
  %939 = vmatprep.subr.bf16.mxu0 0
  %940 = vmatpush2.bf16.msra.mxu0 %v825
  %941 = vmatprep.subr.bf16.mxu0 0
  %942 = vmatpush2.bf16.msra.mxu0 %v824
  %943 = vmatprep.subr.bf16.mxu0 0
  %944 = vmatpush2.bf16.msra.mxu0 %v823
  %945 = vmatprep.subr.bf16.mxu0 0
  %946 = vmatpush2.bf16.msra.mxu0 %v822
  %947 = vmatprep.mubr.bf16.mxu0 %v781
  %948 = vmatmul.mubr.bf16.gmra.mxu0 %v780
  %v949 = vpop.f32.mrf.mxu0
  %v950 = vadd.f32 %v910, %v949
  %v951 = vpop.f32.mrf.mxu0
  %v952 = vpop.f32.mrf.mxu0
  %v953 = vpop.f32.mrf.mxu0
  %954 = vdwg.mxu0
  %v955 = vld [vmem:[%s7 + $0x3d0] sm:$0x1]
  %v956 = vld [vmem:[%s7 + $0x3d8] sm:$0x1]
  %v957 = vsel %vm106, %v950, 0.0
  %958 = vadd.xlane.f32.xlu0 %v957
  %v959 = vpop.xlane.xlu0 %958
  %v960 = vmul.f32 %v959, %v110
  %v961 = vsub.f32 %v950, %v960
  %v962 = vmul.f32 %v961, %v961
  %v963 = vsel %vm106, %v962, 0.0
  %964 = vadd.xlane.f32.xlu0 %v963
  %v965 = vpop.xlane.xlu0 %964
  %v966 = vmul.f32 %v965, %v110
  %v967 = vadd.f32 %v966, 1e-05
  %v968 = vrsqrt.pop %v967
  %v969 = vmul.f32 %v961, %v968
  %v970 = vlaneseq
  %v971 = vshrl.u32 %v970, 7
  %v972 = vsub.s32 0, %v971
  %v973 = vrot.slane %v955, %v972
  %v974 = vmul.f32 %v969, %v973
  %v975 = vlaneseq
  %v976 = vshrl.u32 %v975, 7
  %v977 = vsub.s32 0, %v976
  %v978 = vrot.slane %v956, %v977
  %v979 = vadd.f32 %v974, %v978
  %v980 = vmax.f32 %v979, 0.0
  %981 = vst.msk [vmem:[%s8 + $0x8] sm:$0x3] %vm106, %v980
  // Predicated region
  $region34: #{t5_cls_forward.3} parent=0 // pred_check
    _
  $region35: #{t5_cls_forward.3} parent=0 // pred_check_branch
    %983 = sbr.rel (0) target = $region37
  $region36: #{t5_cls_forward.3} parent=0 // pred_region
    _
  $region37: #{t5_cls_forward.3} parent=0 // pred_fallthru
    _
  // Predicated region
  $region38: #{t5_cls_forward.3} parent=0 // pred_check
    _
  $region39: #{t5_cls_forward.3} parent=0 // pred_check_branch
    %985 = sbr.rel (0) target = $region41
  $region40: #{t5_cls_forward.3} parent=0 // pred_region
    _
  $region41: #{t5_cls_forward.3} parent=0 // pred_fallthru
    _

// kernel: t5_cls_forward.5
$region0: #{t5_cls_forward.5}
  #allocation0 [shape = 'u32[]', space=smem, size = 0x4, offset = 0x4, fixed_abs, tag = 'smem constant byte address 0x4 - core index']
  #allocation1 [shape = 'u32[144,128]{1,0:T(1,128)}', space=vmem, size = 0x12000, scoped, tag = 'internal scratch']
  %s0 = inlined_call_operand.vmem [shape: f32[10,32], index: 0, kind: input, shape index: {}]
  %s1 = inlined_call_operand.vmem [shape: f32[2,32], index: 1, kind: input, shape index: {}]
  %s2 = inlined_call_operand.vmem [shape: f32[1080,128], index: 2, kind: input, shape index: {}]
  %s3 = inlined_call_operand.hbm [shape: f32[2,32], index: 3, kind: output, shape index: {0}]
  %s4 = inlined_call_operand.hbm [shape: f32[2,32], index: 4, kind: output, shape index: {1}]
  %s5 = inlined_call_operand.hbm [shape: f32[2,32], index: 5, kind: output, shape index: {2}]
  %s6 = inlined_call_operand.hbm [shape: f32[2,16], index: 6, kind: output, shape index: {3}]
  %s7 = inlined_call_operand.hbm [shape: f32[2,24], index: 7, kind: output, shape index: {4}]
  %8 = xla_tuple %s3, %s4, %s5, %s6, %s7
  %s9 = sld [smem:[#allocation0]]
  $region54: #{t5_cls_forward.5} parent=0
    _
  %s11 = ssub.s32 1, %s9
  %s12 = scalar_select 0, %s11, %s9
  $region1: #{t5_cls_forward.5} parent=0
    #allocation2 [shape = 'u8[1024]{0}', space=vmem, size = 0x400, scoped, tag = 'output window, operand 0, single buffered']
    #allocation3 [shape = 's32[1]{0}', space=sflag, size = 0x4, scoped, tag = 'scoped memory for t5_cls_forward.5']
    #allocation4 [shape = 'u8[1024]{0}', space=vmem, size = 0x400, scoped, tag = 'output window, operand 1, single buffered']
    #allocation5 [shape = 's32[1]{0}', space=sflag, size = 0x4, scoped, tag = 'scoped memory for t5_cls_forward.5']
    #allocation6 [shape = 'u8[1024]{0}', space=vmem, size = 0x400, scoped, tag = 'output window, operand 2, single buffered']
    #allocation7 [shape = 'u8[1024]{0}', space=vmem, size = 0x400, scoped, tag = 'output window, operand 3, single buffered']
    #allocation8 [shape = 's32[1]{0}', space=sflag, size = 0x4, scoped, tag = 'scoped memory for t5_cls_forward.5']
    #allocation9 [shape = 'u8[1024]{0}', space=vmem, size = 0x400, scoped, tag = 'output window, operand 4, single buffered']
    %13 = vsyncpa [#allocation3], 0
    %14 = vsyncpa [#allocation5], 0
    %15 = vsyncpa [#allocation8], 0
    // Predicated region
    $region2: #{t5_cls_forward.5} parent=1 // pred_check
      _
    $region3: #{t5_cls_forward.5} parent=1 // pred_check_branch
      %17 = sbr.rel (0) target = $region5
    $region4: #{t5_cls_forward.5} parent=1 // pred_region
      _
    $region5: #{t5_cls_forward.5} parent=1 // pred_fallthru
      _
    // Predicated region
    $region6: #{t5_cls_forward.5} parent=1 // pred_check
      _
    $region7: #{t5_cls_forward.5} parent=1 // pred_check_branch
      %19 = sbr.rel (0) target = $region9
    $region8: #{t5_cls_forward.5} parent=1 // pred_region
      _
    $region9: #{t5_cls_forward.5} parent=1 // pred_fallthru
      _
    // Predicated region
    $region10: #{t5_cls_forward.5} parent=1 // pred_check
      _
    $region11: #{t5_cls_forward.5} parent=1 // pred_check_branch
      %21 = sbr.rel (0) target = $region13
    $region12: #{t5_cls_forward.5} parent=1 // pred_region
      _
    $region13: #{t5_cls_forward.5} parent=1 // pred_fallthru
      _
    %v23 = vld [vmem:[%s2] sm:$0xff]
    %v24 = vld [vmem:[%s2 + $0x8] sm:$0xff]
    %v25 = vld [vmem:[%s2 + $0x10] sm:$0xff]
    %v26 = vld [vmem:[%s2 + $0x18] sm:$0xff]
    %v27 = vld [vmem:[%s2 + $0x20] sm:$0x1]
    %v28 = vld [vmem:[%s0] sm:$0xff]
    %v29 = vld [vmem:[%s0 + $0x8] sm:$0x3]
    %v30 = vpack.c.bf16 %v29, %v28
    %v31 = vpack.c.bf16 %v24, %v23
    %v32 = vpack.c.bf16 %v26, %v25
    %v33 = vlaneseq
    %v34 = vshrl.u32 %v33, 7
    %v35 = vsub.s32 0, %v34
    %v36 = vrot.slane %v27, %v35
    %vm37 = vcmask 261120
    %v39 = vsel %vm37, %v30, 0
    %41 = vmatprep.subr.bf16.mxu0 0
    %42 = vmatpush1.bf16.msra.mxu0 0
    %43 = vmatprep.subr.bf16.mxu0 0
    %44 = vmatpush1.bf16.msra.mxu0 0
    %45 = vmatprep.subr.bf16.mxu0 0
    %46 = vmatpush1.bf16.msra.mxu0 0
    %47 = vmatprep.subr.bf16.mxu0 0
    %48 = vmatpush1.bf16.msra.mxu0 0
    %49 = vmatprep.subr.bf16.mxu0 0
    %50 = vmatpush1.bf16.msra.mxu0 0
    %51 = vmatprep.subr.bf16.mxu0 0
    %52 = vmatpush1.bf16.msra.mxu0 0
    %53 = vmatprep.subr.bf16.mxu0 0
    %54 = vmatpush1.bf16.msra.mxu0 %v32
    %55 = vmatprep.subr.bf16.mxu0 0
    %56 = vmatpush1.bf16.msra.mxu0 %v31
    %57 = vmatprep.subr.bf16.mxu0 0
    %58 = vmatpush2.bf16.msra.mxu0 0
    %59 = vmatprep.subr.bf16.mxu0 0
    %60 = vmatpush2.bf16.msra.mxu0 0
    %61 = vmatprep.subr.bf16.mxu0 0
    %62 = vmatpush2.bf16.msra.mxu0 0
    %63 = vmatprep.subr.bf16.mxu0 0
    %64 = vmatpush2.bf16.msra.mxu0 0
    %65 = vmatprep.subr.bf16.mxu0 0
    %66 = vmatpush2.bf16.msra.mxu0 0
    %67 = vmatprep.subr.bf16.mxu0 0
    %68 = vmatpush2.bf16.msra.mxu0 0
    %69 = vmatprep.subr.bf16.mxu0 0
    %70 = vmatpush2.bf16.msra.mxu0 0
    %71 = vmatprep.subr.bf16.mxu0 0
    %72 = vmatpush2.bf16.msra.mxu0 0
    %73 = vmatprep.mubr.bf16.mxu0 0
    %74 = vmatmul.mubr.bf16.gmra.mxu0 %v39
    %v75 = vpop.f32.mrf.mxu0
    %v76 = vadd.f32 %v36, %v75
    %v77 = vpop.f32.mrf.mxu0
    %v78 = vpop.f32.mrf.mxu0
    %v79 = vadd.f32 %v36, %v78
    %v80 = vpop.f32.mrf.mxu0
    %81 = vdwg.mxu0
    %v82 = vld [vmem:[%s1] sm:$0x3]
    %v83 = vpack.c.bf16 %v82, %v82
    %v85 = vsel %vm37, %v83, 0
    %87 = vmatprep.subr.bf16.mxu0 0
    %88 = vmatpush1.bf16.msra.mxu0 0
    %89 = vmatprep.subr.bf16.mxu0 0
    %90 = vmatpush1.bf16.msra.mxu0 0
    %91 = vmatprep.subr.bf16.mxu0 0
    %92 = vmatpush1.bf16.msra.mxu0 0
    %93 = vmatprep.subr.bf16.mxu0 0
    %94 = vmatpush1.bf16.msra.mxu0 0
    %95 = vmatprep.subr.bf16.mxu0 0
    %96 = vmatpush1.bf16.msra.mxu0 0
    %97 = vmatprep.subr.bf16.mxu0 0
    %98 = vmatpush1.bf16.msra.mxu0 0
    %99 = vmatprep.subr.bf16.mxu0 0
    %100 = vmatpush1.bf16.msra.mxu0 %v32
    %101 = vmatprep.subr.bf16.mxu0 0
    %102 = vmatpush1.bf16.msra.mxu0 %v31
    %103 = vmatprep.subr.bf16.mxu0 0
    %104 = vmatpush2.bf16.msra.mxu0 0
    %105 = vmatprep.subr.bf16.mxu0 0
    %106 = vmatpush2.bf16.msra.mxu0 0
    %107 = vmatprep.subr.bf16.mxu0 0
    %108 = vmatpush2.bf16.msra.mxu0 0
    %109 = vmatprep.subr.bf16.mxu0 0
    %110 = vmatpush2.bf16.msra.mxu0 0
    %111 = vmatprep.subr.bf16.mxu0 0
    %112 = vmatpush2.bf16.msra.mxu0 0
    %113 = vmatprep.subr.bf16.mxu0 0
    %114 = vmatpush2.bf16.msra.mxu0 0
    %115 = vmatprep.subr.bf16.mxu0 0
    %116 = vmatpush2.bf16.msra.mxu0 0
    %117 = vmatprep.subr.bf16.mxu0 0
    %118 = vmatpush2.bf16.msra.mxu0 0
    %119 = vmatprep.mubr.bf16.mxu0 0
    %120 = vmatmul.mubr.bf16.gmra.mxu0 %v85
    %v121 = vpop.f32.mrf.mxu0
    %v122 = vadd.f32 %v36, %v121
    %v123 = vpop.f32.mrf.mxu0
    %v124 = vpop.f32.mrf.mxu0
    %v125 = vpop.f32.mrf.mxu0
    %126 = vdwg.mxu0
    %128 = vrot.lane.b32.xlu0 %v76, 96
    %v129 = vpop.permute.xlu0 %128
    %v131 = vmul.f32 %v76, %v129
    %vm132 = vcmask 254976
    %v133 = vsel %vm132, %v131, 0.0
    %134 = vadd.xlane.f32.xlu0 %v133
    %v135 = vpop.xlane.xlu0 %134
    %v136 = vmul.f32 %v135, 0.17677669
    %v137 = vrot.slane %v76, 4
    %138 = vrot.lane.b32.xlu0 %v137, 96
    %v139 = vpop.permute.xlu0 %138
    %v141 = vmul.f32 %v76, %v139
    %v142 = vsel %vm132, %v141, 0.0
    %143 = vadd.xlane.f32.xlu0 %v142
    %v144 = vpop.xlane.xlu0 %143
    %v145 = vmul.f32 %v144, 0.17677669
    %147 = vrot.lane.b32.xlu0 %v122, 96
    %v148 = vpop.permute.xlu0 %147
    %v150 = vmul.f32 %v76, %v148
    %v151 = vsel %vm132, %v150, 0.0
    %152 = vadd.xlane.f32.xlu0 %v151
    %v153 = vpop.xlane.xlu0 %152
    %v154 = vmul.f32 %v153, 0.17677669
    %v155 = vmax.f32 %v136, %v145
    %v156 = vmax.f32 %v155, %v154
    %v157 = vsub.f32 %v136, %v156
    %v158 = vmul.f32 %v157, 1.442695
    %v159 = vpow.pop %v158
    %v160 = vsub.f32 %v145, %v156
    %v161 = vmul.f32 %v160, 1.442695
    %v162 = vpow.pop %v161
    %v163 = vsub.f32 %v154, %v156
    %v164 = vmul.f32 %v163, 1.442695
    %v165 = vpow.pop %v164
    %v166 = vadd.f32 %v159, %v162
    %v167 = vadd.f32 %v166, %v165
    %v168 = vrcp.pop %v167
    %v169 = vmul.f32 %v159, %v168
    %v170 = vmul.f32 %v169, %v76
    %v171 = vmul.f32 %v162, %v168
    %172 = vrot.lane.b32.xlu0 %v137, 64
    %v173 = vpop.permute.xlu0 %172
    %v175 = vmul.f32 %v171, %v173
    %177 = vrot.lane.b32.xlu0 %v175, 64
    %v178 = vpop.permute.xlu0 %177
    %v180 = vadd.f32 %v170, %v178
    %v181 = vmul.f32 %v165, %v168
    %v182 = vmul.f32 %v181, %v122
    %v183 = vadd.f32 %v180, %v182
    %vm184 = vcmask 259076
    %v185 = vsel %vm184, %v141, 0.0
    %186 = vadd.xlane.f32.xlu0 %v185
    %v187 = vpop.xlane.xlu0 %186
    %v188 = vmul.f32 %v187, 0.17677669
    %v189 = vsel %vm184, %v131, 0.0
    %190 = vadd.xlane.f32.xlu0 %v189
    %v191 = vpop.xlane.xlu0 %190
    %v192 = vmul.f32 %v191, 0.17677669
    %v193 = vrot.slane %v122, 4
    %194 = vrot.lane.b32.xlu0 %v193, 96
    %v195 = vpop.permute.xlu0 %194
    %v197 = vmul.f32 %v76, %v195
    %v198 = vsel %vm184, %v197, 0.0
    %199 = vadd.xlane.f32.xlu0 %v198
    %v200 = vpop.xlane.xlu0 %199
    %v201 = vmul.f32 %v200, 0.17677669
    %v202 = vmax.f32 %v188, %v192
    %v203 = vmax.f32 %v202, %v201
    %v204 = vsub.f32 %v188, %v203
    %v205 = vmul.f32 %v204, 1.442695
    %v206 = vpow.pop %v205
    %v207 = vsub.f32 %v192, %v203
    %v208 = vmul.f32 %v207, 1.442695
    %v209 = vpow.pop %v208
    %v210 = vsub.f32 %v201, %v203
    %v211 = vmul.f32 %v210, 1.442695
    %v212 = vpow.pop %v211
    %v213 = vadd.f32 %v206, %v209
    %v214 = vadd.f32 %v213, %v212
    %v215 = vrcp.pop %v214
    %v216 = vmul.f32 %v206, %v215
    %v217 = vmul.f32 %v216, %v173
    %v218 = vmul.f32 %v209, %v215
    %v219 = vmul.f32 %v218, %v76
    %221 = vrot.lane.b32.xlu0 %v219, 64
    %v222 = vpop.permute.xlu0 %221
    %v224 = vadd.f32 %v217, %v222
    %v225 = vmul.f32 %v212, %v215
    %226 = vrot.lane.b32.xlu0 %v193, 64
    %v227 = vpop.permute.xlu0 %226
    %v229 = vmul.f32 %v225, %v227
    %v230 = vadd.f32 %v224, %v229
    %v231 = vmul.f32 %v122, %v129
    %v232 = vsel %vm132, %v231, 0.0
    %233 = vadd.xlane.f32.xlu0 %v232
    %v234 = vpop.xlane.xlu0 %233
    %v235 = vmul.f32 %v234, 0.17677669
    %v236 = vmul.f32 %v122, %v139
    %v237 = vsel %vm132, %v236, 0.0
    %238 = vadd.xlane.f32.xlu0 %v237
    %v239 = vpop.xlane.xlu0 %238
    %v240 = vmul.f32 %v239, 0.17677669
    %v241 = vmul.f32 %v122, %v148
    %v242 = vsel %vm132, %v241, 0.0
    %243 = vadd.xlane.f32.xlu0 %v242
    %v244 = vpop.xlane.xlu0 %243
    %v245 = vmul.f32 %v244, 0.17677669
    %v246 = vmax.f32 %v235, %v240
    %v247 = vmax.f32 %v246, %v245
    %v248 = vsub.f32 %v235, %v247
    %v249 = vmul.f32 %v248, 1.442695
    %v250 = vpow.pop %v249
    %v251 = vsub.f32 %v240, %v247
    %v252 = vmul.f32 %v251, 1.442695
    %v253 = vpow.pop %v252
    %v254 = vsub.f32 %v245, %v247
    %v255 = vmul.f32 %v254, 1.442695
    %v256 = vpow.pop %v255
    %v257 = vadd.f32 %v250, %v253
    %v258 = vadd.f32 %v257, %v256
    %v259 = vrcp.pop %v258
    %v260 = vmul.f32 %v250, %v259
    %v261 = vmul.f32 %v260, %v76
    %v262 = vmul.f32 %v253, %v259
    %v263 = vmul.f32 %v262, %v173
    %265 = vrot.lane.b32.xlu0 %v263, 64
    %v266 = vpop.permute.xlu0 %265
    %v268 = vadd.f32 %v261, %v266
    %v269 = vmul.f32 %v256, %v259
    %v270 = vmul.f32 %v269, %v122
    %v271 = vadd.f32 %v268, %v270
    %v273 = vrot.slane %v230, 4
    %274 = vrot.lane.b32.xlu0 %v273, 64
    %v275 = vpop.permute.xlu0 %274
    %v277 = vmax.f32 %v183, %v275
    %v278 = vmax.f32 %v277, %v271
    %v279 = vld [vmem:[%s2 + $0x28] sm:$0xff]
    %v280 = vld [vmem:[%s2 + $0x30] sm:$0xff]
    %v281 = vld [vmem:[%s2 + $0x38] sm:$0xff]
    %v282 = vld [vmem:[%s2 + $0x40] sm:$0xff]
    %v283 = vld [vmem:[%s2 + $0x48] sm:$0x1]
    %v284 = vld [vmem:[%s2 + $0x50] sm:$0xff]
    %v285 = vld [vmem:[%s2 + $0x58] sm:$0xff]
    %v286 = vld [vmem:[%s2 + $0x60] sm:$0xff]
    %v287 = vld [vmem:[%s2 + $0x68] sm:$0xff]
    %v288 = vld [vmem:[%s2 + $0x70] sm:$0xff]
    %v289 = vld [vmem:[%s2 + $0x78] sm:$0xff]
    %v290 = vld [vmem:[%s2 + $0x80] sm:$0xff]
    %v291 = vld [vmem:[%s2 + $0x88] sm:$0xff]
    %v292 = vld [vmem:[%s2 + $0x90] sm:$0xff]
    %v293 = vld [vmem:[%s2 + $0x98] sm:$0xff]
    %v294 = vld [vmem:[%s2 + $0xa0] sm:$0xff]
    %v295 = vld [vmem:[%s2 + $0xa8] sm:$0xff]
    %v296 = vld [vmem:[%s2 + $0xb0] sm:$0xff]
    %v297 = vld [vmem:[%s2 + $0xb8] sm:$0xff]
    %v298 = vld [vmem:[%s2 + $0xc0] sm:$0xff]
    %v299 = vld [vmem:[%s2 + $0xc8] sm:$0xff]
    %v300 = vld [vmem:[%s2 + $0xd0] sm:$0x1]
    %v301 = vld [vmem:[%s2 + $0xd8] sm:$0x1]
    %v302 = vld [vmem:[%s2 + $0xe0] sm:$0x1]
    %v303 = vpack.c.bf16 %v278, %v278
    %v304 = vpack.c.bf16 %v280, %v279
    %v305 = vpack.c.bf16 %v282, %v281
    %v306 = vlaneseq
    %v307 = vshrl.u32 %v306, 7
    %v308 = vsub.s32 0, %v307
    %v309 = vrot.slane %v283, %v308
    %311 = vrot.lane.b32.xlu0 %v303, 64
    %v312 = vpop.permute.xlu0 %311
    %v314 = vsel %vm37, %v312, 0
    %316 = vmatprep.subr.bf16.mxu0 0
    %317 = vmatpush1.bf16.msra.mxu0 0
    %318 = vmatprep.subr.bf16.mxu0 0
    %319 = vmatpush1.bf16.msra.mxu0 0
    %320 = vmatprep.subr.bf16.mxu0 0
    %321 = vmatpush1.bf16.msra.mxu0 0
    %322 = vmatprep.subr.bf16.mxu0 0
    %323 = vmatpush1.bf16.msra.mxu0 0
    %324 = vmatprep.subr.bf16.mxu0 0
    %325 = vmatpush1.bf16.msra.mxu0 0
    %326 = vmatprep.subr.bf16.mxu0 0
    %327 = vmatpush1.bf16.msra.mxu0 0
    %328 = vmatprep.subr.bf16.mxu0 0
    %329 = vmatpush1.bf16.msra.mxu0 %v305
    %330 = vmatprep.subr.bf16.mxu0 0
    %331 = vmatpush1.bf16.msra.mxu0 %v304
    %332 = vmatprep.subr.bf16.mxu0 0
    %333 = vmatpush2.bf16.msra.mxu0 0
    %334 = vmatprep.subr.bf16.mxu0 0
    %335 = vmatpush2.bf16.msra.mxu0 0
    %336 = vmatprep.subr.bf16.mxu0 0
    %337 = vmatpush2.bf16.msra.mxu0 0
    %338 = vmatprep.subr.bf16.mxu0 0
    %339 = vmatpush2.bf16.msra.mxu0 0
    %340 = vmatprep.subr.bf16.mxu0 0
    %341 = vmatpush2.bf16.msra.mxu0 0
    %342 = vmatprep.subr.bf16.mxu0 0
    %343 = vmatpush2.bf16.msra.mxu0 0
    %344 = vmatprep.subr.bf16.mxu0 0
    %345 = vmatpush2.bf16.msra.mxu0 0
    %346 = vmatprep.subr.bf16.mxu0 0
    %347 = vmatpush2.bf16.msra.mxu0 0
    %348 = vmatprep.mubr.bf16.mxu0 0
    %349 = vmatmul.mubr.bf16.gmra.mxu0 %v314
    %v350 = vpop.f32.mrf.mxu0
    %v351 = vadd.f32 %v309, %v350
    %v352 = vpop.f32.mrf.mxu0
    %v353 = vpop.f32.mrf.mxu0
    %v354 = vpop.f32.mrf.mxu0
    %355 = vdwg.mxu0
    %v356 = vmax.f32 %v351, 0.0
    %v357 = vpack.c.bf16 %v356, %v356
    %v358 = vpack.c.bf16 %v285, %v284
    %v359 = vpack.c.bf16 %v287, %v286
    %v360 = vpack.c.bf16 %v289, %v288
    %v361 = vpack.c.bf16 %v291, %v290
    %v362 = vpack.c.bf16 %v293, %v292
    %v363 = vpack.c.bf16 %v295, %v294
    %v364 = vpack.c.bf16 %v297, %v296
    %v365 = vpack.c.bf16 %v299, %v298
    %366 = vmatprep.subr.bf16.mxu0 0
    %367 = vmatpush1.bf16.msra.mxu0 %v365
    %368 = vmatprep.subr.bf16.mxu0 0
    %369 = vmatpush1.bf16.msra.mxu0 %v364
    %370 = vmatprep.subr.bf16.mxu0 0
    %371 = vmatpush1.bf16.msra.mxu0 %v363
    %372 = vmatprep.subr.bf16.mxu0 0
    %373 = vmatpush1.bf16.msra.mxu0 %v362
    %374 = vmatprep.subr.bf16.mxu0 0
    %375 = vmatpush1.bf16.msra.mxu0 %v361
    %376 = vmatprep.subr.bf16.mxu0 0
    %377 = vmatpush1.bf16.msra.mxu0 %v360
    %378 = vmatprep.subr.bf16.mxu0 0
    %379 = vmatpush1.bf16.msra.mxu0 %v359
    %380 = vmatprep.subr.bf16.mxu0 0
    %381 = vmatpush1.bf16.msra.mxu0 %v358
    %382 = vmatprep.subr.bf16.mxu0 0
    %383 = vmatpush2.bf16.msra.mxu0 0
    %384 = vmatprep.subr.bf16.mxu0 0
    %385 = vmatpush2.bf16.msra.mxu0 0
    %386 = vmatprep.subr.bf16.mxu0 0
    %387 = vmatpush2.bf16.msra.mxu0 0
    %388 = vmatprep.subr.bf16.mxu0 0
    %389 = vmatpush2.bf16.msra.mxu0 0
    %390 = vmatprep.subr.bf16.mxu0 0
    %391 = vmatpush2.bf16.msra.mxu0 0
    %392 = vmatprep.subr.bf16.mxu0 0
    %393 = vmatpush2.bf16.msra.mxu0 0
    %394 = vmatprep.subr.bf16.mxu0 0
    %395 = vmatpush2.bf16.msra.mxu0 0
    %396 = vmatprep.subr.bf16.mxu0 0
    %397 = vmatpush2.bf16.msra.mxu0 0
    %398 = vmatprep.mubr.bf16.mxu0 0
    %399 = vmatmul.mubr.bf16.gmra.mxu0 %v357
    %v400 = vpop.f32.mrf.mxu0
    %v401 = vadd.f32 0.0, %v400
    %v402 = vpop.f32.mrf.mxu0
    %v403 = vpop.f32.mrf.mxu0
    %v404 = vpop.f32.mrf.mxu0
    %405 = vdwg.mxu0
    %407 = vrot.lane.b32.xlu0 %v401, 64
    %v408 = vpop.permute.xlu0 %407
    %v410 = vadd.f32 %v278, %v408
    %v411 = vlaneseq
    %v412 = vshrl.u32 %v411, 7
    %v413 = vsub.s32 0, %v412
    %v414 = vrot.slane %v300, %v413
    %416 = vrot.lane.b32.xlu0 %v414, 64
    %v417 = vpop.permute.xlu0 %416
    %v419 = vadd.f32 %v410, %v417
    %421 = vrot.lane.b32.xlu0 %v419, 64
    %v422 = vpop.permute.xlu0 %421
    %v424 = vsel %vm132, %v422, 0.0
    %425 = vadd.xlane.f32.xlu0 %v424
    %v426 = vpop.xlane.xlu0 %425
    %v427 = vrcp.pop 32.0
    %v428 = vmul.f32 %v426, %v427
    %v429 = vsub.f32 %v419, %v428
    %v430 = vmul.f32 %v429, %v429
    %432 = vrot.lane.b32.xlu0 %v430, 64
    %v433 = vpop.permute.xlu0 %432
    %v435 = vsel %vm132, %v433, 0.0
    %436 = vadd.xlane.f32.xlu0 %v435
    %v437 = vpop.xlane.xlu0 %436
    %v438 = vmul.f32 %v437, %v427
    %v439 = vadd.f32 %v438, 1e-05
    %v440 = vrsqrt.pop %v439
    %v441 = vmul.f32 %v429, %v440
    %v442 = vlaneseq
    %v443 = vshrl.u32 %v442, 7
    %v444 = vsub.s32 0, %v443
    %v445 = vrot.slane %v301, %v444
    %447 = vrot.lane.b32.xlu0 %v445, 64
    %v448 = vpop.permute.xlu0 %447
    %v450 = vmul.f32 %v441, %v448
    %v451 = vlaneseq
    %v452 = vshrl.u32 %v451, 7
    %v453 = vsub.s32 0, %v452
    %v454 = vrot.slane %v302, %v453
    %456 = vrot.lane.b32.xlu0 %v454, 64
    %v457 = vpop.permute.xlu0 %456
    %v459 = vadd.f32 %v450, %v457
    %461 = vrot.lane.b32.xlu0 %v459, 64
    %v462 = vpop.permute.xlu0 %461
    %464 = vst.msk [vmem:[#allocation2] sm:$0x3] %vm132, %v462
    %466 = vrot.lane.b32.xlu0 %v79, 96
    %v467 = vpop.permute.xlu0 %466
    %v469 = vmul.f32 %v79, %v467
    %v470 = vsel %vm132, %v469, 0.0
    %471 = vadd.xlane.f32.xlu0 %v470
    %v472 = vpop.xlane.xlu0 %471
    %v473 = vmul.f32 %v472, 0.17677669
    %v474 = vmul.f32 %v79, %v139
    %v475 = vsel %vm132, %v474, 0.0
    %476 = vadd.xlane.f32.xlu0 %v475
    %v477 = vpop.xlane.xlu0 %476
    %v478 = vmul.f32 %v477, 0.17677669
    %v479 = vmul.f32 %v79, %v148
    %v480 = vsel %vm132, %v479, 0.0
    %481 = vadd.xlane.f32.xlu0 %v480
    %v482 = vpop.xlane.xlu0 %481
    %v483 = vmul.f32 %v482, 0.17677669
    %v484 = vmax.f32 %v473, %v478
    %v485 = vmax.f32 %v484, %v483
    %v486 = vsub.f32 %v473, %v485
    %v487 = vmul.f32 %v486, 1.442695
    %v488 = vpow.pop %v487
    %v489 = vsub.f32 %v478, %v485
    %v490 = vmul.f32 %v489, 1.442695
    %v491 = vpow.pop %v490
    %v492 = vsub.f32 %v483, %v485
    %v493 = vmul.f32 %v492, 1.442695
    %v494 = vpow.pop %v493
    %v495 = vadd.f32 %v488, %v491
    %v496 = vadd.f32 %v495, %v494
    %v497 = vrcp.pop %v496
    %v498 = vmul.f32 %v488, %v497
    %v499 = vmul.f32 %v498, %v79
    %v500 = vmul.f32 %v491, %v497
    %v501 = vmul.f32 %v500, %v173
    %503 = vrot.lane.b32.xlu0 %v501, 64
    %v504 = vpop.permute.xlu0 %503
    %v506 = vadd.f32 %v499, %v504
    %v507 = vmul.f32 %v494, %v497
    %v508 = vmul.f32 %v507, %v122
    %v509 = vadd.f32 %v506, %v508
    %v510 = vrot.slane %v79, 4
    %511 = vrot.lane.b32.xlu0 %v510, 96
    %v512 = vpop.permute.xlu0 %511
    %v514 = vmul.f32 %v76, %v512
    %v515 = vsel %vm184, %v514, 0.0
    %516 = vadd.xlane.f32.xlu0 %v515
    %v517 = vpop.xlane.xlu0 %516
    %v518 = vmul.f32 %v517, 0.17677669
    %v519 = vmax.f32 %v518, %v192
    %v520 = vmax.f32 %v519, %v201
    %v521 = vsub.f32 %v518, %v520
    %v522 = vmul.f32 %v521, 1.442695
    %v523 = vpow.pop %v522
    %v524 = vsub.f32 %v192, %v520
    %v525 = vmul.f32 %v524, 1.442695
    %v526 = vpow.pop %v525
    %v527 = vsub.f32 %v201, %v520
    %v528 = vmul.f32 %v527, 1.442695
    %v529 = vpow.pop %v528
    %v530 = vadd.f32 %v523, %v526
    %v531 = vadd.f32 %v530, %v529
    %v532 = vrcp.pop %v531
    %v533 = vmul.f32 %v523, %v532
    %534 = vrot.lane.b32.xlu0 %v510, 64
    %v535 = vpop.permute.xlu0 %534
    %v537 = vmul.f32 %v533, %v535
    %v538 = vmul.f32 %v526, %v532
    %v539 = vmul.f32 %v538, %v76
    %541 = vrot.lane.b32.xlu0 %v539, 64
    %v542 = vpop.permute.xlu0 %541
    %v544 = vadd.f32 %v537, %v542
    %v545 = vmul.f32 %v529, %v532
    %v546 = vmul.f32 %v545, %v227
    %v547 = vadd.f32 %v544, %v546
    %v548 = vmul.f32 %v122, %v467
    %v549 = vsel %vm132, %v548, 0.0
    %550 = vadd.xlane.f32.xlu0 %v549
    %v551 = vpop.xlane.xlu0 %550
    %v552 = vmul.f32 %v551, 0.17677669
    %v553 = vmax.f32 %v552, %v240
    %v554 = vmax.f32 %v553, %v245
    %v555 = vsub.f32 %v552, %v554
    %v556 = vmul.f32 %v555, 1.442695
    %v557 = vpow.pop %v556
    %v558 = vsub.f32 %v240, %v554
    %v559 = vmul.f32 %v558, 1.442695
    %v560 = vpow.pop %v559
    %v561 = vsub.f32 %v245, %v554
    %v562 = vmul.f32 %v561, 1.442695
    %v563 = vpow.pop %v562
    %v564 = vadd.f32 %v557, %v560
    %v565 = vadd.f32 %v564, %v563
    %v566 = vrcp.pop %v565
    %v567 = vmul.f32 %v557, %v566
    %v568 = vmul.f32 %v567, %v79
    %v569 = vmul.f32 %v560, %v566
    %v570 = vmul.f32 %v569, %v173
    %572 = vrot.lane.b32.xlu0 %v570, 64
    %v573 = vpop.permute.xlu0 %572
    %v575 = vadd.f32 %v568, %v573
    %v576 = vmul.f32 %v563, %v566
    %v577 = vmul.f32 %v576, %v122
    %v578 = vadd.f32 %v575, %v577
    %v580 = vrot.slane %v547, 4
    %581 = vrot.lane.b32.xlu0 %v580, 64
    %v582 = vpop.permute.xlu0 %581
    %v584 = vmax.f32 %v509, %v582
    %v585 = vmax.f32 %v584, %v578
    %v586 = vld [vmem:[%s2 + $0xe8] sm:$0xff]
    %v587 = vld [vmem:[%s2 + $0xf0] sm:$0xff]
    %v588 = vld [vmem:[%s2 + $0xf8] sm:$0xff]
    %v589 = vld [vmem:[%s2 + $0x100] sm:$0xff]
    %v590 = vld [vmem:[%s2 + $0x108] sm:$0x1]
    %v591 = vld [vmem:[%s2 + $0x110] sm:$0xff]
    %v592 = vld [vmem:[%s2 + $0x118] sm:$0xff]
    %v593 = vld [vmem:[%s2 + $0x120] sm:$0xff]
    %v594 = vld [vmem:[%s2 + $0x128] sm:$0xff]
    %v595 = vld [vmem:[%s2 + $0x130] sm:$0xff]
    %v596 = vld [vmem:[%s2 + $0x138] sm:$0xff]
    %v597 = vld [vmem:[%s2 + $0x140] sm:$0xff]
    %v598 = vld [vmem:[%s2 + $0x148] sm:$0xff]
    %v599 = vld [vmem:[%s2 + $0x150] sm:$0xff]
    %v600 = vld [vmem:[%s2 + $0x158] sm:$0xff]
    %v601 = vld [vmem:[%s2 + $0x160] sm:$0xff]
    %v602 = vld [vmem:[%s2 + $0x168] sm:$0xff]
    %v603 = vld [vmem:[%s2 + $0x170] sm:$0xff]
    %v604 = vld [vmem:[%s2 + $0x178] sm:$0xff]
    %v605 = vld [vmem:[%s2 + $0x180] sm:$0xff]
    %v606 = vld [vmem:[%s2 + $0x188] sm:$0xff]
    %v607 = vld [vmem:[%s2 + $0x190] sm:$0x1]
    %v608 = vld [vmem:[%s2 + $0x198] sm:$0x1]
    %v609 = vld [vmem:[%s2 + $0x1a0] sm:$0x1]
    %v610 = vpack.c.bf16 %v585, %v585
    %v611 = vpack.c.bf16 %v587, %v586
    %v612 = vpack.c.bf16 %v589, %v588
    %v613 = vlaneseq
    %v614 = vshrl.u32 %v613, 7
    %v615 = vsub.s32 0, %v614
    %v616 = vrot.slane %v590, %v615
    %618 = vrot.lane.b32.xlu0 %v610, 64
    %v619 = vpop.permute.xlu0 %618
    %v621 = vsel %vm37, %v619, 0
    %623 = vmatprep.subr.bf16.mxu0 0
    %624 = vmatpush1.bf16.msra.mxu0 0
    %625 = vmatprep.subr.bf16.mxu0 0
    %626 = vmatpush1.bf16.msra.mxu0 0
    %627 = vmatprep.subr.bf16.mxu0 0
    %628 = vmatpush1.bf16.msra.mxu0 0
    %629 = vmatprep.subr.bf16.mxu0 0
    %630 = vmatpush1.bf16.msra.mxu0 0
    %631 = vmatprep.subr.bf16.mxu0 0
    %632 = vmatpush1.bf16.msra.mxu0 0
    %633 = vmatprep.subr.bf16.mxu0 0
    %634 = vmatpush1.bf16.msra.mxu0 0
    %635 = vmatprep.subr.bf16.mxu0 0
    %636 = vmatpush1.bf16.msra.mxu0 %v612
    %637 = vmatprep.subr.bf16.mxu0 0
    %638 = vmatpush1.bf16.msra.mxu0 %v611
    %639 = vmatprep.subr.bf16.mxu0 0
    %640 = vmatpush2.bf16.msra.mxu0 0
    %641 = vmatprep.subr.bf16.mxu0 0
    %642 = vmatpush2.bf16.msra.mxu0 0
    %643 = vmatprep.subr.bf16.mxu0 0
    %644 = vmatpush2.bf16.msra.mxu0 0
    %645 = vmatprep.subr.bf16.mxu0 0
    %646 = vmatpush2.bf16.msra.mxu0 0
    %647 = vmatprep.subr.bf16.mxu0 0
    %648 = vmatpush2.bf16.msra.mxu0 0
    %649 = vmatprep.subr.bf16.mxu0 0
    %650 = vmatpush2.bf16.msra.mxu0 0
    %651 = vmatprep.subr.bf16.mxu0 0
    %652 = vmatpush2.bf16.msra.mxu0 0
    %653 = vmatprep.subr.bf16.mxu0 0
    %654 = vmatpush2.bf16.msra.mxu0 0
    %655 = vmatprep.mubr.bf16.mxu0 0
    %656 = vmatmul.mubr.bf16.gmra.mxu0 %v621
    %v657 = vpop.f32.mrf.mxu0
    %v658 = vadd.f32 %v616, %v657
    %v659 = vpop.f32.mrf.mxu0
    %v660 = vpop.f32.mrf.mxu0
    %v661 = vpop.f32.mrf.mxu0
    %662 = vdwg.mxu0
    %v663 = vmax.f32 %v658, 0.0
    %v664 = vpack.c.bf16 %v663, %v663
    %v665 = vpack.c.bf16 %v592, %v591
    %v666 = vpack.c.bf16 %v594, %v593
    %v667 = vpack.c.bf16 %v596, %v595
    %v668 = vpack.c.bf16 %v598, %v597
    %v669 = vpack.c.bf16 %v600, %v599
    %v670 = vpack.c.bf16 %v602, %v601
    %v671 = vpack.c.bf16 %v604, %v603
    %v672 = vpack.c.bf16 %v606, %v605
    %673 = vmatprep.subr.bf16.mxu0 0
    %674 = vmatpush1.bf16.msra.mxu0 %v672
    %675 = vmatprep.subr.bf16.mxu0 0
    %676 = vmatpush1.bf16.msra.mxu0 %v671
    %677 = vmatprep.subr.bf16.mxu0 0
    %678 = vmatpush1.bf16.msra.mxu0 %v670
    %679 = vmatprep.subr.bf16.mxu0 0
    %680 = vmatpush1.bf16.msra.mxu0 %v669
    %681 = vmatprep.subr.bf16.mxu0 0
    %682 = vmatpush1.bf16.msra.mxu0 %v668
    %683 = vmatprep.subr.bf16.mxu0 0
    %684 = vmatpush1.bf16.msra.mxu0 %v667
    %685 = vmatprep.subr.bf16.mxu0 0
    %686 = vmatpush1.bf16.msra.mxu0 %v666
    %687 = vmatprep.subr.bf16.mxu0 0
    %688 = vmatpush1.bf16.msra.mxu0 %v665
    %689 = vmatprep.subr.bf16.mxu0 0
    %690 = vmatpush2.bf16.msra.mxu0 0
    %691 = vmatprep.subr.bf16.mxu0 0
    %692 = vmatpush2.bf16.msra.mxu0 0
    %693 = vmatprep.subr.bf16.mxu0 0
    %694 = vmatpush2.bf16.msra.mxu0 0
    %695 = vmatprep.subr.bf16.mxu0 0
    %696 = vmatpush2.bf16.msra.mxu0 0
    %697 = vmatprep.subr.bf16.mxu0 0
    %698 = vmatpush2.bf16.msra.mxu0 0
    %699 = vmatprep.subr.bf16.mxu0 0
    %700 = vmatpush2.bf16.msra.mxu0 0
    %701 = vmatprep.subr.bf16.mxu0 0
    %702 = vmatpush2.bf16.msra.mxu0 0
    %703 = vmatprep.subr.bf16.mxu0 0
    %704 = vmatpush2.bf16.msra.mxu0 0
    %705 = vmatprep.mubr.bf16.mxu0 0
    %706 = vmatmul.mubr.bf16.gmra.mxu0 %v664
    %v707 = vpop.f32.mrf.mxu0
    %v708 = vadd.f32 0.0, %v707
    %v709 = vpop.f32.mrf.mxu0
    %v710 = vpop.f32.mrf.mxu0
    %v711 = vpop.f32.mrf.mxu0
    %712 = vdwg.mxu0
    %714 = vrot.lane.b32.xlu0 %v708, 64
    %v715 = vpop.permute.xlu0 %714
    %v717 = vadd.f32 %v585, %v715
    %v718 = vlaneseq
    %v719 = vshrl.u32 %v718, 7
    %v720 = vsub.s32 0, %v719
    %v721 = vrot.slane %v607, %v720
    %723 = vrot.lane.b32.xlu0 %v721, 64
    %v724 = vpop.permute.xlu0 %723
    %v726 = vadd.f32 %v717, %v724
    %728 = vrot.lane.b32.xlu0 %v726, 64
    %v729 = vpop.permute.xlu0 %728
    %v731 = vsel %vm132, %v729, 0.0
    %732 = vadd.xlane.f32.xlu0 %v731
    %v733 = vpop.xlane.xlu0 %732
    %v734 = vmul.f32 %v733, %v427
    %v735 = vsub.f32 %v726, %v734
    %v736 = vmul.f32 %v735, %v735
    %738 = vrot.lane.b32.xlu0 %v736, 64
    %v739 = vpop.permute.xlu0 %738
    %v741 = vsel %vm132, %v739, 0.0
    %742 = vadd.xlane.f32.xlu0 %v741
    %v743 = vpop.xlane.xlu0 %742
    %v744 = vmul.f32 %v743, %v427
    %v745 = vadd.f32 %v744, 1e-05
    %v746 = vrsqrt.pop %v745
    %v747 = vmul.f32 %v735, %v746
    %v748 = vlaneseq
    %v749 = vshrl.u32 %v748, 7
    %v750 = vsub.s32 0, %v749
    %v751 = vrot.slane %v608, %v750
    %753 = vrot.lane.b32.xlu0 %v751, 64
    %v754 = vpop.permute.xlu0 %753
    %v756 = vmul.f32 %v747, %v754
    %v757 = vlaneseq
    %v758 = vshrl.u32 %v757, 7
    %v759 = vsub.s32 0, %v758
    %v760 = vrot.slane %v609, %v759
    %762 = vrot.lane.b32.xlu0 %v760, 64
    %v763 = vpop.permute.xlu0 %762
    %v765 = vadd.f32 %v756, %v763
    %767 = vrot.lane.b32.xlu0 %v765, 64
    %v768 = vpop.permute.xlu0 %767
    %770 = vst.msk [vmem:[#allocation4] sm:$0x3] %vm132, %v768
    %v771 = vmul.f32 %v79, %v129
    %v772 = vsel %vm132, %v771, 0.0
    %773 = vadd.xlane.f32.xlu0 %v772
    %v774 = vpop.xlane.xlu0 %773
    %v775 = vmul.f32 %v774, 0.17677669
    %v776 = vmax.f32 %v473, %v775
    %v777 = vmax.f32 %v776, %v483
    %v778 = vsub.f32 %v473, %v777
    %v779 = vmul.f32 %v778, 1.442695
    %v780 = vpow.pop %v779
    %v781 = vsub.f32 %v775, %v777
    %v782 = vmul.f32 %v781, 1.442695
    %v783 = vpow.pop %v782
    %v784 = vsub.f32 %v483, %v777
    %v785 = vmul.f32 %v784, 1.442695
    %v786 = vpow.pop %v785
    %v787 = vadd.f32 %v780, %v783
    %v788 = vadd.f32 %v787, %v786
    %v789 = vrcp.pop %v788
    %v790 = vmul.f32 %v780, %v789
    %v791 = vmul.f32 %v790, %v79
    %v792 = vmul.f32 %v783, %v789
    %v793 = vmul.f32 %v792, %v76
    %v794 = vadd.f32 %v791, %v793
    %v795 = vmul.f32 %v786, %v789
    %v796 = vmul.f32 %v795, %v122
    %v797 = vadd.f32 %v794, %v796
    %v798 = vmul.f32 %v76, %v467
    %v799 = vsel %vm132, %v798, 0.0
    %800 = vadd.xlane.f32.xlu0 %v799
    %v801 = vpop.xlane.xlu0 %800
    %v802 = vmul.f32 %v801, 0.17677669
    %v803 = vmax.f32 %v802, %v136
    %v804 = vmax.f32 %v803, %v154
    %v805 = vsub.f32 %v802, %v804
    %v806 = vmul.f32 %v805, 1.442695
    %v807 = vpow.pop %v806
    %v808 = vsub.f32 %v136, %v804
    %v809 = vmul.f32 %v808, 1.442695
    %v810 = vpow.pop %v809
    %v811 = vsub.f32 %v154, %v804
    %v812 = vmul.f32 %v811, 1.442695
    %v813 = vpow.pop %v812
    %v814 = vadd.f32 %v807, %v810
    %v815 = vadd.f32 %v814, %v813
    %v816 = vrcp.pop %v815
    %v817 = vmul.f32 %v807, %v816
    %v818 = vmul.f32 %v817, %v79
    %v819 = vmul.f32 %v810, %v816
    %v820 = vmul.f32 %v819, %v76
    %v821 = vadd.f32 %v818, %v820
    %v822 = vmul.f32 %v813, %v816
    %v823 = vmul.f32 %v822, %v122
    %v824 = vadd.f32 %v821, %v823
    %v825 = vmax.f32 %v552, %v235
    %v826 = vmax.f32 %v825, %v245
    %v827 = vsub.f32 %v552, %v826
    %v828 = vmul.f32 %v827, 1.442695
    %v829 = vpow.pop %v828
    %v830 = vsub.f32 %v235, %v826
    %v831 = vmul.f32 %v830, 1.442695
    %v832 = vpow.pop %v831
    %v833 = vsub.f32 %v245, %v826
    %v834 = vmul.f32 %v833, 1.442695
    %v835 = vpow.pop %v834
    %v836 = vadd.f32 %v829, %v832
    %v837 = vadd.f32 %v836, %v835
    %v838 = vrcp.pop %v837
    %v839 = vmul.f32 %v829, %v838
    %v840 = vmul.f32 %v839, %v79
    %v841 = vmul.f32 %v832, %v838
    %v842 = vmul.f32 %v841, %v76
    %v843 = vadd.f32 %v840, %v842
    %v844 = vmul.f32 %v835, %v838
    %v845 = vmul.f32 %v844, %v122
    %v846 = vadd.f32 %v843, %v845
    %v847 = vmax.f32 %v797, %v824
    %v848 = vmax.f32 %v847, %v846
    %v849 = vld [vmem:[%s2 + $0x1a8] sm:$0xff]
    %v850 = vld [vmem:[%s2 + $0x1b0] sm:$0xff]
    %v851 = vld [vmem:[%s2 + $0x1b8] sm:$0xff]
    %v852 = vld [vmem:[%s2 + $0x1c0] sm:$0xff]
    %v853 = vld [vmem:[%s2 + $0x1c8] sm:$0x1]
    %v854 = vld [vmem:[%s2 + $0x1d0] sm:$0xff]
    %v855 = vld [vmem:[%s2 + $0x1d8] sm:$0xff]
    %v856 = vld [vmem:[%s2 + $0x1e0] sm:$0xff]
    %v857 = vld [vmem:[%s2 + $0x1e8] sm:$0xff]
    %v858 = vld [vmem:[%s2 + $0x1f0] sm:$0xff]
    %v859 = vld [vmem:[%s2 + $0x1f8] sm:$0xff]
    %v860 = vld [vmem:[%s2 + $0x200] sm:$0xff]
    %v861 = vld [vmem:[%s2 + $0x208] sm:$0xff]
    %v862 = vld [vmem:[%s2 + $0x210] sm:$0xff]
    %v863 = vld [vmem:[%s2 + $0x218] sm:$0xff]
    %v864 = vld [vmem:[%s2 + $0x220] sm:$0xff]
    %v865 = vld [vmem:[%s2 + $0x228] sm:$0xff]
    %v866 = vld [vmem:[%s2 + $0x230] sm:$0xff]
    %v867 = vld [vmem:[%s2 + $0x238] sm:$0xff]
    %v868 = vld [vmem:[%s2 + $0x240] sm:$0xff]
    %v869 = vld [vmem:[%s2 + $0x248] sm:$0xff]
    %v870 = vld [vmem:[%s2 + $0x250] sm:$0x1]
    %v871 = vld [vmem:[%s2 + $0x258] sm:$0x1]
    %v872 = vld [vmem:[%s2 + $0x260] sm:$0x1]
    %v873 = vpack.c.bf16 %v848, %v848
    %v874 = vpack.c.bf16 %v850, %v849
    %v875 = vpack.c.bf16 %v852, %v851
    %v876 = vlaneseq
    %v877 = vshrl.u32 %v876, 7
    %v878 = vsub.s32 0, %v877
    %v879 = vrot.slane %v853, %v878
    %881 = vrot.lane.b32.xlu0 %v873, 64
    %v882 = vpop.permute.xlu0 %881
    %v884 = vsel %vm37, %v882, 0
    %886 = vmatprep.subr.bf16.mxu0 0
    %887 = vmatpush1.bf16.msra.mxu0 0
    %888 = vmatprep.subr.bf16.mxu0 0
    %889 = vmatpush1.bf16.msra.mxu0 0
    %890 = vmatprep.subr.bf16.mxu0 0
    %891 = vmatpush1.bf16.msra.mxu0 0
    %892 = vmatprep.subr.bf16.mxu0 0
    %893 = vmatpush1.bf16.msra.mxu0 0
    %894 = vmatprep.subr.bf16.mxu0 0
    %895 = vmatpush1.bf16.msra.mxu0 0
    %896 = vmatprep.subr.bf16.mxu0 0
    %897 = vmatpush1.bf16.msra.mxu0 0
    %898 = vmatprep.subr.bf16.mxu0 0
    %899 = vmatpush1.bf16.msra.mxu0 %v875
    %900 = vmatprep.subr.bf16.mxu0 0
    %901 = vmatpush1.bf16.msra.mxu0 %v874
    %902 = vmatprep.subr.bf16.mxu0 0
    %903 = vmatpush2.bf16.msra.mxu0 0
    %904 = vmatprep.subr.bf16.mxu0 0
    %905 = vmatpush2.bf16.msra.mxu0 0
    %906 = vmatprep.subr.bf16.mxu0 0
    %907 = vmatpush2.bf16.msra.mxu0 0
    %908 = vmatprep.subr.bf16.mxu0 0
    %909 = vmatpush2.bf16.msra.mxu0 0
    %910 = vmatprep.subr.bf16.mxu0 0
    %911 = vmatpush2.bf16.msra.mxu0 0
    %912 = vmatprep.subr.bf16.mxu0 0
    %913 = vmatpush2.bf16.msra.mxu0 0
    %914 = vmatprep.subr.bf16.mxu0 0
    %915 = vmatpush2.bf16.msra.mxu0 0
    %916 = vmatprep.subr.bf16.mxu0 0
    %917 = vmatpush2.bf16.msra.mxu0 0
    %918 = vmatprep.mubr.bf16.mxu0 0
    %919 = vmatmul.mubr.bf16.gmra.mxu0 %v884
    %v920 = vpop.f32.mrf.mxu0
    %v921 = vadd.f32 %v879, %v920
    %v922 = vpop.f32.mrf.mxu0
    %v923 = vpop.f32.mrf.mxu0
    %v924 = vpop.f32.mrf.mxu0
    %925 = vdwg.mxu0
    %v926 = vmax.f32 %v921, 0.0
    %v927 = vpack.c.bf16 %v926, %v926
    %v928 = vpack.c.bf16 %v855, %v854
    %v929 = vpack.c.bf16 %v857, %v856
    %v930 = vpack.c.bf16 %v859, %v858
    %v931 = vpack.c.bf16 %v861, %v860
    %v932 = vpack.c.bf16 %v863, %v862
    %v933 = vpack.c.bf16 %v865, %v864
    %v934 = vpack.c.bf16 %v867, %v866
    %v935 = vpack.c.bf16 %v869, %v868
    %936 = vmatprep.subr.bf16.mxu0 0
    %937 = vmatpush1.bf16.msra.mxu0 %v935
    %938 = vmatprep.subr.bf16.mxu0 0
    %939 = vmatpush1.bf16.msra.mxu0 %v934
    %940 = vmatprep.subr.bf16.mxu0 0
    %941 = vmatpush1.bf16.msra.mxu0 %v933
    %942 = vmatprep.subr.bf16.mxu0 0
    %943 = vmatpush1.bf16.msra.mxu0 %v932
    %944 = vmatprep.subr.bf16.mxu0 0
    %945 = vmatpush1.bf16.msra.mxu0 %v931
    %946 = vmatprep.subr.bf16.mxu0 0
    %947 = vmatpush1.bf16.msra.mxu0 %v930
    %948 = vmatprep.subr.bf16.mxu0 0
    %949 = vmatpush1.bf16.msra.mxu0 %v929
    %950 = vmatprep.subr.bf16.mxu0 0
    %951 = vmatpush1.bf16.msra.mxu0 %v928
    %952 = vmatprep.subr.bf16.mxu0 0
    %953 = vmatpush2.bf16.msra.mxu0 0
    %954 = vmatprep.subr.bf16.mxu0 0
    %955 = vmatpush2.bf16.msra.mxu0 0
    %956 = vmatprep.subr.bf16.mxu0 0
    %957 = vmatpush2.bf16.msra.mxu0 0
    %958 = vmatprep.subr.bf16.mxu0 0
    %959 = vmatpush2.bf16.msra.mxu0 0
    %960 = vmatprep.subr.bf16.mxu0 0
    %961 = vmatpush2.bf16.msra.mxu0 0
    %962 = vmatprep.subr.bf16.mxu0 0
    %963 = vmatpush2.bf16.msra.mxu0 0
    %964 = vmatprep.subr.bf16.mxu0 0
    %965 = vmatpush2.bf16.msra.mxu0 0
    %966 = vmatprep.subr.bf16.mxu0 0
    %967 = vmatpush2.bf16.msra.mxu0 0
    %968 = vmatprep.mubr.bf16.mxu0 0
    %969 = vmatmul.mubr.bf16.gmra.mxu0 %v927
    %v970 = vpop.f32.mrf.mxu0
    %v971 = vadd.f32 0.0, %v970
    %v972 = vpop.f32.mrf.mxu0
    %v973 = vpop.f32.mrf.mxu0
    %v974 = vpop.f32.mrf.mxu0
    %975 = vdwg.mxu0
    %977 = vrot.lane.b32.xlu0 %v971, 64
    %v978 = vpop.permute.xlu0 %977
    %v980 = vadd.f32 %v848, %v978
    %v981 = vlaneseq
    %v982 = vshrl.u32 %v981, 7
    %v983 = vsub.s32 0, %v982
    %v984 = vrot.slane %v870, %v983
    %986 = vrot.lane.b32.xlu0 %v984, 64
    %v987 = vpop.permute.xlu0 %986
    %v989 = vadd.f32 %v980, %v987
    %991 = vrot.lane.b32.xlu0 %v989, 64
    %v992 = vpop.permute.xlu0 %991
    %v994 = vsel %vm132, %v992, 0.0
    %995 = vadd.xlane.f32.xlu0 %v994
    %v996 = vpop.xlane.xlu0 %995
    %v997 = vmul.f32 %v996, %v427
    %v998 = vsub.f32 %v989, %v997
    %v999 = vmul.f32 %v998, %v998
    %1001 = vrot.lane.b32.xlu0 %v999, 64
    %v1002 = vpop.permute.xlu0 %1001
    %v1004 = vsel %vm132, %v1002, 0.0
    %1005 = vadd.xlane.f32.xlu0 %v1004
    %v1006 = vpop.xlane.xlu0 %1005
    %v1007 = vmul.f32 %v1006, %v427
    %v1008 = vadd.f32 %v1007, 1e-05
    %v1009 = vrsqrt.pop %v1008
    %v1010 = vmul.f32 %v998, %v1009
    %v1011 = vlaneseq
    %v1012 = vshrl.u32 %v1011, 7
    %v1013 = vsub.s32 0, %v1012
    %v1014 = vrot.slane %v871, %v1013
    %1016 = vrot.lane.b32.xlu0 %v1014, 64
    %v1017 = vpop.permute.xlu0 %1016
    %v1019 = vmul.f32 %v1010, %v1017
    %v1020 = vlaneseq
    %v1021 = vshrl.u32 %v1020, 7
    %v1022 = vsub.s32 0, %v1021
    %v1023 = vrot.slane %v872, %v1022
    %1025 = vrot.lane.b32.xlu0 %v1023, 64
    %v1026 = vpop.permute.xlu0 %1025
    %v1028 = vadd.f32 %v1019, %v1026
    %1030 = vrot.lane.b32.xlu0 %v1028, 64
    %v1031 = vpop.permute.xlu0 %1030
    %1033 = vst.msk [vmem:[#allocation6] sm:$0x3] %vm132, %v1031
    %v1034 = vrot.slane %v76, 2
    %1035 = vrot.lane.b32.xlu0 %v1034, 96
    %v1036 = vpop.permute.xlu0 %1035
    %v1038 = vmul.f32 %v79, %v1036
    %v1039 = vsel %vm132, %v1038, 0.0
    %1040 = vadd.xlane.f32.xlu0 %v1039
    %v1041 = vpop.xlane.xlu0 %1040
    %v1042 = vmul.f32 %v1041, 0.17677669
    %v1043 = vmax.f32 %v473, %v1042
    %v1044 = vmax.f32 %v1043, %v478
    %v1045 = vmax.f32 %v1044, %v483
    %v1046 = vsub.f32 %v473, %v1045
    %v1047 = vmul.f32 %v1046, 1.442695
    %v1048 = vpow.pop %v1047
    %v1049 = vsub.f32 %v1042, %v1045
    %v1050 = vmul.f32 %v1049, 1.442695
    %v1051 = vpow.pop %v1050
    %v1052 = vsub.f32 %v478, %v1045
    %v1053 = vmul.f32 %v1052, 1.442695
    %v1054 = vpow.pop %v1053
    %v1055 = vsub.f32 %v483, %v1045
    %v1056 = vmul.f32 %v1055, 1.442695
    %v1057 = vpow.pop %v1056
    %v1058 = vadd.f32 %v1048, %v1051
    %v1059 = vadd.f32 %v1058, %v1054
    %v1060 = vadd.f32 %v1059, %v1057
    %v1061 = vrcp.pop %v1060
    %v1062 = vmul.f32 %v1048, %v1061
    %v1063 = vmul.f32 %v1062, %v79
    %v1064 = vmul.f32 %v1051, %v1061
    %1065 = vrot.lane.b32.xlu0 %v1034, 64
    %v1066 = vpop.permute.xlu0 %1065
    %v1068 = vmul.f32 %v1064, %v1066
    %1070 = vrot.lane.b32.xlu0 %v1068, 64
    %v1071 = vpop.permute.xlu0 %1070
    %v1073 = vadd.f32 %v1063, %v1071
    %v1074 = vmul.f32 %v1054, %v1061
    %v1075 = vmul.f32 %v1074, %v173
    %1077 = vrot.lane.b32.xlu0 %v1075, 64
    %v1078 = vpop.permute.xlu0 %1077
    %v1080 = vadd.f32 %v1073, %v1078
    %v1081 = vmul.f32 %v1057, %v1061
    %v1082 = vmul.f32 %v1081, %v122
    %v1083 = vadd.f32 %v1080, %v1082
    %v1084 = vrot.slane %v79, 6
    %1085 = vrot.lane.b32.xlu0 %v1084, 96
    %v1086 = vpop.permute.xlu0 %1085
    %v1088 = vmul.f32 %v76, %v1086
    %vm1089 = vcmask 257026
    %v1090 = vsel %vm1089, %v1088, 0.0
    %1091 = vadd.xlane.f32.xlu0 %v1090
    %v1092 = vpop.xlane.xlu0 %1091
    %v1093 = vmul.f32 %v1092, 0.17677669
    %v1094 = vsel %vm1089, %v131, 0.0
    %1095 = vadd.xlane.f32.xlu0 %v1094
    %v1096 = vpop.xlane.xlu0 %1095
    %v1097 = vmul.f32 %v1096, 0.17677669
    %v1098 = vmul.f32 %v76, %v1036
    %v1099 = vsel %vm1089, %v1098, 0.0
    %1100 = vadd.xlane.f32.xlu0 %v1099
    %v1101 = vpop.xlane.xlu0 %1100
    %v1102 = vmul.f32 %v1101, 0.17677669
    %v1103 = vrot.slane %v122, 6
    %1104 = vrot.lane.b32.xlu0 %v1103, 96
    %v1105 = vpop.permute.xlu0 %1104
    %v1107 = vmul.f32 %v76, %v1105
    %v1108 = vsel %vm1089, %v1107, 0.0
    %1109 = vadd.xlane.f32.xlu0 %v1108
    %v1110 = vpop.xlane.xlu0 %1109
    %v1111 = vmul.f32 %v1110, 0.17677669
    %v1112 = vmax.f32 %v1093, %v1097
    %v1113 = vmax.f32 %v1112, %v1102
    %v1114 = vmax.f32 %v1113, %v1111
    %v1115 = vsub.f32 %v1093, %v1114
    %v1116 = vmul.f32 %v1115, 1.442695
    %v1117 = vpow.pop %v1116
    %v1118 = vsub.f32 %v1097, %v1114
    %v1119 = vmul.f32 %v1118, 1.442695
    %v1120 = vpow.pop %v1119
    %v1121 = vsub.f32 %v1102, %v1114
    %v1122 = vmul.f32 %v1121, 1.442695
    %v1123 = vpow.pop %v1122
    %v1124 = vsub.f32 %v1111, %v1114
    %v1125 = vmul.f32 %v1124, 1.442695
    %v1126 = vpow.pop %v1125
    %v1127 = vadd.f32 %v1117, %v1120
    %v1128 = vadd.f32 %v1127, %v1123
    %v1129 = vadd.f32 %v1128, %v1126
    %v1130 = vrcp.pop %v1129
    %v1131 = vmul.f32 %v1117, %v1130
    %1132 = vrot.lane.b32.xlu0 %v1084, 64
    %v1133 = vpop.permute.xlu0 %1132
    %v1135 = vmul.f32 %v1131, %v1133
    %v1136 = vmul.f32 %v1120, %v1130
    %v1137 = vmul.f32 %v1136, %v76
    %1139 = vrot.lane.b32.xlu0 %v1137, 64
    %v1140 = vpop.permute.xlu0 %1139
    %v1142 = vadd.f32 %v1135, %v1140
    %v1143 = vmul.f32 %v1123, %v1130
    %v1144 = vmul.f32 %v1143, %v1066
    %v1145 = vadd.f32 %v1142, %v1144
    %v1146 = vmul.f32 %v1126, %v1130
    %1147 = vrot.lane.b32.xlu0 %v1103, 64
    %v1148 = vpop.permute.xlu0 %1147
    %v1150 = vmul.f32 %v1146, %v1148
    %v1151 = vadd.f32 %v1145, %v1150
    %v1152 = vrot.slane %v76, 6
    %1153 = vrot.lane.b32.xlu0 %v1152, 96
    %v1154 = vpop.permute.xlu0 %1153
    %v1156 = vmul.f32 %v76, %v1154
    %v1157 = vsel %vm184, %v1156, 0.0
    %1158 = vadd.xlane.f32.xlu0 %v1157
    %v1159 = vpop.xlane.xlu0 %1158
    %v1160 = vmul.f32 %v1159, 0.17677669
    %v1161 = vmax.f32 %v518, %v1160
    %v1162 = vmax.f32 %v1161, %v192
    %v1163 = vmax.f32 %v1162, %v201
    %v1164 = vsub.f32 %v518, %v1163
    %v1165 = vmul.f32 %v1164, 1.442695
    %v1166 = vpow.pop %v1165
    %v1167 = vsub.f32 %v1160, %v1163
    %v1168 = vmul.f32 %v1167, 1.442695
    %v1169 = vpow.pop %v1168
    %v1170 = vsub.f32 %v192, %v1163
    %v1171 = vmul.f32 %v1170, 1.442695
    %v1172 = vpow.pop %v1171
    %v1173 = vsub.f32 %v201, %v1163
    %v1174 = vmul.f32 %v1173, 1.442695
    %v1175 = vpow.pop %v1174
    %v1176 = vadd.f32 %v1166, %v1169
    %v1177 = vadd.f32 %v1176, %v1172
    %v1178 = vadd.f32 %v1177, %v1175
    %v1179 = vrcp.pop %v1178
    %v1180 = vmul.f32 %v1166, %v1179
    %v1181 = vmul.f32 %v1180, %v535
    %v1182 = vmul.f32 %v1169, %v1179
    %1183 = vrot.lane.b32.xlu0 %v1152, 64
    %v1184 = vpop.permute.xlu0 %1183
    %v1186 = vmul.f32 %v1182, %v1184
    %v1187 = vadd.f32 %v1181, %v1186
    %v1188 = vmul.f32 %v1172, %v1179
    %v1189 = vmul.f32 %v1188, %v76
    %1191 = vrot.lane.b32.xlu0 %v1189, 64
    %v1192 = vpop.permute.xlu0 %1191
    %v1194 = vadd.f32 %v1187, %v1192
    %v1195 = vmul.f32 %v1175, %v1179
    %v1196 = vmul.f32 %v1195, %v227
    %v1197 = vadd.f32 %v1194, %v1196
    %v1198 = vmul.f32 %v122, %v1036
    %v1199 = vsel %vm132, %v1198, 0.0
    %1200 = vadd.xlane.f32.xlu0 %v1199
    %v1201 = vpop.xlane.xlu0 %1200
    %v1202 = vmul.f32 %v1201, 0.17677669
    %v1203 = vmax.f32 %v552, %v1202
    %v1204 = vmax.f32 %v1203, %v240
    %v1205 = vmax.f32 %v1204, %v245
    %v1206 = vsub.f32 %v552, %v1205
    %v1207 = vmul.f32 %v1206, 1.442695
    %v1208 = vpow.pop %v1207
    %v1209 = vsub.f32 %v1202, %v1205
    %v1210 = vmul.f32 %v1209, 1.442695
    %v1211 = vpow.pop %v1210
    %v1212 = vsub.f32 %v240, %v1205
    %v1213 = vmul.f32 %v1212, 1.442695
    %v1214 = vpow.pop %v1213
    %v1215 = vsub.f32 %v245, %v1205
    %v1216 = vmul.f32 %v1215, 1.442695
    %v1217 = vpow.pop %v1216
    %v1218 = vadd.f32 %v1208, %v1211
    %v1219 = vadd.f32 %v1218, %v1214
    %v1220 = vadd.f32 %v1219, %v1217
    %v1221 = vrcp.pop %v1220
    %v1222 = vmul.f32 %v1208, %v1221
    %v1223 = vmul.f32 %v1222, %v79
    %v1224 = vmul.f32 %v1211, %v1221
    %v1225 = vmul.f32 %v1224, %v1066
    %1227 = vrot.lane.b32.xlu0 %v1225, 64
    %v1228 = vpop.permute.xlu0 %1227
    %v1230 = vadd.f32 %v1223, %v1228
    %v1231 = vmul.f32 %v1214, %v1221
    %v1232 = vmul.f32 %v1231, %v173
    %1234 = vrot.lane.b32.xlu0 %v1232, 64
    %v1235 = vpop.permute.xlu0 %1234
    %v1237 = vadd.f32 %v1230, %v1235
    %v1238 = vmul.f32 %v1217, %v1221
    %v1239 = vmul.f32 %v1238, %v122
    %v1240 = vadd.f32 %v1237, %v1239
    %v1242 = vrot.slane %v1151, 2
    %1243 = vrot.lane.b32.xlu0 %v1242, 64
    %v1244 = vpop.permute.xlu0 %1243
    %v1246 = vmax.f32 %v1083, %v1244
    %v1248 = vrot.slane %v1197, 4
    %1249 = vrot.lane.b32.xlu0 %v1248, 64
    %v1250 = vpop.permute.xlu0 %1249
    %v1252 = vmax.f32 %v1246, %v1250
    %v1253 = vmax.f32 %v1252, %v1240
    %v1254 = vld [vmem:[%s2 + $0x268] sm:$0xff]
    %v1255 = vld [vmem:[%s2 + $0x270] sm:$0xff]
    %v1256 = vld [vmem:[%s2 + $0x278] sm:$0xff]
    %v1257 = vld [vmem:[%s2 + $0x280] sm:$0xff]
    %v1258 = vld [vmem:[%s2 + $0x288] sm:$0x1]
    %v1259 = vld [vmem:[%s2 + $0x290] sm:$0xff]
    %v1260 = vld [vmem:[%s2 + $0x298] sm:$0xff]
    %v1261 = vld [vmem:[%s2 + $0x2a0] sm:$0xff]
    %v1262 = vld [vmem:[%s2 + $0x2a8] sm:$0xff]
    %v1263 = vld [vmem:[%s2 + $0x2b0] sm:$0xff]
    %v1264 = vld [vmem:[%s2 + $0x2b8] sm:$0xff]
    %v1265 = vld [vmem:[%s2 + $0x2c0] sm:$0xff]
    %v1266 = vld [vmem:[%s2 + $0x2c8] sm:$0xff]
    %v1267 = vld [vmem:[%s2 + $0x2d0] sm:$0xff]
    %v1268 = vld [vmem:[%s2 + $0x2d8] sm:$0xff]
    %v1269 = vld [vmem:[%s2 + $0x2e0] sm:$0xff]
    %v1270 = vld [vmem:[%s2 + $0x2e8] sm:$0xff]
    %v1271 = vld [vmem:[%s2 + $0x2f0] sm:$0xff]
    %v1272 = vld [vmem:[%s2 + $0x2f8] sm:$0xff]
    %v1273 = vld [vmem:[%s2 + $0x300] sm:$0xff]
    %v1274 = vld [vmem:[%s2 + $0x308] sm:$0xff]
    %v1275 = vld [vmem:[%s2 + $0x310] sm:$0x1]
    %v1276 = vld [vmem:[%s2 + $0x318] sm:$0x1]
    %v1277 = vld [vmem:[%s2 + $0x320] sm:$0x1]
    %v1278 = vpack.c.bf16 %v1253, %v1253
    %v1279 = vpack.c.bf16 %v1255, %v1254
    %v1280 = vpack.c.bf16 %v1257, %v1256
    %v1281 = vlaneseq
    %v1282 = vshrl.u32 %v1281, 7
    %v1283 = vsub.s32 0, %v1282
    %v1284 = vrot.slane %v1258, %v1283
    %1286 = vrot.lane.b32.xlu0 %v1278, 64
    %v1287 = vpop.permute.xlu0 %1286
    %v1289 = vsel %vm37, %v1287, 0
    %1291 = vmatprep.subr.bf16.mxu0 0
    %1292 = vmatpush1.bf16.msra.mxu0 0
    %1293 = vmatprep.subr.bf16.mxu0 0
    %1294 = vmatpush1.bf16.msra.mxu0 0
    %1295 = vmatprep.subr.bf16.mxu0 0
    %1296 = vmatpush1.bf16.msra.mxu0 0
    %1297 = vmatprep.subr.bf16.mxu0 0
    %1298 = vmatpush1.bf16.msra.mxu0 0
    %1299 = vmatprep.subr.bf16.mxu0 0
    %1300 = vmatpush1.bf16.msra.mxu0 0
    %1301 = vmatprep.subr.bf16.mxu0 0
    %1302 = vmatpush1.bf16.msra.mxu0 0
    %1303 = vmatprep.subr.bf16.mxu0 0
    %1304 = vmatpush1.bf16.msra.mxu0 %v1280
    %1305 = vmatprep.subr.bf16.mxu0 0
    %1306 = vmatpush1.bf16.msra.mxu0 %v1279
    %1307 = vmatprep.subr.bf16.mxu0 0
    %1308 = vmatpush2.bf16.msra.mxu0 0
    %1309 = vmatprep.subr.bf16.mxu0 0
    %1310 = vmatpush2.bf16.msra.mxu0 0
    %1311 = vmatprep.subr.bf16.mxu0 0
    %1312 = vmatpush2.bf16.msra.mxu0 0
    %1313 = vmatprep.subr.bf16.mxu0 0
    %1314 = vmatpush2.bf16.msra.mxu0 0
    %1315 = vmatprep.subr.bf16.mxu0 0
    %1316 = vmatpush2.bf16.msra.mxu0 0
    %1317 = vmatprep.subr.bf16.mxu0 0
    %1318 = vmatpush2.bf16.msra.mxu0 0
    %1319 = vmatprep.subr.bf16.mxu0 0
    %1320 = vmatpush2.bf16.msra.mxu0 0
    %1321 = vmatprep.subr.bf16.mxu0 0
    %1322 = vmatpush2.bf16.msra.mxu0 0
    %1323 = vmatprep.mubr.bf16.mxu0 0
    %1324 = vmatmul.mubr.bf16.gmra.mxu0 %v1289
    %v1325 = vpop.f32.mrf.mxu0
    %v1326 = vadd.f32 %v1284, %v1325
    %v1327 = vpop.f32.mrf.mxu0
    %v1328 = vpop.f32.mrf.mxu0
    %v1329 = vpop.f32.mrf.mxu0
    %1330 = vdwg.mxu0
    %v1331 = vmax.f32 %v1326, 0.0
    %v1332 = vpack.c.bf16 %v1331, %v1331
    %v1333 = vpack.c.bf16 %v1260, %v1259
    %v1334 = vpack.c.bf16 %v1262, %v1261
    %v1335 = vpack.c.bf16 %v1264, %v1263
    %v1336 = vpack.c.bf16 %v1266, %v1265
    %v1337 = vpack.c.bf16 %v1268, %v1267
    %v1338 = vpack.c.bf16 %v1270, %v1269
    %v1339 = vpack.c.bf16 %v1272, %v1271
    %v1340 = vpack.c.bf16 %v1274, %v1273
    %1341 = vmatprep.subr.bf16.mxu0 0
    %1342 = vmatpush1.bf16.msra.mxu0 %v1340
    %1343 = vmatprep.subr.bf16.mxu0 0
    %1344 = vmatpush1.bf16.msra.mxu0 %v1339
    %1345 = vmatprep.subr.bf16.mxu0 0
    %1346 = vmatpush1.bf16.msra.mxu0 %v1338
    %1347 = vmatprep.subr.bf16.mxu0 0
    %1348 = vmatpush1.bf16.msra.mxu0 %v1337
    %1349 = vmatprep.subr.bf16.mxu0 0
    %1350 = vmatpush1.bf16.msra.mxu0 %v1336
    %1351 = vmatprep.subr.bf16.mxu0 0
    %1352 = vmatpush1.bf16.msra.mxu0 %v1335
    %1353 = vmatprep.subr.bf16.mxu0 0
    %1354 = vmatpush1.bf16.msra.mxu0 %v1334
    %1355 = vmatprep.subr.bf16.mxu0 0
    %1356 = vmatpush1.bf16.msra.mxu0 %v1333
    %1357 = vmatprep.subr.bf16.mxu0 0
    %1358 = vmatpush2.bf16.msra.mxu0 0
    %1359 = vmatprep.subr.bf16.mxu0 0
    %1360 = vmatpush2.bf16.msra.mxu0 0
    %1361 = vmatprep.subr.bf16.mxu0 0
    %1362 = vmatpush2.bf16.msra.mxu0 0
    %1363 = vmatprep.subr.bf16.mxu0 0
    %1364 = vmatpush2.bf16.msra.mxu0 0
    %1365 = vmatprep.subr.bf16.mxu0 0
    %1366 = vmatpush2.bf16.msra.mxu0 0
    %1367 = vmatprep.subr.bf16.mxu0 0
    %1368 = vmatpush2.bf16.msra.mxu0 0
    %1369 = vmatprep.subr.bf16.mxu0 0
    %1370 = vmatpush2.bf16.msra.mxu0 0
    %1371 = vmatprep.subr.bf16.mxu0 0
    %1372 = vmatpush2.bf16.msra.mxu0 0
    %1373 = vmatprep.mubr.bf16.mxu0 0
    %1374 = vmatmul.mubr.bf16.gmra.mxu0 %v1332
    %v1375 = vpop.f32.mrf.mxu0
    %v1376 = vadd.f32 0.0, %v1375
    %v1377 = vpop.f32.mrf.mxu0
    %v1378 = vpop.f32.mrf.mxu0
    %v1379 = vpop.f32.mrf.mxu0
    %1380 = vdwg.mxu0
    %1382 = vrot.lane.b32.xlu0 %v1376, 64
    %v1383 = vpop.permute.xlu0 %1382
    %v1385 = vadd.f32 %v1253, %v1383
    %v1386 = vlaneseq
    %v1387 = vshrl.u32 %v1386, 7
    %v1388 = vsub.s32 0, %v1387
    %v1389 = vrot.slane %v1275, %v1388
    %1391 = vrot.lane.b32.xlu0 %v1389, 64
    %v1392 = vpop.permute.xlu0 %1391
    %v1394 = vadd.f32 %v1385, %v1392
    %1396 = vrot.lane.b32.xlu0 %v1394, 64
    %v1397 = vpop.permute.xlu0 %1396
    %v1399 = vsel %vm132, %v1397, 0.0
    %1400 = vadd.xlane.f32.xlu0 %v1399
    %v1401 = vpop.xlane.xlu0 %1400
    %v1402 = vmul.f32 %v1401, %v427
    %v1403 = vsub.f32 %v1394, %v1402
    %v1404 = vmul.f32 %v1403, %v1403
    %1406 = vrot.lane.b32.xlu0 %v1404, 64
    %v1407 = vpop.permute.xlu0 %1406
    %v1409 = vsel %vm132, %v1407, 0.0
    %1410 = vadd.xlane.f32.xlu0 %v1409
    %v1411 = vpop.xlane.xlu0 %1410
    %v1412 = vmul.f32 %v1411, %v427
    %v1413 = vadd.f32 %v1412, 1e-05
    %v1414 = vrsqrt.pop %v1413
    %v1415 = vmul.f32 %v1403, %v1414
    %v1416 = vlaneseq
    %v1417 = vshrl.u32 %v1416, 7
    %v1418 = vsub.s32 0, %v1417
    %v1419 = vrot.slane %v1276, %v1418
    %1421 = vrot.lane.b32.xlu0 %v1419, 64
    %v1422 = vpop.permute.xlu0 %1421
    %v1424 = vmul.f32 %v1415, %v1422
    %v1425 = vlaneseq
    %v1426 = vshrl.u32 %v1425, 7
    %v1427 = vsub.s32 0, %v1426
    %v1428 = vrot.slane %v1277, %v1427
    %1430 = vrot.lane.b32.xlu0 %v1428, 64
    %v1431 = vpop.permute.xlu0 %1430
    %v1433 = vadd.f32 %v1424, %v1431
    %v1434 = vmul.f32 %v79, %v1154
    %v1435 = vsel %vm132, %v1434, 0.0
    %1436 = vadd.xlane.f32.xlu0 %v1435
    %v1437 = vpop.xlane.xlu0 %1436
    %v1438 = vmul.f32 %v1437, 0.17677669
    %v1439 = vmax.f32 %v776, %v1438
    %v1440 = vmax.f32 %v1439, %v483
    %v1441 = vsub.f32 %v473, %v1440
    %v1442 = vmul.f32 %v1441, 1.442695
    %v1443 = vpow.pop %v1442
    %v1444 = vsub.f32 %v775, %v1440
    %v1445 = vmul.f32 %v1444, 1.442695
    %v1446 = vpow.pop %v1445
    %v1447 = vsub.f32 %v1438, %v1440
    %v1448 = vmul.f32 %v1447, 1.442695
    %v1449 = vpow.pop %v1448
    %v1450 = vsub.f32 %v483, %v1440
    %v1451 = vmul.f32 %v1450, 1.442695
    %v1452 = vpow.pop %v1451
    %v1453 = vadd.f32 %v1443, %v1446
    %v1454 = vadd.f32 %v1453, %v1449
    %v1455 = vadd.f32 %v1454, %v1452
    %v1456 = vrcp.pop %v1455
    %v1457 = vmul.f32 %v1443, %v1456
    %v1458 = vmul.f32 %v1457, %v79
    %v1459 = vmul.f32 %v1446, %v1456
    %v1460 = vmul.f32 %v1459, %v76
    %v1461 = vadd.f32 %v1458, %v1460
    %v1462 = vmul.f32 %v1449, %v1456
    %v1463 = vmul.f32 %v1462, %v1184
    %1465 = vrot.lane.b32.xlu0 %v1463, 64
    %v1466 = vpop.permute.xlu0 %1465
    %v1468 = vadd.f32 %v1461, %v1466
    %v1469 = vmul.f32 %v1452, %v1456
    %v1470 = vmul.f32 %v1469, %v122
    %v1471 = vadd.f32 %v1468, %v1470
    %v1472 = vsel %vm132, %v1156, 0.0
    %1473 = vadd.xlane.f32.xlu0 %v1472
    %v1474 = vpop.xlane.xlu0 %1473
    %v1475 = vmul.f32 %v1474, 0.17677669
    %v1476 = vmax.f32 %v803, %v1475
    %v1477 = vmax.f32 %v1476, %v154
    %v1478 = vsub.f32 %v802, %v1477
    %v1479 = vmul.f32 %v1478, 1.442695
    %v1480 = vpow.pop %v1479
    %v1481 = vsub.f32 %v136, %v1477
    %v1482 = vmul.f32 %v1481, 1.442695
    %v1483 = vpow.pop %v1482
    %v1484 = vsub.f32 %v1475, %v1477
    %v1485 = vmul.f32 %v1484, 1.442695
    %v1486 = vpow.pop %v1485
    %v1487 = vsub.f32 %v154, %v1477
    %v1488 = vmul.f32 %v1487, 1.442695
    %v1489 = vpow.pop %v1488
    %v1490 = vadd.f32 %v1480, %v1483
    %v1491 = vadd.f32 %v1490, %v1486
    %v1492 = vadd.f32 %v1491, %v1489
    %v1493 = vrcp.pop %v1492
    %v1494 = vmul.f32 %v1480, %v1493
    %v1495 = vmul.f32 %v1494, %v79
    %v1496 = vmul.f32 %v1483, %v1493
    %v1497 = vmul.f32 %v1496, %v76
    %v1498 = vadd.f32 %v1495, %v1497
    %v1499 = vmul.f32 %v1486, %v1493
    %v1500 = vmul.f32 %v1499, %v1184
    %1502 = vrot.lane.b32.xlu0 %v1500, 64
    %v1503 = vpop.permute.xlu0 %1502
    %v1505 = vadd.f32 %v1498, %v1503
    %v1506 = vmul.f32 %v1489, %v1493
    %v1507 = vmul.f32 %v1506, %v122
    %v1508 = vadd.f32 %v1505, %v1507
    %v1509 = vrot.slane %v79, 2
    %1510 = vrot.lane.b32.xlu0 %v1509, 96
    %v1511 = vpop.permute.xlu0 %1510
    %v1513 = vmul.f32 %v76, %v1511
    %vm1514 = vcmask 261126
    %v1515 = vsel %vm1514, %v1513, 0.0
    %1516 = vadd.xlane.f32.xlu0 %v1515
    %v1517 = vpop.xlane.xlu0 %1516
    %v1518 = vmul.f32 %v1517, 0.17677669
    %v1519 = vsel %vm1514, %v1098, 0.0
    %1520 = vadd.xlane.f32.xlu0 %v1519
    %v1521 = vpop.xlane.xlu0 %1520
    %v1522 = vmul.f32 %v1521, 0.17677669
    %v1523 = vsel %vm1514, %v131, 0.0
    %1524 = vadd.xlane.f32.xlu0 %v1523
    %v1525 = vpop.xlane.xlu0 %1524
    %v1526 = vmul.f32 %v1525, 0.17677669
    %v1527 = vrot.slane %v122, 2
    %1528 = vrot.lane.b32.xlu0 %v1527, 96
    %v1529 = vpop.permute.xlu0 %1528
    %v1531 = vmul.f32 %v76, %v1529
    %v1532 = vsel %vm1514, %v1531, 0.0
    %1533 = vadd.xlane.f32.xlu0 %v1532
    %v1534 = vpop.xlane.xlu0 %1533
    %v1535 = vmul.f32 %v1534, 0.17677669
    %v1536 = vmax.f32 %v1518, %v1522
    %v1537 = vmax.f32 %v1536, %v1526
    %v1538 = vmax.f32 %v1537, %v1535
    %v1539 = vsub.f32 %v1518, %v1538
    %v1540 = vmul.f32 %v1539, 1.442695
    %v1541 = vpow.pop %v1540
    %v1542 = vsub.f32 %v1522, %v1538
    %v1543 = vmul.f32 %v1542, 1.442695
    %v1544 = vpow.pop %v1543
    %v1545 = vsub.f32 %v1526, %v1538
    %v1546 = vmul.f32 %v1545, 1.442695
    %v1547 = vpow.pop %v1546
    %v1548 = vsub.f32 %v1535, %v1538
    %v1549 = vmul.f32 %v1548, 1.442695
    %v1550 = vpow.pop %v1549
    %v1551 = vadd.f32 %v1541, %v1544
    %v1552 = vadd.f32 %v1551, %v1547
    %v1553 = vadd.f32 %v1552, %v1550
    %v1554 = vrcp.pop %v1553
    %v1555 = vmul.f32 %v1541, %v1554
    %1556 = vrot.lane.b32.xlu0 %v1509, 64
    %v1557 = vpop.permute.xlu0 %1556
    %v1559 = vmul.f32 %v1555, %v1557
    %v1560 = vmul.f32 %v1544, %v1554
    %v1561 = vmul.f32 %v1560, %v1066
    %v1562 = vadd.f32 %v1559, %v1561
    %v1563 = vmul.f32 %v1547, %v1554
    %v1564 = vmul.f32 %v1563, %v76
    %1566 = vrot.lane.b32.xlu0 %v1564, 64
    %v1567 = vpop.permute.xlu0 %1566
    %v1569 = vadd.f32 %v1562, %v1567
    %v1570 = vmul.f32 %v1550, %v1554
    %1571 = vrot.lane.b32.xlu0 %v1527, 64
    %v1572 = vpop.permute.xlu0 %1571
    %v1574 = vmul.f32 %v1570, %v1572
    %v1575 = vadd.f32 %v1569, %v1574
    %v1576 = vmul.f32 %v122, %v1154
    %v1577 = vsel %vm132, %v1576, 0.0
    %1578 = vadd.xlane.f32.xlu0 %v1577
    %v1579 = vpop.xlane.xlu0 %1578
    %v1580 = vmul.f32 %v1579, 0.17677669
    %v1581 = vmax.f32 %v825, %v1580
    %v1582 = vmax.f32 %v1581, %v245
    %v1583 = vsub.f32 %v552, %v1582
    %v1584 = vmul.f32 %v1583, 1.442695
    %v1585 = vpow.pop %v1584
    %v1586 = vsub.f32 %v235, %v1582
    %v1587 = vmul.f32 %v1586, 1.442695
    %v1588 = vpow.pop %v1587
    %v1589 = vsub.f32 %v1580, %v1582
    %v1590 = vmul.f32 %v1589, 1.442695
    %v1591 = vpow.pop %v1590
    %v1592 = vsub.f32 %v245, %v1582
    %v1593 = vmul.f32 %v1592, 1.442695
    %v1594 = vpow.pop %v1593
    %v1595 = vadd.f32 %v1585, %v1588
    %v1596 = vadd.f32 %v1595, %v1591
    %v1597 = vadd.f32 %v1596, %v1594
    %v1598 = vrcp.pop %v1597
    %v1599 = vmul.f32 %v1585, %v1598
    %v1600 = vmul.f32 %v1599, %v79
    %v1601 = vmul.f32 %v1588, %v1598
    %v1602 = vmul.f32 %v1601, %v76
    %v1603 = vadd.f32 %v1600, %v1602
    %v1604 = vmul.f32 %v1591, %v1598
    %v1605 = vmul.f32 %v1604, %v1184
    %1607 = vrot.lane.b32.xlu0 %v1605, 64
    %v1608 = vpop.permute.xlu0 %1607
    %v1610 = vadd.f32 %v1603, %v1608
    %v1611 = vmul.f32 %v1594, %v1598
    %v1612 = vmul.f32 %v1611, %v122
    %v1613 = vadd.f32 %v1610, %v1612
    %v1614 = vmax.f32 %v1471, %v1508
    %v1616 = vrot.slane %v1575, 6
    %1617 = vrot.lane.b32.xlu0 %v1616, 64
    %v1618 = vpop.permute.xlu0 %1617
    %v1620 = vmax.f32 %v1614, %v1618
    %v1621 = vmax.f32 %v1620, %v1613
    %v1622 = vld [vmem:[%s2 + $0x328] sm:$0xff]
    %v1623 = vld [vmem:[%s2 + $0x330] sm:$0xff]
    %v1624 = vld [vmem:[%s2 + $0x338] sm:$0xff]
    %v1625 = vld [vmem:[%s2 + $0x340] sm:$0xff]
    %v1626 = vld [vmem:[%s2 + $0x348] sm:$0x1]
    %v1627 = vld [vmem:[%s2 + $0x350] sm:$0xff]
    %v1628 = vld [vmem:[%s2 + $0x358] sm:$0xff]
    %v1629 = vld [vmem:[%s2 + $0x360] sm:$0xff]
    %v1630 = vld [vmem:[%s2 + $0x368] sm:$0xff]
    %v1631 = vld [vmem:[%s2 + $0x370] sm:$0xff]
    %v1632 = vld [vmem:[%s2 + $0x378] sm:$0xff]
    %v1633 = vld [vmem:[%s2 + $0x380] sm:$0xff]
    %v1634 = vld [vmem:[%s2 + $0x388] sm:$0xff]
    %v1635 = vld [vmem:[%s2 + $0x390] sm:$0xff]
    %v1636 = vld [vmem:[%s2 + $0x398] sm:$0xff]
    %v1637 = vld [vmem:[%s2 + $0x3a0] sm:$0xff]
    %v1638 = vld [vmem:[%s2 + $0x3a8] sm:$0xff]
    %v1639 = vld [vmem:[%s2 + $0x3b0] sm:$0xff]
    %v1640 = vld [vmem:[%s2 + $0x3b8] sm:$0xff]
    %v1641 = vld [vmem:[%s2 + $0x3c0] sm:$0xff]
    %v1642 = vld [vmem:[%s2 + $0x3c8] sm:$0xff]
    %v1643 = vld [vmem:[%s2 + $0x3d0] sm:$0x1]
    %v1644 = vld [vmem:[%s2 + $0x3d8] sm:$0x1]
    %v1645 = vld [vmem:[%s2 + $0x3e0] sm:$0x1]
    %v1646 = vpack.c.bf16 %v1621, %v1621
    %v1647 = vpack.c.bf16 %v1623, %v1622
    %v1648 = vpack.c.bf16 %v1625, %v1624
    %v1649 = vlaneseq
    %v1650 = vshrl.u32 %v1649, 7
    %v1651 = vsub.s32 0, %v1650
    %v1652 = vrot.slane %v1626, %v1651
    %1654 = vrot.lane.b32.xlu0 %v1646, 64
    %v1655 = vpop.permute.xlu0 %1654
    %v1657 = vsel %vm37, %v1655, 0
    %1659 = vmatprep.subr.bf16.mxu0 0
    %1660 = vmatpush1.bf16.msra.mxu0 0
    %1661 = vmatprep.subr.bf16.mxu0 0
    %1662 = vmatpush1.bf16.msra.mxu0 0
    %1663 = vmatprep.subr.bf16.mxu0 0
    %1664 = vmatpush1.bf16.msra.mxu0 0
    %1665 = vmatprep.subr.bf16.mxu0 0
    %1666 = vmatpush1.bf16.msra.mxu0 0
    %1667 = vmatprep.subr.bf16.mxu0 0
    %1668 = vmatpush1.bf16.msra.mxu0 0
    %1669 = vmatprep.subr.bf16.mxu0 0
    %1670 = vmatpush1.bf16.msra.mxu0 0
    %1671 = vmatprep.subr.bf16.mxu0 0
    %1672 = vmatpush1.bf16.msra.mxu0 %v1648
    %1673 = vmatprep.subr.bf16.mxu0 0
    %1674 = vmatpush1.bf16.msra.mxu0 %v1647
    %1675 = vmatprep.subr.bf16.mxu0 0
    %1676 = vmatpush2.bf16.msra.mxu0 0
    %1677 = vmatprep.subr.bf16.mxu0 0
    %1678 = vmatpush2.bf16.msra.mxu0 0
    %1679 = vmatprep.subr.bf16.mxu0 0
    %1680 = vmatpush2.bf16.msra.mxu0 0
    %1681 = vmatprep.subr.bf16.mxu0 0
    %1682 = vmatpush2.bf16.msra.mxu0 0
    %1683 = vmatprep.subr.bf16.mxu0 0
    %1684 = vmatpush2.bf16.msra.mxu0 0
    %1685 = vmatprep.subr.bf16.mxu0 0
    %1686 = vmatpush2.bf16.msra.mxu0 0
    %1687 = vmatprep.subr.bf16.mxu0 0
    %1688 = vmatpush2.bf16.msra.mxu0 0
    %1689 = vmatprep.subr.bf16.mxu0 0
    %1690 = vmatpush2.bf16.msra.mxu0 0
    %1691 = vmatprep.mubr.bf16.mxu0 0
    %1692 = vmatmul.mubr.bf16.gmra.mxu0 %v1657
    %v1693 = vpop.f32.mrf.mxu0
    %v1694 = vadd.f32 %v1652, %v1693
    %v1695 = vpop.f32.mrf.mxu0
    %v1696 = vpop.f32.mrf.mxu0
    %v1697 = vpop.f32.mrf.mxu0
    %1698 = vdwg.mxu0
    %v1699 = vmax.f32 %v1694, 0.0
    %v1700 = vpack.c.bf16 %v1699, %v1699
    %v1701 = vpack.c.bf16 %v1628, %v1627
    %v1702 = vpack.c.bf16 %v1630, %v1629
    %v1703 = vpack.c.bf16 %v1632, %v1631
    %v1704 = vpack.c.bf16 %v1634, %v1633
    %v1705 = vpack.c.bf16 %v1636, %v1635
    %v1706 = vpack.c.bf16 %v1638, %v1637
    %v1707 = vpack.c.bf16 %v1640, %v1639
    %v1708 = vpack.c.bf16 %v1642, %v1641
    %1709 = vmatprep.subr.bf16.mxu0 0
    %1710 = vmatpush1.bf16.msra.mxu0 %v1708
    %1711 = vmatprep.subr.bf16.mxu0 0
    %1712 = vmatpush1.bf16.msra.mxu0 %v1707
    %1713 = vmatprep.subr.bf16.mxu0 0
    %1714 = vmatpush1.bf16.msra.mxu0 %v1706
    %1715 = vmatprep.subr.bf16.mxu0 0
    %1716 = vmatpush1.bf16.msra.mxu0 %v1705
    %1717 = vmatprep.subr.bf16.mxu0 0
    %1718 = vmatpush1.bf16.msra.mxu0 %v1704
    %1719 = vmatprep.subr.bf16.mxu0 0
    %1720 = vmatpush1.bf16.msra.mxu0 %v1703
    %1721 = vmatprep.subr.bf16.mxu0 0
    %1722 = vmatpush1.bf16.msra.mxu0 %v1702
    %1723 = vmatprep.subr.bf16.mxu0 0
    %1724 = vmatpush1.bf16.msra.mxu0 %v1701
    %1725 = vmatprep.subr.bf16.mxu0 0
    %1726 = vmatpush2.bf16.msra.mxu0 0
    %1727 = vmatprep.subr.bf16.mxu0 0
    %1728 = vmatpush2.bf16.msra.mxu0 0
    %1729 = vmatprep.subr.bf16.mxu0 0
    %1730 = vmatpush2.bf16.msra.mxu0 0
    %1731 = vmatprep.subr.bf16.mxu0 0
    %1732 = vmatpush2.bf16.msra.mxu0 0
    %1733 = vmatprep.subr.bf16.mxu0 0
    %1734 = vmatpush2.bf16.msra.mxu0 0
    %1735 = vmatprep.subr.bf16.mxu0 0
    %1736 = vmatpush2.bf16.msra.mxu0 0
    %1737 = vmatprep.subr.bf16.mxu0 0
    %1738 = vmatpush2.bf16.msra.mxu0 0
    %1739 = vmatprep.subr.bf16.mxu0 0
    %1740 = vmatpush2.bf16.msra.mxu0 0
    %1741 = vmatprep.mubr.bf16.mxu0 0
    %1742 = vmatmul.mubr.bf16.gmra.mxu0 %v1700
    %v1743 = vpop.f32.mrf.mxu0
    %v1744 = vadd.f32 0.0, %v1743
    %v1745 = vpop.f32.mrf.mxu0
    %v1746 = vpop.f32.mrf.mxu0
    %v1747 = vpop.f32.mrf.mxu0
    %1748 = vdwg.mxu0
    %1750 = vrot.lane.b32.xlu0 %v1744, 64
    %v1751 = vpop.permute.xlu0 %1750
    %v1753 = vadd.f32 %v1621, %v1751
    %v1754 = vlaneseq
    %v1755 = vshrl.u32 %v1754, 7
    %v1756 = vsub.s32 0, %v1755
    %v1757 = vrot.slane %v1643, %v1756
    %1759 = vrot.lane.b32.xlu0 %v1757, 64
    %v1760 = vpop.permute.xlu0 %1759
    %v1762 = vadd.f32 %v1753, %v1760
    %1764 = vrot.lane.b32.xlu0 %v1762, 64
    %v1765 = vpop.permute.xlu0 %1764
    %v1767 = vsel %vm132, %v1765, 0.0
    %1768 = vadd.xlane.f32.xlu0 %v1767
    %v1769 = vpop.xlane.xlu0 %1768
    %v1770 = vmul.f32 %v1769, %v427
    %v1771 = vsub.f32 %v1762, %v1770
    %v1772 = vmul.f32 %v1771, %v1771
    %1774 = vrot.lane.b32.xlu0 %v1772, 64
    %v1775 = vpop.permute.xlu0 %1774
    %v1777 = vsel %vm132, %v1775, 0.0
    %1778 = vadd.xlane.f32.xlu0 %v1777
    %v1779 = vpop.xlane.xlu0 %1778
    %v1780 = vmul.f32 %v1779, %v427
    %v1781 = vadd.f32 %v1780, 1e-05
    %v1782 = vrsqrt.pop %v1781
    %v1783 = vmul.f32 %v1771, %v1782
    %v1784 = vlaneseq
    %v1785 = vshrl.u32 %v1784, 7
    %v1786 = vsub.s32 0, %v1785
    %v1787 = vrot.slane %v1644, %v1786
    %1789 = vrot.lane.b32.xlu0 %v1787, 64
    %v1790 = vpop.permute.xlu0 %1789
    %v1792 = vmul.f32 %v1783, %v1790
    %v1793 = vlaneseq
    %v1794 = vshrl.u32 %v1793, 7
    %v1795 = vsub.s32 0, %v1794
    %v1796 = vrot.slane %v1645, %v1795
    %1798 = vrot.lane.b32.xlu0 %v1796, 64
    %v1799 = vpop.permute.xlu0 %1798
    %v1801 = vadd.f32 %v1792, %v1799
    %v1802 = vld [vmem:[%s2 + $0x3e8] sm:$0xff]
    %v1803 = vld [vmem:[%s2 + $0x3f0] sm:$0xff]
    %v1804 = vld [vmem:[%s2 + $0x3f8] sm:$0xff]
    %v1805 = vld [vmem:[%s2 + $0x400] sm:$0xff]
    %v1806 = vpack.c.bf16 %v1433, %v1433
    %v1807 = vpack.c.bf16 %v1803, %v1802
    %v1808 = vpack.c.bf16 %v1805, %v1804
    %v1809 = vld [vmem:[%s2 + $0x408] sm:$0x1]
    %v1810 = vlaneseq
    %v1811 = vshrl.u32 %v1810, 7
    %v1812 = vsub.s32 0, %v1811
    %v1813 = vrot.slane %v1809, %v1812
    %1815 = vrot.lane.b32.xlu0 %v1806, 64
    %v1816 = vpop.permute.xlu0 %1815
    %v1818 = vsel %vm37, %v1816, 0
    %1820 = vmatprep.subr.bf16.mxu0 0
    %1821 = vmatpush1.bf16.msra.mxu0 0
    %1822 = vmatprep.subr.bf16.mxu0 0
    %1823 = vmatpush1.bf16.msra.mxu0 0
    %1824 = vmatprep.subr.bf16.mxu0 0
    %1825 = vmatpush1.bf16.msra.mxu0 0
    %1826 = vmatprep.subr.bf16.mxu0 0
    %1827 = vmatpush1.bf16.msra.mxu0 0
    %1828 = vmatprep.subr.bf16.mxu0 0
    %1829 = vmatpush1.bf16.msra.mxu0 0
    %1830 = vmatprep.subr.bf16.mxu0 0
    %1831 = vmatpush1.bf16.msra.mxu0 0
    %1832 = vmatprep.subr.bf16.mxu0 0
    %1833 = vmatpush1.bf16.msra.mxu0 %v1808
    %1834 = vmatprep.subr.bf16.mxu0 0
    %1835 = vmatpush1.bf16.msra.mxu0 %v1807
    %1836 = vmatprep.subr.bf16.mxu0 0
    %1837 = vmatpush2.bf16.msra.mxu0 0
    %1838 = vmatprep.subr.bf16.mxu0 0
    %1839 = vmatpush2.bf16.msra.mxu0 0
    %1840 = vmatprep.subr.bf16.mxu0 0
    %1841 = vmatpush2.bf16.msra.mxu0 0
    %1842 = vmatprep.subr.bf16.mxu0 0
    %1843 = vmatpush2.bf16.msra.mxu0 0
    %1844 = vmatprep.subr.bf16.mxu0 0
    %1845 = vmatpush2.bf16.msra.mxu0 0
    %1846 = vmatprep.subr.bf16.mxu0 0
    %1847 = vmatpush2.bf16.msra.mxu0 0
    %1848 = vmatprep.subr.bf16.mxu0 0
    %1849 = vmatpush2.bf16.msra.mxu0 0
    %1850 = vmatprep.subr.bf16.mxu0 0
    %1851 = vmatpush2.bf16.msra.mxu0 0
    %1852 = vmatprep.mubr.bf16.mxu0 0
    %1853 = vmatmul.mubr.bf16.gmra.mxu0 %v1818
    %v1854 = vpop.f32.mrf.mxu0
    %v1855 = vadd.f32 %v1813, %v1854
    %v1856 = vpop.f32.mrf.mxu0
    %v1857 = vpop.f32.mrf.mxu0
    %v1858 = vpop.f32.mrf.mxu0
    %1859 = vdwg.mxu0
    %v1860 = vxor.u32 %v1855, 2147483648
    %v1861 = vmul.f32 %v1860, 1.442695
    %v1862 = vpow.pop %v1861
    %v1863 = vadd.f32 %v1862, 1.0
    %v1864 = vrcp.pop %v1863
    %v1865 = vmul.f32 1.0, %v1864
    %vm1866 = vcmask 123904
    %1867 = vst.msk [vmem:[#allocation7] sm:$0x3] %vm1866, %v1865
    %v1868 = vld [vmem:[%s2 + $0x410] sm:$0xff]
    %v1869 = vld [vmem:[%s2 + $0x418] sm:$0xff]
    %v1870 = vld [vmem:[%s2 + $0x420] sm:$0xff]
    %v1871 = vld [vmem:[%s2 + $0x428] sm:$0xff]
    %v1872 = vpack.c.bf16 %v1801, %v1801
    %v1873 = vpack.c.bf16 %v1869, %v1868
    %v1874 = vpack.c.bf16 %v1871, %v1870
    %v1875 = vld [vmem:[%s2 + $0x430] sm:$0x1]
    %v1876 = vlaneseq
    %v1877 = vshrl.u32 %v1876, 7
    %v1878 = vsub.s32 0, %v1877
    %v1879 = vrot.slane %v1875, %v1878
    %1881 = vrot.lane.b32.xlu0 %v1872, 64
    %v1882 = vpop.permute.xlu0 %1881
    %v1884 = vsel %vm37, %v1882, 0
    %1886 = vmatprep.subr.bf16.mxu0 0
    %1887 = vmatpush1.bf16.msra.mxu0 0
    %1888 = vmatprep.subr.bf16.mxu0 0
    %1889 = vmatpush1.bf16.msra.mxu0 0
    %1890 = vmatprep.subr.bf16.mxu0 0
    %1891 = vmatpush1.bf16.msra.mxu0 0
    %1892 = vmatprep.subr.bf16.mxu0 0
    %1893 = vmatpush1.bf16.msra.mxu0 0
    %1894 = vmatprep.subr.bf16.mxu0 0
    %1895 = vmatpush1.bf16.msra.mxu0 0
    %1896 = vmatprep.subr.bf16.mxu0 0
    %1897 = vmatpush1.bf16.msra.mxu0 0
    %1898 = vmatprep.subr.bf16.mxu0 0
    %1899 = vmatpush1.bf16.msra.mxu0 %v1874
    %1900 = vmatprep.subr.bf16.mxu0 0
    %1901 = vmatpush1.bf16.msra.mxu0 %v1873
    %1902 = vmatprep.subr.bf16.mxu0 0
    %1903 = vmatpush2.bf16.msra.mxu0 0
    %1904 = vmatprep.subr.bf16.mxu0 0
    %1905 = vmatpush2.bf16.msra.mxu0 0
    %1906 = vmatprep.subr.bf16.mxu0 0
    %1907 = vmatpush2.bf16.msra.mxu0 0
    %1908 = vmatprep.subr.bf16.mxu0 0
    %1909 = vmatpush2.bf16.msra.mxu0 0
    %1910 = vmatprep.subr.bf16.mxu0 0
    %1911 = vmatpush2.bf16.msra.mxu0 0
    %1912 = vmatprep.subr.bf16.mxu0 0
    %1913 = vmatpush2.bf16.msra.mxu0 0
    %1914 = vmatprep.subr.bf16.mxu0 0
    %1915 = vmatpush2.bf16.msra.mxu0 0
    %1916 = vmatprep.subr.bf16.mxu0 0
    %1917 = vmatpush2.bf16.msra.mxu0 0
    %1918 = vmatprep.mubr.bf16.mxu0 0
    %1919 = vmatmul.mubr.bf16.gmra.mxu0 %v1884
    %v1920 = vpop.f32.mrf.mxu0
    %v1921 = vadd.f32 %v1879, %v1920
    %v1922 = vpop.f32.mrf.mxu0
    %v1923 = vpop.f32.mrf.mxu0
    %v1924 = vpop.f32.mrf.mxu0
    %1925 = vdwg.mxu0
    %v1926 = vxor.u32 %v1921, 2147483648
    %v1927 = vmul.f32 %v1926, 1.442695
    %v1928 = vpow.pop %v1927
    %v1929 = vadd.f32 %v1928, 1.0
    %v1930 = vrcp.pop %v1929
    %v1931 = vmul.f32 1.0, %v1930
    %vm1932 = vcmask 189440
    %1933 = vst.msk [vmem:[#allocation9] sm:$0x3] %vm1932, %v1931
    // Predicated region
    $region14: #{t5_cls_forward.5} parent=1 // pred_check
      _
    $region15: #{t5_cls_forward.5} parent=1 // pred_check_branch
      %1935 = sbr.rel (0) target = $region17
    $region16: #{t5_cls_forward.5} parent=1 // pred_region
      %s1937 = ssub.s32 32, 32
      %1938 = vsyncadd [#allocation3], %s1937
      %s1940 = sshll.u32 [#allocation2], 4
      %s1941 = int_to_ptr.vmem [resolvable:$true] %s1940
      %1943 = dma.vmem_to_hbm [thread:$0]  %s1941, 32, %s3, [#allocation3]
    $region17: #{t5_cls_forward.5} parent=1 // pred_fallthru
      _
    // Predicated region
    $region18: #{t5_cls_forward.5} parent=1 // pred_check
      _
    $region19: #{t5_cls_forward.5} parent=1 // pred_check_branch
      %1945 = sbr.rel (0) target = $region21
    $region20: #{t5_cls_forward.5} parent=1 // pred_region
      %s1947 = ssub.s32 32, 32
      %1948 = vsyncadd [#allocation5], %s1947
      %s1950 = sshll.u32 [#allocation4], 4
      %s1951 = int_to_ptr.vmem [resolvable:$true] %s1950
      %1953 = dma.vmem_to_hbm [thread:$0]  %s1951, 32, %s4, [#allocation5]
    $region21: #{t5_cls_forward.5} parent=1 // pred_fallthru
      _
    // Predicated region
    $region22: #{t5_cls_forward.5} parent=1 // pred_check
      _
    $region23: #{t5_cls_forward.5} parent=1 // pred_check_branch
      %1955 = sbr.rel (0) target = $region25
    $region24: #{t5_cls_forward.5} parent=1 // pred_region
      %s1957 = ssub.s32 32, 32
      %1958 = vsyncadd [#allocation5], %s1957
      %s1960 = sshll.u32 [#allocation6], 4
      %s1961 = int_to_ptr.vmem [resolvable:$true] %s1960
      %1963 = dma.vmem_to_hbm [thread:$0]  %s1961, 32, %s5, [#allocation5]
    $region25: #{t5_cls_forward.5} parent=1 // pred_fallthru
      _
    // Predicated region
    $region26: #{t5_cls_forward.5} parent=1 // pred_check
      _
    $region27: #{t5_cls_forward.5} parent=1 // pred_check_branch
      %1965 = sbr.rel (0) target = $region29
    $region28: #{t5_cls_forward.5} parent=1 // pred_region
      %s1967 = ssub.s32 32, 32
      %1968 = vsyncadd [#allocation8], %s1967
      %s1970 = sshll.u32 [#allocation7], 4
      %s1971 = int_to_ptr.vmem [resolvable:$true] %s1970
      %1973 = dma.vmem_to_hbm [thread:$0]  %s1971, 32, %s6, [#allocation8]
    $region29: #{t5_cls_forward.5} parent=1 // pred_fallthru
      _
    // Predicated region
    $region30: #{t5_cls_forward.5} parent=1 // pred_check
      _
    $region31: #{t5_cls_forward.5} parent=1 // pred_check_branch
      %1975 = sbr.rel (0) target = $region33
    $region32: #{t5_cls_forward.5} parent=1 // pred_region
      %s1977 = ssub.s32 32, 32
      %1978 = vsyncadd [#allocation8], %s1977
      %s1980 = sshll.u32 [#allocation9], 4
      %s1981 = int_to_ptr.vmem [resolvable:$true] %s1980
      %1983 = dma.vmem_to_hbm [thread:$0]  %s1981, 32, %s7, [#allocation8]
    $region33: #{t5_cls_forward.5} parent=1 // pred_fallthru
      _
    // Predicated region
    $region34: #{t5_cls_forward.5} parent=1 // pred_check
      _
    $region35: #{t5_cls_forward.5} parent=1 // pred_check_branch
      %1985 = sbr.rel (0) target = $region37
    $region36: #{t5_cls_forward.5} parent=1 // pred_region
      %1986 = dma.done [#allocation3], 32
    $region37: #{t5_cls_forward.5} parent=1 // pred_fallthru
      _
    // Predicated region
    $region38: #{t5_cls_forward.5} parent=1 // pred_check
      _
    $region39: #{t5_cls_forward.5} parent=1 // pred_check_branch
      %1988 = sbr.rel (0) target = $region41
    $region40: #{t5_cls_forward.5} parent=1 // pred_region
      %1989 = dma.done [#allocation5], 32
    $region41: #{t5_cls_forward.5} parent=1 // pred_fallthru
      _
    // Predicated region
    $region42: #{t5_cls_forward.5} parent=1 // pred_check
      _
    $region43: #{t5_cls_forward.5} parent=1 // pred_check_branch
      %1991 = sbr.rel (0) target = $region45
    $region44: #{t5_cls_forward.5} parent=1 // pred_region
      %1992 = dma.done [#allocation5], 32
    $region45: #{t5_cls_forward.5} parent=1 // pred_fallthru
      _
    // Predicated region
    $region46: #{t5_cls_forward.5} parent=1 // pred_check
      _
    $region47: #{t5_cls_forward.5} parent=1 // pred_check_branch
      %1994 = sbr.rel (0) target = $region49
    $region48: #{t5_cls_forward.5} parent=1 // pred_region
      %1995 = dma.done [#allocation8], 32
    $region49: #{t5_cls_forward.5} parent=1 // pred_fallthru
      _
    // Predicated region
    $region50: #{t5_cls_forward.5} parent=1 // pred_check
      _
    $region51: #{t5_cls_forward.5} parent=1 // pred_check_branch
      %1997 = sbr.rel (0) target = $region53
    $region52: #{t5_cls_forward.5} parent=1 // pred_region
      %1998 = dma.done [#allocation8], 32
    $region53: #{t5_cls_forward.5} parent=1 // pred_fallthru
      _
    %1999 = vsyncpa [#allocation3], 1
    %2000 = vsyncpa [#allocation5], 1
    %2001 = vsyncpa [#allocation8], 1

// kernel: t5_cls_forward.4
$region0: #{t5_cls_forward.4}
  #allocation0 [shape = 'u32[]', space=smem, size = 0x4, offset = 0x4, fixed_abs, tag = 'smem constant byte address 0x4 - core index']
  #allocation1 [shape = 'u32[144,128]{1,0:T(1,128)}', space=vmem, size = 0x12000, scoped, tag = 'internal scratch']
  %s0 = inlined_call_operand.vmem [shape: f32[48,12], index: 0, kind: input, shape index: {}]
  %s1 = inlined_call_operand.vmem [shape: f32[6,73], index: 1, kind: input, shape index: {}]
  %s2 = inlined_call_operand.vmem [shape: f32[728,128], index: 2, kind: input, shape index: {}]
  %s3 = inlined_call_operand.vmem [shape: f32[2,32], index: 3, kind: output, shape index: {}]
  %s4 = sld [smem:[#allocation0]]
  $region22: #{t5_cls_forward.4} parent=0
    _
  %s6 = ssub.s32 1, %s4
  %s7 = scalar_select 0, %s6, %s4
  // Predicated region
  $region2: #{t5_cls_forward.4} parent=0 // pred_check
    _
  $region3: #{t5_cls_forward.4} parent=0 // pred_check_branch
    %9 = sbr.rel (0) target = $region5
  $region4: #{t5_cls_forward.4} parent=0 // pred_region
    _
  $region5: #{t5_cls_forward.4} parent=0 // pred_fallthru
    _
  // Predicated region
  $region6: #{t5_cls_forward.4} parent=0 // pred_check
    _
  $region7: #{t5_cls_forward.4} parent=0 // pred_check_branch
    %11 = sbr.rel (0) target = $region9
  $region8: #{t5_cls_forward.4} parent=0 // pred_region
    _
  $region9: #{t5_cls_forward.4} parent=0 // pred_fallthru
    _
  // Predicated region
  $region10: #{t5_cls_forward.4} parent=0 // pred_check
    _
  $region11: #{t5_cls_forward.4} parent=0 // pred_check_branch
    %13 = sbr.rel (0) target = $region13
  $region12: #{t5_cls_forward.4} parent=0 // pred_region
    _
  $region13: #{t5_cls_forward.4} parent=0 // pred_fallthru
    _
  %v15 = vld [vmem:[%s0] sm:$0xff]
  %v16 = vld [vmem:[%s0 + $0x8] sm:$0xff]
  %v17 = vld [vmem:[%s0 + $0x10] sm:$0xff]
  %v18 = vld [vmem:[%s0 + $0x18] sm:$0xff]
  %v19 = vld [vmem:[%s0 + $0x20] sm:$0xff]
  %v20 = vld [vmem:[%s0 + $0x28] sm:$0xff]
  %v21 = vld [vmem:[%s2] sm:$0xff]
  %v22 = vld [vmem:[%s2 + $0x8] sm:$0xf]
  %v23 = vpack.c.bf16 %v16, %v15
  %v24 = vpack.c.bf16 %v18, %v17
  %v25 = vpack.c.bf16 %v20, %v19
  %v26 = vpack.c.bf16 %v22, %v21
  %v27 = vld [vmem:[%s2 + $0x30] sm:$0x1]
  %v28 = vlaneseq
  %v29 = vshrl.u32 %v28, 7
  %v30 = vsub.s32 0, %v29
  %v31 = vrot.slane %v27, %v30
  %vm32 = vcmask 97280
  %v34 = vsel %vm32, %v23, 0
  %v37 = vsel %vm32, %v24, 0
  %v40 = vsel %vm32, %v25, 0
  %vm42 = vcmask 1045504
  %v44 = vsel %vm42, %v26, 0
  %46 = vmatprep.subr.bf16.mxu0 0
  %47 = vmatpush1.bf16.msra.mxu0 0
  %48 = vmatprep.subr.bf16.mxu0 0
  %49 = vmatpush1.bf16.msra.mxu0 0
  %50 = vmatprep.subr.bf16.mxu0 0
  %51 = vmatpush1.bf16.msra.mxu0 0
  %52 = vmatprep.subr.bf16.mxu0 0
  %53 = vmatpush1.bf16.msra.mxu0 0
  %54 = vmatprep.subr.bf16.mxu0 0
  %55 = vmatpush1.bf16.msra.mxu0 0
  %56 = vmatprep.subr.bf16.mxu0 0
  %57 = vmatpush1.bf16.msra.mxu0 0
  %58 = vmatprep.subr.bf16.mxu0 0
  %59 = vmatpush1.bf16.msra.mxu0 0
  %60 = vmatprep.subr.bf16.mxu0 0
  %61 = vmatpush1.bf16.msra.mxu0 %v44
  %62 = vmatprep.subr.bf16.mxu0 0
  %63 = vmatpush2.bf16.msra.mxu0 0
  %64 = vmatprep.subr.bf16.mxu0 0
  %65 = vmatpush2.bf16.msra.mxu0 0
  %66 = vmatprep.subr.bf16.mxu0 0
  %67 = vmatpush2.bf16.msra.mxu0 0
  %68 = vmatprep.subr.bf16.mxu0 0
  %69 = vmatpush2.bf16.msra.mxu0 0
  %70 = vmatprep.subr.bf16.mxu0 0
  %71 = vmatpush2.bf16.msra.mxu0 0
  %72 = vmatprep.subr.bf16.mxu0 0
  %73 = vmatpush2.bf16.msra.mxu0 0
  %74 = vmatprep.subr.bf16.mxu0 0
  %75 = vmatpush2.bf16.msra.mxu0 0
  %76 = vmatprep.subr.bf16.mxu0 0
  %77 = vmatpush2.bf16.msra.mxu0 0
  %78 = vmatprep.mubr.bf16.mxu0 0
  %79 = vmatmul.mubr.bf16.gmra.mxu0 %v34
  %v80 = vpop.f32.mrf.mxu0
  %v81 = vadd.f32 %v31, %v80
  %v82 = vpop.f32.mrf.mxu0
  %v83 = vpop.f32.mrf.mxu0
  %v84 = vadd.f32 %v31, %v83
  %v85 = vpop.f32.mrf.mxu0
  %86 = vmatprep.mubr.bf16.mxu0 0
  %87 = vmatmul.mubr.bf16.gmra.mxu0 %v37
  %v88 = vpop.f32.mrf.mxu0
  %v89 = vadd.f32 %v31, %v88
  %v90 = vpop.f32.mrf.mxu0
  %v91 = vpop.f32.mrf.mxu0
  %v92 = vadd.f32 %v31, %v91
  %v93 = vpop.f32.mrf.mxu0
  %94 = vmatprep.mubr.bf16.mxu0 0
  %95 = vmatmul.mubr.bf16.gmra.mxu0 %v40
  %v96 = vpop.f32.mrf.mxu0
  %v97 = vadd.f32 %v31, %v96
  %v98 = vpop.f32.mrf.mxu0
  %v99 = vpop.f32.mrf.mxu0
  %v100 = vadd.f32 %v31, %v99
  %v101 = vpop.f32.mrf.mxu0
  %102 = vdwg.mxu0
  %v103 = vld [vmem:[%s2 + $0x10] sm:$0xff]
  %v104 = vld [vmem:[%s2 + $0x18] sm:$0xff]
  %v105 = vld [vmem:[%s2 + $0x20] sm:$0xff]
  %v106 = vld [vmem:[%s2 + $0x28] sm:$0xff]
  %v107 = vpack.c.bf16 %v104, %v103
  %v108 = vpack.c.bf16 %v106, %v105
  %vm109 = vcmask 261120
  %v111 = vsel %vm109, 0, 0
  %113 = vmatprep.subr.bf16.mxu0 0
  %114 = vmatpush1.bf16.msra.mxu0 0
  %115 = vmatprep.subr.bf16.mxu0 0
  %116 = vmatpush1.bf16.msra.mxu0 0
  %117 = vmatprep.subr.bf16.mxu0 0
  %118 = vmatpush1.bf16.msra.mxu0 0
  %119 = vmatprep.subr.bf16.mxu0 0
  %120 = vmatpush1.bf16.msra.mxu0 0
  %121 = vmatprep.subr.bf16.mxu0 0
  %122 = vmatpush1.bf16.msra.mxu0 0
  %123 = vmatprep.subr.bf16.mxu0 0
  %124 = vmatpush1.bf16.msra.mxu0 0
  %125 = vmatprep.subr.bf16.mxu0 0
  %126 = vmatpush1.bf16.msra.mxu0 %v108
  %127 = vmatprep.subr.bf16.mxu0 0
  %128 = vmatpush1.bf16.msra.mxu0 %v107
  %129 = vmatprep.subr.bf16.mxu0 0
  %130 = vmatpush2.bf16.msra.mxu0 0
  %131 = vmatprep.subr.bf16.mxu0 0
  %132 = vmatpush2.bf16.msra.mxu0 0
  %133 = vmatprep.subr.bf16.mxu0 0
  %134 = vmatpush2.bf16.msra.mxu0 0
  %135 = vmatprep.subr.bf16.mxu0 0
  %136 = vmatpush2.bf16.msra.mxu0 0
  %137 = vmatprep.subr.bf16.mxu0 0
  %138 = vmatpush2.bf16.msra.mxu0 0
  %139 = vmatprep.subr.bf16.mxu0 0
  %140 = vmatpush2.bf16.msra.mxu0 0
  %141 = vmatprep.subr.bf16.mxu0 0
  %142 = vmatpush2.bf16.msra.mxu0 0
  %143 = vmatprep.subr.bf16.mxu0 0
  %144 = vmatpush2.bf16.msra.mxu0 0
  %145 = vmatprep.mubr.bf16.mxu0 0
  %146 = vmatmul.mubr.bf16.gmra.mxu0 %v111
  %v147 = vpop.f32.mrf.mxu0
  %v148 = vadd.f32 0.0, %v147
  %v149 = vpop.f32.mrf.mxu0
  %v150 = vpop.f32.mrf.mxu0
  %v151 = vpop.f32.mrf.mxu0
  %152 = vdwg.mxu0
  %v153 = vadd.f32 %v81, %v148
  %v154 = vxor.u32 %v153, 2147483648
  %v155 = vmul.f32 %v154, 1.442695
  %v156 = vpow.pop %v155
  %v157 = vadd.f32 %v156, 1.0
  %v158 = vrcp.pop %v157
  %v159 = vmul.f32 1.0, %v158
  %v160 = vtanh.pop %v153
  %v161 = vmul.f32 %v159, 0.0
  %163 = vrot.lane.b32.xlu0 %v160, 64
  %v164 = vpop.permute.xlu0 %163
  %v166 = vmul.f32 %v159, %v164
  %168 = vrot.lane.b32.xlu0 %v166, 32
  %v169 = vpop.permute.xlu0 %168
  %v171 = vadd.f32 %v161, %v169
  %v172 = vtanh.pop %v171
  %174 = vrot.lane.b32.xlu0 %v172, 64
  %v175 = vpop.permute.xlu0 %174
  %v177 = vmul.f32 %v159, %v175
  %v178 = vpack.c.bf16 %v177, %v177
  %180 = vrot.lane.b32.xlu0 %v178, 32
  %v181 = vpop.permute.xlu0 %180
  %v183 = vsel %vm109, %v181, 0
  %185 = vmatprep.subr.bf16.mxu0 0
  %186 = vmatpush1.bf16.msra.mxu0 0
  %187 = vmatprep.subr.bf16.mxu0 0
  %188 = vmatpush1.bf16.msra.mxu0 0
  %189 = vmatprep.subr.bf16.mxu0 0
  %190 = vmatpush1.bf16.msra.mxu0 0
  %191 = vmatprep.subr.bf16.mxu0 0
  %192 = vmatpush1.bf16.msra.mxu0 0
  %193 = vmatprep.subr.bf16.mxu0 0
  %194 = vmatpush1.bf16.msra.mxu0 0
  %195 = vmatprep.subr.bf16.mxu0 0
  %196 = vmatpush1.bf16.msra.mxu0 0
  %197 = vmatprep.subr.bf16.mxu0 0
  %198 = vmatpush1.bf16.msra.mxu0 %v108
  %199 = vmatprep.subr.bf16.mxu0 0
  %200 = vmatpush1.bf16.msra.mxu0 %v107
  %201 = vmatprep.subr.bf16.mxu0 0
  %202 = vmatpush2.bf16.msra.mxu0 0
  %203 = vmatprep.subr.bf16.mxu0 0
  %204 = vmatpush2.bf16.msra.mxu0 0
  %205 = vmatprep.subr.bf16.mxu0 0
  %206 = vmatpush2.bf16.msra.mxu0 0
  %207 = vmatprep.subr.bf16.mxu0 0
  %208 = vmatpush2.bf16.msra.mxu0 0
  %209 = vmatprep.subr.bf16.mxu0 0
  %210 = vmatpush2.bf16.msra.mxu0 0
  %211 = vmatprep.subr.bf16.mxu0 0
  %212 = vmatpush2.bf16.msra.mxu0 0
  %213 = vmatprep.subr.bf16.mxu0 0
  %214 = vmatpush2.bf16.msra.mxu0 0
  %215 = vmatprep.subr.bf16.mxu0 0
  %216 = vmatpush2.bf16.msra.mxu0 0
  %217 = vmatprep.mubr.bf16.mxu0 0
  %218 = vmatmul.mubr.bf16.gmra.mxu0 %v183
  %v219 = vpop.f32.mrf.mxu0
  %v220 = vadd.f32 0.0, %v219
  %v221 = vpop.f32.mrf.mxu0
  %v222 = vpop.f32.mrf.mxu0
  %v223 = vpop.f32.mrf.mxu0
  %224 = vdwg.mxu0
  %v226 = vrot.slane %v220, 2
  %v228 = vadd.f32 %v81, %v226
  %v229 = vadd.f32 %v84, %v226
  %v230 = vxor.u32 %v228, 2147483648
  %v231 = vxor.u32 %v229, 2147483648
  %v232 = vmul.f32 %v230, 1.442695
  %v233 = vpow.pop %v232
  %v234 = vmul.f32 %v231, 1.442695
  %v235 = vpow.pop %v234
  %v236 = vadd.f32 %v233, 1.0
  %v237 = vadd.f32 %v235, 1.0
  %v238 = vrcp.pop %v236
  %v239 = vmul.f32 1.0, %v238
  %v240 = vrcp.pop %v237
  %v241 = vmul.f32 1.0, %v240
  %v242 = vtanh.pop %v228
  %v243 = vtanh.pop %v229
  %v245 = vrot.slane %v171, 2
  %v247 = vmul.f32 %v239, %v245
  %v248 = vmul.f32 %v241, %v245
  %251 = vrot.lane.b32.xlu0 %v242, 64
  %v252 = vpop.permute.xlu0 %251
  %253 = vrot.lane.b32.xlu0 %v243, 64
  %v254 = vpop.permute.xlu0 %253
  %v257 = vmul.f32 %v239, %v252
  %v258 = vmul.f32 %v241, %v254
  %261 = vrot.lane.b32.xlu0 %v257, 32
  %v262 = vpop.permute.xlu0 %261
  %263 = vrot.lane.b32.xlu0 %v258, 32
  %v264 = vpop.permute.xlu0 %263
  %v267 = vadd.f32 %v247, %v262
  %v268 = vadd.f32 %v248, %v264
  %v269 = vtanh.pop %v267
  %v270 = vtanh.pop %v268
  %273 = vrot.lane.b32.xlu0 %v269, 64
  %v274 = vpop.permute.xlu0 %273
  %275 = vrot.lane.b32.xlu0 %v270, 64
  %v276 = vpop.permute.xlu0 %275
  %v279 = vmul.f32 %v239, %v274
  %v280 = vmul.f32 %v241, %v276
  %v281 = vpack.c.bf16 %v280, %v279
  %v283 = vrot.slane %v281, 3
  %284 = vrot.lane.b32.xlu0 %v283, 32
  %v285 = vpop.permute.xlu0 %284
  %v287 = vsel %vm109, %v285, 0
  %289 = vmatprep.subr.bf16.mxu0 0
  %290 = vmatpush1.bf16.msra.mxu0 0
  %291 = vmatprep.subr.bf16.mxu0 0
  %292 = vmatpush1.bf16.msra.mxu0 0
  %293 = vmatprep.subr.bf16.mxu0 0
  %294 = vmatpush1.bf16.msra.mxu0 0
  %295 = vmatprep.subr.bf16.mxu0 0
  %296 = vmatpush1.bf16.msra.mxu0 0
  %297 = vmatprep.subr.bf16.mxu0 0
  %298 = vmatpush1.bf16.msra.mxu0 0
  %299 = vmatprep.subr.bf16.mxu0 0
  %300 = vmatpush1.bf16.msra.mxu0 0
  %301 = vmatprep.subr.bf16.mxu0 0
  %302 = vmatpush1.bf16.msra.mxu0 %v108
  %303 = vmatprep.subr.bf16.mxu0 0
  %304 = vmatpush1.bf16.msra.mxu0 %v107
  %305 = vmatprep.subr.bf16.mxu0 0
  %306 = vmatpush2.bf16.msra.mxu0 0
  %307 = vmatprep.subr.bf16.mxu0 0
  %308 = vmatpush2.bf16.msra.mxu0 0
  %309 = vmatprep.subr.bf16.mxu0 0
  %310 = vmatpush2.bf16.msra.mxu0 0
  %311 = vmatprep.subr.bf16.mxu0 0
  %312 = vmatpush2.bf16.msra.mxu0 0
  %313 = vmatprep.subr.bf16.mxu0 0
  %314 = vmatpush2.bf16.msra.mxu0 0
  %315 = vmatprep.subr.bf16.mxu0 0
  %316 = vmatpush2.bf16.msra.mxu0 0
  %317 = vmatprep.subr.bf16.mxu0 0
  %318 = vmatpush2.bf16.msra.mxu0 0
  %319 = vmatprep.subr.bf16.mxu0 0
  %320 = vmatpush2.bf16.msra.mxu0 0
  %321 = vmatprep.mubr.bf16.mxu0 0
  %322 = vmatmul.mubr.bf16.gmra.mxu0 %v287
  %v323 = vpop.f32.mrf.mxu0
  %v324 = vadd.f32 0.0, %v323
  %v325 = vpop.f32.mrf.mxu0
  %v326 = vpop.f32.mrf.mxu0
  %v327 = vpop.f32.mrf.mxu0
  %328 = vdwg.mxu0
  %v330 = vrot.slane %v324, 4
  %v332 = vadd.f32 %v84, %v330
  %v333 = vadd.f32 %v89, %v330
  %v334 = vxor.u32 %v332, 2147483648
  %v335 = vxor.u32 %v333, 2147483648
  %v336 = vmul.f32 %v334, 1.442695
  %v337 = vpow.pop %v336
  %v338 = vmul.f32 %v335, 1.442695
  %v339 = vpow.pop %v338
  %v340 = vadd.f32 %v337, 1.0
  %v341 = vadd.f32 %v339, 1.0
  %v342 = vrcp.pop %v340
  %v343 = vmul.f32 1.0, %v342
  %v344 = vrcp.pop %v341
  %v345 = vmul.f32 1.0, %v344
  %v346 = vtanh.pop %v332
  %v347 = vtanh.pop %v333
  %v350 = vrot.slane %v267, 2
  %v351 = vrot.slane %v268, 2
  %v352 = vsel %vm42, %v350, %v351
  %v355 = vmul.f32 %v343, %v352
  %v356 = vmul.f32 %v345, %v351
  %359 = vrot.lane.b32.xlu0 %v346, 64
  %v360 = vpop.permute.xlu0 %359
  %361 = vrot.lane.b32.xlu0 %v347, 64
  %v362 = vpop.permute.xlu0 %361
  %v365 = vmul.f32 %v343, %v360
  %v366 = vmul.f32 %v345, %v362
  %369 = vrot.lane.b32.xlu0 %v365, 32
  %v370 = vpop.permute.xlu0 %369
  %371 = vrot.lane.b32.xlu0 %v366, 32
  %v372 = vpop.permute.xlu0 %371
  %v375 = vadd.f32 %v355, %v370
  %v376 = vadd.f32 %v356, %v372
  %v377 = vtanh.pop %v375
  %v378 = vtanh.pop %v376
  %381 = vrot.lane.b32.xlu0 %v377, 64
  %v382 = vpop.permute.xlu0 %381
  %383 = vrot.lane.b32.xlu0 %v378, 64
  %v384 = vpop.permute.xlu0 %383
  %v387 = vmul.f32 %v343, %v382
  %v388 = vmul.f32 %v345, %v384
  %v389 = vpack.c.bf16 %v388, %v387
  %v391 = vrot.slane %v389, 2
  %392 = vrot.lane.b32.xlu0 %v391, 32
  %v393 = vpop.permute.xlu0 %392
  %v395 = vsel %vm109, %v393, 0
  %397 = vmatprep.subr.bf16.mxu0 0
  %398 = vmatpush1.bf16.msra.mxu0 0
  %399 = vmatprep.subr.bf16.mxu0 0
  %400 = vmatpush1.bf16.msra.mxu0 0
  %401 = vmatprep.subr.bf16.mxu0 0
  %402 = vmatpush1.bf16.msra.mxu0 0
  %403 = vmatprep.subr.bf16.mxu0 0
  %404 = vmatpush1.bf16.msra.mxu0 0
  %405 = vmatprep.subr.bf16.mxu0 0
  %406 = vmatpush1.bf16.msra.mxu0 0
  %407 = vmatprep.subr.bf16.mxu0 0
  %408 = vmatpush1.bf16.msra.mxu0 0
  %409 = vmatprep.subr.bf16.mxu0 0
  %410 = vmatpush1.bf16.msra.mxu0 %v108
  %411 = vmatprep.subr.bf16.mxu0 0
  %412 = vmatpush1.bf16.msra.mxu0 %v107
  %413 = vmatprep.subr.bf16.mxu0 0
  %414 = vmatpush2.bf16.msra.mxu0 0
  %415 = vmatprep.subr.bf16.mxu0 0
  %416 = vmatpush2.bf16.msra.mxu0 0
  %417 = vmatprep.subr.bf16.mxu0 0
  %418 = vmatpush2.bf16.msra.mxu0 0
  %419 = vmatprep.subr.bf16.mxu0 0
  %420 = vmatpush2.bf16.msra.mxu0 0
  %421 = vmatprep.subr.bf16.mxu0 0
  %422 = vmatpush2.bf16.msra.mxu0 0
  %423 = vmatprep.subr.bf16.mxu0 0
  %424 = vmatpush2.bf16.msra.mxu0 0
  %425 = vmatprep.subr.bf16.mxu0 0
  %426 = vmatpush2.bf16.msra.mxu0 0
  %427 = vmatprep.subr.bf16.mxu0 0
  %428 = vmatpush2.bf16.msra.mxu0 0
  %429 = vmatprep.mubr.bf16.mxu0 0
  %430 = vmatmul.mubr.bf16.gmra.mxu0 %v395
  %v431 = vpop.f32.mrf.mxu0
  %v432 = vadd.f32 0.0, %v431
  %v433 = vpop.f32.mrf.mxu0
  %v434 = vpop.f32.mrf.mxu0
  %v435 = vpop.f32.mrf.mxu0
  %436 = vdwg.mxu0
  %v438 = vrot.slane %v432, 6
  %v440 = vadd.f32 %v89, %v438
  %v441 = vxor.u32 %v440, 2147483648
  %v442 = vmul.f32 %v441, 1.442695
  %v443 = vpow.pop %v442
  %v444 = vadd.f32 %v443, 1.0
  %v445 = vrcp.pop %v444
  %v446 = vmul.f32 1.0, %v445
  %v447 = vtanh.pop %v440
  %v450 = vrot.slane %v375, 2
  %v451 = vrot.slane %v376, 2
  %v452 = vsel %vm42, %v450, %v451
  %v454 = vmul.f32 %v446, %v452
  %456 = vrot.lane.b32.xlu0 %v447, 64
  %v457 = vpop.permute.xlu0 %456
  %v459 = vmul.f32 %v446, %v457
  %461 = vrot.lane.b32.xlu0 %v459, 32
  %v462 = vpop.permute.xlu0 %461
  %v464 = vadd.f32 %v454, %v462
  %v465 = vtanh.pop %v464
  %467 = vrot.lane.b32.xlu0 %v465, 64
  %v468 = vpop.permute.xlu0 %467
  %v470 = vmul.f32 %v446, %v468
  %v471 = vpack.c.bf16 %v470, %v470
  %v473 = vrot.slane %v471, 1
  %474 = vrot.lane.b32.xlu0 %v473, 32
  %v475 = vpop.permute.xlu0 %474
  %v477 = vsel %vm109, %v475, 0
  %479 = vmatprep.subr.bf16.mxu0 0
  %480 = vmatpush1.bf16.msra.mxu0 0
  %481 = vmatprep.subr.bf16.mxu0 0
  %482 = vmatpush1.bf16.msra.mxu0 0
  %483 = vmatprep.subr.bf16.mxu0 0
  %484 = vmatpush1.bf16.msra.mxu0 0
  %485 = vmatprep.subr.bf16.mxu0 0
  %486 = vmatpush1.bf16.msra.mxu0 0
  %487 = vmatprep.subr.bf16.mxu0 0
  %488 = vmatpush1.bf16.msra.mxu0 0
  %489 = vmatprep.subr.bf16.mxu0 0
  %490 = vmatpush1.bf16.msra.mxu0 0
  %491 = vmatprep.subr.bf16.mxu0 0
  %492 = vmatpush1.bf16.msra.mxu0 %v108
  %493 = vmatprep.subr.bf16.mxu0 0
  %494 = vmatpush1.bf16.msra.mxu0 %v107
  %495 = vmatprep.subr.bf16.mxu0 0
  %496 = vmatpush2.bf16.msra.mxu0 0
  %497 = vmatprep.subr.bf16.mxu0 0
  %498 = vmatpush2.bf16.msra.mxu0 0
  %499 = vmatprep.subr.bf16.mxu0 0
  %500 = vmatpush2.bf16.msra.mxu0 0
  %501 = vmatprep.subr.bf16.mxu0 0
  %502 = vmatpush2.bf16.msra.mxu0 0
  %503 = vmatprep.subr.bf16.mxu0 0
  %504 = vmatpush2.bf16.msra.mxu0 0
  %505 = vmatprep.subr.bf16.mxu0 0
  %506 = vmatpush2.bf16.msra.mxu0 0
  %507 = vmatprep.subr.bf16.mxu0 0
  %508 = vmatpush2.bf16.msra.mxu0 0
  %509 = vmatprep.subr.bf16.mxu0 0
  %510 = vmatpush2.bf16.msra.mxu0 0
  %511 = vmatprep.mubr.bf16.mxu0 0
  %512 = vmatmul.mubr.bf16.gmra.mxu0 %v477
  %v513 = vpop.f32.mrf.mxu0
  %v514 = vadd.f32 0.0, %v513
  %v515 = vpop.f32.mrf.mxu0
  %v516 = vpop.f32.mrf.mxu0
  %v517 = vpop.f32.mrf.mxu0
  %518 = vdwg.mxu0
  %v519 = vadd.f32 %v92, %v514
  %v520 = vxor.u32 %v519, 2147483648
  %v521 = vmul.f32 %v520, 1.442695
  %v522 = vpow.pop %v521
  %v523 = vadd.f32 %v522, 1.0
  %v524 = vrcp.pop %v523
  %v525 = vmul.f32 1.0, %v524
  %v526 = vtanh.pop %v519
  %v528 = vrot.slane %v464, 2
  %v530 = vmul.f32 %v525, %v528
  %532 = vrot.lane.b32.xlu0 %v526, 64
  %v533 = vpop.permute.xlu0 %532
  %v535 = vmul.f32 %v525, %v533
  %537 = vrot.lane.b32.xlu0 %v535, 32
  %v538 = vpop.permute.xlu0 %537
  %v540 = vadd.f32 %v530, %v538
  %v541 = vtanh.pop %v540
  %543 = vrot.lane.b32.xlu0 %v541, 64
  %v544 = vpop.permute.xlu0 %543
  %v546 = vmul.f32 %v525, %v544
  %v547 = vpack.c.bf16 %v546, %v546
  %549 = vrot.lane.b32.xlu0 %v547, 32
  %v550 = vpop.permute.xlu0 %549
  %v552 = vsel %vm109, %v550, 0
  %554 = vmatprep.subr.bf16.mxu0 0
  %555 = vmatpush1.bf16.msra.mxu0 0
  %556 = vmatprep.subr.bf16.mxu0 0
  %557 = vmatpush1.bf16.msra.mxu0 0
  %558 = vmatprep.subr.bf16.mxu0 0
  %559 = vmatpush1.bf16.msra.mxu0 0
  %560 = vmatprep.subr.bf16.mxu0 0
  %561 = vmatpush1.bf16.msra.mxu0 0
  %562 = vmatprep.subr.bf16.mxu0 0
  %563 = vmatpush1.bf16.msra.mxu0 0
  %564 = vmatprep.subr.bf16.mxu0 0
  %565 = vmatpush1.bf16.msra.mxu0 0
  %566 = vmatprep.subr.bf16.mxu0 0
  %567 = vmatpush1.bf16.msra.mxu0 %v108
  %568 = vmatprep.subr.bf16.mxu0 0
  %569 = vmatpush1.bf16.msra.mxu0 %v107
  %570 = vmatprep.subr.bf16.mxu0 0
  %571 = vmatpush2.bf16.msra.mxu0 0
  %572 = vmatprep.subr.bf16.mxu0 0
  %573 = vmatpush2.bf16.msra.mxu0 0
  %574 = vmatprep.subr.bf16.mxu0 0
  %575 = vmatpush2.bf16.msra.mxu0 0
  %576 = vmatprep.subr.bf16.mxu0 0
  %577 = vmatpush2.bf16.msra.mxu0 0
  %578 = vmatprep.subr.bf16.mxu0 0
  %579 = vmatpush2.bf16.msra.mxu0 0
  %580 = vmatprep.subr.bf16.mxu0 0
  %581 = vmatpush2.bf16.msra.mxu0 0
  %582 = vmatprep.subr.bf16.mxu0 0
  %583 = vmatpush2.bf16.msra.mxu0 0
  %584 = vmatprep.subr.bf16.mxu0 0
  %585 = vmatpush2.bf16.msra.mxu0 0
  %586 = vmatprep.mubr.bf16.mxu0 0
  %587 = vmatmul.mubr.bf16.gmra.mxu0 %v552
  %v588 = vpop.f32.mrf.mxu0
  %v589 = vadd.f32 0.0, %v588
  %v590 = vpop.f32.mrf.mxu0
  %v591 = vpop.f32.mrf.mxu0
  %v592 = vpop.f32.mrf.mxu0
  %593 = vdwg.mxu0
  %v595 = vrot.slane %v589, 2
  %v597 = vadd.f32 %v92, %v595
  %v598 = vadd.f32 %v97, %v595
  %v599 = vxor.u32 %v597, 2147483648
  %v600 = vxor.u32 %v598, 2147483648
  %v601 = vmul.f32 %v599, 1.442695
  %v602 = vpow.pop %v601
  %v603 = vmul.f32 %v600, 1.442695
  %v604 = vpow.pop %v603
  %v605 = vadd.f32 %v602, 1.0
  %v606 = vadd.f32 %v604, 1.0
  %v607 = vrcp.pop %v605
  %v608 = vmul.f32 1.0, %v607
  %v609 = vrcp.pop %v606
  %v610 = vmul.f32 1.0, %v609
  %v611 = vtanh.pop %v597
  %v612 = vtanh.pop %v598
  %v614 = vrot.slane %v540, 2
  %v616 = vmul.f32 %v608, %v614
  %v617 = vmul.f32 %v610, %v614
  %620 = vrot.lane.b32.xlu0 %v611, 64
  %v621 = vpop.permute.xlu0 %620
  %622 = vrot.lane.b32.xlu0 %v612, 64
  %v623 = vpop.permute.xlu0 %622
  %v626 = vmul.f32 %v608, %v621
  %v627 = vmul.f32 %v610, %v623
  %630 = vrot.lane.b32.xlu0 %v626, 32
  %v631 = vpop.permute.xlu0 %630
  %632 = vrot.lane.b32.xlu0 %v627, 32
  %v633 = vpop.permute.xlu0 %632
  %v636 = vadd.f32 %v616, %v631
  %v637 = vadd.f32 %v617, %v633
  %v638 = vtanh.pop %v636
  %v639 = vtanh.pop %v637
  %642 = vrot.lane.b32.xlu0 %v638, 64
  %v643 = vpop.permute.xlu0 %642
  %644 = vrot.lane.b32.xlu0 %v639, 64
  %v645 = vpop.permute.xlu0 %644
  %v648 = vmul.f32 %v608, %v643
  %v649 = vmul.f32 %v610, %v645
  %v650 = vpack.c.bf16 %v649, %v648
  %v652 = vrot.slane %v650, 3
  %653 = vrot.lane.b32.xlu0 %v652, 32
  %v654 = vpop.permute.xlu0 %653
  %v656 = vsel %vm109, %v654, 0
  %658 = vmatprep.subr.bf16.mxu0 0
  %659 = vmatpush1.bf16.msra.mxu0 0
  %660 = vmatprep.subr.bf16.mxu0 0
  %661 = vmatpush1.bf16.msra.mxu0 0
  %662 = vmatprep.subr.bf16.mxu0 0
  %663 = vmatpush1.bf16.msra.mxu0 0
  %664 = vmatprep.subr.bf16.mxu0 0
  %665 = vmatpush1.bf16.msra.mxu0 0
  %666 = vmatprep.subr.bf16.mxu0 0
  %667 = vmatpush1.bf16.msra.mxu0 0
  %668 = vmatprep.subr.bf16.mxu0 0
  %669 = vmatpush1.bf16.msra.mxu0 0
  %670 = vmatprep.subr.bf16.mxu0 0
  %671 = vmatpush1.bf16.msra.mxu0 %v108
  %672 = vmatprep.subr.bf16.mxu0 0
  %673 = vmatpush1.bf16.msra.mxu0 %v107
  %674 = vmatprep.subr.bf16.mxu0 0
  %675 = vmatpush2.bf16.msra.mxu0 0
  %676 = vmatprep.subr.bf16.mxu0 0
  %677 = vmatpush2.bf16.msra.mxu0 0
  %678 = vmatprep.subr.bf16.mxu0 0
  %679 = vmatpush2.bf16.msra.mxu0 0
  %680 = vmatprep.subr.bf16.mxu0 0
  %681 = vmatpush2.bf16.msra.mxu0 0
  %682 = vmatprep.subr.bf16.mxu0 0
  %683 = vmatpush2.bf16.msra.mxu0 0
  %684 = vmatprep.subr.bf16.mxu0 0
  %685 = vmatpush2.bf16.msra.mxu0 0
  %686 = vmatprep.subr.bf16.mxu0 0
  %687 = vmatpush2.bf16.msra.mxu0 0
  %688 = vmatprep.subr.bf16.mxu0 0
  %689 = vmatpush2.bf16.msra.mxu0 0
  %690 = vmatprep.mubr.bf16.mxu0 0
  %691 = vmatmul.mubr.bf16.gmra.mxu0 %v656
  %v692 = vpop.f32.mrf.mxu0
  %v693 = vadd.f32 0.0, %v692
  %v694 = vpop.f32.mrf.mxu0
  %v695 = vpop.f32.mrf.mxu0
  %v696 = vpop.f32.mrf.mxu0
  %697 = vdwg.mxu0
  %v699 = vrot.slane %v693, 4
  %v701 = vadd.f32 %v97, %v699
  %v702 = vadd.f32 %v100, %v699
  %v703 = vxor.u32 %v701, 2147483648
  %v704 = vxor.u32 %v702, 2147483648
  %v705 = vmul.f32 %v703, 1.442695
  %v706 = vpow.pop %v705
  %v707 = vmul.f32 %v704, 1.442695
  %v708 = vpow.pop %v707
  %v709 = vadd.f32 %v706, 1.0
  %v710 = vadd.f32 %v708, 1.0
  %v711 = vrcp.pop %v709
  %v712 = vmul.f32 1.0, %v711
  %v713 = vrcp.pop %v710
  %v714 = vmul.f32 1.0, %v713
  %v715 = vtanh.pop %v701
  %v716 = vtanh.pop %v702
  %v719 = vrot.slane %v636, 2
  %v720 = vrot.slane %v637, 2
  %v721 = vsel %vm42, %v719, %v720
  %v724 = vmul.f32 %v712, %v721
  %v725 = vmul.f32 %v714, %v720
  %728 = vrot.lane.b32.xlu0 %v715, 64
  %v729 = vpop.permute.xlu0 %728
  %730 = vrot.lane.b32.xlu0 %v716, 64
  %v731 = vpop.permute.xlu0 %730
  %v734 = vmul.f32 %v712, %v729
  %v735 = vmul.f32 %v714, %v731
  %738 = vrot.lane.b32.xlu0 %v734, 32
  %v739 = vpop.permute.xlu0 %738
  %740 = vrot.lane.b32.xlu0 %v735, 32
  %v741 = vpop.permute.xlu0 %740
  %v744 = vadd.f32 %v724, %v739
  %v745 = vadd.f32 %v725, %v741
  %v746 = vtanh.pop %v744
  %v747 = vtanh.pop %v745
  %750 = vrot.lane.b32.xlu0 %v746, 64
  %v751 = vpop.permute.xlu0 %750
  %752 = vrot.lane.b32.xlu0 %v747, 64
  %v753 = vpop.permute.xlu0 %752
  %v756 = vmul.f32 %v712, %v751
  %v757 = vmul.f32 %v714, %v753
  %v758 = vpack.c.bf16 %v757, %v756
  %v760 = vrot.slane %v758, 2
  %761 = vrot.lane.b32.xlu0 %v760, 32
  %v762 = vpop.permute.xlu0 %761
  %v764 = vsel %vm109, %v762, 0
  %766 = vmatprep.subr.bf16.mxu0 0
  %767 = vmatpush1.bf16.msra.mxu0 0
  %768 = vmatprep.subr.bf16.mxu0 0
  %769 = vmatpush1.bf16.msra.mxu0 0
  %770 = vmatprep.subr.bf16.mxu0 0
  %771 = vmatpush1.bf16.msra.mxu0 0
  %772 = vmatprep.subr.bf16.mxu0 0
  %773 = vmatpush1.bf16.msra.mxu0 0
  %774 = vmatprep.subr.bf16.mxu0 0
  %775 = vmatpush1.bf16.msra.mxu0 0
  %776 = vmatprep.subr.bf16.mxu0 0
  %777 = vmatpush1.bf16.msra.mxu0 0
  %778 = vmatprep.subr.bf16.mxu0 0
  %779 = vmatpush1.bf16.msra.mxu0 %v108
  %780 = vmatprep.subr.bf16.mxu0 0
  %781 = vmatpush1.bf16.msra.mxu0 %v107
  %782 = vmatprep.subr.bf16.mxu0 0
  %783 = vmatpush2.bf16.msra.mxu0 0
  %784 = vmatprep.subr.bf16.mxu0 0
  %785 = vmatpush2.bf16.msra.mxu0 0
  %786 = vmatprep.subr.bf16.mxu0 0
  %787 = vmatpush2.bf16.msra.mxu0 0
  %788 = vmatprep.subr.bf16.mxu0 0
  %789 = vmatpush2.bf16.msra.mxu0 0
  %790 = vmatprep.subr.bf16.mxu0 0
  %791 = vmatpush2.bf16.msra.mxu0 0
  %792 = vmatprep.subr.bf16.mxu0 0
  %793 = vmatpush2.bf16.msra.mxu0 0
  %794 = vmatprep.subr.bf16.mxu0 0
  %795 = vmatpush2.bf16.msra.mxu0 0
  %796 = vmatprep.subr.bf16.mxu0 0
  %797 = vmatpush2.bf16.msra.mxu0 0
  %798 = vmatprep.mubr.bf16.mxu0 0
  %799 = vmatmul.mubr.bf16.gmra.mxu0 %v764
  %v800 = vpop.f32.mrf.mxu0
  %v801 = vadd.f32 0.0, %v800
  %v802 = vpop.f32.mrf.mxu0
  %v803 = vpop.f32.mrf.mxu0
  %v804 = vpop.f32.mrf.mxu0
  %805 = vdwg.mxu0
  %v807 = vrot.slane %v801, 6
  %v809 = vadd.f32 %v100, %v807
  %v810 = vxor.u32 %v809, 2147483648
  %v811 = vmul.f32 %v810, 1.442695
  %v812 = vpow.pop %v811
  %v813 = vadd.f32 %v812, 1.0
  %v814 = vrcp.pop %v813
  %v815 = vmul.f32 1.0, %v814
  %v816 = vtanh.pop %v809
  %v819 = vrot.slane %v744, 2
  %v820 = vrot.slane %v745, 2
  %v821 = vsel %vm42, %v819, %v820
  %v823 = vmul.f32 %v815, %v821
  %825 = vrot.lane.b32.xlu0 %v816, 64
  %v826 = vpop.permute.xlu0 %825
  %v828 = vmul.f32 %v815, %v826
  %830 = vrot.lane.b32.xlu0 %v828, 32
  %v831 = vpop.permute.xlu0 %830
  %v833 = vadd.f32 %v823, %v831
  %v834 = vtanh.pop %v833
  %836 = vrot.lane.b32.xlu0 %v834, 64
  %v837 = vpop.permute.xlu0 %836
  %v839 = vmul.f32 %v815, %v837
  %v840 = vsel %vm42, %v177, %v279
  %vm841 = vcmask 1043456
  %v842 = vsel %vm841, %v280, %v387
  %vm843 = vcmask 1041408
  %v844 = vsel %vm843, %v388, %v470
  %v845 = vsel %vm42, %v546, %v648
  %v846 = vsel %vm841, %v649, %v756
  %v847 = vsel %vm843, %v757, %v839
  %v848 = vld [vmem:[%s2 + $0x38] sm:$0x1]
  %v849 = vld [vmem:[%s2 + $0x40] sm:$0x1]
  %856 = vrot.lane.b32.xlu0 %v840, 32
  %v857 = vpop.permute.xlu0 %856
  %858 = vrot.lane.b32.xlu0 %v842, 32
  %v859 = vpop.permute.xlu0 %858
  %860 = vrot.lane.b32.xlu0 %v844, 32
  %v861 = vpop.permute.xlu0 %860
  %862 = vrot.lane.b32.xlu0 %v845, 32
  %v863 = vpop.permute.xlu0 %862
  %864 = vrot.lane.b32.xlu0 %v846, 32
  %v865 = vpop.permute.xlu0 %864
  %866 = vrot.lane.b32.xlu0 %v847, 32
  %v867 = vpop.permute.xlu0 %866
  %v874 = vsel %vm109, %v857, 0.0
  %875 = vadd.xlane.f32.xlu0 %v874
  %v876 = vpop.xlane.xlu0 %875
  %v877 = vsel %vm109, %v859, 0.0
  %878 = vadd.xlane.f32.xlu0 %v877
  %v879 = vpop.xlane.xlu0 %878
  %v880 = vsel %vm109, %v861, 0.0
  %881 = vadd.xlane.f32.xlu0 %v880
  %v882 = vpop.xlane.xlu0 %881
  %v883 = vsel %vm109, %v863, 0.0
  %884 = vadd.xlane.f32.xlu0 %v883
  %v885 = vpop.xlane.xlu0 %884
  %v886 = vsel %vm109, %v865, 0.0
  %887 = vadd.xlane.f32.xlu0 %v886
  %v888 = vpop.xlane.xlu0 %887
  %v889 = vsel %vm109, %v867, 0.0
  %890 = vadd.xlane.f32.xlu0 %v889
  %v891 = vpop.xlane.xlu0 %890
  %v892 = vrcp.pop 32.0
  %v893 = vmul.f32 %v876, %v892
  %v894 = vmul.f32 %v879, %v892
  %v895 = vmul.f32 %v882, %v892
  %v896 = vmul.f32 %v885, %v892
  %v897 = vmul.f32 %v888, %v892
  %v898 = vmul.f32 %v891, %v892
  %v899 = vsub.f32 %v840, %v893
  %v900 = vsub.f32 %v842, %v894
  %v901 = vsub.f32 %v844, %v895
  %v902 = vsub.f32 %v845, %v896
  %v903 = vsub.f32 %v846, %v897
  %v904 = vsub.f32 %v847, %v898
  %v905 = vmul.f32 %v899, %v899
  %v906 = vmul.f32 %v900, %v900
  %v907 = vmul.f32 %v901, %v901
  %v908 = vmul.f32 %v902, %v902
  %v909 = vmul.f32 %v903, %v903
  %v910 = vmul.f32 %v904, %v904
  %917 = vrot.lane.b32.xlu0 %v905, 32
  %v918 = vpop.permute.xlu0 %917
  %919 = vrot.lane.b32.xlu0 %v906, 32
  %v920 = vpop.permute.xlu0 %919
  %921 = vrot.lane.b32.xlu0 %v907, 32
  %v922 = vpop.permute.xlu0 %921
  %923 = vrot.lane.b32.xlu0 %v908, 32
  %v924 = vpop.permute.xlu0 %923
  %925 = vrot.lane.b32.xlu0 %v909, 32
  %v926 = vpop.permute.xlu0 %925
  %927 = vrot.lane.b32.xlu0 %v910, 32
  %v928 = vpop.permute.xlu0 %927
  %v935 = vsel %vm109, %v918, 0.0
  %936 = vadd.xlane.f32.xlu0 %v935
  %v937 = vpop.xlane.xlu0 %936
  %v938 = vsel %vm109, %v920, 0.0
  %939 = vadd.xlane.f32.xlu0 %v938
  %v940 = vpop.xlane.xlu0 %939
  %v941 = vsel %vm109, %v922, 0.0
  %942 = vadd.xlane.f32.xlu0 %v941
  %v943 = vpop.xlane.xlu0 %942
  %v944 = vsel %vm109, %v924, 0.0
  %945 = vadd.xlane.f32.xlu0 %v944
  %v946 = vpop.xlane.xlu0 %945
  %v947 = vsel %vm109, %v926, 0.0
  %948 = vadd.xlane.f32.xlu0 %v947
  %v949 = vpop.xlane.xlu0 %948
  %v950 = vsel %vm109, %v928, 0.0
  %951 = vadd.xlane.f32.xlu0 %v950
  %v952 = vpop.xlane.xlu0 %951
  %v953 = vmul.f32 %v937, %v892
  %v954 = vmul.f32 %v940, %v892
  %v955 = vmul.f32 %v943, %v892
  %v956 = vmul.f32 %v946, %v892
  %v957 = vmul.f32 %v949, %v892
  %v958 = vmul.f32 %v952, %v892
  %v959 = vadd.f32 %v953, 1e-05
  %v960 = vadd.f32 %v954, 1e-05
  %v961 = vadd.f32 %v955, 1e-05
  %v962 = vadd.f32 %v956, 1e-05
  %v963 = vadd.f32 %v957, 1e-05
  %v964 = vadd.f32 %v958, 1e-05
  %v965 = vrsqrt.pop %v959
  %v966 = vrsqrt.pop %v960
  %v967 = vrsqrt.pop %v961
  %v968 = vrsqrt.pop %v962
  %v969 = vrsqrt.pop %v963
  %v970 = vrsqrt.pop %v964
  %v971 = vmul.f32 %v899, %v965
  %v972 = vmul.f32 %v900, %v966
  %v973 = vmul.f32 %v901, %v967
  %v974 = vmul.f32 %v902, %v968
  %v975 = vmul.f32 %v903, %v969
  %v976 = vmul.f32 %v904, %v970
  %v977 = vlaneseq
  %v978 = vshrl.u32 %v977, 7
  %v979 = vsub.s32 0, %v978
  %v980 = vrot.slane %v848, %v979
  %982 = vrot.lane.b32.xlu0 %v980, 96
  %v983 = vpop.permute.xlu0 %982
  %v985 = vmul.f32 %v971, %v983
  %v986 = vmul.f32 %v972, %v983
  %v987 = vmul.f32 %v973, %v983
  %v988 = vmul.f32 %v974, %v983
  %v989 = vmul.f32 %v975, %v983
  %v990 = vmul.f32 %v976, %v983
  %v991 = vlaneseq
  %v992 = vshrl.u32 %v991, 7
  %v993 = vsub.s32 0, %v992
  %v994 = vrot.slane %v849, %v993
  %996 = vrot.lane.b32.xlu0 %v994, 96
  %v997 = vpop.permute.xlu0 %996
  %v999 = vadd.f32 %v985, %v997
  %v1000 = vadd.f32 %v986, %v997
  %v1001 = vadd.f32 %v987, %v997
  %v1002 = vadd.f32 %v988, %v997
  %v1003 = vadd.f32 %v989, %v997
  %v1004 = vadd.f32 %v990, %v997
  %v1005 = vld [vmem:[%s2 + $0x48] sm:$0xff]
  %v1006 = vld [vmem:[%s2 + $0x50] sm:$0xff]
  %v1007 = vld [vmem:[%s2 + $0x58] sm:$0xff]
  %v1008 = vld [vmem:[%s2 + $0x60] sm:$0xff]
  %v1009 = vpack.c.bf16 %v1000, %v999
  %v1010 = vpack.c.bf16 %v1002, %v1001
  %v1011 = vpack.c.bf16 %v1004, %v1003
  %v1012 = vpack.c.bf16 %v1006, %v1005
  %v1013 = vpack.c.bf16 %v1008, %v1007
  %v1014 = vld [vmem:[%s2 + $0x88] sm:$0x1]
  %v1015 = vlaneseq
  %v1016 = vshrl.u32 %v1015, 7
  %v1017 = vsub.s32 0, %v1016
  %v1018 = vrot.slane %v1014, %v1017
  %1022 = vrot.lane.b32.xlu0 %v1009, 32
  %v1023 = vpop.permute.xlu0 %1022
  %1024 = vrot.lane.b32.xlu0 %v1010, 32
  %v1025 = vpop.permute.xlu0 %1024
  %1026 = vrot.lane.b32.xlu0 %v1011, 32
  %v1027 = vpop.permute.xlu0 %1026
  %v1029 = vsel %vm109, %v1023, 0
  %v1032 = vsel %vm109, %v1025, 0
  %v1035 = vsel %vm109, %v1027, 0
  %1037 = vmatprep.subr.bf16.mxu0 0
  %1038 = vmatpush1.bf16.msra.mxu0 0
  %1039 = vmatprep.subr.bf16.mxu0 0
  %1040 = vmatpush1.bf16.msra.mxu0 0
  %1041 = vmatprep.subr.bf16.mxu0 0
  %1042 = vmatpush1.bf16.msra.mxu0 0
  %1043 = vmatprep.subr.bf16.mxu0 0
  %1044 = vmatpush1.bf16.msra.mxu0 0
  %1045 = vmatprep.subr.bf16.mxu0 0
  %1046 = vmatpush1.bf16.msra.mxu0 0
  %1047 = vmatprep.subr.bf16.mxu0 0
  %1048 = vmatpush1.bf16.msra.mxu0 0
  %1049 = vmatprep.subr.bf16.mxu0 0
  %1050 = vmatpush1.bf16.msra.mxu0 %v1013
  %1051 = vmatprep.subr.bf16.mxu0 0
  %1052 = vmatpush1.bf16.msra.mxu0 %v1012
  %1053 = vmatprep.subr.bf16.mxu0 0
  %1054 = vmatpush2.bf16.msra.mxu0 0
  %1055 = vmatprep.subr.bf16.mxu0 0
  %1056 = vmatpush2.bf16.msra.mxu0 0
  %1057 = vmatprep.subr.bf16.mxu0 0
  %1058 = vmatpush2.bf16.msra.mxu0 0
  %1059 = vmatprep.subr.bf16.mxu0 0
  %1060 = vmatpush2.bf16.msra.mxu0 0
  %1061 = vmatprep.subr.bf16.mxu0 0
  %1062 = vmatpush2.bf16.msra.mxu0 0
  %1063 = vmatprep.subr.bf16.mxu0 0
  %1064 = vmatpush2.bf16.msra.mxu0 0
  %1065 = vmatprep.subr.bf16.mxu0 0
  %1066 = vmatpush2.bf16.msra.mxu0 0
  %1067 = vmatprep.subr.bf16.mxu0 0
  %1068 = vmatpush2.bf16.msra.mxu0 0
  %1069 = vmatprep.mubr.bf16.mxu0 0
  %1070 = vmatmul.mubr.bf16.gmra.mxu0 %v1029
  %v1071 = vpop.f32.mrf.mxu0
  %v1072 = vadd.f32 %v1018, %v1071
  %v1073 = vpop.f32.mrf.mxu0
  %v1074 = vpop.f32.mrf.mxu0
  %v1075 = vadd.f32 %v1018, %v1074
  %v1076 = vpop.f32.mrf.mxu0
  %1077 = vmatprep.mubr.bf16.mxu0 0
  %1078 = vmatmul.mubr.bf16.gmra.mxu0 %v1032
  %v1079 = vpop.f32.mrf.mxu0
  %v1080 = vadd.f32 %v1018, %v1079
  %v1081 = vpop.f32.mrf.mxu0
  %v1082 = vpop.f32.mrf.mxu0
  %v1083 = vadd.f32 %v1018, %v1082
  %v1084 = vpop.f32.mrf.mxu0
  %1085 = vmatprep.mubr.bf16.mxu0 0
  %1086 = vmatmul.mubr.bf16.gmra.mxu0 %v1035
  %v1087 = vpop.f32.mrf.mxu0
  %v1088 = vadd.f32 %v1018, %v1087
  %v1089 = vpop.f32.mrf.mxu0
  %v1090 = vpop.f32.mrf.mxu0
  %v1091 = vadd.f32 %v1018, %v1090
  %v1092 = vpop.f32.mrf.mxu0
  %1093 = vdwg.mxu0
  %v1094 = vld [vmem:[%s2 + $0x68] sm:$0xff]
  %v1095 = vld [vmem:[%s2 + $0x70] sm:$0xff]
  %v1096 = vld [vmem:[%s2 + $0x78] sm:$0xff]
  %v1097 = vld [vmem:[%s2 + $0x80] sm:$0xff]
  %v1098 = vpack.c.bf16 %v1095, %v1094
  %v1099 = vpack.c.bf16 %v1097, %v1096
  %1100 = vmatprep.subr.bf16.mxu0 0
  %1101 = vmatpush1.bf16.msra.mxu0 0
  %1102 = vmatprep.subr.bf16.mxu0 0
  %1103 = vmatpush1.bf16.msra.mxu0 0
  %1104 = vmatprep.subr.bf16.mxu0 0
  %1105 = vmatpush1.bf16.msra.mxu0 0
  %1106 = vmatprep.subr.bf16.mxu0 0
  %1107 = vmatpush1.bf16.msra.mxu0 0
  %1108 = vmatprep.subr.bf16.mxu0 0
  %1109 = vmatpush1.bf16.msra.mxu0 0
  %1110 = vmatprep.subr.bf16.mxu0 0
  %1111 = vmatpush1.bf16.msra.mxu0 0
  %1112 = vmatprep.subr.bf16.mxu0 0
  %1113 = vmatpush1.bf16.msra.mxu0 %v1099
  %1114 = vmatprep.subr.bf16.mxu0 0
  %1115 = vmatpush1.bf16.msra.mxu0 %v1098
  %1116 = vmatprep.subr.bf16.mxu0 0
  %1117 = vmatpush2.bf16.msra.mxu0 0
  %1118 = vmatprep.subr.bf16.mxu0 0
  %1119 = vmatpush2.bf16.msra.mxu0 0
  %1120 = vmatprep.subr.bf16.mxu0 0
  %1121 = vmatpush2.bf16.msra.mxu0 0
  %1122 = vmatprep.subr.bf16.mxu0 0
  %1123 = vmatpush2.bf16.msra.mxu0 0
  %1124 = vmatprep.subr.bf16.mxu0 0
  %1125 = vmatpush2.bf16.msra.mxu0 0
  %1126 = vmatprep.subr.bf16.mxu0 0
  %1127 = vmatpush2.bf16.msra.mxu0 0
  %1128 = vmatprep.subr.bf16.mxu0 0
  %1129 = vmatpush2.bf16.msra.mxu0 0
  %1130 = vmatprep.subr.bf16.mxu0 0
  %1131 = vmatpush2.bf16.msra.mxu0 0
  %1132 = vmatprep.mubr.bf16.mxu0 0
  %1133 = vmatmul.mubr.bf16.gmra.mxu0 %v111
  %v1134 = vpop.f32.mrf.mxu0
  %v1135 = vadd.f32 0.0, %v1134
  %v1136 = vpop.f32.mrf.mxu0
  %v1137 = vpop.f32.mrf.mxu0
  %v1138 = vpop.f32.mrf.mxu0
  %1139 = vdwg.mxu0
  %v1140 = vadd.f32 %v1072, %v1135
  %v1141 = vxor.u32 %v1140, 2147483648
  %v1142 = vmul.f32 %v1141, 1.442695
  %v1143 = vpow.pop %v1142
  %v1144 = vadd.f32 %v1143, 1.0
  %v1145 = vrcp.pop %v1144
  %v1146 = vmul.f32 1.0, %v1145
  %v1147 = vtanh.pop %v1140
  %v1148 = vmul.f32 %v1146, 0.0
  %1150 = vrot.lane.b32.xlu0 %v1147, 64
  %v1151 = vpop.permute.xlu0 %1150
  %v1153 = vmul.f32 %v1146, %v1151
  %1155 = vrot.lane.b32.xlu0 %v1153, 32
  %v1156 = vpop.permute.xlu0 %1155
  %v1158 = vadd.f32 %v1148, %v1156
  %v1159 = vtanh.pop %v1158
  %1161 = vrot.lane.b32.xlu0 %v1159, 64
  %v1162 = vpop.permute.xlu0 %1161
  %v1164 = vmul.f32 %v1146, %v1162
  %v1165 = vpack.c.bf16 %v1164, %v1164
  %1167 = vrot.lane.b32.xlu0 %v1165, 32
  %v1168 = vpop.permute.xlu0 %1167
  %v1170 = vsel %vm109, %v1168, 0
  %1172 = vmatprep.subr.bf16.mxu0 0
  %1173 = vmatpush1.bf16.msra.mxu0 0
  %1174 = vmatprep.subr.bf16.mxu0 0
  %1175 = vmatpush1.bf16.msra.mxu0 0
  %1176 = vmatprep.subr.bf16.mxu0 0
  %1177 = vmatpush1.bf16.msra.mxu0 0
  %1178 = vmatprep.subr.bf16.mxu0 0
  %1179 = vmatpush1.bf16.msra.mxu0 0
  %1180 = vmatprep.subr.bf16.mxu0 0
  %1181 = vmatpush1.bf16.msra.mxu0 0
  %1182 = vmatprep.subr.bf16.mxu0 0
  %1183 = vmatpush1.bf16.msra.mxu0 0
  %1184 = vmatprep.subr.bf16.mxu0 0
  %1185 = vmatpush1.bf16.msra.mxu0 %v1099
  %1186 = vmatprep.subr.bf16.mxu0 0
  %1187 = vmatpush1.bf16.msra.mxu0 %v1098
  %1188 = vmatprep.subr.bf16.mxu0 0
  %1189 = vmatpush2.bf16.msra.mxu0 0
  %1190 = vmatprep.subr.bf16.mxu0 0
  %1191 = vmatpush2.bf16.msra.mxu0 0
  %1192 = vmatprep.subr.bf16.mxu0 0
  %1193 = vmatpush2.bf16.msra.mxu0 0
  %1194 = vmatprep.subr.bf16.mxu0 0
  %1195 = vmatpush2.bf16.msra.mxu0 0
  %1196 = vmatprep.subr.bf16.mxu0 0
  %1197 = vmatpush2.bf16.msra.mxu0 0
  %1198 = vmatprep.subr.bf16.mxu0 0
  %1199 = vmatpush2.bf16.msra.mxu0 0
  %1200 = vmatprep.subr.bf16.mxu0 0
  %1201 = vmatpush2.bf16.msra.mxu0 0
  %1202 = vmatprep.subr.bf16.mxu0 0
  %1203 = vmatpush2.bf16.msra.mxu0 0
  %1204 = vmatprep.mubr.bf16.mxu0 0
  %1205 = vmatmul.mubr.bf16.gmra.mxu0 %v1170
  %v1206 = vpop.f32.mrf.mxu0
  %v1207 = vadd.f32 0.0, %v1206
  %v1208 = vpop.f32.mrf.mxu0
  %v1209 = vpop.f32.mrf.mxu0
  %v1210 = vpop.f32.mrf.mxu0
  %1211 = vdwg.mxu0
  %v1213 = vrot.slane %v1207, 2
  %v1215 = vadd.f32 %v1072, %v1213
  %v1216 = vadd.f32 %v1075, %v1213
  %v1217 = vxor.u32 %v1215, 2147483648
  %v1218 = vxor.u32 %v1216, 2147483648
  %v1219 = vmul.f32 %v1217, 1.442695
  %v1220 = vpow.pop %v1219
  %v1221 = vmul.f32 %v1218, 1.442695
  %v1222 = vpow.pop %v1221
  %v1223 = vadd.f32 %v1220, 1.0
  %v1224 = vadd.f32 %v1222, 1.0
  %v1225 = vrcp.pop %v1223
  %v1226 = vmul.f32 1.0, %v1225
  %v1227 = vrcp.pop %v1224
  %v1228 = vmul.f32 1.0, %v1227
  %v1229 = vtanh.pop %v1215
  %v1230 = vtanh.pop %v1216
  %v1232 = vrot.slane %v1158, 2
  %v1234 = vmul.f32 %v1226, %v1232
  %v1235 = vmul.f32 %v1228, %v1232
  %1238 = vrot.lane.b32.xlu0 %v1229, 64
  %v1239 = vpop.permute.xlu0 %1238
  %1240 = vrot.lane.b32.xlu0 %v1230, 64
  %v1241 = vpop.permute.xlu0 %1240
  %v1244 = vmul.f32 %v1226, %v1239
  %v1245 = vmul.f32 %v1228, %v1241
  %1248 = vrot.lane.b32.xlu0 %v1244, 32
  %v1249 = vpop.permute.xlu0 %1248
  %1250 = vrot.lane.b32.xlu0 %v1245, 32
  %v1251 = vpop.permute.xlu0 %1250
  %v1254 = vadd.f32 %v1234, %v1249
  %v1255 = vadd.f32 %v1235, %v1251
  %v1256 = vtanh.pop %v1254
  %v1257 = vtanh.pop %v1255
  %1260 = vrot.lane.b32.xlu0 %v1256, 64
  %v1261 = vpop.permute.xlu0 %1260
  %1262 = vrot.lane.b32.xlu0 %v1257, 64
  %v1263 = vpop.permute.xlu0 %1262
  %v1266 = vmul.f32 %v1226, %v1261
  %v1267 = vmul.f32 %v1228, %v1263
  %v1268 = vpack.c.bf16 %v1267, %v1266
  %v1270 = vrot.slane %v1268, 3
  %1271 = vrot.lane.b32.xlu0 %v1270, 32
  %v1272 = vpop.permute.xlu0 %1271
  %v1274 = vsel %vm109, %v1272, 0
  %1276 = vmatprep.subr.bf16.mxu0 0
  %1277 = vmatpush1.bf16.msra.mxu0 0
  %1278 = vmatprep.subr.bf16.mxu0 0
  %1279 = vmatpush1.bf16.msra.mxu0 0
  %1280 = vmatprep.subr.bf16.mxu0 0
  %1281 = vmatpush1.bf16.msra.mxu0 0
  %1282 = vmatprep.subr.bf16.mxu0 0
  %1283 = vmatpush1.bf16.msra.mxu0 0
  %1284 = vmatprep.subr.bf16.mxu0 0
  %1285 = vmatpush1.bf16.msra.mxu0 0
  %1286 = vmatprep.subr.bf16.mxu0 0
  %1287 = vmatpush1.bf16.msra.mxu0 0
  %1288 = vmatprep.subr.bf16.mxu0 0
  %1289 = vmatpush1.bf16.msra.mxu0 %v1099
  %1290 = vmatprep.subr.bf16.mxu0 0
  %1291 = vmatpush1.bf16.msra.mxu0 %v1098
  %1292 = vmatprep.subr.bf16.mxu0 0
  %1293 = vmatpush2.bf16.msra.mxu0 0
  %1294 = vmatprep.subr.bf16.mxu0 0
  %1295 = vmatpush2.bf16.msra.mxu0 0
  %1296 = vmatprep.subr.bf16.mxu0 0
  %1297 = vmatpush2.bf16.msra.mxu0 0
  %1298 = vmatprep.subr.bf16.mxu0 0
  %1299 = vmatpush2.bf16.msra.mxu0 0
  %1300 = vmatprep.subr.bf16.mxu0 0
  %1301 = vmatpush2.bf16.msra.mxu0 0
  %1302 = vmatprep.subr.bf16.mxu0 0
  %1303 = vmatpush2.bf16.msra.mxu0 0
  %1304 = vmatprep.subr.bf16.mxu0 0
  %1305 = vmatpush2.bf16.msra.mxu0 0
  %1306 = vmatprep.subr.bf16.mxu0 0
  %1307 = vmatpush2.bf16.msra.mxu0 0
  %1308 = vmatprep.mubr.bf16.mxu0 0
  %1309 = vmatmul.mubr.bf16.gmra.mxu0 %v1274
  %v1310 = vpop.f32.mrf.mxu0
  %v1311 = vadd.f32 0.0, %v1310
  %v1312 = vpop.f32.mrf.mxu0
  %v1313 = vpop.f32.mrf.mxu0
  %v1314 = vpop.f32.mrf.mxu0
  %1315 = vdwg.mxu0
  %v1317 = vrot.slane %v1311, 4
  %v1319 = vadd.f32 %v1075, %v1317
  %v1320 = vadd.f32 %v1080, %v1317
  %v1321 = vxor.u32 %v1319, 2147483648
  %v1322 = vxor.u32 %v1320, 2147483648
  %v1323 = vmul.f32 %v1321, 1.442695
  %v1324 = vpow.pop %v1323
  %v1325 = vmul.f32 %v1322, 1.442695
  %v1326 = vpow.pop %v1325
  %v1327 = vadd.f32 %v1324, 1.0
  %v1328 = vadd.f32 %v1326, 1.0
  %v1329 = vrcp.pop %v1327
  %v1330 = vmul.f32 1.0, %v1329
  %v1331 = vrcp.pop %v1328
  %v1332 = vmul.f32 1.0, %v1331
  %v1333 = vtanh.pop %v1319
  %v1334 = vtanh.pop %v1320
  %v1337 = vrot.slane %v1254, 2
  %v1338 = vrot.slane %v1255, 2
  %v1339 = vsel %vm42, %v1337, %v1338
  %v1342 = vmul.f32 %v1330, %v1339
  %v1343 = vmul.f32 %v1332, %v1338
  %1346 = vrot.lane.b32.xlu0 %v1333, 64
  %v1347 = vpop.permute.xlu0 %1346
  %1348 = vrot.lane.b32.xlu0 %v1334, 64
  %v1349 = vpop.permute.xlu0 %1348
  %v1352 = vmul.f32 %v1330, %v1347
  %v1353 = vmul.f32 %v1332, %v1349
  %1356 = vrot.lane.b32.xlu0 %v1352, 32
  %v1357 = vpop.permute.xlu0 %1356
  %1358 = vrot.lane.b32.xlu0 %v1353, 32
  %v1359 = vpop.permute.xlu0 %1358
  %v1362 = vadd.f32 %v1342, %v1357
  %v1363 = vadd.f32 %v1343, %v1359
  %v1364 = vtanh.pop %v1362
  %v1365 = vtanh.pop %v1363
  %1368 = vrot.lane.b32.xlu0 %v1364, 64
  %v1369 = vpop.permute.xlu0 %1368
  %1370 = vrot.lane.b32.xlu0 %v1365, 64
  %v1371 = vpop.permute.xlu0 %1370
  %v1374 = vmul.f32 %v1330, %v1369
  %v1375 = vmul.f32 %v1332, %v1371
  %v1376 = vpack.c.bf16 %v1375, %v1374
  %v1378 = vrot.slane %v1376, 2
  %1379 = vrot.lane.b32.xlu0 %v1378, 32
  %v1380 = vpop.permute.xlu0 %1379
  %v1382 = vsel %vm109, %v1380, 0
  %1384 = vmatprep.subr.bf16.mxu0 0
  %1385 = vmatpush1.bf16.msra.mxu0 0
  %1386 = vmatprep.subr.bf16.mxu0 0
  %1387 = vmatpush1.bf16.msra.mxu0 0
  %1388 = vmatprep.subr.bf16.mxu0 0
  %1389 = vmatpush1.bf16.msra.mxu0 0
  %1390 = vmatprep.subr.bf16.mxu0 0
  %1391 = vmatpush1.bf16.msra.mxu0 0
  %1392 = vmatprep.subr.bf16.mxu0 0
  %1393 = vmatpush1.bf16.msra.mxu0 0
  %1394 = vmatprep.subr.bf16.mxu0 0
  %1395 = vmatpush1.bf16.msra.mxu0 0
  %1396 = vmatprep.subr.bf16.mxu0 0
  %1397 = vmatpush1.bf16.msra.mxu0 %v1099
  %1398 = vmatprep.subr.bf16.mxu0 0
  %1399 = vmatpush1.bf16.msra.mxu0 %v1098
  %1400 = vmatprep.subr.bf16.mxu0 0
  %1401 = vmatpush2.bf16.msra.mxu0 0
  %1402 = vmatprep.subr.bf16.mxu0 0
  %1403 = vmatpush2.bf16.msra.mxu0 0
  %1404 = vmatprep.subr.bf16.mxu0 0
  %1405 = vmatpush2.bf16.msra.mxu0 0
  %1406 = vmatprep.subr.bf16.mxu0 0
  %1407 = vmatpush2.bf16.msra.mxu0 0
  %1408 = vmatprep.subr.bf16.mxu0 0
  %1409 = vmatpush2.bf16.msra.mxu0 0
  %1410 = vmatprep.subr.bf16.mxu0 0
  %1411 = vmatpush2.bf16.msra.mxu0 0
  %1412 = vmatprep.subr.bf16.mxu0 0
  %1413 = vmatpush2.bf16.msra.mxu0 0
  %1414 = vmatprep.subr.bf16.mxu0 0
  %1415 = vmatpush2.bf16.msra.mxu0 0
  %1416 = vmatprep.mubr.bf16.mxu0 0
  %1417 = vmatmul.mubr.bf16.gmra.mxu0 %v1382
  %v1418 = vpop.f32.mrf.mxu0
  %v1419 = vadd.f32 0.0, %v1418
  %v1420 = vpop.f32.mrf.mxu0
  %v1421 = vpop.f32.mrf.mxu0
  %v1422 = vpop.f32.mrf.mxu0
  %1423 = vdwg.mxu0
  %v1425 = vrot.slane %v1419, 6
  %v1427 = vadd.f32 %v1080, %v1425
  %v1428 = vxor.u32 %v1427, 2147483648
  %v1429 = vmul.f32 %v1428, 1.442695
  %v1430 = vpow.pop %v1429
  %v1431 = vadd.f32 %v1430, 1.0
  %v1432 = vrcp.pop %v1431
  %v1433 = vmul.f32 1.0, %v1432
  %v1434 = vtanh.pop %v1427
  %v1437 = vrot.slane %v1362, 2
  %v1438 = vrot.slane %v1363, 2
  %v1439 = vsel %vm42, %v1437, %v1438
  %v1441 = vmul.f32 %v1433, %v1439
  %1443 = vrot.lane.b32.xlu0 %v1434, 64
  %v1444 = vpop.permute.xlu0 %1443
  %v1446 = vmul.f32 %v1433, %v1444
  %1448 = vrot.lane.b32.xlu0 %v1446, 32
  %v1449 = vpop.permute.xlu0 %1448
  %v1451 = vadd.f32 %v1441, %v1449
  %v1452 = vtanh.pop %v1451
  %1454 = vrot.lane.b32.xlu0 %v1452, 64
  %v1455 = vpop.permute.xlu0 %1454
  %v1457 = vmul.f32 %v1433, %v1455
  %v1458 = vpack.c.bf16 %v1457, %v1457
  %v1460 = vrot.slane %v1458, 1
  %1461 = vrot.lane.b32.xlu0 %v1460, 32
  %v1462 = vpop.permute.xlu0 %1461
  %v1464 = vsel %vm109, %v1462, 0
  %1466 = vmatprep.subr.bf16.mxu0 0
  %1467 = vmatpush1.bf16.msra.mxu0 0
  %1468 = vmatprep.subr.bf16.mxu0 0
  %1469 = vmatpush1.bf16.msra.mxu0 0
  %1470 = vmatprep.subr.bf16.mxu0 0
  %1471 = vmatpush1.bf16.msra.mxu0 0
  %1472 = vmatprep.subr.bf16.mxu0 0
  %1473 = vmatpush1.bf16.msra.mxu0 0
  %1474 = vmatprep.subr.bf16.mxu0 0
  %1475 = vmatpush1.bf16.msra.mxu0 0
  %1476 = vmatprep.subr.bf16.mxu0 0
  %1477 = vmatpush1.bf16.msra.mxu0 0
  %1478 = vmatprep.subr.bf16.mxu0 0
  %1479 = vmatpush1.bf16.msra.mxu0 %v1099
  %1480 = vmatprep.subr.bf16.mxu0 0
  %1481 = vmatpush1.bf16.msra.mxu0 %v1098
  %1482 = vmatprep.subr.bf16.mxu0 0
  %1483 = vmatpush2.bf16.msra.mxu0 0
  %1484 = vmatprep.subr.bf16.mxu0 0
  %1485 = vmatpush2.bf16.msra.mxu0 0
  %1486 = vmatprep.subr.bf16.mxu0 0
  %1487 = vmatpush2.bf16.msra.mxu0 0
  %1488 = vmatprep.subr.bf16.mxu0 0
  %1489 = vmatpush2.bf16.msra.mxu0 0
  %1490 = vmatprep.subr.bf16.mxu0 0
  %1491 = vmatpush2.bf16.msra.mxu0 0
  %1492 = vmatprep.subr.bf16.mxu0 0
  %1493 = vmatpush2.bf16.msra.mxu0 0
  %1494 = vmatprep.subr.bf16.mxu0 0
  %1495 = vmatpush2.bf16.msra.mxu0 0
  %1496 = vmatprep.subr.bf16.mxu0 0
  %1497 = vmatpush2.bf16.msra.mxu0 0
  %1498 = vmatprep.mubr.bf16.mxu0 0
  %1499 = vmatmul.mubr.bf16.gmra.mxu0 %v1464
  %v1500 = vpop.f32.mrf.mxu0
  %v1501 = vadd.f32 0.0, %v1500
  %v1502 = vpop.f32.mrf.mxu0
  %v1503 = vpop.f32.mrf.mxu0
  %v1504 = vpop.f32.mrf.mxu0
  %1505 = vdwg.mxu0
  %v1506 = vadd.f32 %v1083, %v1501
  %v1507 = vxor.u32 %v1506, 2147483648
  %v1508 = vmul.f32 %v1507, 1.442695
  %v1509 = vpow.pop %v1508
  %v1510 = vadd.f32 %v1509, 1.0
  %v1511 = vrcp.pop %v1510
  %v1512 = vmul.f32 1.0, %v1511
  %v1513 = vtanh.pop %v1506
  %v1515 = vrot.slane %v1451, 2
  %v1517 = vmul.f32 %v1512, %v1515
  %1519 = vrot.lane.b32.xlu0 %v1513, 64
  %v1520 = vpop.permute.xlu0 %1519
  %v1522 = vmul.f32 %v1512, %v1520
  %1524 = vrot.lane.b32.xlu0 %v1522, 32
  %v1525 = vpop.permute.xlu0 %1524
  %v1527 = vadd.f32 %v1517, %v1525
  %v1528 = vtanh.pop %v1527
  %1530 = vrot.lane.b32.xlu0 %v1528, 64
  %v1531 = vpop.permute.xlu0 %1530
  %v1533 = vmul.f32 %v1512, %v1531
  %v1534 = vpack.c.bf16 %v1533, %v1533
  %1536 = vrot.lane.b32.xlu0 %v1534, 32
  %v1537 = vpop.permute.xlu0 %1536
  %v1539 = vsel %vm109, %v1537, 0
  %1541 = vmatprep.subr.bf16.mxu0 0
  %1542 = vmatpush1.bf16.msra.mxu0 0
  %1543 = vmatprep.subr.bf16.mxu0 0
  %1544 = vmatpush1.bf16.msra.mxu0 0
  %1545 = vmatprep.subr.bf16.mxu0 0
  %1546 = vmatpush1.bf16.msra.mxu0 0
  %1547 = vmatprep.subr.bf16.mxu0 0
  %1548 = vmatpush1.bf16.msra.mxu0 0
  %1549 = vmatprep.subr.bf16.mxu0 0
  %1550 = vmatpush1.bf16.msra.mxu0 0
  %1551 = vmatprep.subr.bf16.mxu0 0
  %1552 = vmatpush1.bf16.msra.mxu0 0
  %1553 = vmatprep.subr.bf16.mxu0 0
  %1554 = vmatpush1.bf16.msra.mxu0 %v1099
  %1555 = vmatprep.subr.bf16.mxu0 0
  %1556 = vmatpush1.bf16.msra.mxu0 %v1098
  %1557 = vmatprep.subr.bf16.mxu0 0
  %1558 = vmatpush2.bf16.msra.mxu0 0
  %1559 = vmatprep.subr.bf16.mxu0 0
  %1560 = vmatpush2.bf16.msra.mxu0 0
  %1561 = vmatprep.subr.bf16.mxu0 0
  %1562 = vmatpush2.bf16.msra.mxu0 0
  %1563 = vmatprep.subr.bf16.mxu0 0
  %1564 = vmatpush2.bf16.msra.mxu0 0
  %1565 = vmatprep.subr.bf16.mxu0 0
  %1566 = vmatpush2.bf16.msra.mxu0 0
  %1567 = vmatprep.subr.bf16.mxu0 0
  %1568 = vmatpush2.bf16.msra.mxu0 0
  %1569 = vmatprep.subr.bf16.mxu0 0
  %1570 = vmatpush2.bf16.msra.mxu0 0
  %1571 = vmatprep.subr.bf16.mxu0 0
  %1572 = vmatpush2.bf16.msra.mxu0 0
  %1573 = vmatprep.mubr.bf16.mxu0 0
  %1574 = vmatmul.mubr.bf16.gmra.mxu0 %v1539
  %v1575 = vpop.f32.mrf.mxu0
  %v1576 = vadd.f32 0.0, %v1575
  %v1577 = vpop.f32.mrf.mxu0
  %v1578 = vpop.f32.mrf.mxu0
  %v1579 = vpop.f32.mrf.mxu0
  %1580 = vdwg.mxu0
  %v1582 = vrot.slane %v1576, 2
  %v1584 = vadd.f32 %v1083, %v1582
  %v1585 = vadd.f32 %v1088, %v1582
  %v1586 = vxor.u32 %v1584, 2147483648
  %v1587 = vxor.u32 %v1585, 2147483648
  %v1588 = vmul.f32 %v1586, 1.442695
  %v1589 = vpow.pop %v1588
  %v1590 = vmul.f32 %v1587, 1.442695
  %v1591 = vpow.pop %v1590
  %v1592 = vadd.f32 %v1589, 1.0
  %v1593 = vadd.f32 %v1591, 1.0
  %v1594 = vrcp.pop %v1592
  %v1595 = vmul.f32 1.0, %v1594
  %v1596 = vrcp.pop %v1593
  %v1597 = vmul.f32 1.0, %v1596
  %v1598 = vtanh.pop %v1584
  %v1599 = vtanh.pop %v1585
  %v1601 = vrot.slane %v1527, 2
  %v1603 = vmul.f32 %v1595, %v1601
  %v1604 = vmul.f32 %v1597, %v1601
  %1607 = vrot.lane.b32.xlu0 %v1598, 64
  %v1608 = vpop.permute.xlu0 %1607
  %1609 = vrot.lane.b32.xlu0 %v1599, 64
  %v1610 = vpop.permute.xlu0 %1609
  %v1613 = vmul.f32 %v1595, %v1608
  %v1614 = vmul.f32 %v1597, %v1610
  %1617 = vrot.lane.b32.xlu0 %v1613, 32
  %v1618 = vpop.permute.xlu0 %1617
  %1619 = vrot.lane.b32.xlu0 %v1614, 32
  %v1620 = vpop.permute.xlu0 %1619
  %v1623 = vadd.f32 %v1603, %v1618
  %v1624 = vadd.f32 %v1604, %v1620
  %v1625 = vtanh.pop %v1623
  %v1626 = vtanh.pop %v1624
  %1629 = vrot.lane.b32.xlu0 %v1625, 64
  %v1630 = vpop.permute.xlu0 %1629
  %1631 = vrot.lane.b32.xlu0 %v1626, 64
  %v1632 = vpop.permute.xlu0 %1631
  %v1635 = vmul.f32 %v1595, %v1630
  %v1636 = vmul.f32 %v1597, %v1632
  %v1637 = vpack.c.bf16 %v1636, %v1635
  %v1639 = vrot.slane %v1637, 3
  %1640 = vrot.lane.b32.xlu0 %v1639, 32
  %v1641 = vpop.permute.xlu0 %1640
  %v1643 = vsel %vm109, %v1641, 0
  %1645 = vmatprep.subr.bf16.mxu0 0
  %1646 = vmatpush1.bf16.msra.mxu0 0
  %1647 = vmatprep.subr.bf16.mxu0 0
  %1648 = vmatpush1.bf16.msra.mxu0 0
  %1649 = vmatprep.subr.bf16.mxu0 0
  %1650 = vmatpush1.bf16.msra.mxu0 0
  %1651 = vmatprep.subr.bf16.mxu0 0
  %1652 = vmatpush1.bf16.msra.mxu0 0
  %1653 = vmatprep.subr.bf16.mxu0 0
  %1654 = vmatpush1.bf16.msra.mxu0 0
  %1655 = vmatprep.subr.bf16.mxu0 0
  %1656 = vmatpush1.bf16.msra.mxu0 0
  %1657 = vmatprep.subr.bf16.mxu0 0
  %1658 = vmatpush1.bf16.msra.mxu0 %v1099
  %1659 = vmatprep.subr.bf16.mxu0 0
  %1660 = vmatpush1.bf16.msra.mxu0 %v1098
  %1661 = vmatprep.subr.bf16.mxu0 0
  %1662 = vmatpush2.bf16.msra.mxu0 0
  %1663 = vmatprep.subr.bf16.mxu0 0
  %1664 = vmatpush2.bf16.msra.mxu0 0
  %1665 = vmatprep.subr.bf16.mxu0 0
  %1666 = vmatpush2.bf16.msra.mxu0 0
  %1667 = vmatprep.subr.bf16.mxu0 0
  %1668 = vmatpush2.bf16.msra.mxu0 0
  %1669 = vmatprep.subr.bf16.mxu0 0
  %1670 = vmatpush2.bf16.msra.mxu0 0
  %1671 = vmatprep.subr.bf16.mxu0 0
  %1672 = vmatpush2.bf16.msra.mxu0 0
  %1673 = vmatprep.subr.bf16.mxu0 0
  %1674 = vmatpush2.bf16.msra.mxu0 0
  %1675 = vmatprep.subr.bf16.mxu0 0
  %1676 = vmatpush2.bf16.msra.mxu0 0
  %1677 = vmatprep.mubr.bf16.mxu0 0
  %1678 = vmatmul.mubr.bf16.gmra.mxu0 %v1643
  %v1679 = vpop.f32.mrf.mxu0
  %v1680 = vadd.f32 0.0, %v1679
  %v1681 = vpop.f32.mrf.mxu0
  %v1682 = vpop.f32.mrf.mxu0
  %v1683 = vpop.f32.mrf.mxu0
  %1684 = vdwg.mxu0
  %v1686 = vrot.slane %v1680, 4
  %v1688 = vadd.f32 %v1088, %v1686
  %v1689 = vadd.f32 %v1091, %v1686
  %v1690 = vxor.u32 %v1688, 2147483648
  %v1691 = vxor.u32 %v1689, 2147483648
  %v1692 = vmul.f32 %v1690, 1.442695
  %v1693 = vpow.pop %v1692
  %v1694 = vmul.f32 %v1691, 1.442695
  %v1695 = vpow.pop %v1694
  %v1696 = vadd.f32 %v1693, 1.0
  %v1697 = vadd.f32 %v1695, 1.0
  %v1698 = vrcp.pop %v1696
  %v1699 = vmul.f32 1.0, %v1698
  %v1700 = vrcp.pop %v1697
  %v1701 = vmul.f32 1.0, %v1700
  %v1702 = vtanh.pop %v1688
  %v1703 = vtanh.pop %v1689
  %v1706 = vrot.slane %v1623, 2
  %v1707 = vrot.slane %v1624, 2
  %v1708 = vsel %vm42, %v1706, %v1707
  %v1711 = vmul.f32 %v1699, %v1708
  %v1712 = vmul.f32 %v1701, %v1707
  %1715 = vrot.lane.b32.xlu0 %v1702, 64
  %v1716 = vpop.permute.xlu0 %1715
  %1717 = vrot.lane.b32.xlu0 %v1703, 64
  %v1718 = vpop.permute.xlu0 %1717
  %v1721 = vmul.f32 %v1699, %v1716
  %v1722 = vmul.f32 %v1701, %v1718
  %1725 = vrot.lane.b32.xlu0 %v1721, 32
  %v1726 = vpop.permute.xlu0 %1725
  %1727 = vrot.lane.b32.xlu0 %v1722, 32
  %v1728 = vpop.permute.xlu0 %1727
  %v1731 = vadd.f32 %v1711, %v1726
  %v1732 = vadd.f32 %v1712, %v1728
  %v1733 = vtanh.pop %v1731
  %v1734 = vtanh.pop %v1732
  %1737 = vrot.lane.b32.xlu0 %v1733, 64
  %v1738 = vpop.permute.xlu0 %1737
  %1739 = vrot.lane.b32.xlu0 %v1734, 64
  %v1740 = vpop.permute.xlu0 %1739
  %v1743 = vmul.f32 %v1699, %v1738
  %v1744 = vmul.f32 %v1701, %v1740
  %v1745 = vpack.c.bf16 %v1744, %v1743
  %v1747 = vrot.slane %v1745, 2
  %1748 = vrot.lane.b32.xlu0 %v1747, 32
  %v1749 = vpop.permute.xlu0 %1748
  %v1751 = vsel %vm109, %v1749, 0
  %1753 = vmatprep.subr.bf16.mxu0 0
  %1754 = vmatpush1.bf16.msra.mxu0 0
  %1755 = vmatprep.subr.bf16.mxu0 0
  %1756 = vmatpush1.bf16.msra.mxu0 0
  %1757 = vmatprep.subr.bf16.mxu0 0
  %1758 = vmatpush1.bf16.msra.mxu0 0
  %1759 = vmatprep.subr.bf16.mxu0 0
  %1760 = vmatpush1.bf16.msra.mxu0 0
  %1761 = vmatprep.subr.bf16.mxu0 0
  %1762 = vmatpush1.bf16.msra.mxu0 0
  %1763 = vmatprep.subr.bf16.mxu0 0
  %1764 = vmatpush1.bf16.msra.mxu0 0
  %1765 = vmatprep.subr.bf16.mxu0 0
  %1766 = vmatpush1.bf16.msra.mxu0 %v1099
  %1767 = vmatprep.subr.bf16.mxu0 0
  %1768 = vmatpush1.bf16.msra.mxu0 %v1098
  %1769 = vmatprep.subr.bf16.mxu0 0
  %1770 = vmatpush2.bf16.msra.mxu0 0
  %1771 = vmatprep.subr.bf16.mxu0 0
  %1772 = vmatpush2.bf16.msra.mxu0 0
  %1773 = vmatprep.subr.bf16.mxu0 0
  %1774 = vmatpush2.bf16.msra.mxu0 0
  %1775 = vmatprep.subr.bf16.mxu0 0
  %1776 = vmatpush2.bf16.msra.mxu0 0
  %1777 = vmatprep.subr.bf16.mxu0 0
  %1778 = vmatpush2.bf16.msra.mxu0 0
  %1779 = vmatprep.subr.bf16.mxu0 0
  %1780 = vmatpush2.bf16.msra.mxu0 0
  %1781 = vmatprep.subr.bf16.mxu0 0
  %1782 = vmatpush2.bf16.msra.mxu0 0
  %1783 = vmatprep.subr.bf16.mxu0 0
  %1784 = vmatpush2.bf16.msra.mxu0 0
  %1785 = vmatprep.mubr.bf16.mxu0 0
  %1786 = vmatmul.mubr.bf16.gmra.mxu0 %v1751
  %v1787 = vpop.f32.mrf.mxu0
  %v1788 = vadd.f32 0.0, %v1787
  %v1789 = vpop.f32.mrf.mxu0
  %v1790 = vpop.f32.mrf.mxu0
  %v1791 = vpop.f32.mrf.mxu0
  %1792 = vdwg.mxu0
  %v1794 = vrot.slane %v1788, 6
  %v1796 = vadd.f32 %v1091, %v1794
  %v1797 = vxor.u32 %v1796, 2147483648
  %v1798 = vmul.f32 %v1797, 1.442695
  %v1799 = vpow.pop %v1798
  %v1800 = vadd.f32 %v1799, 1.0
  %v1801 = vrcp.pop %v1800
  %v1802 = vmul.f32 1.0, %v1801
  %v1803 = vtanh.pop %v1796
  %v1806 = vrot.slane %v1731, 2
  %v1807 = vrot.slane %v1732, 2
  %v1808 = vsel %vm42, %v1806, %v1807
  %v1810 = vmul.f32 %v1802, %v1808
  %1812 = vrot.lane.b32.xlu0 %v1803, 64
  %v1813 = vpop.permute.xlu0 %1812
  %v1815 = vmul.f32 %v1802, %v1813
  %1817 = vrot.lane.b32.xlu0 %v1815, 32
  %v1818 = vpop.permute.xlu0 %1817
  %v1820 = vadd.f32 %v1810, %v1818
  %v1821 = vtanh.pop %v1820
  %1823 = vrot.lane.b32.xlu0 %v1821, 64
  %v1824 = vpop.permute.xlu0 %1823
  %v1826 = vmul.f32 %v1802, %v1824
  %v1827 = vsel %vm42, %v1164, %v1266
  %v1828 = vsel %vm841, %v1267, %v1374
  %v1829 = vsel %vm843, %v1375, %v1457
  %v1830 = vsel %vm42, %v1533, %v1635
  %v1831 = vsel %vm841, %v1636, %v1743
  %v1832 = vsel %vm843, %v1744, %v1826
  %v1833 = vld [vmem:[%s2 + $0x90] sm:$0xff]
  %v1834 = vld [vmem:[%s2 + $0x98] sm:$0xff]
  %v1835 = vld [vmem:[%s2 + $0xa0] sm:$0xff]
  %v1836 = vld [vmem:[%s2 + $0xa8] sm:$0xff]
  %v1837 = vpack.c.bf16 %v1828, %v1827
  %v1838 = vpack.c.bf16 %v1830, %v1829
  %v1839 = vpack.c.bf16 %v1832, %v1831
  %v1840 = vpack.c.bf16 %v1834, %v1833
  %v1841 = vpack.c.bf16 %v1836, %v1835
  %v1842 = vld [vmem:[%s2 + $0xd0] sm:$0x1]
  %v1843 = vlaneseq
  %v1844 = vshrl.u32 %v1843, 7
  %v1845 = vsub.s32 0, %v1844
  %v1846 = vrot.slane %v1842, %v1845
  %1850 = vrot.lane.b32.xlu0 %v1837, 32
  %v1851 = vpop.permute.xlu0 %1850
  %1852 = vrot.lane.b32.xlu0 %v1838, 32
  %v1853 = vpop.permute.xlu0 %1852
  %1854 = vrot.lane.b32.xlu0 %v1839, 32
  %v1855 = vpop.permute.xlu0 %1854
  %v1857 = vsel %vm109, %v1851, 0
  %v1860 = vsel %vm109, %v1853, 0
  %v1863 = vsel %vm109, %v1855, 0
  %1865 = vmatprep.subr.bf16.mxu0 0
  %1866 = vmatpush1.bf16.msra.mxu0 0
  %1867 = vmatprep.subr.bf16.mxu0 0
  %1868 = vmatpush1.bf16.msra.mxu0 0
  %1869 = vmatprep.subr.bf16.mxu0 0
  %1870 = vmatpush1.bf16.msra.mxu0 0
  %1871 = vmatprep.subr.bf16.mxu0 0
  %1872 = vmatpush1.bf16.msra.mxu0 0
  %1873 = vmatprep.subr.bf16.mxu0 0
  %1874 = vmatpush1.bf16.msra.mxu0 0
  %1875 = vmatprep.subr.bf16.mxu0 0
  %1876 = vmatpush1.bf16.msra.mxu0 0
  %1877 = vmatprep.subr.bf16.mxu0 0
  %1878 = vmatpush1.bf16.msra.mxu0 %v1841
  %1879 = vmatprep.subr.bf16.mxu0 0
  %1880 = vmatpush1.bf16.msra.mxu0 %v1840
  %1881 = vmatprep.subr.bf16.mxu0 0
  %1882 = vmatpush2.bf16.msra.mxu0 0
  %1883 = vmatprep.subr.bf16.mxu0 0
  %1884 = vmatpush2.bf16.msra.mxu0 0
  %1885 = vmatprep.subr.bf16.mxu0 0
  %1886 = vmatpush2.bf16.msra.mxu0 0
  %1887 = vmatprep.subr.bf16.mxu0 0
  %1888 = vmatpush2.bf16.msra.mxu0 0
  %1889 = vmatprep.subr.bf16.mxu0 0
  %1890 = vmatpush2.bf16.msra.mxu0 0
  %1891 = vmatprep.subr.bf16.mxu0 0
  %1892 = vmatpush2.bf16.msra.mxu0 0
  %1893 = vmatprep.subr.bf16.mxu0 0
  %1894 = vmatpush2.bf16.msra.mxu0 0
  %1895 = vmatprep.subr.bf16.mxu0 0
  %1896 = vmatpush2.bf16.msra.mxu0 0
  %1897 = vmatprep.mubr.bf16.mxu0 0
  %1898 = vmatmul.mubr.bf16.gmra.mxu0 %v1857
  %v1899 = vpop.f32.mrf.mxu0
  %v1900 = vadd.f32 %v1846, %v1899
  %v1901 = vpop.f32.mrf.mxu0
  %v1902 = vpop.f32.mrf.mxu0
  %v1903 = vadd.f32 %v1846, %v1902
  %v1904 = vpop.f32.mrf.mxu0
  %1905 = vmatprep.mubr.bf16.mxu0 0
  %1906 = vmatmul.mubr.bf16.gmra.mxu0 %v1860
  %v1907 = vpop.f32.mrf.mxu0
  %v1908 = vadd.f32 %v1846, %v1907
  %v1909 = vpop.f32.mrf.mxu0
  %v1910 = vpop.f32.mrf.mxu0
  %v1911 = vadd.f32 %v1846, %v1910
  %v1912 = vpop.f32.mrf.mxu0
  %1913 = vmatprep.mubr.bf16.mxu0 0
  %1914 = vmatmul.mubr.bf16.gmra.mxu0 %v1863
  %v1915 = vpop.f32.mrf.mxu0
  %v1916 = vadd.f32 %v1846, %v1915
  %v1917 = vpop.f32.mrf.mxu0
  %v1918 = vpop.f32.mrf.mxu0
  %v1919 = vadd.f32 %v1846, %v1918
  %v1920 = vpop.f32.mrf.mxu0
  %1921 = vdwg.mxu0
  %v1922 = vld [vmem:[%s2 + $0xb0] sm:$0xff]
  %v1923 = vld [vmem:[%s2 + $0xb8] sm:$0xff]
  %v1924 = vld [vmem:[%s2 + $0xc0] sm:$0xff]
  %v1925 = vld [vmem:[%s2 + $0xc8] sm:$0xff]
  %v1926 = vpack.c.bf16 %v1923, %v1922
  %v1927 = vpack.c.bf16 %v1925, %v1924
  %1928 = vmatprep.subr.bf16.mxu0 0
  %1929 = vmatpush1.bf16.msra.mxu0 0
  %1930 = vmatprep.subr.bf16.mxu0 0
  %1931 = vmatpush1.bf16.msra.mxu0 0
  %1932 = vmatprep.subr.bf16.mxu0 0
  %1933 = vmatpush1.bf16.msra.mxu0 0
  %1934 = vmatprep.subr.bf16.mxu0 0
  %1935 = vmatpush1.bf16.msra.mxu0 0
  %1936 = vmatprep.subr.bf16.mxu0 0
  %1937 = vmatpush1.bf16.msra.mxu0 0
  %1938 = vmatprep.subr.bf16.mxu0 0
  %1939 = vmatpush1.bf16.msra.mxu0 0
  %1940 = vmatprep.subr.bf16.mxu0 0
  %1941 = vmatpush1.bf16.msra.mxu0 %v1927
  %1942 = vmatprep.subr.bf16.mxu0 0
  %1943 = vmatpush1.bf16.msra.mxu0 %v1926
  %1944 = vmatprep.subr.bf16.mxu0 0
  %1945 = vmatpush2.bf16.msra.mxu0 0
  %1946 = vmatprep.subr.bf16.mxu0 0
  %1947 = vmatpush2.bf16.msra.mxu0 0
  %1948 = vmatprep.subr.bf16.mxu0 0
  %1949 = vmatpush2.bf16.msra.mxu0 0
  %1950 = vmatprep.subr.bf16.mxu0 0
  %1951 = vmatpush2.bf16.msra.mxu0 0
  %1952 = vmatprep.subr.bf16.mxu0 0
  %1953 = vmatpush2.bf16.msra.mxu0 0
  %1954 = vmatprep.subr.bf16.mxu0 0
  %1955 = vmatpush2.bf16.msra.mxu0 0
  %1956 = vmatprep.subr.bf16.mxu0 0
  %1957 = vmatpush2.bf16.msra.mxu0 0
  %1958 = vmatprep.subr.bf16.mxu0 0
  %1959 = vmatpush2.bf16.msra.mxu0 0
  %1960 = vmatprep.mubr.bf16.mxu0 0
  %1961 = vmatmul.mubr.bf16.gmra.mxu0 %v111
  %v1962 = vpop.f32.mrf.mxu0
  %v1963 = vadd.f32 0.0, %v1962
  %v1964 = vpop.f32.mrf.mxu0
  %v1965 = vpop.f32.mrf.mxu0
  %v1966 = vpop.f32.mrf.mxu0
  %1967 = vdwg.mxu0
  %v1968 = vadd.f32 %v1900, %v1963
  %v1969 = vxor.u32 %v1968, 2147483648
  %v1970 = vmul.f32 %v1969, 1.442695
  %v1971 = vpow.pop %v1970
  %v1972 = vadd.f32 %v1971, 1.0
  %v1973 = vrcp.pop %v1972
  %v1974 = vmul.f32 1.0, %v1973
  %v1975 = vtanh.pop %v1968
  %v1976 = vmul.f32 %v1974, 0.0
  %1978 = vrot.lane.b32.xlu0 %v1975, 64
  %v1979 = vpop.permute.xlu0 %1978
  %v1981 = vmul.f32 %v1974, %v1979
  %1983 = vrot.lane.b32.xlu0 %v1981, 32
  %v1984 = vpop.permute.xlu0 %1983
  %v1986 = vadd.f32 %v1976, %v1984
  %v1987 = vtanh.pop %v1986
  %1989 = vrot.lane.b32.xlu0 %v1987, 64
  %v1990 = vpop.permute.xlu0 %1989
  %v1992 = vmul.f32 %v1974, %v1990
  %v1993 = vpack.c.bf16 %v1992, %v1992
  %1995 = vrot.lane.b32.xlu0 %v1993, 32
  %v1996 = vpop.permute.xlu0 %1995
  %v1998 = vsel %vm109, %v1996, 0
  %2000 = vmatprep.subr.bf16.mxu0 0
  %2001 = vmatpush1.bf16.msra.mxu0 0
  %2002 = vmatprep.subr.bf16.mxu0 0
  %2003 = vmatpush1.bf16.msra.mxu0 0
  %2004 = vmatprep.subr.bf16.mxu0 0
  %2005 = vmatpush1.bf16.msra.mxu0 0
  %2006 = vmatprep.subr.bf16.mxu0 0
  %2007 = vmatpush1.bf16.msra.mxu0 0
  %2008 = vmatprep.subr.bf16.mxu0 0
  %2009 = vmatpush1.bf16.msra.mxu0 0
  %2010 = vmatprep.subr.bf16.mxu0 0
  %2011 = vmatpush1.bf16.msra.mxu0 0
  %2012 = vmatprep.subr.bf16.mxu0 0
  %2013 = vmatpush1.bf16.msra.mxu0 %v1927
  %2014 = vmatprep.subr.bf16.mxu0 0
  %2015 = vmatpush1.bf16.msra.mxu0 %v1926
  %2016 = vmatprep.subr.bf16.mxu0 0
  %2017 = vmatpush2.bf16.msra.mxu0 0
  %2018 = vmatprep.subr.bf16.mxu0 0
  %2019 = vmatpush2.bf16.msra.mxu0 0
  %2020 = vmatprep.subr.bf16.mxu0 0
  %2021 = vmatpush2.bf16.msra.mxu0 0
  %2022 = vmatprep.subr.bf16.mxu0 0
  %2023 = vmatpush2.bf16.msra.mxu0 0
  %2024 = vmatprep.subr.bf16.mxu0 0
  %2025 = vmatpush2.bf16.msra.mxu0 0
  %2026 = vmatprep.subr.bf16.mxu0 0
  %2027 = vmatpush2.bf16.msra.mxu0 0
  %2028 = vmatprep.subr.bf16.mxu0 0
  %2029 = vmatpush2.bf16.msra.mxu0 0
  %2030 = vmatprep.subr.bf16.mxu0 0
  %2031 = vmatpush2.bf16.msra.mxu0 0
  %2032 = vmatprep.mubr.bf16.mxu0 0
  %2033 = vmatmul.mubr.bf16.gmra.mxu0 %v1998
  %v2034 = vpop.f32.mrf.mxu0
  %v2035 = vadd.f32 0.0, %v2034
  %v2036 = vpop.f32.mrf.mxu0
  %v2037 = vpop.f32.mrf.mxu0
  %v2038 = vpop.f32.mrf.mxu0
  %2039 = vdwg.mxu0
  %v2041 = vrot.slane %v2035, 2
  %v2043 = vadd.f32 %v1900, %v2041
  %v2044 = vadd.f32 %v1903, %v2041
  %v2045 = vxor.u32 %v2043, 2147483648
  %v2046 = vxor.u32 %v2044, 2147483648
  %v2047 = vmul.f32 %v2045, 1.442695
  %v2048 = vpow.pop %v2047
  %v2049 = vmul.f32 %v2046, 1.442695
  %v2050 = vpow.pop %v2049
  %v2051 = vadd.f32 %v2048, 1.0
  %v2052 = vadd.f32 %v2050, 1.0
  %v2053 = vrcp.pop %v2051
  %v2054 = vmul.f32 1.0, %v2053
  %v2055 = vrcp.pop %v2052
  %v2056 = vmul.f32 1.0, %v2055
  %v2057 = vtanh.pop %v2043
  %v2058 = vtanh.pop %v2044
  %v2060 = vrot.slane %v1986, 2
  %v2062 = vmul.f32 %v2054, %v2060
  %v2063 = vmul.f32 %v2056, %v2060
  %2066 = vrot.lane.b32.xlu0 %v2057, 64
  %v2067 = vpop.permute.xlu0 %2066
  %2068 = vrot.lane.b32.xlu0 %v2058, 64
  %v2069 = vpop.permute.xlu0 %2068
  %v2072 = vmul.f32 %v2054, %v2067
  %v2073 = vmul.f32 %v2056, %v2069
  %2076 = vrot.lane.b32.xlu0 %v2072, 32
  %v2077 = vpop.permute.xlu0 %2076
  %2078 = vrot.lane.b32.xlu0 %v2073, 32
  %v2079 = vpop.permute.xlu0 %2078
  %v2082 = vadd.f32 %v2062, %v2077
  %v2083 = vadd.f32 %v2063, %v2079
  %v2084 = vtanh.pop %v2082
  %v2085 = vtanh.pop %v2083
  %2088 = vrot.lane.b32.xlu0 %v2084, 64
  %v2089 = vpop.permute.xlu0 %2088
  %2090 = vrot.lane.b32.xlu0 %v2085, 64
  %v2091 = vpop.permute.xlu0 %2090
  %v2094 = vmul.f32 %v2054, %v2089
  %v2095 = vmul.f32 %v2056, %v2091
  %v2096 = vpack.c.bf16 %v2095, %v2094
  %v2098 = vrot.slane %v2096, 3
  %2099 = vrot.lane.b32.xlu0 %v2098, 32
  %v2100 = vpop.permute.xlu0 %2099
  %v2102 = vsel %vm109, %v2100, 0
  %2104 = vmatprep.subr.bf16.mxu0 0
  %2105 = vmatpush1.bf16.msra.mxu0 0
  %2106 = vmatprep.subr.bf16.mxu0 0
  %2107 = vmatpush1.bf16.msra.mxu0 0
  %2108 = vmatprep.subr.bf16.mxu0 0
  %2109 = vmatpush1.bf16.msra.mxu0 0
  %2110 = vmatprep.subr.bf16.mxu0 0
  %2111 = vmatpush1.bf16.msra.mxu0 0
  %2112 = vmatprep.subr.bf16.mxu0 0
  %2113 = vmatpush1.bf16.msra.mxu0 0
  %2114 = vmatprep.subr.bf16.mxu0 0
  %2115 = vmatpush1.bf16.msra.mxu0 0
  %2116 = vmatprep.subr.bf16.mxu0 0
  %2117 = vmatpush1.bf16.msra.mxu0 %v1927
  %2118 = vmatprep.subr.bf16.mxu0 0
  %2119 = vmatpush1.bf16.msra.mxu0 %v1926
  %2120 = vmatprep.subr.bf16.mxu0 0
  %2121 = vmatpush2.bf16.msra.mxu0 0
  %2122 = vmatprep.subr.bf16.mxu0 0
  %2123 = vmatpush2.bf16.msra.mxu0 0
  %2124 = vmatprep.subr.bf16.mxu0 0
  %2125 = vmatpush2.bf16.msra.mxu0 0
  %2126 = vmatprep.subr.bf16.mxu0 0
  %2127 = vmatpush2.bf16.msra.mxu0 0
  %2128 = vmatprep.subr.bf16.mxu0 0
  %2129 = vmatpush2.bf16.msra.mxu0 0
  %2130 = vmatprep.subr.bf16.mxu0 0
  %2131 = vmatpush2.bf16.msra.mxu0 0
  %2132 = vmatprep.subr.bf16.mxu0 0
  %2133 = vmatpush2.bf16.msra.mxu0 0
  %2134 = vmatprep.subr.bf16.mxu0 0
  %2135 = vmatpush2.bf16.msra.mxu0 0
  %2136 = vmatprep.mubr.bf16.mxu0 0
  %2137 = vmatmul.mubr.bf16.gmra.mxu0 %v2102
  %v2138 = vpop.f32.mrf.mxu0
  %v2139 = vadd.f32 0.0, %v2138
  %v2140 = vpop.f32.mrf.mxu0
  %v2141 = vpop.f32.mrf.mxu0
  %v2142 = vpop.f32.mrf.mxu0
  %2143 = vdwg.mxu0
  %v2145 = vrot.slane %v2139, 4
  %v2147 = vadd.f32 %v1903, %v2145
  %v2148 = vadd.f32 %v1908, %v2145
  %v2149 = vxor.u32 %v2147, 2147483648
  %v2150 = vxor.u32 %v2148, 2147483648
  %v2151 = vmul.f32 %v2149, 1.442695
  %v2152 = vpow.pop %v2151
  %v2153 = vmul.f32 %v2150, 1.442695
  %v2154 = vpow.pop %v2153
  %v2155 = vadd.f32 %v2152, 1.0
  %v2156 = vadd.f32 %v2154, 1.0
  %v2157 = vrcp.pop %v2155
  %v2158 = vmul.f32 1.0, %v2157
  %v2159 = vrcp.pop %v2156
  %v2160 = vmul.f32 1.0, %v2159
  %v2161 = vtanh.pop %v2147
  %v2162 = vtanh.pop %v2148
  %v2165 = vrot.slane %v2082, 2
  %v2166 = vrot.slane %v2083, 2
  %v2167 = vsel %vm42, %v2165, %v2166
  %v2170 = vmul.f32 %v2158, %v2167
  %v2171 = vmul.f32 %v2160, %v2166
  %2174 = vrot.lane.b32.xlu0 %v2161, 64
  %v2175 = vpop.permute.xlu0 %2174
  %2176 = vrot.lane.b32.xlu0 %v2162, 64
  %v2177 = vpop.permute.xlu0 %2176
  %v2180 = vmul.f32 %v2158, %v2175
  %v2181 = vmul.f32 %v2160, %v2177
  %2184 = vrot.lane.b32.xlu0 %v2180, 32
  %v2185 = vpop.permute.xlu0 %2184
  %2186 = vrot.lane.b32.xlu0 %v2181, 32
  %v2187 = vpop.permute.xlu0 %2186
  %v2190 = vadd.f32 %v2170, %v2185
  %v2191 = vadd.f32 %v2171, %v2187
  %v2192 = vtanh.pop %v2190
  %v2193 = vtanh.pop %v2191
  %2196 = vrot.lane.b32.xlu0 %v2192, 64
  %v2197 = vpop.permute.xlu0 %2196
  %2198 = vrot.lane.b32.xlu0 %v2193, 64
  %v2199 = vpop.permute.xlu0 %2198
  %v2202 = vmul.f32 %v2158, %v2197
  %v2203 = vmul.f32 %v2160, %v2199
  %v2204 = vpack.c.bf16 %v2203, %v2202
  %v2206 = vrot.slane %v2204, 2
  %2207 = vrot.lane.b32.xlu0 %v2206, 32
  %v2208 = vpop.permute.xlu0 %2207
  %v2210 = vsel %vm109, %v2208, 0
  %2212 = vmatprep.subr.bf16.mxu0 0
  %2213 = vmatpush1.bf16.msra.mxu0 0
  %2214 = vmatprep.subr.bf16.mxu0 0
  %2215 = vmatpush1.bf16.msra.mxu0 0
  %2216 = vmatprep.subr.bf16.mxu0 0
  %2217 = vmatpush1.bf16.msra.mxu0 0
  %2218 = vmatprep.subr.bf16.mxu0 0
  %2219 = vmatpush1.bf16.msra.mxu0 0
  %2220 = vmatprep.subr.bf16.mxu0 0
  %2221 = vmatpush1.bf16.msra.mxu0 0
  %2222 = vmatprep.subr.bf16.mxu0 0
  %2223 = vmatpush1.bf16.msra.mxu0 0
  %2224 = vmatprep.subr.bf16.mxu0 0
  %2225 = vmatpush1.bf16.msra.mxu0 %v1927
  %2226 = vmatprep.subr.bf16.mxu0 0
  %2227 = vmatpush1.bf16.msra.mxu0 %v1926
  %2228 = vmatprep.subr.bf16.mxu0 0
  %2229 = vmatpush2.bf16.msra.mxu0 0
  %2230 = vmatprep.subr.bf16.mxu0 0
  %2231 = vmatpush2.bf16.msra.mxu0 0
  %2232 = vmatprep.subr.bf16.mxu0 0
  %2233 = vmatpush2.bf16.msra.mxu0 0
  %2234 = vmatprep.subr.bf16.mxu0 0
  %2235 = vmatpush2.bf16.msra.mxu0 0
  %2236 = vmatprep.subr.bf16.mxu0 0
  %2237 = vmatpush2.bf16.msra.mxu0 0
  %2238 = vmatprep.subr.bf16.mxu0 0
  %2239 = vmatpush2.bf16.msra.mxu0 0
  %2240 = vmatprep.subr.bf16.mxu0 0
  %2241 = vmatpush2.bf16.msra.mxu0 0
  %2242 = vmatprep.subr.bf16.mxu0 0
  %2243 = vmatpush2.bf16.msra.mxu0 0
  %2244 = vmatprep.mubr.bf16.mxu0 0
  %2245 = vmatmul.mubr.bf16.gmra.mxu0 %v2210
  %v2246 = vpop.f32.mrf.mxu0
  %v2247 = vadd.f32 0.0, %v2246
  %v2248 = vpop.f32.mrf.mxu0
  %v2249 = vpop.f32.mrf.mxu0
  %v2250 = vpop.f32.mrf.mxu0
  %2251 = vdwg.mxu0
  %v2253 = vrot.slane %v2247, 6
  %v2255 = vadd.f32 %v1908, %v2253
  %v2256 = vxor.u32 %v2255, 2147483648
  %v2257 = vmul.f32 %v2256, 1.442695
  %v2258 = vpow.pop %v2257
  %v2259 = vadd.f32 %v2258, 1.0
  %v2260 = vrcp.pop %v2259
  %v2261 = vmul.f32 1.0, %v2260
  %v2262 = vtanh.pop %v2255
  %v2265 = vrot.slane %v2190, 2
  %v2266 = vrot.slane %v2191, 2
  %v2267 = vsel %vm42, %v2265, %v2266
  %v2269 = vmul.f32 %v2261, %v2267
  %2271 = vrot.lane.b32.xlu0 %v2262, 64
  %v2272 = vpop.permute.xlu0 %2271
  %v2274 = vmul.f32 %v2261, %v2272
  %2276 = vrot.lane.b32.xlu0 %v2274, 32
  %v2277 = vpop.permute.xlu0 %2276
  %v2279 = vadd.f32 %v2269, %v2277
  %v2280 = vtanh.pop %v2279
  %2282 = vrot.lane.b32.xlu0 %v2280, 64
  %v2283 = vpop.permute.xlu0 %2282
  %v2285 = vmul.f32 %v2261, %v2283
  %v2286 = vpack.c.bf16 %v2285, %v2285
  %v2288 = vrot.slane %v2286, 1
  %2289 = vrot.lane.b32.xlu0 %v2288, 32
  %v2290 = vpop.permute.xlu0 %2289
  %v2292 = vsel %vm109, %v2290, 0
  %2294 = vmatprep.subr.bf16.mxu0 0
  %2295 = vmatpush1.bf16.msra.mxu0 0
  %2296 = vmatprep.subr.bf16.mxu0 0
  %2297 = vmatpush1.bf16.msra.mxu0 0
  %2298 = vmatprep.subr.bf16.mxu0 0
  %2299 = vmatpush1.bf16.msra.mxu0 0
  %2300 = vmatprep.subr.bf16.mxu0 0
  %2301 = vmatpush1.bf16.msra.mxu0 0
  %2302 = vmatprep.subr.bf16.mxu0 0
  %2303 = vmatpush1.bf16.msra.mxu0 0
  %2304 = vmatprep.subr.bf16.mxu0 0
  %2305 = vmatpush1.bf16.msra.mxu0 0
  %2306 = vmatprep.subr.bf16.mxu0 0
  %2307 = vmatpush1.bf16.msra.mxu0 %v1927
  %2308 = vmatprep.subr.bf16.mxu0 0
  %2309 = vmatpush1.bf16.msra.mxu0 %v1926
  %2310 = vmatprep.subr.bf16.mxu0 0
  %2311 = vmatpush2.bf16.msra.mxu0 0
  %2312 = vmatprep.subr.bf16.mxu0 0
  %2313 = vmatpush2.bf16.msra.mxu0 0
  %2314 = vmatprep.subr.bf16.mxu0 0
  %2315 = vmatpush2.bf16.msra.mxu0 0
  %2316 = vmatprep.subr.bf16.mxu0 0
  %2317 = vmatpush2.bf16.msra.mxu0 0
  %2318 = vmatprep.subr.bf16.mxu0 0
  %2319 = vmatpush2.bf16.msra.mxu0 0
  %2320 = vmatprep.subr.bf16.mxu0 0
  %2321 = vmatpush2.bf16.msra.mxu0 0
  %2322 = vmatprep.subr.bf16.mxu0 0
  %2323 = vmatpush2.bf16.msra.mxu0 0
  %2324 = vmatprep.subr.bf16.mxu0 0
  %2325 = vmatpush2.bf16.msra.mxu0 0
  %2326 = vmatprep.mubr.bf16.mxu0 0
  %2327 = vmatmul.mubr.bf16.gmra.mxu0 %v2292
  %v2328 = vpop.f32.mrf.mxu0
  %v2329 = vadd.f32 0.0, %v2328
  %v2330 = vpop.f32.mrf.mxu0
  %v2331 = vpop.f32.mrf.mxu0
  %v2332 = vpop.f32.mrf.mxu0
  %2333 = vdwg.mxu0
  %v2334 = vadd.f32 %v1911, %v2329
  %v2335 = vxor.u32 %v2334, 2147483648
  %v2336 = vmul.f32 %v2335, 1.442695
  %v2337 = vpow.pop %v2336
  %v2338 = vadd.f32 %v2337, 1.0
  %v2339 = vrcp.pop %v2338
  %v2340 = vmul.f32 1.0, %v2339
  %v2341 = vtanh.pop %v2334
  %v2343 = vrot.slane %v2279, 2
  %v2345 = vmul.f32 %v2340, %v2343
  %2347 = vrot.lane.b32.xlu0 %v2341, 64
  %v2348 = vpop.permute.xlu0 %2347
  %v2350 = vmul.f32 %v2340, %v2348
  %2352 = vrot.lane.b32.xlu0 %v2350, 32
  %v2353 = vpop.permute.xlu0 %2352
  %v2355 = vadd.f32 %v2345, %v2353
  %v2356 = vtanh.pop %v2355
  %2358 = vrot.lane.b32.xlu0 %v2356, 64
  %v2359 = vpop.permute.xlu0 %2358
  %v2361 = vmul.f32 %v2340, %v2359
  %v2362 = vpack.c.bf16 %v2361, %v2361
  %2364 = vrot.lane.b32.xlu0 %v2362, 32
  %v2365 = vpop.permute.xlu0 %2364
  %v2367 = vsel %vm109, %v2365, 0
  %2369 = vmatprep.subr.bf16.mxu0 0
  %2370 = vmatpush1.bf16.msra.mxu0 0
  %2371 = vmatprep.subr.bf16.mxu0 0
  %2372 = vmatpush1.bf16.msra.mxu0 0
  %2373 = vmatprep.subr.bf16.mxu0 0
  %2374 = vmatpush1.bf16.msra.mxu0 0
  %2375 = vmatprep.subr.bf16.mxu0 0
  %2376 = vmatpush1.bf16.msra.mxu0 0
  %2377 = vmatprep.subr.bf16.mxu0 0
  %2378 = vmatpush1.bf16.msra.mxu0 0
  %2379 = vmatprep.subr.bf16.mxu0 0
  %2380 = vmatpush1.bf16.msra.mxu0 0
  %2381 = vmatprep.subr.bf16.mxu0 0
  %2382 = vmatpush1.bf16.msra.mxu0 %v1927
  %2383 = vmatprep.subr.bf16.mxu0 0
  %2384 = vmatpush1.bf16.msra.mxu0 %v1926
  %2385 = vmatprep.subr.bf16.mxu0 0
  %2386 = vmatpush2.bf16.msra.mxu0 0
  %2387 = vmatprep.subr.bf16.mxu0 0
  %2388 = vmatpush2.bf16.msra.mxu0 0
  %2389 = vmatprep.subr.bf16.mxu0 0
  %2390 = vmatpush2.bf16.msra.mxu0 0
  %2391 = vmatprep.subr.bf16.mxu0 0
  %2392 = vmatpush2.bf16.msra.mxu0 0
  %2393 = vmatprep.subr.bf16.mxu0 0
  %2394 = vmatpush2.bf16.msra.mxu0 0
  %2395 = vmatprep.subr.bf16.mxu0 0
  %2396 = vmatpush2.bf16.msra.mxu0 0
  %2397 = vmatprep.subr.bf16.mxu0 0
  %2398 = vmatpush2.bf16.msra.mxu0 0
  %2399 = vmatprep.subr.bf16.mxu0 0
  %2400 = vmatpush2.bf16.msra.mxu0 0
  %2401 = vmatprep.mubr.bf16.mxu0 0
  %2402 = vmatmul.mubr.bf16.gmra.mxu0 %v2367
  %v2403 = vpop.f32.mrf.mxu0
  %v2404 = vadd.f32 0.0, %v2403
  %v2405 = vpop.f32.mrf.mxu0
  %v2406 = vpop.f32.mrf.mxu0
  %v2407 = vpop.f32.mrf.mxu0
  %2408 = vdwg.mxu0
  %v2410 = vrot.slane %v2404, 2
  %v2412 = vadd.f32 %v1911, %v2410
  %v2413 = vadd.f32 %v1916, %v2410
  %v2414 = vxor.u32 %v2412, 2147483648
  %v2415 = vxor.u32 %v2413, 2147483648
  %v2416 = vmul.f32 %v2414, 1.442695
  %v2417 = vpow.pop %v2416
  %v2418 = vmul.f32 %v2415, 1.442695
  %v2419 = vpow.pop %v2418
  %v2420 = vadd.f32 %v2417, 1.0
  %v2421 = vadd.f32 %v2419, 1.0
  %v2422 = vrcp.pop %v2420
  %v2423 = vmul.f32 1.0, %v2422
  %v2424 = vrcp.pop %v2421
  %v2425 = vmul.f32 1.0, %v2424
  %v2426 = vtanh.pop %v2412
  %v2427 = vtanh.pop %v2413
  %v2429 = vrot.slane %v2355, 2
  %v2431 = vmul.f32 %v2423, %v2429
  %v2432 = vmul.f32 %v2425, %v2429
  %2435 = vrot.lane.b32.xlu0 %v2426, 64
  %v2436 = vpop.permute.xlu0 %2435
  %2437 = vrot.lane.b32.xlu0 %v2427, 64
  %v2438 = vpop.permute.xlu0 %2437
  %v2441 = vmul.f32 %v2423, %v2436
  %v2442 = vmul.f32 %v2425, %v2438
  %2445 = vrot.lane.b32.xlu0 %v2441, 32
  %v2446 = vpop.permute.xlu0 %2445
  %2447 = vrot.lane.b32.xlu0 %v2442, 32
  %v2448 = vpop.permute.xlu0 %2447
  %v2451 = vadd.f32 %v2431, %v2446
  %v2452 = vadd.f32 %v2432, %v2448
  %v2453 = vtanh.pop %v2451
  %v2454 = vtanh.pop %v2452
  %2457 = vrot.lane.b32.xlu0 %v2453, 64
  %v2458 = vpop.permute.xlu0 %2457
  %2459 = vrot.lane.b32.xlu0 %v2454, 64
  %v2460 = vpop.permute.xlu0 %2459
  %v2463 = vmul.f32 %v2423, %v2458
  %v2464 = vmul.f32 %v2425, %v2460
  %v2465 = vpack.c.bf16 %v2464, %v2463
  %v2467 = vrot.slane %v2465, 3
  %2468 = vrot.lane.b32.xlu0 %v2467, 32
  %v2469 = vpop.permute.xlu0 %2468
  %v2471 = vsel %vm109, %v2469, 0
  %2473 = vmatprep.subr.bf16.mxu0 0
  %2474 = vmatpush1.bf16.msra.mxu0 0
  %2475 = vmatprep.subr.bf16.mxu0 0
  %2476 = vmatpush1.bf16.msra.mxu0 0
  %2477 = vmatprep.subr.bf16.mxu0 0
  %2478 = vmatpush1.bf16.msra.mxu0 0
  %2479 = vmatprep.subr.bf16.mxu0 0
  %2480 = vmatpush1.bf16.msra.mxu0 0
  %2481 = vmatprep.subr.bf16.mxu0 0
  %2482 = vmatpush1.bf16.msra.mxu0 0
  %2483 = vmatprep.subr.bf16.mxu0 0
  %2484 = vmatpush1.bf16.msra.mxu0 0
  %2485 = vmatprep.subr.bf16.mxu0 0
  %2486 = vmatpush1.bf16.msra.mxu0 %v1927
  %2487 = vmatprep.subr.bf16.mxu0 0
  %2488 = vmatpush1.bf16.msra.mxu0 %v1926
  %2489 = vmatprep.subr.bf16.mxu0 0
  %2490 = vmatpush2.bf16.msra.mxu0 0
  %2491 = vmatprep.subr.bf16.mxu0 0
  %2492 = vmatpush2.bf16.msra.mxu0 0
  %2493 = vmatprep.subr.bf16.mxu0 0
  %2494 = vmatpush2.bf16.msra.mxu0 0
  %2495 = vmatprep.subr.bf16.mxu0 0
  %2496 = vmatpush2.bf16.msra.mxu0 0
  %2497 = vmatprep.subr.bf16.mxu0 0
  %2498 = vmatpush2.bf16.msra.mxu0 0
  %2499 = vmatprep.subr.bf16.mxu0 0
  %2500 = vmatpush2.bf16.msra.mxu0 0
  %2501 = vmatprep.subr.bf16.mxu0 0
  %2502 = vmatpush2.bf16.msra.mxu0 0
  %2503 = vmatprep.subr.bf16.mxu0 0
  %2504 = vmatpush2.bf16.msra.mxu0 0
  %2505 = vmatprep.mubr.bf16.mxu0 0
  %2506 = vmatmul.mubr.bf16.gmra.mxu0 %v2471
  %v2507 = vpop.f32.mrf.mxu0
  %v2508 = vadd.f32 0.0, %v2507
  %v2509 = vpop.f32.mrf.mxu0
  %v2510 = vpop.f32.mrf.mxu0
  %v2511 = vpop.f32.mrf.mxu0
  %2512 = vdwg.mxu0
  %v2514 = vrot.slane %v2508, 4
  %v2516 = vadd.f32 %v1916, %v2514
  %v2517 = vadd.f32 %v1919, %v2514
  %v2518 = vxor.u32 %v2516, 2147483648
  %v2519 = vxor.u32 %v2517, 2147483648
  %v2520 = vmul.f32 %v2518, 1.442695
  %v2521 = vpow.pop %v2520
  %v2522 = vmul.f32 %v2519, 1.442695
  %v2523 = vpow.pop %v2522
  %v2524 = vadd.f32 %v2521, 1.0
  %v2525 = vadd.f32 %v2523, 1.0
  %v2526 = vrcp.pop %v2524
  %v2527 = vmul.f32 1.0, %v2526
  %v2528 = vrcp.pop %v2525
  %v2529 = vmul.f32 1.0, %v2528
  %v2530 = vtanh.pop %v2516
  %v2531 = vtanh.pop %v2517
  %v2534 = vrot.slane %v2451, 2
  %v2535 = vrot.slane %v2452, 2
  %v2536 = vsel %vm42, %v2534, %v2535
  %v2539 = vmul.f32 %v2527, %v2536
  %v2540 = vmul.f32 %v2529, %v2535
  %2543 = vrot.lane.b32.xlu0 %v2530, 64
  %v2544 = vpop.permute.xlu0 %2543
  %2545 = vrot.lane.b32.xlu0 %v2531, 64
  %v2546 = vpop.permute.xlu0 %2545
  %v2549 = vmul.f32 %v2527, %v2544
  %v2550 = vmul.f32 %v2529, %v2546
  %2553 = vrot.lane.b32.xlu0 %v2549, 32
  %v2554 = vpop.permute.xlu0 %2553
  %2555 = vrot.lane.b32.xlu0 %v2550, 32
  %v2556 = vpop.permute.xlu0 %2555
  %v2559 = vadd.f32 %v2539, %v2554
  %v2560 = vadd.f32 %v2540, %v2556
  %v2561 = vtanh.pop %v2559
  %v2562 = vtanh.pop %v2560
  %2565 = vrot.lane.b32.xlu0 %v2561, 64
  %v2566 = vpop.permute.xlu0 %2565
  %2567 = vrot.lane.b32.xlu0 %v2562, 64
  %v2568 = vpop.permute.xlu0 %2567
  %v2571 = vmul.f32 %v2527, %v2566
  %v2572 = vmul.f32 %v2529, %v2568
  %v2573 = vpack.c.bf16 %v2572, %v2571
  %v2575 = vrot.slane %v2573, 2
  %2576 = vrot.lane.b32.xlu0 %v2575, 32
  %v2577 = vpop.permute.xlu0 %2576
  %v2579 = vsel %vm109, %v2577, 0
  %2581 = vmatprep.subr.bf16.mxu0 0
  %2582 = vmatpush1.bf16.msra.mxu0 0
  %2583 = vmatprep.subr.bf16.mxu0 0
  %2584 = vmatpush1.bf16.msra.mxu0 0
  %2585 = vmatprep.subr.bf16.mxu0 0
  %2586 = vmatpush1.bf16.msra.mxu0 0
  %2587 = vmatprep.subr.bf16.mxu0 0
  %2588 = vmatpush1.bf16.msra.mxu0 0
  %2589 = vmatprep.subr.bf16.mxu0 0
  %2590 = vmatpush1.bf16.msra.mxu0 0
  %2591 = vmatprep.subr.bf16.mxu0 0
  %2592 = vmatpush1.bf16.msra.mxu0 0
  %2593 = vmatprep.subr.bf16.mxu0 0
  %2594 = vmatpush1.bf16.msra.mxu0 %v1927
  %2595 = vmatprep.subr.bf16.mxu0 0
  %2596 = vmatpush1.bf16.msra.mxu0 %v1926
  %2597 = vmatprep.subr.bf16.mxu0 0
  %2598 = vmatpush2.bf16.msra.mxu0 0
  %2599 = vmatprep.subr.bf16.mxu0 0
  %2600 = vmatpush2.bf16.msra.mxu0 0
  %2601 = vmatprep.subr.bf16.mxu0 0
  %2602 = vmatpush2.bf16.msra.mxu0 0
  %2603 = vmatprep.subr.bf16.mxu0 0
  %2604 = vmatpush2.bf16.msra.mxu0 0
  %2605 = vmatprep.subr.bf16.mxu0 0
  %2606 = vmatpush2.bf16.msra.mxu0 0
  %2607 = vmatprep.subr.bf16.mxu0 0
  %2608 = vmatpush2.bf16.msra.mxu0 0
  %2609 = vmatprep.subr.bf16.mxu0 0
  %2610 = vmatpush2.bf16.msra.mxu0 0
  %2611 = vmatprep.subr.bf16.mxu0 0
  %2612 = vmatpush2.bf16.msra.mxu0 0
  %2613 = vmatprep.mubr.bf16.mxu0 0
  %2614 = vmatmul.mubr.bf16.gmra.mxu0 %v2579
  %v2615 = vpop.f32.mrf.mxu0
  %v2616 = vadd.f32 0.0, %v2615
  %v2617 = vpop.f32.mrf.mxu0
  %v2618 = vpop.f32.mrf.mxu0
  %v2619 = vpop.f32.mrf.mxu0
  %2620 = vdwg.mxu0
  %v2622 = vrot.slane %v2616, 6
  %v2624 = vadd.f32 %v1919, %v2622
  %v2625 = vxor.u32 %v2624, 2147483648
  %v2626 = vmul.f32 %v2625, 1.442695
  %v2627 = vpow.pop %v2626
  %v2628 = vadd.f32 %v2627, 1.0
  %v2629 = vrcp.pop %v2628
  %v2630 = vmul.f32 1.0, %v2629
  %v2631 = vtanh.pop %v2624
  %v2634 = vrot.slane %v2559, 2
  %v2635 = vrot.slane %v2560, 2
  %v2636 = vsel %vm42, %v2634, %v2635
  %v2638 = vmul.f32 %v2630, %v2636
  %2640 = vrot.lane.b32.xlu0 %v2631, 64
  %v2641 = vpop.permute.xlu0 %2640
  %v2643 = vmul.f32 %v2630, %v2641
  %2645 = vrot.lane.b32.xlu0 %v2643, 32
  %v2646 = vpop.permute.xlu0 %2645
  %v2648 = vadd.f32 %v2638, %v2646
  %v2649 = vld [vmem:[%s1] sm:$0x3f]
  %v2650 = vld [vmem:[%s2 + $0xd8] sm:$0xff]
  %v2651 = vld [vmem:[%s2 + $0xe0] sm:$0xff]
  %v2652 = vld [vmem:[%s2 + $0xe8] sm:$0xff]
  %v2653 = vld [vmem:[%s2 + $0xf0] sm:$0xff]
  %v2654 = vld [vmem:[%s2 + $0xf8] sm:$0xff]
  %v2655 = vld [vmem:[%s2 + $0x100] sm:$0xff]
  %v2656 = vld [vmem:[%s2 + $0x108] sm:$0xff]
  %v2657 = vld [vmem:[%s2 + $0x110] sm:$0xff]
  %v2658 = vld [vmem:[%s2 + $0x118] sm:$0xff]
  %v2659 = vld [vmem:[%s2 + $0x120] sm:$0x1]
  %v2660 = vpack.c.bf16 %v2649, %v2649
  %v2661 = vpack.c.bf16 %v2651, %v2650
  %v2662 = vpack.c.bf16 %v2653, %v2652
  %v2663 = vpack.c.bf16 %v2655, %v2654
  %v2664 = vpack.c.bf16 %v2657, %v2656
  %v2665 = vpack.c.bf16 %v2659, %v2658
  %v2666 = vld [vmem:[%s2 + $0x128] sm:$0x1]
  %v2667 = vlaneseq
  %v2668 = vshrl.u32 %v2667, 7
  %v2669 = vsub.s32 0, %v2668
  %v2670 = vrot.slane %v2666, %v2669
  %vm2671 = vcmask 596992
  %v2673 = vsel %vm2671, %v2660, 0
  %vm2675 = vcmask 1044480
  %v2676 = vsel %vm841, 4294967295, 65535
  %v2677 = vsel %vm2675, %v2676, 0
  %v2679 = vand.u32 %v2665, %v2677
  %2681 = vmatprep.subr.bf16.mxu0 0
  %2682 = vmatpush1.bf16.msra.mxu0 0
  %2683 = vmatprep.subr.bf16.mxu0 0
  %2684 = vmatpush1.bf16.msra.mxu0 0
  %2685 = vmatprep.subr.bf16.mxu0 0
  %2686 = vmatpush1.bf16.msra.mxu0 0
  %2687 = vmatprep.subr.bf16.mxu0 0
  %2688 = vmatpush1.bf16.msra.mxu0 %v2679
  %2689 = vmatprep.subr.bf16.mxu0 0
  %2690 = vmatpush1.bf16.msra.mxu0 %v2664
  %2691 = vmatprep.subr.bf16.mxu0 0
  %2692 = vmatpush1.bf16.msra.mxu0 %v2663
  %2693 = vmatprep.subr.bf16.mxu0 0
  %2694 = vmatpush1.bf16.msra.mxu0 %v2662
  %2695 = vmatprep.subr.bf16.mxu0 0
  %2696 = vmatpush1.bf16.msra.mxu0 %v2661
  %2697 = vmatprep.subr.bf16.mxu0 0
  %2698 = vmatpush2.bf16.msra.mxu0 0
  %2699 = vmatprep.subr.bf16.mxu0 0
  %2700 = vmatpush2.bf16.msra.mxu0 0
  %2701 = vmatprep.subr.bf16.mxu0 0
  %2702 = vmatpush2.bf16.msra.mxu0 0
  %2703 = vmatprep.subr.bf16.mxu0 0
  %2704 = vmatpush2.bf16.msra.mxu0 0
  %2705 = vmatprep.subr.bf16.mxu0 0
  %2706 = vmatpush2.bf16.msra.mxu0 0
  %2707 = vmatprep.subr.bf16.mxu0 0
  %2708 = vmatpush2.bf16.msra.mxu0 0
  %2709 = vmatprep.subr.bf16.mxu0 0
  %2710 = vmatpush2.bf16.msra.mxu0 0
  %2711 = vmatprep.subr.bf16.mxu0 0
  %2712 = vmatpush2.bf16.msra.mxu0 0
  %2713 = vmatprep.mubr.bf16.mxu0 0
  %2714 = vmatmul.mubr.bf16.gmra.mxu0 %v2673
  %v2715 = vpop.f32.mrf.mxu0
  %v2716 = vadd.f32 %v2670, %v2715
  %v2717 = vpop.f32.mrf.mxu0
  %v2718 = vpop.f32.mrf.mxu0
  %v2719 = vpop.f32.mrf.mxu0
  %2720 = vdwg.mxu0
  %v2721 = vmax.f32 %v2716, 0.0
  %v2722 = vld [vmem:[%s2 + $0x130] sm:$0xff]
  %v2723 = vld [vmem:[%s2 + $0x138] sm:$0xff]
  %v2724 = vld [vmem:[%s2 + $0x140] sm:$0xff]
  %v2725 = vld [vmem:[%s2 + $0x148] sm:$0xff]
  %v2726 = vld [vmem:[%s2 + $0x150] sm:$0xff]
  %v2727 = vld [vmem:[%s2 + $0x158] sm:$0xff]
  %v2728 = vld [vmem:[%s2 + $0x160] sm:$0xff]
  %v2729 = vld [vmem:[%s2 + $0x168] sm:$0xff]
  %v2730 = vpack.c.bf16 %v2721, %v2721
  %v2731 = vpack.c.bf16 %v2723, %v2722
  %v2732 = vpack.c.bf16 %v2725, %v2724
  %v2733 = vpack.c.bf16 %v2727, %v2726
  %v2734 = vpack.c.bf16 %v2729, %v2728
  %v2735 = vld [vmem:[%s2 + $0x170] sm:$0x1]
  %v2736 = vlaneseq
  %v2737 = vshrl.u32 %v2736, 7
  %v2738 = vsub.s32 0, %v2737
  %v2739 = vrot.slane %v2735, %v2738
  %vm2740 = vcmask 523264
  %v2742 = vsel %vm2740, %v2730, 0
  %2744 = vmatprep.subr.bf16.mxu0 0
  %2745 = vmatpush1.bf16.msra.mxu0 0
  %2746 = vmatprep.subr.bf16.mxu0 0
  %2747 = vmatpush1.bf16.msra.mxu0 0
  %2748 = vmatprep.subr.bf16.mxu0 0
  %2749 = vmatpush1.bf16.msra.mxu0 0
  %2750 = vmatprep.subr.bf16.mxu0 0
  %2751 = vmatpush1.bf16.msra.mxu0 0
  %2752 = vmatprep.subr.bf16.mxu0 0
  %2753 = vmatpush1.bf16.msra.mxu0 %v2734
  %2754 = vmatprep.subr.bf16.mxu0 0
  %2755 = vmatpush1.bf16.msra.mxu0 %v2733
  %2756 = vmatprep.subr.bf16.mxu0 0
  %2757 = vmatpush1.bf16.msra.mxu0 %v2732
  %2758 = vmatprep.subr.bf16.mxu0 0
  %2759 = vmatpush1.bf16.msra.mxu0 %v2731
  %2760 = vmatprep.subr.bf16.mxu0 0
  %2761 = vmatpush2.bf16.msra.mxu0 0
  %2762 = vmatprep.subr.bf16.mxu0 0
  %2763 = vmatpush2.bf16.msra.mxu0 0
  %2764 = vmatprep.subr.bf16.mxu0 0
  %2765 = vmatpush2.bf16.msra.mxu0 0
  %2766 = vmatprep.subr.bf16.mxu0 0
  %2767 = vmatpush2.bf16.msra.mxu0 0
  %2768 = vmatprep.subr.bf16.mxu0 0
  %2769 = vmatpush2.bf16.msra.mxu0 0
  %2770 = vmatprep.subr.bf16.mxu0 0
  %2771 = vmatpush2.bf16.msra.mxu0 0
  %2772 = vmatprep.subr.bf16.mxu0 0
  %2773 = vmatpush2.bf16.msra.mxu0 0
  %2774 = vmatprep.subr.bf16.mxu0 0
  %2775 = vmatpush2.bf16.msra.mxu0 0
  %2776 = vmatprep.mubr.bf16.mxu0 0
  %2777 = vmatmul.mubr.bf16.gmra.mxu0 %v2742
  %v2778 = vpop.f32.mrf.mxu0
  %v2779 = vadd.f32 %v2739, %v2778
  %v2780 = vpop.f32.mrf.mxu0
  %v2781 = vpop.f32.mrf.mxu0
  %v2782 = vpop.f32.mrf.mxu0
  %2783 = vdwg.mxu0
  %v2784 = vld [vmem:[%s2 + $0x178] sm:$0xff]
  %v2785 = vld [vmem:[%s2 + $0x180] sm:$0xff]
  %v2786 = vld [vmem:[%s2 + $0x188] sm:$0xff]
  %v2787 = vld [vmem:[%s2 + $0x190] sm:$0xff]
  %v2788 = vld [vmem:[%s2 + $0x198] sm:$0x1]
  %v2789 = vpack.c.bf16 %v2648, %v2648
  %v2790 = vpack.c.bf16 %v2785, %v2784
  %v2791 = vpack.c.bf16 %v2787, %v2786
  %v2792 = vlaneseq
  %v2793 = vshrl.u32 %v2792, 7
  %v2794 = vsub.s32 0, %v2793
  %v2795 = vrot.slane %v2788, %v2794
  %v2797 = vrot.slane %v2789, 1
  %2798 = vrot.lane.b32.xlu0 %v2797, 96
  %v2799 = vpop.permute.xlu0 %2798
  %v2801 = vsel %vm109, %v2799, 0
  %2803 = vmatprep.subr.bf16.mxu0 0
  %2804 = vmatpush1.bf16.msra.mxu0 0
  %2805 = vmatprep.subr.bf16.mxu0 0
  %2806 = vmatpush1.bf16.msra.mxu0 0
  %2807 = vmatprep.subr.bf16.mxu0 0
  %2808 = vmatpush1.bf16.msra.mxu0 0
  %2809 = vmatprep.subr.bf16.mxu0 0
  %2810 = vmatpush1.bf16.msra.mxu0 0
  %2811 = vmatprep.subr.bf16.mxu0 0
  %2812 = vmatpush1.bf16.msra.mxu0 0
  %2813 = vmatprep.subr.bf16.mxu0 0
  %2814 = vmatpush1.bf16.msra.mxu0 0
  %2815 = vmatprep.subr.bf16.mxu0 0
  %2816 = vmatpush1.bf16.msra.mxu0 %v2791
  %2817 = vmatprep.subr.bf16.mxu0 0
  %2818 = vmatpush1.bf16.msra.mxu0 %v2790
  %2819 = vmatprep.subr.bf16.mxu0 0
  %2820 = vmatpush2.bf16.msra.mxu0 0
  %2821 = vmatprep.subr.bf16.mxu0 0
  %2822 = vmatpush2.bf16.msra.mxu0 0
  %2823 = vmatprep.subr.bf16.mxu0 0
  %2824 = vmatpush2.bf16.msra.mxu0 0
  %2825 = vmatprep.subr.bf16.mxu0 0
  %2826 = vmatpush2.bf16.msra.mxu0 0
  %2827 = vmatprep.subr.bf16.mxu0 0
  %2828 = vmatpush2.bf16.msra.mxu0 0
  %2829 = vmatprep.subr.bf16.mxu0 0
  %2830 = vmatpush2.bf16.msra.mxu0 0
  %2831 = vmatprep.subr.bf16.mxu0 0
  %2832 = vmatpush2.bf16.msra.mxu0 0
  %2833 = vmatprep.subr.bf16.mxu0 0
  %2834 = vmatpush2.bf16.msra.mxu0 0
  %2835 = vmatprep.mubr.bf16.mxu0 0
  %2836 = vmatmul.mubr.bf16.gmra.mxu0 %v2801
  %v2837 = vpop.f32.mrf.mxu0
  %v2838 = vadd.f32 %v2795, %v2837
  %v2839 = vpop.f32.mrf.mxu0
  %v2840 = vpop.f32.mrf.mxu0
  %v2841 = vpop.f32.mrf.mxu0
  %2842 = vdwg.mxu0
  %v2843 = vpack.c.bf16 %v2779, %v2779
  %v2845 = vsel %vm109, %v2843, 0
  %2847 = vmatprep.subr.bf16.mxu0 0
  %2848 = vmatpush1.bf16.msra.mxu0 0
  %2849 = vmatprep.subr.bf16.mxu0 0
  %2850 = vmatpush1.bf16.msra.mxu0 0
  %2851 = vmatprep.subr.bf16.mxu0 0
  %2852 = vmatpush1.bf16.msra.mxu0 0
  %2853 = vmatprep.subr.bf16.mxu0 0
  %2854 = vmatpush1.bf16.msra.mxu0 0
  %2855 = vmatprep.subr.bf16.mxu0 0
  %2856 = vmatpush1.bf16.msra.mxu0 0
  %2857 = vmatprep.subr.bf16.mxu0 0
  %2858 = vmatpush1.bf16.msra.mxu0 0
  %2859 = vmatprep.subr.bf16.mxu0 0
  %2860 = vmatpush1.bf16.msra.mxu0 %v2791
  %2861 = vmatprep.subr.bf16.mxu0 0
  %2862 = vmatpush1.bf16.msra.mxu0 %v2790
  %2863 = vmatprep.subr.bf16.mxu0 0
  %2864 = vmatpush2.bf16.msra.mxu0 0
  %2865 = vmatprep.subr.bf16.mxu0 0
  %2866 = vmatpush2.bf16.msra.mxu0 0
  %2867 = vmatprep.subr.bf16.mxu0 0
  %2868 = vmatpush2.bf16.msra.mxu0 0
  %2869 = vmatprep.subr.bf16.mxu0 0
  %2870 = vmatpush2.bf16.msra.mxu0 0
  %2871 = vmatprep.subr.bf16.mxu0 0
  %2872 = vmatpush2.bf16.msra.mxu0 0
  %2873 = vmatprep.subr.bf16.mxu0 0
  %2874 = vmatpush2.bf16.msra.mxu0 0
  %2875 = vmatprep.subr.bf16.mxu0 0
  %2876 = vmatpush2.bf16.msra.mxu0 0
  %2877 = vmatprep.subr.bf16.mxu0 0
  %2878 = vmatpush2.bf16.msra.mxu0 0
  %2879 = vmatprep.mubr.bf16.mxu0 0
  %2880 = vmatmul.mubr.bf16.gmra.mxu0 %v2845
  %v2881 = vpop.f32.mrf.mxu0
  %v2882 = vadd.f32 %v2795, %v2881
  %v2883 = vpop.f32.mrf.mxu0
  %v2884 = vpop.f32.mrf.mxu0
  %v2885 = vpop.f32.mrf.mxu0
  %2886 = vdwg.mxu0
  %2888 = vrot.lane.b32.xlu0 %v2838, 96
  %v2889 = vpop.permute.xlu0 %2888
  %v2891 = vmul.f32 %v2838, %v2889
  %vm2892 = vcmask 259072
  %v2893 = vsel %vm2892, %v2891, 0.0
  %2894 = vadd.xlane.f32.xlu0 %v2893
  %v2895 = vpop.xlane.xlu0 %2894
  %v2896 = vmul.f32 %v2895, 0.17677669
  %2898 = vrot.lane.b32.xlu0 %v2882, 96
  %v2899 = vpop.permute.xlu0 %2898
  %v2901 = vmul.f32 %v2838, %v2899
  %v2902 = vsel %vm2892, %v2901, 0.0
  %2903 = vadd.xlane.f32.xlu0 %v2902
  %v2904 = vpop.xlane.xlu0 %2903
  %v2905 = vmul.f32 %v2904, 0.17677669
  %v2906 = vmax.f32 %v2896, %v2905
  %v2907 = vsub.f32 %v2896, %v2906
  %v2908 = vmul.f32 %v2907, 1.442695
  %v2909 = vpow.pop %v2908
  %v2910 = vsub.f32 %v2905, %v2906
  %v2911 = vmul.f32 %v2910, 1.442695
  %v2912 = vpow.pop %v2911
  %v2913 = vadd.f32 %v2909, %v2912
  %v2914 = vrcp.pop %v2913
  %v2915 = vmul.f32 %v2909, %v2914
  %v2916 = vmul.f32 %v2915, %v2838
  %v2917 = vmul.f32 %v2912, %v2914
  %v2918 = vmul.f32 %v2917, %v2882
  %v2919 = vadd.f32 %v2916, %v2918
  %v2920 = vmul.f32 %v2882, %v2889
  %v2921 = vsel %vm2892, %v2920, 0.0
  %2922 = vadd.xlane.f32.xlu0 %v2921
  %v2923 = vpop.xlane.xlu0 %2922
  %v2924 = vmul.f32 %v2923, 0.17677669
  %v2925 = vmul.f32 %v2882, %v2899
  %v2926 = vsel %vm2892, %v2925, 0.0
  %2927 = vadd.xlane.f32.xlu0 %v2926
  %v2928 = vpop.xlane.xlu0 %2927
  %v2929 = vmul.f32 %v2928, 0.17677669
  %v2930 = vmax.f32 %v2924, %v2929
  %v2931 = vsub.f32 %v2924, %v2930
  %v2932 = vmul.f32 %v2931, 1.442695
  %v2933 = vpow.pop %v2932
  %v2934 = vsub.f32 %v2929, %v2930
  %v2935 = vmul.f32 %v2934, 1.442695
  %v2936 = vpow.pop %v2935
  %v2937 = vadd.f32 %v2933, %v2936
  %v2938 = vrcp.pop %v2937
  %v2939 = vmul.f32 %v2933, %v2938
  %v2940 = vmul.f32 %v2939, %v2838
  %v2941 = vmul.f32 %v2936, %v2938
  %v2942 = vmul.f32 %v2941, %v2882
  %v2943 = vadd.f32 %v2940, %v2942
  %v2944 = vld [vmem:[%s2 + $0x1a0] sm:$0xff]
  %v2945 = vld [vmem:[%s2 + $0x1a8] sm:$0xff]
  %v2946 = vld [vmem:[%s2 + $0x1b0] sm:$0xff]
  %v2947 = vld [vmem:[%s2 + $0x1b8] sm:$0xff]
  %v2948 = vld [vmem:[%s2 + $0x1c0] sm:$0x1]
  %v2949 = vld [vmem:[%s2 + $0x1c8] sm:$0xff]
  %v2950 = vld [vmem:[%s2 + $0x1d0] sm:$0xff]
  %v2951 = vld [vmem:[%s2 + $0x1d8] sm:$0xff]
  %v2952 = vld [vmem:[%s2 + $0x1e0] sm:$0xff]
  %v2953 = vld [vmem:[%s2 + $0x1e8] sm:$0xff]
  %v2954 = vld [vmem:[%s2 + $0x1f0] sm:$0xff]
  %v2955 = vld [vmem:[%s2 + $0x1f8] sm:$0xff]
  %v2956 = vld [vmem:[%s2 + $0x200] sm:$0xff]
  %v2957 = vld [vmem:[%s2 + $0x208] sm:$0xff]
  %v2958 = vld [vmem:[%s2 + $0x210] sm:$0xff]
  %v2959 = vld [vmem:[%s2 + $0x218] sm:$0xff]
  %v2960 = vld [vmem:[%s2 + $0x220] sm:$0xff]
  %v2961 = vld [vmem:[%s2 + $0x228] sm:$0xff]
  %v2962 = vld [vmem:[%s2 + $0x230] sm:$0xff]
  %v2963 = vld [vmem:[%s2 + $0x238] sm:$0xff]
  %v2964 = vld [vmem:[%s2 + $0x240] sm:$0xff]
  %v2965 = vld [vmem:[%s2 + $0x248] sm:$0x1]
  %v2966 = vld [vmem:[%s2 + $0x250] sm:$0x1]
  %v2967 = vld [vmem:[%s2 + $0x258] sm:$0x1]
  %v2968 = vpack.c.bf16 %v2919, %v2919
  %v2969 = vpack.c.bf16 %v2945, %v2944
  %v2970 = vpack.c.bf16 %v2947, %v2946
  %v2971 = vlaneseq
  %v2972 = vshrl.u32 %v2971, 7
  %v2973 = vsub.s32 0, %v2972
  %v2974 = vrot.slane %v2948, %v2973
  %2976 = vrot.lane.b32.xlu0 %v2968, 64
  %v2977 = vpop.permute.xlu0 %2976
  %v2979 = vsel %vm109, %v2977, 0
  %2981 = vmatprep.subr.bf16.mxu0 0
  %2982 = vmatpush1.bf16.msra.mxu0 0
  %2983 = vmatprep.subr.bf16.mxu0 0
  %2984 = vmatpush1.bf16.msra.mxu0 0
  %2985 = vmatprep.subr.bf16.mxu0 0
  %2986 = vmatpush1.bf16.msra.mxu0 0
  %2987 = vmatprep.subr.bf16.mxu0 0
  %2988 = vmatpush1.bf16.msra.mxu0 0
  %2989 = vmatprep.subr.bf16.mxu0 0
  %2990 = vmatpush1.bf16.msra.mxu0 0
  %2991 = vmatprep.subr.bf16.mxu0 0
  %2992 = vmatpush1.bf16.msra.mxu0 0
  %2993 = vmatprep.subr.bf16.mxu0 0
  %2994 = vmatpush1.bf16.msra.mxu0 %v2970
  %2995 = vmatprep.subr.bf16.mxu0 0
  %2996 = vmatpush1.bf16.msra.mxu0 %v2969
  %2997 = vmatprep.subr.bf16.mxu0 0
  %2998 = vmatpush2.bf16.msra.mxu0 0
  %2999 = vmatprep.subr.bf16.mxu0 0
  %3000 = vmatpush2.bf16.msra.mxu0 0
  %3001 = vmatprep.subr.bf16.mxu0 0
  %3002 = vmatpush2.bf16.msra.mxu0 0
  %3003 = vmatprep.subr.bf16.mxu0 0
  %3004 = vmatpush2.bf16.msra.mxu0 0
  %3005 = vmatprep.subr.bf16.mxu0 0
  %3006 = vmatpush2.bf16.msra.mxu0 0
  %3007 = vmatprep.subr.bf16.mxu0 0
  %3008 = vmatpush2.bf16.msra.mxu0 0
  %3009 = vmatprep.subr.bf16.mxu0 0
  %3010 = vmatpush2.bf16.msra.mxu0 0
  %3011 = vmatprep.subr.bf16.mxu0 0
  %3012 = vmatpush2.bf16.msra.mxu0 0
  %3013 = vmatprep.mubr.bf16.mxu0 0
  %3014 = vmatmul.mubr.bf16.gmra.mxu0 %v2979
  %v3015 = vpop.f32.mrf.mxu0
  %v3016 = vadd.f32 %v2974, %v3015
  %v3017 = vpop.f32.mrf.mxu0
  %v3018 = vpop.f32.mrf.mxu0
  %v3019 = vpop.f32.mrf.mxu0
  %3020 = vdwg.mxu0
  %v3021 = vmax.f32 %v3016, 0.0
  %v3022 = vpack.c.bf16 %v3021, %v3021
  %v3023 = vpack.c.bf16 %v2950, %v2949
  %v3024 = vpack.c.bf16 %v2952, %v2951
  %v3025 = vpack.c.bf16 %v2954, %v2953
  %v3026 = vpack.c.bf16 %v2956, %v2955
  %v3027 = vpack.c.bf16 %v2958, %v2957
  %v3028 = vpack.c.bf16 %v2960, %v2959
  %v3029 = vpack.c.bf16 %v2962, %v2961
  %v3030 = vpack.c.bf16 %v2964, %v2963
  %3031 = vmatprep.subr.bf16.mxu0 0
  %3032 = vmatpush1.bf16.msra.mxu0 %v3030
  %3033 = vmatprep.subr.bf16.mxu0 0
  %3034 = vmatpush1.bf16.msra.mxu0 %v3029
  %3035 = vmatprep.subr.bf16.mxu0 0
  %3036 = vmatpush1.bf16.msra.mxu0 %v3028
  %3037 = vmatprep.subr.bf16.mxu0 0
  %3038 = vmatpush1.bf16.msra.mxu0 %v3027
  %3039 = vmatprep.subr.bf16.mxu0 0
  %3040 = vmatpush1.bf16.msra.mxu0 %v3026
  %3041 = vmatprep.subr.bf16.mxu0 0
  %3042 = vmatpush1.bf16.msra.mxu0 %v3025
  %3043 = vmatprep.subr.bf16.mxu0 0
  %3044 = vmatpush1.bf16.msra.mxu0 %v3024
  %3045 = vmatprep.subr.bf16.mxu0 0
  %3046 = vmatpush1.bf16.msra.mxu0 %v3023
  %3047 = vmatprep.subr.bf16.mxu0 0
  %3048 = vmatpush2.bf16.msra.mxu0 0
  %3049 = vmatprep.subr.bf16.mxu0 0
  %3050 = vmatpush2.bf16.msra.mxu0 0
  %3051 = vmatprep.subr.bf16.mxu0 0
  %3052 = vmatpush2.bf16.msra.mxu0 0
  %3053 = vmatprep.subr.bf16.mxu0 0
  %3054 = vmatpush2.bf16.msra.mxu0 0
  %3055 = vmatprep.subr.bf16.mxu0 0
  %3056 = vmatpush2.bf16.msra.mxu0 0
  %3057 = vmatprep.subr.bf16.mxu0 0
  %3058 = vmatpush2.bf16.msra.mxu0 0
  %3059 = vmatprep.subr.bf16.mxu0 0
  %3060 = vmatpush2.bf16.msra.mxu0 0
  %3061 = vmatprep.subr.bf16.mxu0 0
  %3062 = vmatpush2.bf16.msra.mxu0 0
  %3063 = vmatprep.mubr.bf16.mxu0 0
  %3064 = vmatmul.mubr.bf16.gmra.mxu0 %v3022
  %v3065 = vpop.f32.mrf.mxu0
  %v3066 = vadd.f32 0.0, %v3065
  %v3067 = vpop.f32.mrf.mxu0
  %v3068 = vpop.f32.mrf.mxu0
  %v3069 = vpop.f32.mrf.mxu0
  %3070 = vdwg.mxu0
  %3072 = vrot.lane.b32.xlu0 %v3066, 64
  %v3073 = vpop.permute.xlu0 %3072
  %v3075 = vadd.f32 %v2919, %v3073
  %v3076 = vlaneseq
  %v3077 = vshrl.u32 %v3076, 7
  %v3078 = vsub.s32 0, %v3077
  %v3079 = vrot.slane %v2965, %v3078
  %3081 = vrot.lane.b32.xlu0 %v3079, 64
  %v3082 = vpop.permute.xlu0 %3081
  %v3084 = vadd.f32 %v3075, %v3082
  %3086 = vrot.lane.b32.xlu0 %v3084, 64
  %v3087 = vpop.permute.xlu0 %3086
  %v3089 = vsel %vm2892, %v3087, 0.0
  %3090 = vadd.xlane.f32.xlu0 %v3089
  %v3091 = vpop.xlane.xlu0 %3090
  %v3092 = vmul.f32 %v3091, %v892
  %v3093 = vsub.f32 %v3084, %v3092
  %v3094 = vmul.f32 %v3093, %v3093
  %3096 = vrot.lane.b32.xlu0 %v3094, 64
  %v3097 = vpop.permute.xlu0 %3096
  %v3099 = vsel %vm2892, %v3097, 0.0
  %3100 = vadd.xlane.f32.xlu0 %v3099
  %v3101 = vpop.xlane.xlu0 %3100
  %v3102 = vmul.f32 %v3101, %v892
  %v3103 = vadd.f32 %v3102, 1e-05
  %v3104 = vrsqrt.pop %v3103
  %v3105 = vmul.f32 %v3093, %v3104
  %v3106 = vlaneseq
  %v3107 = vshrl.u32 %v3106, 7
  %v3108 = vsub.s32 0, %v3107
  %v3109 = vrot.slane %v2966, %v3108
  %3111 = vrot.lane.b32.xlu0 %v3109, 64
  %v3112 = vpop.permute.xlu0 %3111
  %v3114 = vmul.f32 %v3105, %v3112
  %v3115 = vlaneseq
  %v3116 = vshrl.u32 %v3115, 7
  %v3117 = vsub.s32 0, %v3116
  %v3118 = vrot.slane %v2967, %v3117
  %3120 = vrot.lane.b32.xlu0 %v3118, 64
  %v3121 = vpop.permute.xlu0 %3120
  %v3123 = vadd.f32 %v3114, %v3121
  %v3124 = vpack.c.bf16 %v2943, %v2943
  %3126 = vrot.lane.b32.xlu0 %v3124, 64
  %v3127 = vpop.permute.xlu0 %3126
  %v3129 = vsel %vm109, %v3127, 0
  %3131 = vmatprep.subr.bf16.mxu0 0
  %3132 = vmatpush1.bf16.msra.mxu0 0
  %3133 = vmatprep.subr.bf16.mxu0 0
  %3134 = vmatpush1.bf16.msra.mxu0 0
  %3135 = vmatprep.subr.bf16.mxu0 0
  %3136 = vmatpush1.bf16.msra.mxu0 0
  %3137 = vmatprep.subr.bf16.mxu0 0
  %3138 = vmatpush1.bf16.msra.mxu0 0
  %3139 = vmatprep.subr.bf16.mxu0 0
  %3140 = vmatpush1.bf16.msra.mxu0 0
  %3141 = vmatprep.subr.bf16.mxu0 0
  %3142 = vmatpush1.bf16.msra.mxu0 0
  %3143 = vmatprep.subr.bf16.mxu0 0
  %3144 = vmatpush1.bf16.msra.mxu0 %v2970
  %3145 = vmatprep.subr.bf16.mxu0 0
  %3146 = vmatpush1.bf16.msra.mxu0 %v2969
  %3147 = vmatprep.subr.bf16.mxu0 0
  %3148 = vmatpush2.bf16.msra.mxu0 0
  %3149 = vmatprep.subr.bf16.mxu0 0
  %3150 = vmatpush2.bf16.msra.mxu0 0
  %3151 = vmatprep.subr.bf16.mxu0 0
  %3152 = vmatpush2.bf16.msra.mxu0 0
  %3153 = vmatprep.subr.bf16.mxu0 0
  %3154 = vmatpush2.bf16.msra.mxu0 0
  %3155 = vmatprep.subr.bf16.mxu0 0
  %3156 = vmatpush2.bf16.msra.mxu0 0
  %3157 = vmatprep.subr.bf16.mxu0 0
  %3158 = vmatpush2.bf16.msra.mxu0 0
  %3159 = vmatprep.subr.bf16.mxu0 0
  %3160 = vmatpush2.bf16.msra.mxu0 0
  %3161 = vmatprep.subr.bf16.mxu0 0
  %3162 = vmatpush2.bf16.msra.mxu0 0
  %3163 = vmatprep.mubr.bf16.mxu0 0
  %3164 = vmatmul.mubr.bf16.gmra.mxu0 %v3129
  %v3165 = vpop.f32.mrf.mxu0
  %v3166 = vadd.f32 %v2974, %v3165
  %v3167 = vpop.f32.mrf.mxu0
  %v3168 = vpop.f32.mrf.mxu0
  %v3169 = vpop.f32.mrf.mxu0
  %3170 = vdwg.mxu0
  %v3171 = vmax.f32 %v3166, 0.0
  %v3172 = vpack.c.bf16 %v3171, %v3171
  %3173 = vmatprep.subr.bf16.mxu0 0
  %3174 = vmatpush1.bf16.msra.mxu0 %v3030
  %3175 = vmatprep.subr.bf16.mxu0 0
  %3176 = vmatpush1.bf16.msra.mxu0 %v3029
  %3177 = vmatprep.subr.bf16.mxu0 0
  %3178 = vmatpush1.bf16.msra.mxu0 %v3028
  %3179 = vmatprep.subr.bf16.mxu0 0
  %3180 = vmatpush1.bf16.msra.mxu0 %v3027
  %3181 = vmatprep.subr.bf16.mxu0 0
  %3182 = vmatpush1.bf16.msra.mxu0 %v3026
  %3183 = vmatprep.subr.bf16.mxu0 0
  %3184 = vmatpush1.bf16.msra.mxu0 %v3025
  %3185 = vmatprep.subr.bf16.mxu0 0
  %3186 = vmatpush1.bf16.msra.mxu0 %v3024
  %3187 = vmatprep.subr.bf16.mxu0 0
  %3188 = vmatpush1.bf16.msra.mxu0 %v3023
  %3189 = vmatprep.subr.bf16.mxu0 0
  %3190 = vmatpush2.bf16.msra.mxu0 0
  %3191 = vmatprep.subr.bf16.mxu0 0
  %3192 = vmatpush2.bf16.msra.mxu0 0
  %3193 = vmatprep.subr.bf16.mxu0 0
  %3194 = vmatpush2.bf16.msra.mxu0 0
  %3195 = vmatprep.subr.bf16.mxu0 0
  %3196 = vmatpush2.bf16.msra.mxu0 0
  %3197 = vmatprep.subr.bf16.mxu0 0
  %3198 = vmatpush2.bf16.msra.mxu0 0
  %3199 = vmatprep.subr.bf16.mxu0 0
  %3200 = vmatpush2.bf16.msra.mxu0 0
  %3201 = vmatprep.subr.bf16.mxu0 0
  %3202 = vmatpush2.bf16.msra.mxu0 0
  %3203 = vmatprep.subr.bf16.mxu0 0
  %3204 = vmatpush2.bf16.msra.mxu0 0
  %3205 = vmatprep.mubr.bf16.mxu0 0
  %3206 = vmatmul.mubr.bf16.gmra.mxu0 %v3172
  %v3207 = vpop.f32.mrf.mxu0
  %v3208 = vadd.f32 0.0, %v3207
  %v3209 = vpop.f32.mrf.mxu0
  %v3210 = vpop.f32.mrf.mxu0
  %v3211 = vpop.f32.mrf.mxu0
  %3212 = vdwg.mxu0
  %3214 = vrot.lane.b32.xlu0 %v3208, 64
  %v3215 = vpop.permute.xlu0 %3214
  %v3217 = vadd.f32 %v2943, %v3215
  %v3218 = vadd.f32 %v3217, %v3082
  %3220 = vrot.lane.b32.xlu0 %v3218, 64
  %v3221 = vpop.permute.xlu0 %3220
  %v3223 = vsel %vm2892, %v3221, 0.0
  %3224 = vadd.xlane.f32.xlu0 %v3223
  %v3225 = vpop.xlane.xlu0 %3224
  %v3226 = vmul.f32 %v3225, %v892
  %v3227 = vsub.f32 %v3218, %v3226
  %v3228 = vmul.f32 %v3227, %v3227
  %3230 = vrot.lane.b32.xlu0 %v3228, 64
  %v3231 = vpop.permute.xlu0 %3230
  %v3233 = vsel %vm2892, %v3231, 0.0
  %3234 = vadd.xlane.f32.xlu0 %v3233
  %v3235 = vpop.xlane.xlu0 %3234
  %v3236 = vmul.f32 %v3235, %v892
  %v3237 = vadd.f32 %v3236, 1e-05
  %v3238 = vrsqrt.pop %v3237
  %v3239 = vmul.f32 %v3227, %v3238
  %v3240 = vmul.f32 %v3239, %v3112
  %v3241 = vadd.f32 %v3240, %v3121
  %v3242 = vmax.f32 %v3123, %v3241
  %3244 = vrot.lane.b32.xlu0 %v3242, 64
  %v3245 = vpop.permute.xlu0 %3244
  %v3247 = vrot.slane %v3242, 2
  %3248 = vrot.lane.b32.xlu0 %v3247, 96
  %v3249 = vpop.permute.xlu0 %3248
  %v3251 = vrot.slane %v3242, 4
  %v3253 = vsel %vm109, %v3245, %v3249
  %v3254 = vsel %vm2740, %v3253, %v3251
  %v3255 = vld [vmem:[%s2 + $0x260] sm:$0xff]
  %v3256 = vld [vmem:[%s2 + $0x268] sm:$0xff]
  %v3257 = vld [vmem:[%s2 + $0x270] sm:$0xff]
  %v3258 = vld [vmem:[%s2 + $0x278] sm:$0xff]
  %v3259 = vld [vmem:[%s2 + $0x280] sm:$0xff]
  %v3260 = vld [vmem:[%s2 + $0x288] sm:$0xff]
  %v3261 = vld [vmem:[%s2 + $0x290] sm:$0xff]
  %v3262 = vld [vmem:[%s2 + $0x298] sm:$0xff]
  %v3263 = vld [vmem:[%s2 + $0x2a0] sm:$0xff]
  %v3264 = vld [vmem:[%s2 + $0x2a8] sm:$0xff]
  %v3265 = vld [vmem:[%s2 + $0x2b0] sm:$0xff]
  %v3266 = vld [vmem:[%s2 + $0x2b8] sm:$0xff]
  %v3267 = vpack.c.bf16 %v3254, %v3254
  %v3268 = vpack.c.bf16 %v3256, %v3255
  %v3269 = vpack.c.bf16 %v3258, %v3257
  %v3270 = vpack.c.bf16 %v3260, %v3259
  %v3271 = vpack.c.bf16 %v3262, %v3261
  %v3272 = vpack.c.bf16 %v3264, %v3263
  %v3273 = vpack.c.bf16 %v3266, %v3265
  %v3274 = vld [vmem:[%s2 + $0x2c0] sm:$0x1]
  %v3275 = vlaneseq
  %v3276 = vshrl.u32 %v3275, 7
  %v3277 = vsub.s32 0, %v3276
  %v3278 = vrot.slane %v3274, %v3277
  %vm3279 = vcmask 785408
  %v3281 = vsel %vm3279, %v3267, 0
  %3283 = vmatprep.subr.bf16.mxu0 0
  %3284 = vmatpush1.bf16.msra.mxu0 0
  %3285 = vmatprep.subr.bf16.mxu0 0
  %3286 = vmatpush1.bf16.msra.mxu0 0
  %3287 = vmatprep.subr.bf16.mxu0 0
  %3288 = vmatpush1.bf16.msra.mxu0 %v3273
  %3289 = vmatprep.subr.bf16.mxu0 0
  %3290 = vmatpush1.bf16.msra.mxu0 %v3272
  %3291 = vmatprep.subr.bf16.mxu0 0
  %3292 = vmatpush1.bf16.msra.mxu0 %v3271
  %3293 = vmatprep.subr.bf16.mxu0 0
  %3294 = vmatpush1.bf16.msra.mxu0 %v3270
  %3295 = vmatprep.subr.bf16.mxu0 0
  %3296 = vmatpush1.bf16.msra.mxu0 %v3269
  %3297 = vmatprep.subr.bf16.mxu0 0
  %3298 = vmatpush1.bf16.msra.mxu0 %v3268
  %3299 = vmatprep.subr.bf16.mxu0 0
  %3300 = vmatpush2.bf16.msra.mxu0 0
  %3301 = vmatprep.subr.bf16.mxu0 0
  %3302 = vmatpush2.bf16.msra.mxu0 0
  %3303 = vmatprep.subr.bf16.mxu0 0
  %3304 = vmatpush2.bf16.msra.mxu0 0
  %3305 = vmatprep.subr.bf16.mxu0 0
  %3306 = vmatpush2.bf16.msra.mxu0 0
  %3307 = vmatprep.subr.bf16.mxu0 0
  %3308 = vmatpush2.bf16.msra.mxu0 0
  %3309 = vmatprep.subr.bf16.mxu0 0
  %3310 = vmatpush2.bf16.msra.mxu0 0
  %3311 = vmatprep.subr.bf16.mxu0 0
  %3312 = vmatpush2.bf16.msra.mxu0 0
  %3313 = vmatprep.subr.bf16.mxu0 0
  %3314 = vmatpush2.bf16.msra.mxu0 0
  %3315 = vmatprep.mubr.bf16.mxu0 0
  %3316 = vmatmul.mubr.bf16.gmra.mxu0 %v3281
  %v3317 = vpop.f32.mrf.mxu0
  %v3318 = vadd.f32 %v3278, %v3317
  %v3319 = vpop.f32.mrf.mxu0
  %v3320 = vpop.f32.mrf.mxu0
  %v3321 = vpop.f32.mrf.mxu0
  %3322 = vdwg.mxu0
  %v3323 = vld [vmem:[%s2 + $0x2c8] sm:$0x1]
  %v3324 = vld [vmem:[%s2 + $0x2d0] sm:$0x1]
  %vm3325 = vcmask 254976
  %v3326 = vsel %vm3325, %v3318, 0.0
  %3327 = vadd.xlane.f32.xlu0 %v3326
  %v3328 = vpop.xlane.xlu0 %3327
  %v3329 = vmul.f32 %v3328, %v892
  %v3330 = vsub.f32 %v3318, %v3329
  %v3331 = vmul.f32 %v3330, %v3330
  %v3332 = vsel %vm3325, %v3331, 0.0
  %3333 = vadd.xlane.f32.xlu0 %v3332
  %v3334 = vpop.xlane.xlu0 %3333
  %v3335 = vmul.f32 %v3334, %v892
  %v3336 = vadd.f32 %v3335, 1e-05
  %v3337 = vrsqrt.pop %v3336
  %v3338 = vmul.f32 %v3330, %v3337
  %v3339 = vlaneseq
  %v3340 = vshrl.u32 %v3339, 7
  %v3341 = vsub.s32 0, %v3340
  %v3342 = vrot.slane %v3323, %v3341
  %v3343 = vmul.f32 %v3338, %v3342
  %v3344 = vlaneseq
  %v3345 = vshrl.u32 %v3344, 7
  %v3346 = vsub.s32 0, %v3345
  %v3347 = vrot.slane %v3324, %v3346
  %v3348 = vadd.f32 %v3343, %v3347
  %v3349 = vmax.f32 %v3348, 0.0
  %3350 = vst.msk [vmem:[%s3] sm:$0x3] %vm3325, %v3349
  // Predicated region
  $region14: #{t5_cls_forward.4} parent=0 // pred_check
    _
  $region15: #{t5_cls_forward.4} parent=0 // pred_check_branch
    %3352 = sbr.rel (0) target = $region17
  $region16: #{t5_cls_forward.4} parent=0 // pred_region
    _
  $region17: #{t5_cls_forward.4} parent=0 // pred_fallthru
    _
  // Predicated region
  $region18: #{t5_cls_forward.4} parent=0 // pred_check
    _
  $region19: #{t5_cls_forward.4} parent=0 // pred_check_branch
    %3354 = sbr.rel (0) target = $region21
  $region20: #{t5_cls_forward.4} parent=0 // pred_region
    _
  $region21: #{t5_cls_forward.4} parent=0 // pred_fallthru
    _

</llo_original>
